<compile_context>
chip_gen: v5e
topology: v5e:2x2
jax: 0.10.0
libtpu: 0.0.40
codegen_flags: <defaults>
</compile_context>

<pallas_src>
import numpy as np
import jax
import jax.numpy as jnp
from jax.experimental import pallas as pl
from jax.experimental.pallas import tpu as pltpu

IMAGE_SIZE = 32             # original module uses 200; same structure, scaled for the demo
LEAKY_SLOPE = 0.01          # F.leaky_relu default negative_slope
BN_EPS = 1e-5

B = 2                       # batch (stacked into the matmul M dimension)
CIN = 6                     # network input channels (fixed by the module)
C1 = 64                     # real channel width of conv1..conv3
CP = 128                    # channel width padded to full lane width / MXU N
H1 = IMAGE_SIZE // 4        # conv1 output spatial side (stride 4)        -> 8
H2 = IMAGE_SIZE // 8        # conv2 output spatial side (stride 2)        -> 4
NPOS = H1 * H1              # positions on the full stride-1 grid         -> 64
MROWS = B * NPOS            # batch-stacked matmul M                      -> 128
PAD = H1 + 4                # padded scratch side (2-wide zero border)    -> 12
K1 = 5 * 5 * CIN            # conv1 im2col contraction size               -> 150
K1P = ((K1 + 7) // 8) * 8   # padded to a multiple of 8                   -> 152
D = IMAGE_SIZE


# ---------------------------------------------------------------------------
# Fused Pallas kernel: conv1..conv4 (+BN folded, +LeakyReLU) + x8 bilinear
# upsample + global softmax.  Single grid step, batch stacked along M.
# ---------------------------------------------------------------------------
def _fused_forward_kernel(p1_ref, w1_ref, w2_ref, w3_ref, w4_ref, bn_ref,
                          uh_ref, uwT_ref, o_ref, pad_ref):
    f32 = jnp.float32
    bf16 = jnp.bfloat16

    def lrelu(v):
        return jnp.where(v >= 0, v, LEAKY_SLOPE * v)

    def store_interior(a_f32):
        # a_f32: (MROWS, CP).  Pad channels (64..127) stay exactly zero because
        # the padded weight columns and padded BN shifts are zero.
        pad_ref[:, 2:2 + H1, 2:2 + H1, :] = a_f32.reshape(B, H1, H1, CP)

    def window(ri, ci):
        # (B, H1, H1, CP) shifted window of the padded activation, flattened to
        # a lane-dense (MROWS, CP) bf16 slab for the im2col matmul LHS.
        sl = pad_ref[:, ri:ri + H1, ci:ci + H1, :]
        return sl.reshape(MROWS, CP).astype(bf16)

    # Zero the padded scratch exactly once: the 2-wide border is the conv zero
    # padding; the interior is fully overwritten by each layer before any read.
    pad_ref[...] = jnp.zeros_like(pad_ref)

    # ---- conv1 (stride-4 5x5, im2col built in the wrapper) + BN1 + LeakyReLU --
    a = jnp.dot(p1_ref[...], w1_ref[...], preferred_element_type=f32)    # (M, CP)
    store_interior(lrelu(a * bn_ref[0:1] + bn_ref[1:2]))

    # ---- conv2: 5x5 stride-2, evaluated stride-1 on the full H1 x H1 grid -----
    # One K=5*CP matmul per kernel row instead of 25 tiny per-tap dots.  True
    # outputs live at even positions; odd-lattice values never reach them and
    # are zero-weighted by the upsample matrices.
    acc = jnp.zeros((MROWS, CP), f32)
    for ki in range(5):
        lhs = jnp.concatenate([window(ki, kj) for kj in range(5)], axis=-1)
        acc += jnp.dot(lhs, w2_ref[ki * 5 * CP:(ki + 1) * 5 * CP, :],
                       preferred_element_type=f32)
    store_interior(lrelu(acc * bn_ref[2:3] + bn_ref[3:4]))

    # ---- conv3: 3x3 stride-1 on the H2 grid == dilation-2 3x3 on the H1 grid --
    acc = jnp.zeros((MROWS, CP), f32)
    for di in range(3):
        lhs = jnp.concatenate([window(2 * di, 2 * dj) for dj in range(3)], axis=-1)
        acc += jnp.dot(lhs, w3_ref[di * 3 * CP:(di + 1) * 3 * CP, :],
                       preferred_element_type=f32)
    store_interior(lrelu(acc * bn_ref[4:5] + bn_ref[5:6]))

    # ---- conv4 (Cout=1): VPU multiply + lane reduce.  Result is (B, H1, H1)
    # with the column axis in lanes, exactly what the upsample matmuls want.
    y4 = jnp.zeros((B, H1, H1), f32)
    for k in range(9):
        di, dj = divmod(k, 3)
        sl = pad_ref[:, 2 * di:2 * di + H1, 2 * dj:2 * dj + H1, :]   # (B,H1,H1,CP) f32
        y4 = y4 + jnp.sum(sl * w4_ref[k], axis=-1)
    y4 = lrelu(y4)

    # ---- x8 bilinear upsample (even-subsample folded into uh) + softmax -------
    for b in range(B):
        t = jnp.dot(uh_ref[...], y4[b].astype(bf16), preferred_element_type=f32)  # (D,H1)
        y = jnp.dot(t.astype(bf16), uwT_ref[...], preferred_element_type=f32)     # (D,D)
        m = jnp.max(jnp.max(y, axis=1, keepdims=True), axis=0, keepdims=True)
        e = jnp.exp(y - m)
        s = jnp.sum(jnp.sum(e, axis=1, keepdims=True), axis=0, keepdims=True)
        inv = pl.reciprocal(s, approx=True)
        inv = inv * (2.0 - s * inv)          # one Newton step -> ~f32-accurate 1/s
        o_ref[b] = e * inv


# ---------------------------------------------------------------------------
# Plain-JAX glue: conv1 im2col, weight/BN packing (channel pad to 128),
# bilinear upsample matrices.
# ---------------------------------------------------------------------------
def im2col_conv1(x_nhwc):
    """im2col for the stride-4 5x5 conv1 only: (B, NPOS, K1P)."""
    xp = jnp.pad(x_nhwc, ((0, 0), (2, 2), (2, 2), (0, 0)))
    cols = []
    for i in range(5):
        for j in range(5):
            cols.append(xp[:, i:i + 4 * H1:4, j:j + 4 * H1:4, :])
    p = jnp.concatenate(cols, axis=-1).reshape(x_nhwc.shape[0], NPOS, K1)
    return jnp.pad(p, ((0, 0), (0, 0), (0, K1P - K1)))


def bilinear_matrix(out_size, in_size):
    # PyTorch F.interpolate(mode='bilinear', align_corners=False) source-index rule.
    scale = in_size / out_size
    d = np.arange(out_size)
    src = np.maximum(scale * (d + 0.5) - 0.5, 0.0)
    i0 = np.minimum(np.floor(src).astype(np.int64), in_size - 1)
    i1 = np.minimum(i0 + 1, in_size - 1)
    lam = (src - i0).astype(np.float32)
    W = np.zeros((out_size, in_size), dtype=np.float32)
    W[d, i0] += 1.0 - lam
    W[d, i1] += lam
    return W


def upsample_matrices():
    # x8 bilinear from the H2 grid, with the even-position subsample of the full
    # H1 stride-1 grid folded in (odd columns are zero -> garbage odd-lattice
    # values from the stride-folded conv2/3/4 evaluation never contribute).
    Wh = bilinear_matrix(D, H2)                        # (D, H2)
    Wh_eff = np.zeros((D, H1), np.float32)
    Wh_eff[:, 0::2] = Wh
    return (jnp.asarray(Wh_eff, dtype=jnp.bfloat16),           # (D, H1)
            jnp.asarray(Wh_eff.T, dtype=jnp.bfloat16))         # (H1, D)


def fold_bn(gamma, beta, mean, var):
    scale = gamma / jnp.sqrt(var + BN_EPS)
    shift = beta - mean * scale
    return scale, shift


def basic_block_forward(x_nchw, params):
    bf16 = jnp.bfloat16
    x = jnp.transpose(x_nchw, (0, 2, 3, 1)).astype(jnp.float32)          # NHWC

    # conv1 patches, batch stacked along M: (B*NPOS, K1P)
    p1 = im2col_conv1(x).reshape(MROWS, K1P).astype(bf16)

    # Weights packed for the K-deep im2col matmuls; channel / N axes padded
    # 64 -> 128 with zeros (fake channels stay exactly zero through the net).
    w1m = jnp.transpose(params["w1"], (2, 3, 1, 0)).reshape(K1, C1)
    w1m = jnp.pad(w1m, ((0, K1P - K1), (0, CP - C1))).astype(bf16)        # (K1P, CP)

    w2t = jnp.transpose(params["w2"], (2, 3, 1, 0)).reshape(25, C1, C1)
    w2m = jnp.zeros((25, CP, CP), jnp.float32).at[:, :C1, :C1].set(w2t)
    w2m = w2m.reshape(25 * CP, CP).astype(bf16)                           # (3200, CP)

    w3t = jnp.transpose(params["w3"], (2, 3, 1, 0)).reshape(9, C1, C1)
    w3m = jnp.zeros((9, CP, CP), jnp.float32).at[:, :C1, :C1].set(w3t)
    w3m = w3m.reshape(9 * CP, CP).astype(bf16)                            # (1152, CP)

    w4t = jnp.transpose(params["w4"][0], (1, 2, 0)).reshape(9, C1)
    w4m = jnp.pad(w4t, ((0, 0), (0, CP - C1))).astype(jnp.float32)        # (9, CP)

    s1, b1 = fold_bn(params["g1"], params["be1"], params["m1"], params["v1"])
    s2, b2 = fold_bn(params["g2"], params["be2"], params["m2"], params["v2"])
    s3, b3 = fold_bn(params["g3"], params["be3"], params["m3"], params["v3"])
    bn = jnp.stack([s1, b1, s2, b2, s3, b3])
    bn = jnp.pad(bn, ((0, 0), (0, CP - C1))).astype(jnp.float32)          # (6, CP)

    uh, uwT = upsample_matrices()

    out = pl.pallas_call(
        _fused_forward_kernel,
        out_shape=jax.ShapeDtypeStruct((B, D, D), jnp.float32),
        grid=(1,),
        in_specs=[
            pl.BlockSpec((MROWS, K1P), lambda i: (0, 0)),        # conv1 patches
            pl.BlockSpec((K1P, CP), lambda i: (0, 0)),           # w1
            pl.BlockSpec((25 * CP, CP), lambda i: (0, 0)),       # w2 (im2col rows)
            pl.BlockSpec((9 * CP, CP), lambda i: (0, 0)),        # w3 (im2col rows)
            pl.BlockSpec((9, CP), lambda i: (0, 0)),             # w4 taps (Cout=1)
            pl.BlockSpec((6, CP), lambda i: (0, 0)),             # folded BN scale/shift
            pl.BlockSpec((D, H1), lambda i: (0, 0)),             # bilinear rows
            pl.BlockSpec((H1, D), lambda i: (0, 0)),             # bilinear cols^T
        ],
        out_specs=pl.BlockSpec((B, D, D), lambda i: (0, 0, 0)),
        scratch_shapes=[pltpu.VMEM((B, PAD, PAD, CP), jnp.float32)],
        compiler_params=pltpu.CompilerParams(
            dimension_semantics=("arbitrary",)),
    )(p1, w1m, w2m, w3m, w4m, bn, uh, uwT)

    return out[:, None, :, :]                                             # NCHW (B,1,D,D)


def init_params(key):
    ks = jax.random.split(key, 16)
    p = {
        "w1": 0.1 * jax.random.normal(ks[0], (64, 6, 5, 5), jnp.float32),
        "w2": 0.1 * jax.random.normal(ks[1], (64, 64, 5, 5), jnp.float32),
        "w3": 0.1 * jax.random.normal(ks[2], (64, 64, 3, 3), jnp.float32),
        "w4": 0.1 * jax.random.normal(ks[3], (1, 64, 3, 3), jnp.float32),
    }
    for i, k in zip((1, 2, 3), (ks[4], ks[5], ks[6])):
        kg, kb, km, kv = jax.random.split(k, 4)
        p[f"g{i}"] = 1.0 + 0.1 * jax.random.normal(kg, (64,), jnp.float32)
        p[f"be{i}"] = 0.1 * jax.random.normal(kb, (64,), jnp.float32)
        p[f"m{i}"] = 0.1 * jax.random.normal(km, (64,), jnp.float32)
        p[f"v{i}"] = 0.5 + jax.random.uniform(kv, (64,), jnp.float32)
    return p
    # TODO(synk): BatchNorm is implemented in eval mode (folded running stats);
    # training-mode batch statistics would need an extra per-channel reduction.


if __name__ == "__main__":
    key = jax.random.PRNGKey(0)
    kx, kp = jax.random.split(key)
    x = jax.random.normal(kx, (B, CIN, IMAGE_SIZE, IMAGE_SIZE), jnp.float32)
    params = init_params(kp)

    fwd = jax.jit(basic_block_forward)
    out = jax.block_until_ready(fwd(x, params))

    assert out.shape == (B, 1, IMAGE_SIZE, IMAGE_SIZE)
    # softmax over d*d pixels sums to 1 (approx reciprocal + Newton step -> ~f32 exact)
    sums = np.asarray(out).reshape(B, -1).sum(axis=1)
    assert np.allclose(sums, 1.0, atol=1e-3), sums
    print("KERNEL_OK")
</pallas_src>

<mosaic_0001>
module attributes {stable_mosaic.version = 11 : i64} {
  func.func @_fused_forward_kernel(%arg0: i32, %arg1: memref<128x152xbf16, #tpu.memory_space<vmem>>, %arg2: memref<152x128xbf16, #tpu.memory_space<vmem>>, %arg3: memref<3200x128xbf16, #tpu.memory_space<vmem>>, %arg4: memref<1152x128xbf16, #tpu.memory_space<vmem>>, %arg5: memref<9x128xf32, #tpu.memory_space<vmem>>, %arg6: memref<6x128xf32, #tpu.memory_space<vmem>>, %arg7: memref<32x8xbf16, #tpu.memory_space<vmem>>, %arg8: memref<8x32xbf16, #tpu.memory_space<vmem>>, %arg9: memref<2x32x32xf32, #tpu.memory_space<vmem>>, %arg10: memref<2x12x12x128xf32, #tpu.memory_space<vmem>>) attributes {dimension_semantics = [#tpu.dimension_semantics<arbitrary>], iteration_bounds = array<i64: 1>, scalar_prefetch = 0 : i64, scratch_operands = 1 : i64, tpu.core_type = #tpu.core_type<tc>, window_params = [{pipeline_mode = #tpu.pipeline_mode<synchronous>, transform_indices = @transform_0, window_bounds = array<i64: 128, 152>}, {pipeline_mode = #tpu.pipeline_mode<synchronous>, transform_indices = @transform_1, window_bounds = array<i64: 152, 128>}, {pipeline_mode = #tpu.pipeline_mode<synchronous>, transform_indices = @transform_2, window_bounds = array<i64: 3200, 128>}, {pipeline_mode = #tpu.pipeline_mode<synchronous>, transform_indices = @transform_3, window_bounds = array<i64: 1152, 128>}, {pipeline_mode = #tpu.pipeline_mode<synchronous>, transform_indices = @transform_4, window_bounds = array<i64: 9, 128>}, {pipeline_mode = #tpu.pipeline_mode<synchronous>, transform_indices = @transform_5, window_bounds = array<i64: 6, 128>}, {pipeline_mode = #tpu.pipeline_mode<synchronous>, transform_indices = @transform_6, window_bounds = array<i64: 32, 8>}, {pipeline_mode = #tpu.pipeline_mode<synchronous>, transform_indices = @transform_7, window_bounds = array<i64: 8, 32>}, {pipeline_mode = #tpu.pipeline_mode<synchronous>, transform_indices = @transform_8, window_bounds = array<i64: 2, 32, 32>}]} {
    %cst = arith.constant 0.000000e+00 : f32
    %0 = vector.broadcast %cst : f32 to vector<2x12x12x128xf32>
    %c0 = arith.constant 0 : index
    %c0_0 = arith.constant 0 : index
    %c0_1 = arith.constant 0 : index
    %c0_2 = arith.constant 0 : index
    %1 = vector.load %arg10[%c0, %c0_0, %c0_1, %c0_2] : memref<2x12x12x128xf32, #tpu.memory_space<vmem>>, vector<2x12x12x128xf32>
    tpu.vector_store %arg10[%c0, %c0_0, %c0_1, %c0_2], %0 {strides = array<i32>} : memref<2x12x12x128xf32, #tpu.memory_space<vmem>>, vector<2x12x12x128xf32>,
    %c0_3 = arith.constant 0 : index
    %c0_4 = arith.constant 0 : index
    %2 = vector.load %arg1[%c0_3, %c0_4] : memref<128x152xbf16, #tpu.memory_space<vmem>>, vector<128x152xbf16>
    %c0_5 = arith.constant 0 : index
    %c0_6 = arith.constant 0 : index
    %3 = vector.load %arg2[%c0_5, %c0_6] : memref<152x128xbf16, #tpu.memory_space<vmem>>, vector<152x128xbf16>
    %cst_7 = arith.constant dense<0.000000e+00> : vector<128x128xf32>
    %4 = tpu.matmul %2, %3, %cst_7 {dimension_numbers = #tpu.dot_dimension_numbers<[1], [0], [0], [1], [0, 0, 1, 1], [], []>} : vector<128x152xbf16>, vector<152x128xbf16>, vector<128x128xf32> -> vector<128x128xf32>
    %c0_8 = arith.constant 0 : index
    %c0_9 = arith.constant 0 : index
    %5 = vector.load %arg6[%c0_8, %c0_9] : memref<6x128xf32, #tpu.memory_space<vmem>>, vector<1x128xf32>
    %6 = vector.broadcast %5 : vector<1x128xf32> to vector<128x128xf32>
    %7 = arith.mulf %4, %6 : vector<128x128xf32>
    %c1 = arith.constant 1 : index
    %c0_10 = arith.constant 0 : index
    %8 = vector.load %arg6[%c1, %c0_10] : memref<6x128xf32, #tpu.memory_space<vmem>>, vector<1x128xf32>
    %9 = vector.broadcast %8 : vector<1x128xf32> to vector<128x128xf32>
    %10 = arith.addf %7, %9 : vector<128x128xf32>
    %cst_11 = arith.constant 0.000000e+00 : f32
    %11 = vector.broadcast %cst_11 : f32 to vector<128x128xf32>
    %12 = arith.cmpf oge, %10, %11 : vector<128x128xf32>
    %cst_12 = arith.constant 0.00999999977 : f32
    %13 = vector.broadcast %cst_12 : f32 to vector<128x128xf32>
    %14 = arith.mulf %13, %10 : vector<128x128xf32>
    %15 = arith.select %12, %10, %14 : vector<128x128xi1>, vector<128x128xf32>
    %16 = vector.shape_cast %15 : vector<128x128xf32> to vector<2x8x8x128xf32>
    %c0_13 = arith.constant 0 : index
    %c2 = arith.constant 2 : index
    %c2_14 = arith.constant 2 : index
    %c0_15 = arith.constant 0 : index
    %17 = vector.load %arg10[%c0_13, %c2, %c2_14, %c0_15] : memref<2x12x12x128xf32, #tpu.memory_space<vmem>>, vector<2x8x8x128xf32>
    tpu.vector_store %arg10[%c0_13, %c2, %c2_14, %c0_15], %16 {strides = array<i32>} : memref<2x12x12x128xf32, #tpu.memory_space<vmem>>, vector<2x8x8x128xf32>,
    %cst_16 = arith.constant 0.000000e+00 : f32
    %18 = vector.broadcast %cst_16 : f32 to vector<128x128xf32>
    %c0_17 = arith.constant 0 : index
    %c0_18 = arith.constant 0 : index
    %c0_19 = arith.constant 0 : index
    %c0_20 = arith.constant 0 : index
    %19 = vector.load %arg10[%c0_17, %c0_18, %c0_19, %c0_20] : memref<2x12x12x128xf32, #tpu.memory_space<vmem>>, vector<2x8x8x128xf32>
    %20 = vector.shape_cast %19 : vector<2x8x8x128xf32> to vector<128x128xf32>
    %21 = arith.truncf %20 : vector<128x128xf32> to vector<128x128xbf16>
    %c0_21 = arith.constant 0 : index
    %c0_22 = arith.constant 0 : index
    %c1_23 = arith.constant 1 : index
    %c0_24 = arith.constant 0 : index
    %22 = vector.load %arg10[%c0_21, %c0_22, %c1_23, %c0_24] : memref<2x12x12x128xf32, #tpu.memory_space<vmem>>, vector<2x8x8x128xf32>
    %23 = vector.shape_cast %22 : vector<2x8x8x128xf32> to vector<128x128xf32>
    %24 = arith.truncf %23 : vector<128x128xf32> to vector<128x128xbf16>
    %c0_25 = arith.constant 0 : index
    %c0_26 = arith.constant 0 : index
    %c2_27 = arith.constant 2 : index
    %c0_28 = arith.constant 0 : index
    %25 = vector.load %arg10[%c0_25, %c0_26, %c2_27, %c0_28] : memref<2x12x12x128xf32, #tpu.memory_space<vmem>>, vector<2x8x8x128xf32>
    %26 = vector.shape_cast %25 : vector<2x8x8x128xf32> to vector<128x128xf32>
    %27 = arith.truncf %26 : vector<128x128xf32> to vector<128x128xbf16>
    %c0_29 = arith.constant 0 : index
    %c0_30 = arith.constant 0 : index
    %c3 = arith.constant 3 : index
    %c0_31 = arith.constant 0 : index
    %28 = vector.load %arg10[%c0_29, %c0_30, %c3, %c0_31] : memref<2x12x12x128xf32, #tpu.memory_space<vmem>>, vector<2x8x8x128xf32>
    %29 = vector.shape_cast %28 : vector<2x8x8x128xf32> to vector<128x128xf32>
    %30 = arith.truncf %29 : vector<128x128xf32> to vector<128x128xbf16>
    %c0_32 = arith.constant 0 : index
    %c0_33 = arith.constant 0 : index
    %c4 = arith.constant 4 : index
    %c0_34 = arith.constant 0 : index
    %31 = vector.load %arg10[%c0_32, %c0_33, %c4, %c0_34] : memref<2x12x12x128xf32, #tpu.memory_space<vmem>>, vector<2x8x8x128xf32>
    %32 = vector.shape_cast %31 : vector<2x8x8x128xf32> to vector<128x128xf32>
    %33 = arith.truncf %32 : vector<128x128xf32> to vector<128x128xbf16>
    %34 = tpu.concatenate %21, %24, %27, %30, %33 in 1 : vector<128x128xbf16>, vector<128x128xbf16>, vector<128x128xbf16>, vector<128x128xbf16>, vector<128x128xbf16> -> vector<128x640xbf16>
    %c0_35 = arith.constant 0 : index
    %c0_36 = arith.constant 0 : index
    %35 = vector.load %arg3[%c0_35, %c0_36] : memref<3200x128xbf16, #tpu.memory_space<vmem>>, vector<640x128xbf16>
    %cst_37 = arith.constant dense<0.000000e+00> : vector<128x128xf32>
    %36 = tpu.matmul %34, %35, %cst_37 {dimension_numbers = #tpu.dot_dimension_numbers<[1], [0], [0], [1], [0, 0, 1, 1], [], []>} : vector<128x640xbf16>, vector<640x128xbf16>, vector<128x128xf32> -> vector<128x128xf32>
    %37 = arith.addf %18, %36 : vector<128x128xf32>
    %c0_38 = arith.constant 0 : index
    %c1_39 = arith.constant 1 : index
    %c0_40 = arith.constant 0 : index
    %c0_41 = arith.constant 0 : index
    %38 = vector.load %arg10[%c0_38, %c1_39, %c0_40, %c0_41] : memref<2x12x12x128xf32, #tpu.memory_space<vmem>>, vector<2x8x8x128xf32>
    %39 = vector.shape_cast %38 : vector<2x8x8x128xf32> to vector<128x128xf32>
    %40 = arith.truncf %39 : vector<128x128xf32> to vector<128x128xbf16>
    %c0_42 = arith.constant 0 : index
    %c1_43 = arith.constant 1 : index
    %c1_44 = arith.constant 1 : index
    %c0_45 = arith.constant 0 : index
    %41 = vector.load %arg10[%c0_42, %c1_43, %c1_44, %c0_45] : memref<2x12x12x128xf32, #tpu.memory_space<vmem>>, vector<2x8x8x128xf32>
    %42 = vector.shape_cast %41 : vector<2x8x8x128xf32> to vector<128x128xf32>
    %43 = arith.truncf %42 : vector<128x128xf32> to vector<128x128xbf16>
    %c0_46 = arith.constant 0 : index
    %c1_47 = arith.constant 1 : index
    %c2_48 = arith.constant 2 : index
    %c0_49 = arith.constant 0 : index
    %44 = vector.load %arg10[%c0_46, %c1_47, %c2_48, %c0_49] : memref<2x12x12x128xf32, #tpu.memory_space<vmem>>, vector<2x8x8x128xf32>
    %45 = vector.shape_cast %44 : vector<2x8x8x128xf32> to vector<128x128xf32>
    %46 = arith.truncf %45 : vector<128x128xf32> to vector<128x128xbf16>
    %c0_50 = arith.constant 0 : index
    %c1_51 = arith.constant 1 : index
    %c3_52 = arith.constant 3 : index
    %c0_53 = arith.constant 0 : index
    %47 = vector.load %arg10[%c0_50, %c1_51, %c3_52, %c0_53] : memref<2x12x12x128xf32, #tpu.memory_space<vmem>>, vector<2x8x8x128xf32>
    %48 = vector.shape_cast %47 : vector<2x8x8x128xf32> to vector<128x128xf32>
    %49 = arith.truncf %48 : vector<128x128xf32> to vector<128x128xbf16>
    %c0_54 = arith.constant 0 : index
    %c1_55 = arith.constant 1 : index
    %c4_56 = arith.constant 4 : index
    %c0_57 = arith.constant 0 : index
    %50 = vector.load %arg10[%c0_54, %c1_55, %c4_56, %c0_57] : memref<2x12x12x128xf32, #tpu.memory_space<vmem>>, vector<2x8x8x128xf32>
    %51 = vector.shape_cast %50 : vector<2x8x8x128xf32> to vector<128x128xf32>
    %52 = arith.truncf %51 : vector<128x128xf32> to vector<128x128xbf16>
    %53 = tpu.concatenate %40, %43, %46, %49, %52 in 1 : vector<128x128xbf16>, vector<128x128xbf16>, vector<128x128xbf16>, vector<128x128xbf16>, vector<128x128xbf16> -> vector<128x640xbf16>
    %c640 = arith.constant 640 : index
    %c0_58 = arith.constant 0 : index
    %54 = vector.load %arg3[%c640, %c0_58] : memref<3200x128xbf16, #tpu.memory_space<vmem>>, vector<640x128xbf16>
    %cst_59 = arith.constant dense<0.000000e+00> : vector<128x128xf32>
    %55 = tpu.matmul %53, %54, %cst_59 {dimension_numbers = #tpu.dot_dimension_numbers<[1], [0], [0], [1], [0, 0, 1, 1], [], []>} : vector<128x640xbf16>, vector<640x128xbf16>, vector<128x128xf32> -> vector<128x128xf32>
    %56 = arith.addf %37, %55 : vector<128x128xf32>
    %c0_60 = arith.constant 0 : index
    %c2_61 = arith.constant 2 : index
    %c0_62 = arith.constant 0 : index
    %c0_63 = arith.constant 0 : index
    %57 = vector.load %arg10[%c0_60, %c2_61, %c0_62, %c0_63] : memref<2x12x12x128xf32, #tpu.memory_space<vmem>>, vector<2x8x8x128xf32>
    %58 = vector.shape_cast %57 : vector<2x8x8x128xf32> to vector<128x128xf32>
    %59 = arith.truncf %58 : vector<128x128xf32> to vector<128x128xbf16>
    %c0_64 = arith.constant 0 : index
    %c2_65 = arith.constant 2 : index
    %c1_66 = arith.constant 1 : index
    %c0_67 = arith.constant 0 : index
    %60 = vector.load %arg10[%c0_64, %c2_65, %c1_66, %c0_67] : memref<2x12x12x128xf32, #tpu.memory_space<vmem>>, vector<2x8x8x128xf32>
    %61 = vector.shape_cast %60 : vector<2x8x8x128xf32> to vector<128x128xf32>
    %62 = arith.truncf %61 : vector<128x128xf32> to vector<128x128xbf16>
    %c0_68 = arith.constant 0 : index
    %c2_69 = arith.constant 2 : index
    %c2_70 = arith.constant 2 : index
    %c0_71 = arith.constant 0 : index
    %63 = vector.load %arg10[%c0_68, %c2_69, %c2_70, %c0_71] : memref<2x12x12x128xf32, #tpu.memory_space<vmem>>, vector<2x8x8x128xf32>
    %64 = vector.shape_cast %63 : vector<2x8x8x128xf32> to vector<128x128xf32>
    %65 = arith.truncf %64 : vector<128x128xf32> to vector<128x128xbf16>
    %c0_72 = arith.constant 0 : index
    %c2_73 = arith.constant 2 : index
    %c3_74 = arith.constant 3 : index
    %c0_75 = arith.constant 0 : index
    %66 = vector.load %arg10[%c0_72, %c2_73, %c3_74, %c0_75] : memref<2x12x12x128xf32, #tpu.memory_space<vmem>>, vector<2x8x8x128xf32>
    %67 = vector.shape_cast %66 : vector<2x8x8x128xf32> to vector<128x128xf32>
    %68 = arith.truncf %67 : vector<128x128xf32> to vector<128x128xbf16>
    %c0_76 = arith.constant 0 : index
    %c2_77 = arith.constant 2 : index
    %c4_78 = arith.constant 4 : index
    %c0_79 = arith.constant 0 : index
    %69 = vector.load %arg10[%c0_76, %c2_77, %c4_78, %c0_79] : memref<2x12x12x128xf32, #tpu.memory_space<vmem>>, vector<2x8x8x128xf32>
    %70 = vector.shape_cast %69 : vector<2x8x8x128xf32> to vector<128x128xf32>
    %71 = arith.truncf %70 : vector<128x128xf32> to vector<128x128xbf16>
    %72 = tpu.concatenate %59, %62, %65, %68, %71 in 1 : vector<128x128xbf16>, vector<128x128xbf16>, vector<128x128xbf16>, vector<128x128xbf16>, vector<128x128xbf16> -> vector<128x640xbf16>
    %c1280 = arith.constant 1280 : index
    %c0_80 = arith.constant 0 : index
    %73 = vector.load %arg3[%c1280, %c0_80] : memref<3200x128xbf16, #tpu.memory_space<vmem>>, vector<640x128xbf16>
    %cst_81 = arith.constant dense<0.000000e+00> : vector<128x128xf32>
    %74 = tpu.matmul %72, %73, %cst_81 {dimension_numbers = #tpu.dot_dimension_numbers<[1], [0], [0], [1], [0, 0, 1, 1], [], []>} : vector<128x640xbf16>, vector<640x128xbf16>, vector<128x128xf32> -> vector<128x128xf32>
    %75 = arith.addf %56, %74 : vector<128x128xf32>
    %c0_82 = arith.constant 0 : index
    %c3_83 = arith.constant 3 : index
    %c0_84 = arith.constant 0 : index
    %c0_85 = arith.constant 0 : index
    %76 = vector.load %arg10[%c0_82, %c3_83, %c0_84, %c0_85] : memref<2x12x12x128xf32, #tpu.memory_space<vmem>>, vector<2x8x8x128xf32>
    %77 = vector.shape_cast %76 : vector<2x8x8x128xf32> to vector<128x128xf32>
    %78 = arith.truncf %77 : vector<128x128xf32> to vector<128x128xbf16>
    %c0_86 = arith.constant 0 : index
    %c3_87 = arith.constant 3 : index
    %c1_88 = arith.constant 1 : index
    %c0_89 = arith.constant 0 : index
    %79 = vector.load %arg10[%c0_86, %c3_87, %c1_88, %c0_89] : memref<2x12x12x128xf32, #tpu.memory_space<vmem>>, vector<2x8x8x128xf32>
    %80 = vector.shape_cast %79 : vector<2x8x8x128xf32> to vector<128x128xf32>
    %81 = arith.truncf %80 : vector<128x128xf32> to vector<128x128xbf16>
    %c0_90 = arith.constant 0 : index
    %c3_91 = arith.constant 3 : index
    %c2_92 = arith.constant 2 : index
    %c0_93 = arith.constant 0 : index
    %82 = vector.load %arg10[%c0_90, %c3_91, %c2_92, %c0_93] : memref<2x12x12x128xf32, #tpu.memory_space<vmem>>, vector<2x8x8x128xf32>
    %83 = vector.shape_cast %82 : vector<2x8x8x128xf32> to vector<128x128xf32>
    %84 = arith.truncf %83 : vector<128x128xf32> to vector<128x128xbf16>
    %c0_94 = arith.constant 0 : index
    %c3_95 = arith.constant 3 : index
    %c3_96 = arith.constant 3 : index
    %c0_97 = arith.constant 0 : index
    %85 = vector.load %arg10[%c0_94, %c3_95, %c3_96, %c0_97] : memref<2x12x12x128xf32, #tpu.memory_space<vmem>>, vector<2x8x8x128xf32>
    %86 = vector.shape_cast %85 : vector<2x8x8x128xf32> to vector<128x128xf32>
    %87 = arith.truncf %86 : vector<128x128xf32> to vector<128x128xbf16>
    %c0_98 = arith.constant 0 : index
    %c3_99 = arith.constant 3 : index
    %c4_100 = arith.constant 4 : index
    %c0_101 = arith.constant 0 : index
    %88 = vector.load %arg10[%c0_98, %c3_99, %c4_100, %c0_101] : memref<2x12x12x128xf32, #tpu.memory_space<vmem>>, vector<2x8x8x128xf32>
    %89 = vector.shape_cast %88 : vector<2x8x8x128xf32> to vector<128x128xf32>
    %90 = arith.truncf %89 : vector<128x128xf32> to vector<128x128xbf16>
    %91 = tpu.concatenate %78, %81, %84, %87, %90 in 1 : vector<128x128xbf16>, vector<128x128xbf16>, vector<128x128xbf16>, vector<128x128xbf16>, vector<128x128xbf16> -> vector<128x640xbf16>
    %c1920 = arith.constant 1920 : index
    %c0_102 = arith.constant 0 : index
    %92 = vector.load %arg3[%c1920, %c0_102] : memref<3200x128xbf16, #tpu.memory_space<vmem>>, vector<640x128xbf16>
    %cst_103 = arith.constant dense<0.000000e+00> : vector<128x128xf32>
    %93 = tpu.matmul %91, %92, %cst_103 {dimension_numbers = #tpu.dot_dimension_numbers<[1], [0], [0], [1], [0, 0, 1, 1], [], []>} : vector<128x640xbf16>, vector<640x128xbf16>, vector<128x128xf32> -> vector<128x128xf32>
    %94 = arith.addf %75, %93 : vector<128x128xf32>
    %c0_104 = arith.constant 0 : index
    %c4_105 = arith.constant 4 : index
    %c0_106 = arith.constant 0 : index
    %c0_107 = arith.constant 0 : index
    %95 = vector.load %arg10[%c0_104, %c4_105, %c0_106, %c0_107] : memref<2x12x12x128xf32, #tpu.memory_space<vmem>>, vector<2x8x8x128xf32>
    %96 = vector.shape_cast %95 : vector<2x8x8x128xf32> to vector<128x128xf32>
    %97 = arith.truncf %96 : vector<128x128xf32> to vector<128x128xbf16>
    %c0_108 = arith.constant 0 : index
    %c4_109 = arith.constant 4 : index
    %c1_110 = arith.constant 1 : index
    %c0_111 = arith.constant 0 : index
    %98 = vector.load %arg10[%c0_108, %c4_109, %c1_110, %c0_111] : memref<2x12x12x128xf32, #tpu.memory_space<vmem>>, vector<2x8x8x128xf32>
    %99 = vector.shape_cast %98 : vector<2x8x8x128xf32> to vector<128x128xf32>
    %100 = arith.truncf %99 : vector<128x128xf32> to vector<128x128xbf16>
    %c0_112 = arith.constant 0 : index
    %c4_113 = arith.constant 4 : index
    %c2_114 = arith.constant 2 : index
    %c0_115 = arith.constant 0 : index
    %101 = vector.load %arg10[%c0_112, %c4_113, %c2_114, %c0_115] : memref<2x12x12x128xf32, #tpu.memory_space<vmem>>, vector<2x8x8x128xf32>
    %102 = vector.shape_cast %101 : vector<2x8x8x128xf32> to vector<128x128xf32>
    %103 = arith.truncf %102 : vector<128x128xf32> to vector<128x128xbf16>
    %c0_116 = arith.constant 0 : index
    %c4_117 = arith.constant 4 : index
    %c3_118 = arith.constant 3 : index
    %c0_119 = arith.constant 0 : index
    %104 = vector.load %arg10[%c0_116, %c4_117, %c3_118, %c0_119] : memref<2x12x12x128xf32, #tpu.memory_space<vmem>>, vector<2x8x8x128xf32>
    %105 = vector.shape_cast %104 : vector<2x8x8x128xf32> to vector<128x128xf32>
    %106 = arith.truncf %105 : vector<128x128xf32> to vector<128x128xbf16>
    %c0_120 = arith.constant 0 : index
    %c4_121 = arith.constant 4 : index
    %c4_122 = arith.constant 4 : index
    %c0_123 = arith.constant 0 : index
    %107 = vector.load %arg10[%c0_120, %c4_121, %c4_122, %c0_123] : memref<2x12x12x128xf32, #tpu.memory_space<vmem>>, vector<2x8x8x128xf32>
    %108 = vector.shape_cast %107 : vector<2x8x8x128xf32> to vector<128x128xf32>
    %109 = arith.truncf %108 : vector<128x128xf32> to vector<128x128xbf16>
    %110 = tpu.concatenate %97, %100, %103, %106, %109 in 1 : vector<128x128xbf16>, vector<128x128xbf16>, vector<128x128xbf16>, vector<128x128xbf16>, vector<128x128xbf16> -> vector<128x640xbf16>
    %c2560 = arith.constant 2560 : index
    %c0_124 = arith.constant 0 : index
    %111 = vector.load %arg3[%c2560, %c0_124] : memref<3200x128xbf16, #tpu.memory_space<vmem>>, vector<640x128xbf16>
    %cst_125 = arith.constant dense<0.000000e+00> : vector<128x128xf32>
    %112 = tpu.matmul %110, %111, %cst_125 {dimension_numbers = #tpu.dot_dimension_numbers<[1], [0], [0], [1], [0, 0, 1, 1], [], []>} : vector<128x640xbf16>, vector<640x128xbf16>, vector<128x128xf32> -> vector<128x128xf32>
    %113 = arith.addf %94, %112 : vector<128x128xf32>
    %c2_126 = arith.constant 2 : index
    %c0_127 = arith.constant 0 : index
    %114 = vector.load %arg6[%c2_126, %c0_127] : memref<6x128xf32, #tpu.memory_space<vmem>>, vector<1x128xf32>
    %115 = vector.broadcast %114 : vector<1x128xf32> to vector<128x128xf32>
    %116 = arith.mulf %113, %115 : vector<128x128xf32>
    %c3_128 = arith.constant 3 : index
    %c0_129 = arith.constant 0 : index
    %117 = vector.load %arg6[%c3_128, %c0_129] : memref<6x128xf32, #tpu.memory_space<vmem>>, vector<1x128xf32>
    %118 = vector.broadcast %117 : vector<1x128xf32> to vector<128x128xf32>
    %119 = arith.addf %116, %118 : vector<128x128xf32>
    %cst_130 = arith.constant 0.000000e+00 : f32
    %120 = vector.broadcast %cst_130 : f32 to vector<128x128xf32>
    %121 = arith.cmpf oge, %119, %120 : vector<128x128xf32>
    %cst_131 = arith.constant 0.00999999977 : f32
    %122 = vector.broadcast %cst_131 : f32 to vector<128x128xf32>
    %123 = arith.mulf %122, %119 : vector<128x128xf32>
    %124 = arith.select %121, %119, %123 : vector<128x128xi1>, vector<128x128xf32>
    %125 = vector.shape_cast %124 : vector<128x128xf32> to vector<2x8x8x128xf32>
    %c0_132 = arith.constant 0 : index
    %c2_133 = arith.constant 2 : index
    %c2_134 = arith.constant 2 : index
    %c0_135 = arith.constant 0 : index
    %126 = vector.load %arg10[%c0_132, %c2_133, %c2_134, %c0_135] : memref<2x12x12x128xf32, #tpu.memory_space<vmem>>, vector<2x8x8x128xf32>
    tpu.vector_store %arg10[%c0_132, %c2_133, %c2_134, %c0_135], %125 {strides = array<i32>} : memref<2x12x12x128xf32, #tpu.memory_space<vmem>>, vector<2x8x8x128xf32>,
    %cst_136 = arith.constant 0.000000e+00 : f32
    %127 = vector.broadcast %cst_136 : f32 to vector<128x128xf32>
    %c0_137 = arith.constant 0 : index
    %c0_138 = arith.constant 0 : index
    %c0_139 = arith.constant 0 : index
    %c0_140 = arith.constant 0 : index
    %128 = vector.load %arg10[%c0_137, %c0_138, %c0_139, %c0_140] : memref<2x12x12x128xf32, #tpu.memory_space<vmem>>, vector<2x8x8x128xf32>
    %129 = vector.shape_cast %128 : vector<2x8x8x128xf32> to vector<128x128xf32>
    %130 = arith.truncf %129 : vector<128x128xf32> to vector<128x128xbf16>
    %c0_141 = arith.constant 0 : index
    %c0_142 = arith.constant 0 : index
    %c2_143 = arith.constant 2 : index
    %c0_144 = arith.constant 0 : index
    %131 = vector.load %arg10[%c0_141, %c0_142, %c2_143, %c0_144] : memref<2x12x12x128xf32, #tpu.memory_space<vmem>>, vector<2x8x8x128xf32>
    %132 = vector.shape_cast %131 : vector<2x8x8x128xf32> to vector<128x128xf32>
    %133 = arith.truncf %132 : vector<128x128xf32> to vector<128x128xbf16>
    %c0_145 = arith.constant 0 : index
    %c0_146 = arith.constant 0 : index
    %c4_147 = arith.constant 4 : index
    %c0_148 = arith.constant 0 : index
    %134 = vector.load %arg10[%c0_145, %c0_146, %c4_147, %c0_148] : memref<2x12x12x128xf32, #tpu.memory_space<vmem>>, vector<2x8x8x128xf32>
    %135 = vector.shape_cast %134 : vector<2x8x8x128xf32> to vector<128x128xf32>
    %136 = arith.truncf %135 : vector<128x128xf32> to vector<128x128xbf16>
    %137 = tpu.concatenate %130, %133, %136 in 1 : vector<128x128xbf16>, vector<128x128xbf16>, vector<128x128xbf16> -> vector<128x384xbf16>
    %c0_149 = arith.constant 0 : index
    %c0_150 = arith.constant 0 : index
    %138 = vector.load %arg4[%c0_149, %c0_150] : memref<1152x128xbf16, #tpu.memory_space<vmem>>, vector<384x128xbf16>
    %cst_151 = arith.constant dense<0.000000e+00> : vector<128x128xf32>
    %139 = tpu.matmul %137, %138, %cst_151 {dimension_numbers = #tpu.dot_dimension_numbers<[1], [0], [0], [1], [0, 0, 1, 1], [], []>} : vector<128x384xbf16>, vector<384x128xbf16>, vector<128x128xf32> -> vector<128x128xf32>
    %140 = arith.addf %127, %139 : vector<128x128xf32>
    %c0_152 = arith.constant 0 : index
    %c2_153 = arith.constant 2 : index
    %c0_154 = arith.constant 0 : index
    %c0_155 = arith.constant 0 : index
    %141 = vector.load %arg10[%c0_152, %c2_153, %c0_154, %c0_155] : memref<2x12x12x128xf32, #tpu.memory_space<vmem>>, vector<2x8x8x128xf32>
    %142 = vector.shape_cast %141 : vector<2x8x8x128xf32> to vector<128x128xf32>
    %143 = arith.truncf %142 : vector<128x128xf32> to vector<128x128xbf16>
    %c0_156 = arith.constant 0 : index
    %c2_157 = arith.constant 2 : index
    %c2_158 = arith.constant 2 : index
    %c0_159 = arith.constant 0 : index
    %144 = vector.load %arg10[%c0_156, %c2_157, %c2_158, %c0_159] : memref<2x12x12x128xf32, #tpu.memory_space<vmem>>, vector<2x8x8x128xf32>
    %145 = vector.shape_cast %144 : vector<2x8x8x128xf32> to vector<128x128xf32>
    %146 = arith.truncf %145 : vector<128x128xf32> to vector<128x128xbf16>
    %c0_160 = arith.constant 0 : index
    %c2_161 = arith.constant 2 : index
    %c4_162 = arith.constant 4 : index
    %c0_163 = arith.constant 0 : index
    %147 = vector.load %arg10[%c0_160, %c2_161, %c4_162, %c0_163] : memref<2x12x12x128xf32, #tpu.memory_space<vmem>>, vector<2x8x8x128xf32>
    %148 = vector.shape_cast %147 : vector<2x8x8x128xf32> to vector<128x128xf32>
    %149 = arith.truncf %148 : vector<128x128xf32> to vector<128x128xbf16>
    %150 = tpu.concatenate %143, %146, %149 in 1 : vector<128x128xbf16>, vector<128x128xbf16>, vector<128x128xbf16> -> vector<128x384xbf16>
    %c384 = arith.constant 384 : index
    %c0_164 = arith.constant 0 : index
    %151 = vector.load %arg4[%c384, %c0_164] : memref<1152x128xbf16, #tpu.memory_space<vmem>>, vector<384x128xbf16>
    %cst_165 = arith.constant dense<0.000000e+00> : vector<128x128xf32>
    %152 = tpu.matmul %150, %151, %cst_165 {dimension_numbers = #tpu.dot_dimension_numbers<[1], [0], [0], [1], [0, 0, 1, 1], [], []>} : vector<128x384xbf16>, vector<384x128xbf16>, vector<128x128xf32> -> vector<128x128xf32>
    %153 = arith.addf %140, %152 : vector<128x128xf32>
    %c0_166 = arith.constant 0 : index
    %c4_167 = arith.constant 4 : index
    %c0_168 = arith.constant 0 : index
    %c0_169 = arith.constant 0 : index
    %154 = vector.load %arg10[%c0_166, %c4_167, %c0_168, %c0_169] : memref<2x12x12x128xf32, #tpu.memory_space<vmem>>, vector<2x8x8x128xf32>
    %155 = vector.shape_cast %154 : vector<2x8x8x128xf32> to vector<128x128xf32>
    %156 = arith.truncf %155 : vector<128x128xf32> to vector<128x128xbf16>
    %c0_170 = arith.constant 0 : index
    %c4_171 = arith.constant 4 : index
    %c2_172 = arith.constant 2 : index
    %c0_173 = arith.constant 0 : index
    %157 = vector.load %arg10[%c0_170, %c4_171, %c2_172, %c0_173] : memref<2x12x12x128xf32, #tpu.memory_space<vmem>>, vector<2x8x8x128xf32>
    %158 = vector.shape_cast %157 : vector<2x8x8x128xf32> to vector<128x128xf32>
    %159 = arith.truncf %158 : vector<128x128xf32> to vector<128x128xbf16>
    %c0_174 = arith.constant 0 : index
    %c4_175 = arith.constant 4 : index
    %c4_176 = arith.constant 4 : index
    %c0_177 = arith.constant 0 : index
    %160 = vector.load %arg10[%c0_174, %c4_175, %c4_176, %c0_177] : memref<2x12x12x128xf32, #tpu.memory_space<vmem>>, vector<2x8x8x128xf32>
    %161 = vector.shape_cast %160 : vector<2x8x8x128xf32> to vector<128x128xf32>
    %162 = arith.truncf %161 : vector<128x128xf32> to vector<128x128xbf16>
    %163 = tpu.concatenate %156, %159, %162 in 1 : vector<128x128xbf16>, vector<128x128xbf16>, vector<128x128xbf16> -> vector<128x384xbf16>
    %c768 = arith.constant 768 : index
    %c0_178 = arith.constant 0 : index
    %164 = vector.load %arg4[%c768, %c0_178] : memref<1152x128xbf16, #tpu.memory_space<vmem>>, vector<384x128xbf16>
    %cst_179 = arith.constant dense<0.000000e+00> : vector<128x128xf32>
    %165 = tpu.matmul %163, %164, %cst_179 {dimension_numbers = #tpu.dot_dimension_numbers<[1], [0], [0], [1], [0, 0, 1, 1], [], []>} : vector<128x384xbf16>, vector<384x128xbf16>, vector<128x128xf32> -> vector<128x128xf32>
    %166 = arith.addf %153, %165 : vector<128x128xf32>
    %c4_180 = arith.constant 4 : index
    %c0_181 = arith.constant 0 : index
    %167 = vector.load %arg6[%c4_180, %c0_181] : memref<6x128xf32, #tpu.memory_space<vmem>>, vector<1x128xf32>
    %168 = vector.broadcast %167 : vector<1x128xf32> to vector<128x128xf32>
    %169 = arith.mulf %166, %168 : vector<128x128xf32>
    %c5 = arith.constant 5 : index
    %c0_182 = arith.constant 0 : index
    %170 = vector.load %arg6[%c5, %c0_182] : memref<6x128xf32, #tpu.memory_space<vmem>>, vector<1x128xf32>
    %171 = vector.broadcast %170 : vector<1x128xf32> to vector<128x128xf32>
    %172 = arith.addf %169, %171 : vector<128x128xf32>
    %cst_183 = arith.constant 0.000000e+00 : f32
    %173 = vector.broadcast %cst_183 : f32 to vector<128x128xf32>
    %174 = arith.cmpf oge, %172, %173 : vector<128x128xf32>
    %cst_184 = arith.constant 0.00999999977 : f32
    %175 = vector.broadcast %cst_184 : f32 to vector<128x128xf32>
    %176 = arith.mulf %175, %172 : vector<128x128xf32>
    %177 = arith.select %174, %172, %176 : vector<128x128xi1>, vector<128x128xf32>
    %178 = vector.shape_cast %177 : vector<128x128xf32> to vector<2x8x8x128xf32>
    %c0_185 = arith.constant 0 : index
    %c2_186 = arith.constant 2 : index
    %c2_187 = arith.constant 2 : index
    %c0_188 = arith.constant 0 : index
    %179 = vector.load %arg10[%c0_185, %c2_186, %c2_187, %c0_188] : memref<2x12x12x128xf32, #tpu.memory_space<vmem>>, vector<2x8x8x128xf32>
    tpu.vector_store %arg10[%c0_185, %c2_186, %c2_187, %c0_188], %178 {strides = array<i32>} : memref<2x12x12x128xf32, #tpu.memory_space<vmem>>, vector<2x8x8x128xf32>,
    %cst_189 = arith.constant 0.000000e+00 : f32
    %180 = vector.broadcast %cst_189 : f32 to vector<2x8x8xf32>
    %c0_190 = arith.constant 0 : index
    %c0_191 = arith.constant 0 : index
    %c0_192 = arith.constant 0 : index
    %c0_193 = arith.constant 0 : index
    %181 = vector.load %arg10[%c0_190, %c0_191, %c0_192, %c0_193] : memref<2x12x12x128xf32, #tpu.memory_space<vmem>>, vector<2x8x8x128xf32>
    %c0_194 = arith.constant 0 : index
    %c0_195 = arith.constant 0 : index
    %182 = vector.load %arg5[%c0_194, %c0_195] : memref<9x128xf32, #tpu.memory_space<vmem>>, vector<1x128xf32>
    %183 = vector.shape_cast %182 : vector<1x128xf32> to vector<128xf32>
    %184 = vector.shape_cast %183 : vector<128xf32> to vector<1x1x1x128xf32>
    %185 = vector.broadcast %184 : vector<1x1x1x128xf32> to vector<2x8x8x128xf32>
    %186 = arith.mulf %181, %185 : vector<2x8x8x128xf32>
    %cst_196 = arith.constant dense<0.000000e+00> : vector<2x8x8xf32>
    %187 = vector.multi_reduction <add>, %186, %cst_196 [3] : vector<2x8x8x128xf32> to vector<2x8x8xf32>
    %188 = arith.addf %180, %187 : vector<2x8x8xf32>
    %c0_197 = arith.constant 0 : index
    %c0_198 = arith.constant 0 : index
    %c2_199 = arith.constant 2 : index
    %c0_200 = arith.constant 0 : index
    %189 = vector.load %arg10[%c0_197, %c0_198, %c2_199, %c0_200] : memref<2x12x12x128xf32, #tpu.memory_space<vmem>>, vector<2x8x8x128xf32>
    %c1_201 = arith.constant 1 : index
    %c0_202 = arith.constant 0 : index
    %190 = vector.load %arg5[%c1_201, %c0_202] : memref<9x128xf32, #tpu.memory_space<vmem>>, vector<1x128xf32>
    %191 = vector.shape_cast %190 : vector<1x128xf32> to vector<128xf32>
    %192 = vector.shape_cast %191 : vector<128xf32> to vector<1x1x1x128xf32>
    %193 = vector.broadcast %192 : vector<1x1x1x128xf32> to vector<2x8x8x128xf32>
    %194 = arith.mulf %189, %193 : vector<2x8x8x128xf32>
    %cst_203 = arith.constant dense<0.000000e+00> : vector<2x8x8xf32>
    %195 = vector.multi_reduction <add>, %194, %cst_203 [3] : vector<2x8x8x128xf32> to vector<2x8x8xf32>
    %196 = arith.addf %188, %195 : vector<2x8x8xf32>
    %c0_204 = arith.constant 0 : index
    %c0_205 = arith.constant 0 : index
    %c4_206 = arith.constant 4 : index
    %c0_207 = arith.constant 0 : index
    %197 = vector.load %arg10[%c0_204, %c0_205, %c4_206, %c0_207] : memref<2x12x12x128xf32, #tpu.memory_space<vmem>>, vector<2x8x8x128xf32>
    %c2_208 = arith.constant 2 : index
    %c0_209 = arith.constant 0 : index
    %198 = vector.load %arg5[%c2_208, %c0_209] : memref<9x128xf32, #tpu.memory_space<vmem>>, vector<1x128xf32>
    %199 = vector.shape_cast %198 : vector<1x128xf32> to vector<128xf32>
    %200 = vector.shape_cast %199 : vector<128xf32> to vector<1x1x1x128xf32>
    %201 = vector.broadcast %200 : vector<1x1x1x128xf32> to vector<2x8x8x128xf32>
    %202 = arith.mulf %197, %201 : vector<2x8x8x128xf32>
    %cst_210 = arith.constant dense<0.000000e+00> : vector<2x8x8xf32>
    %203 = vector.multi_reduction <add>, %202, %cst_210 [3] : vector<2x8x8x128xf32> to vector<2x8x8xf32>
    %204 = arith.addf %196, %203 : vector<2x8x8xf32>
    %c0_211 = arith.constant 0 : index
    %c2_212 = arith.constant 2 : index
    %c0_213 = arith.constant 0 : index
    %c0_214 = arith.constant 0 : index
    %205 = vector.load %arg10[%c0_211, %c2_212, %c0_213, %c0_214] : memref<2x12x12x128xf32, #tpu.memory_space<vmem>>, vector<2x8x8x128xf32>
    %c3_215 = arith.constant 3 : index
    %c0_216 = arith.constant 0 : index
    %206 = vector.load %arg5[%c3_215, %c0_216] : memref<9x128xf32, #tpu.memory_space<vmem>>, vector<1x128xf32>
    %207 = vector.shape_cast %206 : vector<1x128xf32> to vector<128xf32>
    %208 = vector.shape_cast %207 : vector<128xf32> to vector<1x1x1x128xf32>
    %209 = vector.broadcast %208 : vector<1x1x1x128xf32> to vector<2x8x8x128xf32>
    %210 = arith.mulf %205, %209 : vector<2x8x8x128xf32>
    %cst_217 = arith.constant dense<0.000000e+00> : vector<2x8x8xf32>
    %211 = vector.multi_reduction <add>, %210, %cst_217 [3] : vector<2x8x8x128xf32> to vector<2x8x8xf32>
    %212 = arith.addf %204, %211 : vector<2x8x8xf32>
    %c0_218 = arith.constant 0 : index
    %c2_219 = arith.constant 2 : index
    %c2_220 = arith.constant 2 : index
    %c0_221 = arith.constant 0 : index
    %213 = vector.load %arg10[%c0_218, %c2_219, %c2_220, %c0_221] : memref<2x12x12x128xf32, #tpu.memory_space<vmem>>, vector<2x8x8x128xf32>
    %c4_222 = arith.constant 4 : index
    %c0_223 = arith.constant 0 : index
    %214 = vector.load %arg5[%c4_222, %c0_223] : memref<9x128xf32, #tpu.memory_space<vmem>>, vector<1x128xf32>
    %215 = vector.shape_cast %214 : vector<1x128xf32> to vector<128xf32>
    %216 = vector.shape_cast %215 : vector<128xf32> to vector<1x1x1x128xf32>
    %217 = vector.broadcast %216 : vector<1x1x1x128xf32> to vector<2x8x8x128xf32>
    %218 = arith.mulf %213, %217 : vector<2x8x8x128xf32>
    %cst_224 = arith.constant dense<0.000000e+00> : vector<2x8x8xf32>
    %219 = vector.multi_reduction <add>, %218, %cst_224 [3] : vector<2x8x8x128xf32> to vector<2x8x8xf32>
    %220 = arith.addf %212, %219 : vector<2x8x8xf32>
    %c0_225 = arith.constant 0 : index
    %c2_226 = arith.constant 2 : index
    %c4_227 = arith.constant 4 : index
    %c0_228 = arith.constant 0 : index
    %221 = vector.load %arg10[%c0_225, %c2_226, %c4_227, %c0_228] : memref<2x12x12x128xf32, #tpu.memory_space<vmem>>, vector<2x8x8x128xf32>
    %c5_229 = arith.constant 5 : index
    %c0_230 = arith.constant 0 : index
    %222 = vector.load %arg5[%c5_229, %c0_230] : memref<9x128xf32, #tpu.memory_space<vmem>>, vector<1x128xf32>
    %223 = vector.shape_cast %222 : vector<1x128xf32> to vector<128xf32>
    %224 = vector.shape_cast %223 : vector<128xf32> to vector<1x1x1x128xf32>
    %225 = vector.broadcast %224 : vector<1x1x1x128xf32> to vector<2x8x8x128xf32>
    %226 = arith.mulf %221, %225 : vector<2x8x8x128xf32>
    %cst_231 = arith.constant dense<0.000000e+00> : vector<2x8x8xf32>
    %227 = vector.multi_reduction <add>, %226, %cst_231 [3] : vector<2x8x8x128xf32> to vector<2x8x8xf32>
    %228 = arith.addf %220, %227 : vector<2x8x8xf32>
    %c0_232 = arith.constant 0 : index
    %c4_233 = arith.constant 4 : index
    %c0_234 = arith.constant 0 : index
    %c0_235 = arith.constant 0 : index
    %229 = vector.load %arg10[%c0_232, %c4_233, %c0_234, %c0_235] : memref<2x12x12x128xf32, #tpu.memory_space<vmem>>, vector<2x8x8x128xf32>
    %c6 = arith.constant 6 : index
    %c0_236 = arith.constant 0 : index
    %230 = vector.load %arg5[%c6, %c0_236] : memref<9x128xf32, #tpu.memory_space<vmem>>, vector<1x128xf32>
    %231 = vector.shape_cast %230 : vector<1x128xf32> to vector<128xf32>
    %232 = vector.shape_cast %231 : vector<128xf32> to vector<1x1x1x128xf32>
    %233 = vector.broadcast %232 : vector<1x1x1x128xf32> to vector<2x8x8x128xf32>
    %234 = arith.mulf %229, %233 : vector<2x8x8x128xf32>
    %cst_237 = arith.constant dense<0.000000e+00> : vector<2x8x8xf32>
    %235 = vector.multi_reduction <add>, %234, %cst_237 [3] : vector<2x8x8x128xf32> to vector<2x8x8xf32>
    %236 = arith.addf %228, %235 : vector<2x8x8xf32>
    %c0_238 = arith.constant 0 : index
    %c4_239 = arith.constant 4 : index
    %c2_240 = arith.constant 2 : index
    %c0_241 = arith.constant 0 : index
    %237 = vector.load %arg10[%c0_238, %c4_239, %c2_240, %c0_241] : memref<2x12x12x128xf32, #tpu.memory_space<vmem>>, vector<2x8x8x128xf32>
    %c7 = arith.constant 7 : index
    %c0_242 = arith.constant 0 : index
    %238 = vector.load %arg5[%c7, %c0_242] : memref<9x128xf32, #tpu.memory_space<vmem>>, vector<1x128xf32>
    %239 = vector.shape_cast %238 : vector<1x128xf32> to vector<128xf32>
    %240 = vector.shape_cast %239 : vector<128xf32> to vector<1x1x1x128xf32>
    %241 = vector.broadcast %240 : vector<1x1x1x128xf32> to vector<2x8x8x128xf32>
    %242 = arith.mulf %237, %241 : vector<2x8x8x128xf32>
    %cst_243 = arith.constant dense<0.000000e+00> : vector<2x8x8xf32>
    %243 = vector.multi_reduction <add>, %242, %cst_243 [3] : vector<2x8x8x128xf32> to vector<2x8x8xf32>
    %244 = arith.addf %236, %243 : vector<2x8x8xf32>
    %c0_244 = arith.constant 0 : index
    %c4_245 = arith.constant 4 : index
    %c4_246 = arith.constant 4 : index
    %c0_247 = arith.constant 0 : index
    %245 = vector.load %arg10[%c0_244, %c4_245, %c4_246, %c0_247] : memref<2x12x12x128xf32, #tpu.memory_space<vmem>>, vector<2x8x8x128xf32>
    %c8 = arith.constant 8 : index
    %c0_248 = arith.constant 0 : index
    %246 = vector.load %arg5[%c8, %c0_248] : memref<9x128xf32, #tpu.memory_space<vmem>>, vector<1x128xf32>
    %247 = vector.shape_cast %246 : vector<1x128xf32> to vector<128xf32>
    %248 = vector.shape_cast %247 : vector<128xf32> to vector<1x1x1x128xf32>
    %249 = vector.broadcast %248 : vector<1x1x1x128xf32> to vector<2x8x8x128xf32>
    %250 = arith.mulf %245, %249 : vector<2x8x8x128xf32>
    %cst_249 = arith.constant dense<0.000000e+00> : vector<2x8x8xf32>
    %251 = vector.multi_reduction <add>, %250, %cst_249 [3] : vector<2x8x8x128xf32> to vector<2x8x8xf32>
    %252 = arith.addf %244, %251 : vector<2x8x8xf32>
    %cst_250 = arith.constant 0.000000e+00 : f32
    %253 = vector.broadcast %cst_250 : f32 to vector<2x8x8xf32>
    %254 = arith.cmpf oge, %252, %253 : vector<2x8x8xf32>
    %cst_251 = arith.constant 0.00999999977 : f32
    %255 = vector.broadcast %cst_251 : f32 to vector<2x8x8xf32>
    %256 = arith.mulf %255, %252 : vector<2x8x8xf32>
    %257 = arith.select %254, %252, %256 : vector<2x8x8xi1>, vector<2x8x8xf32>
    %c0_252 = arith.constant 0 : index
    %c0_253 = arith.constant 0 : index
    %258 = vector.load %arg7[%c0_252, %c0_253] : memref<32x8xbf16, #tpu.memory_space<vmem>>, vector<32x8xbf16>
    %259 = vector.extract_strided_slice %257 {offsets = [0, 0, 0], sizes = [1, 8, 8], strides = [1, 1, 1]} : vector<2x8x8xf32> to vector<1x8x8xf32>
    %260 = vector.shape_cast %259 : vector<1x8x8xf32> to vector<8x8xf32>
    %261 = arith.truncf %260 : vector<8x8xf32> to vector<8x8xbf16>
    %cst_254 = arith.constant dense<0.000000e+00> : vector<32x8xf32>
    %262 = tpu.matmul %258, %261, %cst_254 {dimension_numbers = #tpu.dot_dimension_numbers<[1], [0], [0], [1], [0, 0, 1, 1], [], []>} : vector<32x8xbf16>, vector<8x8xbf16>, vector<32x8xf32> -> vector<32x8xf32>
    %263 = arith.truncf %262 : vector<32x8xf32> to vector<32x8xbf16>
    %c0_255 = arith.constant 0 : index
    %c0_256 = arith.constant 0 : index
    %264 = vector.load %arg8[%c0_255, %c0_256] : memref<8x32xbf16, #tpu.memory_space<vmem>>, vector<8x32xbf16>
    %cst_257 = arith.constant dense<0.000000e+00> : vector<32x32xf32>
    %265 = tpu.matmul %263, %264, %cst_257 {dimension_numbers = #tpu.dot_dimension_numbers<[1], [0], [0], [1], [0, 0, 1, 1], [], []>} : vector<32x8xbf16>, vector<8x32xbf16>, vector<32x32xf32> -> vector<32x32xf32>
    %cst_258 = arith.constant dense<0xFF800000> : vector<32xf32>
    %266 = vector.multi_reduction <maximumf>, %265, %cst_258 [1] : vector<32x32xf32> to vector<32xf32>
    %267 = vector.shape_cast %266 : vector<32xf32> to vector<32x1xf32>
    %cst_259 = arith.constant dense<0xFF800000> : vector<1xf32>
    %268 = vector.multi_reduction <maximumf>, %267, %cst_259 [0] : vector<32x1xf32> to vector<1xf32>
    %269 = vector.shape_cast %268 : vector<1xf32> to vector<1x1xf32>
    %270 = vector.broadcast %269 : vector<1x1xf32> to vector<32x32xf32>
    %271 = arith.subf %265, %270 : vector<32x32xf32>
    %272 = math.exp %271 : vector<32x32xf32>
    %cst_260 = arith.constant dense<0.000000e+00> : vector<32xf32>
    %273 = vector.multi_reduction <add>, %272, %cst_260 [1] : vector<32x32xf32> to vector<32xf32>
    %274 = vector.shape_cast %273 : vector<32xf32> to vector<32x1xf32>
    %cst_261 = arith.constant dense<0.000000e+00> : vector<1xf32>
    %275 = vector.multi_reduction <add>, %274, %cst_261 [0] : vector<32x1xf32> to vector<1xf32>
    %276 = vector.shape_cast %275 : vector<1xf32> to vector<1x1xf32>
    %277 = tpu.reciprocal %276 {approx = true} : vector<1x1xf32> -> vector<1x1xf32>
    %278 = arith.mulf %276, %277 : vector<1x1xf32>
    %cst_262 = arith.constant 2.000000e+00 : f32
    %279 = vector.broadcast %cst_262 : f32 to vector<1x1xf32>
    %280 = arith.subf %279, %278 : vector<1x1xf32>
    %281 = arith.mulf %277, %280 : vector<1x1xf32>
    %282 = vector.broadcast %281 : vector<1x1xf32> to vector<32x32xf32>
    %283 = arith.mulf %272, %282 : vector<32x32xf32>
    %c0_263 = arith.constant 0 : index
    %c0_264 = arith.constant 0 : index
    %c0_265 = arith.constant 0 : index
    %284 = vector.load %arg9[%c0_263, %c0_264, %c0_265] : memref<2x32x32xf32, #tpu.memory_space<vmem>>, vector<1x32x32xf32>
    %285 = vector.shape_cast %284 : vector<1x32x32xf32> to vector<32x32xf32>
    %286 = vector.shape_cast %283 : vector<32x32xf32> to vector<1x32x32xf32>
    tpu.vector_store %arg9[%c0_263, %c0_264, %c0_265], %286 {strides = array<i32>} : memref<2x32x32xf32, #tpu.memory_space<vmem>>, vector<1x32x32xf32>,
    %c0_266 = arith.constant 0 : index
    %c0_267 = arith.constant 0 : index
    %287 = vector.load %arg7[%c0_266, %c0_267] : memref<32x8xbf16, #tpu.memory_space<vmem>>, vector<32x8xbf16>
    %288 = vector.extract_strided_slice %257 {offsets = [1, 0, 0], sizes = [1, 8, 8], strides = [1, 1, 1]} : vector<2x8x8xf32> to vector<1x8x8xf32>
    %289 = vector.shape_cast %288 : vector<1x8x8xf32> to vector<8x8xf32>
    %290 = arith.truncf %289 : vector<8x8xf32> to vector<8x8xbf16>
    %cst_268 = arith.constant dense<0.000000e+00> : vector<32x8xf32>
    %291 = tpu.matmul %287, %290, %cst_268 {dimension_numbers = #tpu.dot_dimension_numbers<[1], [0], [0], [1], [0, 0, 1, 1], [], []>} : vector<32x8xbf16>, vector<8x8xbf16>, vector<32x8xf32> -> vector<32x8xf32>
    %292 = arith.truncf %291 : vector<32x8xf32> to vector<32x8xbf16>
    %c0_269 = arith.constant 0 : index
    %c0_270 = arith.constant 0 : index
    %293 = vector.load %arg8[%c0_269, %c0_270] : memref<8x32xbf16, #tpu.memory_space<vmem>>, vector<8x32xbf16>
    %cst_271 = arith.constant dense<0.000000e+00> : vector<32x32xf32>
    %294 = tpu.matmul %292, %293, %cst_271 {dimension_numbers = #tpu.dot_dimension_numbers<[1], [0], [0], [1], [0, 0, 1, 1], [], []>} : vector<32x8xbf16>, vector<8x32xbf16>, vector<32x32xf32> -> vector<32x32xf32>
    %cst_272 = arith.constant dense<0xFF800000> : vector<32xf32>
    %295 = vector.multi_reduction <maximumf>, %294, %cst_272 [1] : vector<32x32xf32> to vector<32xf32>
    %296 = vector.shape_cast %295 : vector<32xf32> to vector<32x1xf32>
    %cst_273 = arith.constant dense<0xFF800000> : vector<1xf32>
    %297 = vector.multi_reduction <maximumf>, %296, %cst_273 [0] : vector<32x1xf32> to vector<1xf32>
    %298 = vector.shape_cast %297 : vector<1xf32> to vector<1x1xf32>
    %299 = vector.broadcast %298 : vector<1x1xf32> to vector<32x32xf32>
    %300 = arith.subf %294, %299 : vector<32x32xf32>
    %301 = math.exp %300 : vector<32x32xf32>
    %cst_274 = arith.constant dense<0.000000e+00> : vector<32xf32>
    %302 = vector.multi_reduction <add>, %301, %cst_274 [1] : vector<32x32xf32> to vector<32xf32>
    %303 = vector.shape_cast %302 : vector<32xf32> to vector<32x1xf32>
    %cst_275 = arith.constant dense<0.000000e+00> : vector<1xf32>
    %304 = vector.multi_reduction <add>, %303, %cst_275 [0] : vector<32x1xf32> to vector<1xf32>
    %305 = vector.shape_cast %304 : vector<1xf32> to vector<1x1xf32>
    %306 = tpu.reciprocal %305 {approx = true} : vector<1x1xf32> -> vector<1x1xf32>
    %307 = arith.mulf %305, %306 : vector<1x1xf32>
    %cst_276 = arith.constant 2.000000e+00 : f32
    %308 = vector.broadcast %cst_276 : f32 to vector<1x1xf32>
    %309 = arith.subf %308, %307 : vector<1x1xf32>
    %310 = arith.mulf %306, %309 : vector<1x1xf32>
    %311 = vector.broadcast %310 : vector<1x1xf32> to vector<32x32xf32>
    %312 = arith.mulf %301, %311 : vector<32x32xf32>
    %c1_277 = arith.constant 1 : index
    %c0_278 = arith.constant 0 : index
    %c0_279 = arith.constant 0 : index
    %313 = vector.load %arg9[%c1_277, %c0_278, %c0_279] : memref<2x32x32xf32, #tpu.memory_space<vmem>>, vector<1x32x32xf32>
    %314 = vector.shape_cast %313 : vector<1x32x32xf32> to vector<32x32xf32>
    %315 = vector.shape_cast %312 : vector<32x32xf32> to vector<1x32x32xf32>
    tpu.vector_store %arg9[%c1_277, %c0_278, %c0_279], %315 {strides = array<i32>} : memref<2x32x32xf32, #tpu.memory_space<vmem>>, vector<1x32x32xf32>,
    return
  }
  func.func @transform_0(%arg0: i32) -> (i32, i32) {
    %c0_i32 = arith.constant 0 : i32
    %c0_i32_0 = arith.constant 0 : i32
    %c0_i32_1 = arith.constant 0 : i32
    return %c0_i32, %c0_i32_0 : i32, i32
  }
  func.func @transform_1(%arg0: i32) -> (i32, i32) {
    %c0_i32 = arith.constant 0 : i32
    %c0_i32_0 = arith.constant 0 : i32
    %c0_i32_1 = arith.constant 0 : i32
    return %c0_i32, %c0_i32_0 : i32, i32
  }
  func.func @transform_2(%arg0: i32) -> (i32, i32) {
    %c0_i32 = arith.constant 0 : i32
    %c0_i32_0 = arith.constant 0 : i32
    %c0_i32_1 = arith.constant 0 : i32
    return %c0_i32, %c0_i32_0 : i32, i32
  }
  func.func @transform_3(%arg0: i32) -> (i32, i32) {
    %c0_i32 = arith.constant 0 : i32
    %c0_i32_0 = arith.constant 0 : i32
    %c0_i32_1 = arith.constant 0 : i32
    return %c0_i32, %c0_i32_0 : i32, i32
  }
  func.func @transform_4(%arg0: i32) -> (i32, i32) {
    %c0_i32 = arith.constant 0 : i32
    %c0_i32_0 = arith.constant 0 : i32
    %c0_i32_1 = arith.constant 0 : i32
    return %c0_i32, %c0_i32_0 : i32, i32
  }
  func.func @transform_5(%arg0: i32) -> (i32, i32) {
    %c0_i32 = arith.constant 0 : i32
    %c0_i32_0 = arith.constant 0 : i32
    %c0_i32_1 = arith.constant 0 : i32
    return %c0_i32, %c0_i32_0 : i32, i32
  }
  func.func @transform_6(%arg0: i32) -> (i32, i32) {
    %c0_i32 = arith.constant 0 : i32
    %c0_i32_0 = arith.constant 0 : i32
    %c0_i32_1 = arith.constant 0 : i32
    return %c0_i32, %c0_i32_0 : i32, i32
  }
  func.func @transform_7(%arg0: i32) -> (i32, i32) {
    %c0_i32 = arith.constant 0 : i32
    %c0_i32_0 = arith.constant 0 : i32
    %c0_i32_1 = arith.constant 0 : i32
    return %c0_i32, %c0_i32_0 : i32, i32
  }
  func.func @transform_8(%arg0: i32) -> (i32, i32, i32) {
    %c0_i32 = arith.constant 0 : i32
    %c0_i32_0 = arith.constant 0 : i32
    %c0_i32_1 = arith.constant 0 : i32
    %c0_i32_2 = arith.constant 0 : i32
    return %c0_i32, %c0_i32_0, %c0_i32_1 : i32, i32, i32
  }
}

</mosaic_0001>

<llo_original>
// kernel: basic_block_forward.1
$region0: #{basic_block_forward.1}
  #allocation0 [shape = 'u32[]', space=smem, size = 0x4, offset = 0x4, fixed_abs, tag = 'smem constant byte address 0x4 - core index']
  #allocation1 [shape = 'u32[72,128]{1,0:T(1,128)}', space=vmem, size = 0x9000, scoped, tag = 'internal scratch']
  #allocation2 [shape = 'f32[2,12,12,128]{3,2,1,0:T(8,128)}', space=vmem, size = 0x30000, scoped, tag = 'scratch operand']
  %s0 = inlined_call_operand.vmem [shape: bf16[128,152], index: 0, kind: input, shape index: {}]
  %s1 = inlined_call_operand.vmem [shape: bf16[152,128], index: 1, kind: input, shape index: {}]
  %s2 = inlined_call_operand.vmem [shape: bf16[3200,128], index: 2, kind: input, shape index: {}]
  %s3 = inlined_call_operand.vmem [shape: bf16[1152,128], index: 3, kind: input, shape index: {}]
  %s4 = inlined_call_operand.vmem [shape: f32[9,128], index: 4, kind: input, shape index: {}]
  %s5 = inlined_call_operand.vmem [shape: f32[6,128], index: 5, kind: input, shape index: {}]
  %s6 = inlined_call_operand.vmem [shape: bf16[32,8], index: 6, kind: input, shape index: {}]
  %s7 = inlined_call_operand.vmem [shape: bf16[8,32], index: 7, kind: input, shape index: {}]
  %s8 = inlined_call_operand.hbm [shape: f32[2,32,32], index: 8, kind: output, shape index: {}]
  %s9 = sld [smem:[#allocation0]]
  $region42: #{basic_block_forward.1} parent=0
    _
  %s11 = ssub.s32 1, %s9
  %s12 = scalar_select 0, %s11, %s9
  $region1: #{basic_block_forward.1} parent=0
    #allocation3 [shape = 'u8[32768]{0}', space=vmem, size = 0x8000, scoped, tag = 'output window, operand 0, single buffered']
    #allocation4 [shape = 's32[1]{0}', space=sflag, size = 0x4, scoped, tag = 'scoped memory for basic_block_forward.1']
    %13 = vsyncpa [#allocation4], 0
    // Predicated region
    $region2: #{basic_block_forward.1} parent=1 // pred_check
      _
    $region3: #{basic_block_forward.1} parent=1 // pred_check_branch
      %15 = sbr.rel (0) target = $region5
    $region4: #{basic_block_forward.1} parent=1 // pred_region
      _
    $region5: #{basic_block_forward.1} parent=1 // pred_fallthru
      _
    // Predicated region
    $region6: #{basic_block_forward.1} parent=1 // pred_check
      _
    $region7: #{basic_block_forward.1} parent=1 // pred_check_branch
      %17 = sbr.rel (0) target = $region9
    $region8: #{basic_block_forward.1} parent=1 // pred_region
      _
    $region9: #{basic_block_forward.1} parent=1 // pred_fallthru
      _
    // Predicated region
    $region10: #{basic_block_forward.1} parent=1 // pred_check
      _
    $region11: #{basic_block_forward.1} parent=1 // pred_check_branch
      %19 = sbr.rel (0) target = $region13
    $region12: #{basic_block_forward.1} parent=1 // pred_region
      _
    $region13: #{basic_block_forward.1} parent=1 // pred_fallthru
      _
    // Predicated region
    $region14: #{basic_block_forward.1} parent=1 // pred_check
      _
    $region15: #{basic_block_forward.1} parent=1 // pred_check_branch
      %21 = sbr.rel (0) target = $region17
    $region16: #{basic_block_forward.1} parent=1 // pred_region
      _
    $region17: #{basic_block_forward.1} parent=1 // pred_fallthru
      _
    // Predicated region
    $region18: #{basic_block_forward.1} parent=1 // pred_check
      _
    $region19: #{basic_block_forward.1} parent=1 // pred_check_branch
      %23 = sbr.rel (0) target = $region21
    $region20: #{basic_block_forward.1} parent=1 // pred_region
      _
    $region21: #{basic_block_forward.1} parent=1 // pred_fallthru
      _
    // Predicated region
    $region22: #{basic_block_forward.1} parent=1 // pred_check
      _
    $region23: #{basic_block_forward.1} parent=1 // pred_check_branch
      %25 = sbr.rel (0) target = $region25
    $region24: #{basic_block_forward.1} parent=1 // pred_region
      _
    $region25: #{basic_block_forward.1} parent=1 // pred_fallthru
      _
    // Predicated region
    $region26: #{basic_block_forward.1} parent=1 // pred_check
      _
    $region27: #{basic_block_forward.1} parent=1 // pred_check_branch
      %27 = sbr.rel (0) target = $region29
    $region28: #{basic_block_forward.1} parent=1 // pred_region
      _
    $region29: #{basic_block_forward.1} parent=1 // pred_fallthru
      _
    // Predicated region
    $region30: #{basic_block_forward.1} parent=1 // pred_check
      _
    $region31: #{basic_block_forward.1} parent=1 // pred_check_branch
      %29 = sbr.rel (0) target = $region33
    $region32: #{basic_block_forward.1} parent=1 // pred_region
      _
    $region33: #{basic_block_forward.1} parent=1 // pred_fallthru
      _
    %31 = vst [vmem:[#allocation2] sm:$0xff] 0.0
    %32 = vst [vmem:[#allocation2 + $0x8] sm:$0xf] 0.0
    %33 = vst [vmem:[#allocation2 + $0x10] sm:$0xff] 0.0
    %34 = vst [vmem:[#allocation2 + $0x18] sm:$0xf] 0.0
    %35 = vst [vmem:[#allocation2 + $0x20] sm:$0xff] 0.0
    %36 = vst [vmem:[#allocation2 + $0x28] sm:$0xf] 0.0
    %37 = vst [vmem:[#allocation2 + $0x30] sm:$0xff] 0.0
    %38 = vst [vmem:[#allocation2 + $0x38] sm:$0xf] 0.0
    %39 = vst [vmem:[#allocation2 + $0x40] sm:$0xff] 0.0
    %40 = vst [vmem:[#allocation2 + $0x48] sm:$0xf] 0.0
    %41 = vst [vmem:[#allocation2 + $0x50] sm:$0xff] 0.0
    %42 = vst [vmem:[#allocation2 + $0x58] sm:$0xf] 0.0
    %43 = vst [vmem:[#allocation2 + $0x60] sm:$0xff] 0.0
    %44 = vst [vmem:[#allocation2 + $0x68] sm:$0xf] 0.0
    %45 = vst [vmem:[#allocation2 + $0x70] sm:$0xff] 0.0
    %46 = vst [vmem:[#allocation2 + $0x78] sm:$0xf] 0.0
    %47 = vst [vmem:[#allocation2 + $0x80] sm:$0xff] 0.0
    %48 = vst [vmem:[#allocation2 + $0x88] sm:$0xf] 0.0
    %49 = vst [vmem:[#allocation2 + $0x90] sm:$0xff] 0.0
    %50 = vst [vmem:[#allocation2 + $0x98] sm:$0xf] 0.0
    %51 = vst [vmem:[#allocation2 + $0xa0] sm:$0xff] 0.0
    %52 = vst [vmem:[#allocation2 + $0xa8] sm:$0xf] 0.0
    %53 = vst [vmem:[#allocation2 + $0xb0] sm:$0xff] 0.0
    %54 = vst [vmem:[#allocation2 + $0xb8] sm:$0xf] 0.0
    %55 = vst [vmem:[#allocation2 + $0xc0] sm:$0xff] 0.0
    %56 = vst [vmem:[#allocation2 + $0xc8] sm:$0xf] 0.0
    %57 = vst [vmem:[#allocation2 + $0xd0] sm:$0xff] 0.0
    %58 = vst [vmem:[#allocation2 + $0xd8] sm:$0xf] 0.0
    %59 = vst [vmem:[#allocation2 + $0xe0] sm:$0xff] 0.0
    %60 = vst [vmem:[#allocation2 + $0xe8] sm:$0xf] 0.0
    %61 = vst [vmem:[#allocation2 + $0xf0] sm:$0xff] 0.0
    %62 = vst [vmem:[#allocation2 + $0xf8] sm:$0xf] 0.0
    %63 = vst [vmem:[#allocation2 + $0x100] sm:$0xff] 0.0
    %64 = vst [vmem:[#allocation2 + $0x108] sm:$0xf] 0.0
    %65 = vst [vmem:[#allocation2 + $0x110] sm:$0xff] 0.0
    %66 = vst [vmem:[#allocation2 + $0x118] sm:$0xf] 0.0
    %67 = vst [vmem:[#allocation2 + $0x120] sm:$0xff] 0.0
    %68 = vst [vmem:[#allocation2 + $0x128] sm:$0xf] 0.0
    %69 = vst [vmem:[#allocation2 + $0x130] sm:$0xff] 0.0
    %70 = vst [vmem:[#allocation2 + $0x138] sm:$0xf] 0.0
    %71 = vst [vmem:[#allocation2 + $0x140] sm:$0xff] 0.0
    %72 = vst [vmem:[#allocation2 + $0x148] sm:$0xf] 0.0
    %73 = vst [vmem:[#allocation2 + $0x150] sm:$0xff] 0.0
    %74 = vst [vmem:[#allocation2 + $0x158] sm:$0xf] 0.0
    %75 = vst [vmem:[#allocation2 + $0x160] sm:$0xff] 0.0
    %76 = vst [vmem:[#allocation2 + $0x168] sm:$0xf] 0.0
    %77 = vst [vmem:[#allocation2 + $0x170] sm:$0xff] 0.0
    %78 = vst [vmem:[#allocation2 + $0x178] sm:$0xf] 0.0
    %v79 = vld [vmem:[%s0] sm:$0xff]
    %v80 = vld [vmem:[%s0 + $0x8] sm:$0xff]
    %v81 = vld [vmem:[%s0 + $0x10] sm:$0xff]
    %v82 = vld [vmem:[%s0 + $0x18] sm:$0xff]
    %v83 = vld [vmem:[%s0 + $0x20] sm:$0xff]
    %v84 = vld [vmem:[%s0 + $0x28] sm:$0xff]
    %v85 = vld [vmem:[%s0 + $0x30] sm:$0xff]
    %v86 = vld [vmem:[%s0 + $0x38] sm:$0xff]
    %v87 = vld [vmem:[%s0 + $0x40] sm:$0xff]
    %v88 = vld [vmem:[%s0 + $0x48] sm:$0xff]
    %v89 = vld [vmem:[%s0 + $0x50] sm:$0xff]
    %v90 = vld [vmem:[%s0 + $0x58] sm:$0xff]
    %v91 = vld [vmem:[%s0 + $0x60] sm:$0xff]
    %v92 = vld [vmem:[%s0 + $0x68] sm:$0xff]
    %v93 = vld [vmem:[%s0 + $0x70] sm:$0xff]
    %v94 = vld [vmem:[%s0 + $0x78] sm:$0xff]
    %v95 = vld [vmem:[%s1] sm:$0xf]
    %v96 = vld [vmem:[%s1 + $0x4] sm:$0xf]
    %v97 = vld [vmem:[%s1 + $0x8] sm:$0xf]
    %v98 = vld [vmem:[%s1 + $0xc] sm:$0xf]
    %v99 = vld [vmem:[%s1 + $0x10] sm:$0xf]
    %v100 = vld [vmem:[%s1 + $0x14] sm:$0xf]
    %v101 = vld [vmem:[%s1 + $0x18] sm:$0xf]
    %v102 = vld [vmem:[%s1 + $0x1c] sm:$0xf]
    %v103 = vld [vmem:[%s1 + $0x20] sm:$0xf]
    %v104 = vld [vmem:[%s1 + $0x24] sm:$0xf]
    %v105 = vld [vmem:[%s1 + $0x28] sm:$0xf]
    %v106 = vld [vmem:[%s1 + $0x2c] sm:$0xf]
    %v107 = vld [vmem:[%s1 + $0x30] sm:$0xf]
    %v108 = vld [vmem:[%s1 + $0x34] sm:$0xf]
    %v109 = vld [vmem:[%s1 + $0x38] sm:$0xf]
    %v110 = vld [vmem:[%s1 + $0x3c] sm:$0xf]
    %v111 = vld [vmem:[%s1 + $0x40] sm:$0xf]
    %v112 = vld [vmem:[%s1 + $0x44] sm:$0xf]
    %v113 = vld [vmem:[%s1 + $0x48] sm:$0xf]
    %v130 = vunpack.c.l.b16 %v79
    %v131 = vunpack.c.h.b16 %v79
    %v132 = vunpack.c.l.b16 %v80
    %v133 = vunpack.c.h.b16 %v80
    %v134 = vunpack.c.l.b16 %v81
    %v135 = vunpack.c.h.b16 %v81
    %v136 = vunpack.c.l.b16 %v82
    %v137 = vunpack.c.h.b16 %v82
    %v138 = vunpack.c.l.b16 %v83
    %v139 = vunpack.c.h.b16 %v83
    %v140 = vunpack.c.l.b16 %v84
    %v141 = vunpack.c.h.b16 %v84
    %v142 = vunpack.c.l.b16 %v85
    %v143 = vunpack.c.h.b16 %v85
    %v144 = vunpack.c.l.b16 %v86
    %v145 = vunpack.c.h.b16 %v86
    %v146 = vunpack.c.l.b16 %v87
    %v147 = vunpack.c.h.b16 %v87
    %v148 = vunpack.c.l.b16 %v88
    %v149 = vunpack.c.h.b16 %v88
    %v150 = vunpack.c.l.b16 %v89
    %v151 = vunpack.c.h.b16 %v89
    %v152 = vunpack.c.l.b16 %v90
    %v153 = vunpack.c.h.b16 %v90
    %v154 = vunpack.c.l.b16 %v91
    %v155 = vunpack.c.h.b16 %v91
    %v156 = vunpack.c.l.b16 %v92
    %v157 = vunpack.c.h.b16 %v92
    %v158 = vunpack.c.l.b16 %v93
    %v159 = vunpack.c.h.b16 %v93
    %v160 = vunpack.c.l.b16 %v94
    %v161 = vunpack.c.h.b16 %v94
    %v162 = vpack.c.b16 %v132, %v130
    %v163 = vpack.c.b16 %v133, %v131
    %v164 = vpack.c.b16 %v136, %v134
    %v165 = vpack.c.b16 %v137, %v135
    %v166 = vpack.c.b16 %v140, %v138
    %v167 = vpack.c.b16 %v141, %v139
    %v168 = vpack.c.b16 %v144, %v142
    %v169 = vpack.c.b16 %v145, %v143
    %v170 = vpack.c.b16 %v148, %v146
    %v171 = vpack.c.b16 %v149, %v147
    %v172 = vpack.c.b16 %v152, %v150
    %v173 = vpack.c.b16 %v153, %v151
    %v174 = vpack.c.b16 %v156, %v154
    %v175 = vpack.c.b16 %v157, %v155
    %v176 = vpack.c.b16 %v160, %v158
    %v177 = vpack.c.b16 %v161, %v159
    %v205 = vunpack.c.l.b16 %v95
    %v206 = vunpack.c.l.b16 %v96
    %v207 = vunpack.c.l.b16 %v97
    %v208 = vunpack.c.l.b16 %v98
    %v209 = vunpack.c.l.b16 %v99
    %v210 = vunpack.c.l.b16 %v100
    %v211 = vunpack.c.l.b16 %v101
    %v212 = vunpack.c.l.b16 %v102
    %v213 = vunpack.c.l.b16 %v103
    %v214 = vunpack.c.l.b16 %v104
    %v215 = vunpack.c.l.b16 %v105
    %v216 = vunpack.c.l.b16 %v106
    %v217 = vunpack.c.l.b16 %v107
    %v218 = vunpack.c.l.b16 %v108
    %v219 = vunpack.c.l.b16 %v109
    %v220 = vunpack.c.l.b16 %v110
    %v221 = vunpack.c.l.b16 %v111
    %v222 = vunpack.c.l.b16 %v112
    %v223 = vunpack.c.l.b16 %v113
    %v224 = vpack.c.b16 %v206, %v205
    %v225 = vpack.c.b16 %v208, %v207
    %v226 = vpack.c.b16 %v210, %v209
    %v227 = vpack.c.b16 %v212, %v211
    %v228 = vpack.c.b16 %v214, %v213
    %v229 = vpack.c.b16 %v216, %v215
    %v230 = vpack.c.b16 %v218, %v217
    %v231 = vpack.c.b16 %v220, %v219
    %v232 = vpack.c.b16 %v222, %v221
    %v233 = vpack.c.b16 %v223, %v223
    %vm243 = vcmask 195584
    %v245 = vsel %vm243, %v163, 0
    %v248 = vsel %vm243, %v165, 0
    %v251 = vsel %vm243, %v167, 0
    %v254 = vsel %vm243, %v169, 0
    %v257 = vsel %vm243, %v171, 0
    %v260 = vsel %vm243, %v173, 0
    %v263 = vsel %vm243, %v175, 0
    %v266 = vsel %vm243, %v177, 0
    %vm268 = vcmask 1043456
    %v270 = vsel %vm268, %v233, 0
    %272 = vmatpush.bf16.msra.mxu0 %v231
    %273 = vmatpush.bf16.msra.mxu0 %v230
    %274 = vmatpush.bf16.msra.mxu0 %v229
    %275 = vmatpush.bf16.msra.mxu0 %v228
    %276 = vmatpush.bf16.msra.mxu0 %v227
    %277 = vmatpush.bf16.msra.mxu0 %v226
    %278 = vmatpush.bf16.msra.mxu0 %v225
    %279 = vmatpush.bf16.msra.mxu0 %v224
    %280 = vmatmul.bf16.gmra.mxu0 %v162
    %v281 = vpop.f32.mrf.mxu0
    %v282 = vadd.f32 0.0, %v281
    %v283 = vpop.f32.mrf.mxu0
    %v284 = vadd.f32 0.0, %v283
    %285 = vmatmul.bf16.gmra.mxu0 %v164
    %v286 = vpop.f32.mrf.mxu0
    %v287 = vadd.f32 0.0, %v286
    %v288 = vpop.f32.mrf.mxu0
    %v289 = vadd.f32 0.0, %v288
    %290 = vmatmul.bf16.gmra.mxu0 %v166
    %v291 = vpop.f32.mrf.mxu0
    %v292 = vadd.f32 0.0, %v291
    %v293 = vpop.f32.mrf.mxu0
    %v294 = vadd.f32 0.0, %v293
    %295 = vmatmul.bf16.gmra.mxu0 %v168
    %v296 = vpop.f32.mrf.mxu0
    %v297 = vadd.f32 0.0, %v296
    %v298 = vpop.f32.mrf.mxu0
    %v299 = vadd.f32 0.0, %v298
    %300 = vmatmul.bf16.gmra.mxu0 %v170
    %v301 = vpop.f32.mrf.mxu0
    %v302 = vadd.f32 0.0, %v301
    %v303 = vpop.f32.mrf.mxu0
    %v304 = vadd.f32 0.0, %v303
    %305 = vmatmul.bf16.gmra.mxu0 %v172
    %v306 = vpop.f32.mrf.mxu0
    %v307 = vadd.f32 0.0, %v306
    %v308 = vpop.f32.mrf.mxu0
    %v309 = vadd.f32 0.0, %v308
    %310 = vmatmul.bf16.gmra.mxu0 %v174
    %v311 = vpop.f32.mrf.mxu0
    %v312 = vadd.f32 0.0, %v311
    %v313 = vpop.f32.mrf.mxu0
    %v314 = vadd.f32 0.0, %v313
    %315 = vmatmul.bf16.gmra.mxu0 %v176
    %v316 = vpop.f32.mrf.mxu0
    %v317 = vadd.f32 0.0, %v316
    %v318 = vpop.f32.mrf.mxu0
    %v319 = vadd.f32 0.0, %v318
    %320 = vdwg.mxu0
    %321 = vmatpush.bf16.msra.mxu0 0
    %322 = vmatpush.bf16.msra.mxu0 0
    %323 = vmatpush.bf16.msra.mxu0 0
    %324 = vmatpush.bf16.msra.mxu0 0
    %325 = vmatpush.bf16.msra.mxu0 0
    %326 = vmatpush.bf16.msra.mxu0 0
    %327 = vmatpush.bf16.msra.mxu0 %v270
    %328 = vmatpush.bf16.msra.mxu0 %v232
    %329 = vmatmul.bf16.gmra.mxu0 %v245
    %v330 = vpop.f32.mrf.mxu0
    %v331 = vadd.f32 %v282, %v330
    %v332 = vpop.f32.mrf.mxu0
    %v333 = vadd.f32 %v284, %v332
    %334 = vmatmul.bf16.gmra.mxu0 %v248
    %v335 = vpop.f32.mrf.mxu0
    %v336 = vadd.f32 %v287, %v335
    %v337 = vpop.f32.mrf.mxu0
    %v338 = vadd.f32 %v289, %v337
    %339 = vmatmul.bf16.gmra.mxu0 %v251
    %v340 = vpop.f32.mrf.mxu0
    %v341 = vadd.f32 %v292, %v340
    %v342 = vpop.f32.mrf.mxu0
    %v343 = vadd.f32 %v294, %v342
    %344 = vmatmul.bf16.gmra.mxu0 %v254
    %v345 = vpop.f32.mrf.mxu0
    %v346 = vadd.f32 %v297, %v345
    %v347 = vpop.f32.mrf.mxu0
    %v348 = vadd.f32 %v299, %v347
    %349 = vmatmul.bf16.gmra.mxu0 %v257
    %v350 = vpop.f32.mrf.mxu0
    %v351 = vadd.f32 %v302, %v350
    %v352 = vpop.f32.mrf.mxu0
    %v353 = vadd.f32 %v304, %v352
    %354 = vmatmul.bf16.gmra.mxu0 %v260
    %v355 = vpop.f32.mrf.mxu0
    %v356 = vadd.f32 %v307, %v355
    %v357 = vpop.f32.mrf.mxu0
    %v358 = vadd.f32 %v309, %v357
    %359 = vmatmul.bf16.gmra.mxu0 %v263
    %v360 = vpop.f32.mrf.mxu0
    %v361 = vadd.f32 %v312, %v360
    %v362 = vpop.f32.mrf.mxu0
    %v363 = vadd.f32 %v314, %v362
    %364 = vmatmul.bf16.gmra.mxu0 %v266
    %v365 = vpop.f32.mrf.mxu0
    %v366 = vadd.f32 %v317, %v365
    %v367 = vpop.f32.mrf.mxu0
    %v368 = vadd.f32 %v319, %v367
    %369 = vdwg.mxu0
    %v370 = vld [vmem:[%s5] sm:$0x1]
    %v371 = vperm.slane %v370, 0
    %v372 = vmul.f32 %v331, %v371
    %v373 = vmul.f32 %v333, %v371
    %v374 = vmul.f32 %v336, %v371
    %v375 = vmul.f32 %v338, %v371
    %v376 = vmul.f32 %v341, %v371
    %v377 = vmul.f32 %v343, %v371
    %v378 = vmul.f32 %v346, %v371
    %v379 = vmul.f32 %v348, %v371
    %v380 = vmul.f32 %v351, %v371
    %v381 = vmul.f32 %v353, %v371
    %v382 = vmul.f32 %v356, %v371
    %v383 = vmul.f32 %v358, %v371
    %v384 = vmul.f32 %v361, %v371
    %v385 = vmul.f32 %v363, %v371
    %v386 = vmul.f32 %v366, %v371
    %v387 = vmul.f32 %v368, %v371
    %v388 = vld [vmem:[%s5 + $0x1] sm:$0x1]
    %v389 = vperm.slane %v388, 0
    %v390 = vadd.f32 %v372, %v389
    %v391 = vadd.f32 %v373, %v389
    %v392 = vadd.f32 %v374, %v389
    %v393 = vadd.f32 %v375, %v389
    %v394 = vadd.f32 %v376, %v389
    %v395 = vadd.f32 %v377, %v389
    %v396 = vadd.f32 %v378, %v389
    %v397 = vadd.f32 %v379, %v389
    %v398 = vadd.f32 %v380, %v389
    %v399 = vadd.f32 %v381, %v389
    %v400 = vadd.f32 %v382, %v389
    %v401 = vadd.f32 %v383, %v389
    %v402 = vadd.f32 %v384, %v389
    %v403 = vadd.f32 %v385, %v389
    %v404 = vadd.f32 %v386, %v389
    %v405 = vadd.f32 %v387, %v389
    %vm406 = vcmp.ge.f32.partialorder %v390, 0.0
    %vm407 = vcmp.ge.f32.partialorder %v391, 0.0
    %vm408 = vcmp.ge.f32.partialorder %v392, 0.0
    %vm409 = vcmp.ge.f32.partialorder %v393, 0.0
    %vm410 = vcmp.ge.f32.partialorder %v394, 0.0
    %vm411 = vcmp.ge.f32.partialorder %v395, 0.0
    %vm412 = vcmp.ge.f32.partialorder %v396, 0.0
    %vm413 = vcmp.ge.f32.partialorder %v397, 0.0
    %vm414 = vcmp.ge.f32.partialorder %v398, 0.0
    %vm415 = vcmp.ge.f32.partialorder %v399, 0.0
    %vm416 = vcmp.ge.f32.partialorder %v400, 0.0
    %vm417 = vcmp.ge.f32.partialorder %v401, 0.0
    %vm418 = vcmp.ge.f32.partialorder %v402, 0.0
    %vm419 = vcmp.ge.f32.partialorder %v403, 0.0
    %vm420 = vcmp.ge.f32.partialorder %v404, 0.0
    %vm421 = vcmp.ge.f32.partialorder %v405, 0.0
    %v422 = vmul.f32 %v390, 0.01
    %v423 = vmul.f32 %v391, 0.01
    %v424 = vmul.f32 %v392, 0.01
    %v425 = vmul.f32 %v393, 0.01
    %v426 = vmul.f32 %v394, 0.01
    %v427 = vmul.f32 %v395, 0.01
    %v428 = vmul.f32 %v396, 0.01
    %v429 = vmul.f32 %v397, 0.01
    %v430 = vmul.f32 %v398, 0.01
    %v431 = vmul.f32 %v399, 0.01
    %v432 = vmul.f32 %v400, 0.01
    %v433 = vmul.f32 %v401, 0.01
    %v434 = vmul.f32 %v402, 0.01
    %v435 = vmul.f32 %v403, 0.01
    %v436 = vmul.f32 %v404, 0.01
    %v437 = vmul.f32 %v405, 0.01
    %v438 = vsel %vm406, %v390, %v422
    %v439 = vsel %vm407, %v391, %v423
    %v440 = vsel %vm408, %v392, %v424
    %v441 = vsel %vm409, %v393, %v425
    %v442 = vsel %vm410, %v394, %v426
    %v443 = vsel %vm411, %v395, %v427
    %v444 = vsel %vm412, %v396, %v428
    %v445 = vsel %vm413, %v397, %v429
    %v446 = vsel %vm414, %v398, %v430
    %v447 = vsel %vm415, %v399, %v431
    %v448 = vsel %vm416, %v400, %v432
    %v449 = vsel %vm417, %v401, %v433
    %v450 = vsel %vm418, %v402, %v434
    %v451 = vsel %vm419, %v403, %v435
    %v452 = vsel %vm420, %v404, %v436
    %v453 = vsel %vm421, %v405, %v437
    %s454 = scalar_lea.vmem [#allocation2], 32
    %455 = vst [vmem:[%s454 + $0x2] sm:$0xff] %v438
    %456 = vst [vmem:[%s454 + $0x12] sm:$0xff] %v439
    %457 = vst [vmem:[%s454 + $0x22] sm:$0xff] %v440
    %458 = vst [vmem:[%s454 + $0x32] sm:$0xff] %v441
    %459 = vst [vmem:[%s454 + $0x42] sm:$0xff] %v442
    %460 = vst [vmem:[%s454 + $0x52] sm:$0xff] %v443
    %461 = vst [vmem:[%s454 + $0x62] sm:$0xff] %v444
    %462 = vst [vmem:[%s454 + $0x72] sm:$0xff] %v445
    %463 = vst [vmem:[%s454 + $0xc2] sm:$0xff] %v446
    %464 = vst [vmem:[%s454 + $0xd2] sm:$0xff] %v447
    %465 = vst [vmem:[%s454 + $0xe2] sm:$0xff] %v448
    %466 = vst [vmem:[%s454 + $0xf2] sm:$0xff] %v449
    %467 = vst [vmem:[%s454 + $0x102] sm:$0xff] %v450
    %468 = vst [vmem:[%s454 + $0x112] sm:$0xff] %v451
    %469 = vst [vmem:[%s454 + $0x122] sm:$0xff] %v452
    %470 = vst [vmem:[%s454 + $0x132] sm:$0xff] %v453
    %v471 = vld [vmem:[#allocation2] sm:$0xff]
    %v472 = vld [vmem:[#allocation2 + $0x10] sm:$0xff]
    %v473 = vld [vmem:[#allocation2 + $0x20] sm:$0xff]
    %v474 = vld [vmem:[#allocation2 + $0x30] sm:$0xff]
    %v475 = vld [vmem:[#allocation2 + $0x40] sm:$0xff]
    %v476 = vld [vmem:[#allocation2 + $0x50] sm:$0xff]
    %v477 = vld [vmem:[#allocation2 + $0x60] sm:$0xff]
    %v478 = vld [vmem:[#allocation2 + $0x70] sm:$0xff]
    %v479 = vld [vmem:[#allocation2 + $0xc0] sm:$0xff]
    %v480 = vld [vmem:[#allocation2 + $0xd0] sm:$0xff]
    %v481 = vld [vmem:[#allocation2 + $0xe0] sm:$0xff]
    %v482 = vld [vmem:[#allocation2 + $0xf0] sm:$0xff]
    %v483 = vld [vmem:[#allocation2 + $0x100] sm:$0xff]
    %v484 = vld [vmem:[#allocation2 + $0x110] sm:$0xff]
    %v485 = vld [vmem:[#allocation2 + $0x120] sm:$0xff]
    %v486 = vld [vmem:[#allocation2 + $0x130] sm:$0xff]
    %v487 = vpack.c.bf16 %v471, %v471
    %v488 = vpack.c.bf16 %v472, %v472
    %v489 = vpack.c.bf16 %v473, %v473
    %v490 = vpack.c.bf16 %v474, %v474
    %v491 = vpack.c.bf16 %v475, %v475
    %v492 = vpack.c.bf16 %v476, %v476
    %v493 = vpack.c.bf16 %v477, %v477
    %v494 = vpack.c.bf16 %v478, %v478
    %v495 = vpack.c.bf16 %v479, %v479
    %v496 = vpack.c.bf16 %v480, %v480
    %v497 = vpack.c.bf16 %v481, %v481
    %v498 = vpack.c.bf16 %v482, %v482
    %v499 = vpack.c.bf16 %v483, %v483
    %v500 = vpack.c.bf16 %v484, %v484
    %v501 = vpack.c.bf16 %v485, %v485
    %v502 = vpack.c.bf16 %v486, %v486
    %v503 = vld [vmem:[#allocation2 + $0x1] sm:$0xff]
    %v504 = vld [vmem:[#allocation2 + $0x11] sm:$0xff]
    %v505 = vld [vmem:[#allocation2 + $0x21] sm:$0xff]
    %v506 = vld [vmem:[#allocation2 + $0x31] sm:$0xff]
    %v507 = vld [vmem:[#allocation2 + $0x41] sm:$0xff]
    %v508 = vld [vmem:[#allocation2 + $0x51] sm:$0xff]
    %v509 = vld [vmem:[#allocation2 + $0x61] sm:$0xff]
    %v510 = vld [vmem:[#allocation2 + $0x71] sm:$0xff]
    %v511 = vld [vmem:[#allocation2 + $0xc1] sm:$0xff]
    %v512 = vld [vmem:[#allocation2 + $0xd1] sm:$0xff]
    %v513 = vld [vmem:[#allocation2 + $0xe1] sm:$0xff]
    %v514 = vld [vmem:[#allocation2 + $0xf1] sm:$0xff]
    %v515 = vld [vmem:[#allocation2 + $0x101] sm:$0xff]
    %v516 = vld [vmem:[#allocation2 + $0x111] sm:$0xff]
    %v517 = vld [vmem:[#allocation2 + $0x121] sm:$0xff]
    %v518 = vld [vmem:[#allocation2 + $0x131] sm:$0xff]
    %v519 = vpack.c.bf16 %v503, %v503
    %v520 = vpack.c.bf16 %v504, %v504
    %v521 = vpack.c.bf16 %v505, %v505
    %v522 = vpack.c.bf16 %v506, %v506
    %v523 = vpack.c.bf16 %v507, %v507
    %v524 = vpack.c.bf16 %v508, %v508
    %v525 = vpack.c.bf16 %v509, %v509
    %v526 = vpack.c.bf16 %v510, %v510
    %v527 = vpack.c.bf16 %v511, %v511
    %v528 = vpack.c.bf16 %v512, %v512
    %v529 = vpack.c.bf16 %v513, %v513
    %v530 = vpack.c.bf16 %v514, %v514
    %v531 = vpack.c.bf16 %v515, %v515
    %v532 = vpack.c.bf16 %v516, %v516
    %v533 = vpack.c.bf16 %v517, %v517
    %v534 = vpack.c.bf16 %v518, %v518
    %v535 = vld [vmem:[#allocation2 + $0x2] sm:$0xff]
    %v536 = vld [vmem:[#allocation2 + $0x12] sm:$0xff]
    %v537 = vld [vmem:[#allocation2 + $0x22] sm:$0xff]
    %v538 = vld [vmem:[#allocation2 + $0x32] sm:$0xff]
    %v539 = vld [vmem:[#allocation2 + $0x42] sm:$0xff]
    %v540 = vld [vmem:[#allocation2 + $0x52] sm:$0xff]
    %v541 = vld [vmem:[#allocation2 + $0x62] sm:$0xff]
    %v542 = vld [vmem:[#allocation2 + $0x72] sm:$0xff]
    %v543 = vld [vmem:[#allocation2 + $0xc2] sm:$0xff]
    %v544 = vld [vmem:[#allocation2 + $0xd2] sm:$0xff]
    %v545 = vld [vmem:[#allocation2 + $0xe2] sm:$0xff]
    %v546 = vld [vmem:[#allocation2 + $0xf2] sm:$0xff]
    %v547 = vld [vmem:[#allocation2 + $0x102] sm:$0xff]
    %v548 = vld [vmem:[#allocation2 + $0x112] sm:$0xff]
    %v549 = vld [vmem:[#allocation2 + $0x122] sm:$0xff]
    %v550 = vld [vmem:[#allocation2 + $0x132] sm:$0xff]
    %v551 = vpack.c.bf16 %v535, %v535
    %v552 = vpack.c.bf16 %v536, %v536
    %v553 = vpack.c.bf16 %v537, %v537
    %v554 = vpack.c.bf16 %v538, %v538
    %v555 = vpack.c.bf16 %v539, %v539
    %v556 = vpack.c.bf16 %v540, %v540
    %v557 = vpack.c.bf16 %v541, %v541
    %v558 = vpack.c.bf16 %v542, %v542
    %v559 = vpack.c.bf16 %v543, %v543
    %v560 = vpack.c.bf16 %v544, %v544
    %v561 = vpack.c.bf16 %v545, %v545
    %v562 = vpack.c.bf16 %v546, %v546
    %v563 = vpack.c.bf16 %v547, %v547
    %v564 = vpack.c.bf16 %v548, %v548
    %v565 = vpack.c.bf16 %v549, %v549
    %v566 = vpack.c.bf16 %v550, %v550
    %v567 = vld [vmem:[#allocation2 + $0x3] sm:$0xff]
    %v568 = vld [vmem:[#allocation2 + $0x13] sm:$0xff]
    %v569 = vld [vmem:[#allocation2 + $0x23] sm:$0xff]
    %v570 = vld [vmem:[#allocation2 + $0x33] sm:$0xff]
    %v571 = vld [vmem:[#allocation2 + $0x43] sm:$0xff]
    %v572 = vld [vmem:[#allocation2 + $0x53] sm:$0xff]
    %v573 = vld [vmem:[#allocation2 + $0x63] sm:$0xff]
    %v574 = vld [vmem:[#allocation2 + $0x73] sm:$0xff]
    %v575 = vld [vmem:[#allocation2 + $0xc3] sm:$0xff]
    %v576 = vld [vmem:[#allocation2 + $0xd3] sm:$0xff]
    %v577 = vld [vmem:[#allocation2 + $0xe3] sm:$0xff]
    %v578 = vld [vmem:[#allocation2 + $0xf3] sm:$0xff]
    %v579 = vld [vmem:[#allocation2 + $0x103] sm:$0xff]
    %v580 = vld [vmem:[#allocation2 + $0x113] sm:$0xff]
    %v581 = vld [vmem:[#allocation2 + $0x123] sm:$0xff]
    %v582 = vld [vmem:[#allocation2 + $0x133] sm:$0xff]
    %v583 = vpack.c.bf16 %v567, %v567
    %v584 = vpack.c.bf16 %v568, %v568
    %v585 = vpack.c.bf16 %v569, %v569
    %v586 = vpack.c.bf16 %v570, %v570
    %v587 = vpack.c.bf16 %v571, %v571
    %v588 = vpack.c.bf16 %v572, %v572
    %v589 = vpack.c.bf16 %v573, %v573
    %v590 = vpack.c.bf16 %v574, %v574
    %v591 = vpack.c.bf16 %v575, %v575
    %v592 = vpack.c.bf16 %v576, %v576
    %v593 = vpack.c.bf16 %v577, %v577
    %v594 = vpack.c.bf16 %v578, %v578
    %v595 = vpack.c.bf16 %v579, %v579
    %v596 = vpack.c.bf16 %v580, %v580
    %v597 = vpack.c.bf16 %v581, %v581
    %v598 = vpack.c.bf16 %v582, %v582
    %v599 = vld [vmem:[#allocation2 + $0x4] sm:$0xff]
    %v600 = vld [vmem:[#allocation2 + $0x14] sm:$0xff]
    %v601 = vld [vmem:[#allocation2 + $0x24] sm:$0xff]
    %v602 = vld [vmem:[#allocation2 + $0x34] sm:$0xff]
    %v603 = vld [vmem:[#allocation2 + $0x44] sm:$0xff]
    %v604 = vld [vmem:[#allocation2 + $0x54] sm:$0xff]
    %v605 = vld [vmem:[#allocation2 + $0x64] sm:$0xff]
    %v606 = vld [vmem:[#allocation2 + $0x74] sm:$0xff]
    %v607 = vld [vmem:[#allocation2 + $0xc4] sm:$0xff]
    %v608 = vld [vmem:[#allocation2 + $0xd4] sm:$0xff]
    %v609 = vld [vmem:[#allocation2 + $0xe4] sm:$0xff]
    %v610 = vld [vmem:[#allocation2 + $0xf4] sm:$0xff]
    %v611 = vld [vmem:[#allocation2 + $0x104] sm:$0xff]
    %v612 = vld [vmem:[#allocation2 + $0x114] sm:$0xff]
    %v613 = vld [vmem:[#allocation2 + $0x124] sm:$0xff]
    %v614 = vld [vmem:[#allocation2 + $0x134] sm:$0xff]
    %v615 = vpack.c.bf16 %v599, %v599
    %v616 = vpack.c.bf16 %v600, %v600
    %v617 = vpack.c.bf16 %v601, %v601
    %v618 = vpack.c.bf16 %v602, %v602
    %v619 = vpack.c.bf16 %v603, %v603
    %v620 = vpack.c.bf16 %v604, %v604
    %v621 = vpack.c.bf16 %v605, %v605
    %v622 = vpack.c.bf16 %v606, %v606
    %v623 = vpack.c.bf16 %v607, %v607
    %v624 = vpack.c.bf16 %v608, %v608
    %v625 = vpack.c.bf16 %v609, %v609
    %v626 = vpack.c.bf16 %v610, %v610
    %v627 = vpack.c.bf16 %v611, %v611
    %v628 = vpack.c.bf16 %v612, %v612
    %v629 = vpack.c.bf16 %v613, %v613
    %v630 = vpack.c.bf16 %v614, %v614
    %v647 = vunpack.c.l.b16 %v487
    %v648 = vunpack.c.l.b16 %v488
    %v649 = vunpack.c.l.b16 %v489
    %v650 = vunpack.c.l.b16 %v490
    %v651 = vunpack.c.l.b16 %v491
    %v652 = vunpack.c.l.b16 %v492
    %v653 = vunpack.c.l.b16 %v493
    %v654 = vunpack.c.l.b16 %v494
    %v655 = vunpack.c.l.b16 %v495
    %v656 = vunpack.c.l.b16 %v496
    %v657 = vunpack.c.l.b16 %v497
    %v658 = vunpack.c.l.b16 %v498
    %v659 = vunpack.c.l.b16 %v499
    %v660 = vunpack.c.l.b16 %v500
    %v661 = vunpack.c.l.b16 %v501
    %v662 = vunpack.c.l.b16 %v502
    %v663 = vpack.c.b16 %v648, %v647
    %v664 = vpack.c.b16 %v650, %v649
    %v665 = vpack.c.b16 %v652, %v651
    %v666 = vpack.c.b16 %v654, %v653
    %v667 = vpack.c.b16 %v656, %v655
    %v668 = vpack.c.b16 %v658, %v657
    %v669 = vpack.c.b16 %v660, %v659
    %v670 = vpack.c.b16 %v662, %v661
    %v695 = vunpack.c.l.b16 %v519
    %v696 = vunpack.c.l.b16 %v520
    %v697 = vunpack.c.l.b16 %v521
    %v698 = vunpack.c.l.b16 %v522
    %v699 = vunpack.c.l.b16 %v523
    %v700 = vunpack.c.l.b16 %v524
    %v701 = vunpack.c.l.b16 %v525
    %v702 = vunpack.c.l.b16 %v526
    %v703 = vunpack.c.l.b16 %v527
    %v704 = vunpack.c.l.b16 %v528
    %v705 = vunpack.c.l.b16 %v529
    %v706 = vunpack.c.l.b16 %v530
    %v707 = vunpack.c.l.b16 %v531
    %v708 = vunpack.c.l.b16 %v532
    %v709 = vunpack.c.l.b16 %v533
    %v710 = vunpack.c.l.b16 %v534
    %v711 = vpack.c.b16 %v696, %v695
    %v712 = vpack.c.b16 %v698, %v697
    %v713 = vpack.c.b16 %v700, %v699
    %v714 = vpack.c.b16 %v702, %v701
    %v715 = vpack.c.b16 %v704, %v703
    %v716 = vpack.c.b16 %v706, %v705
    %v717 = vpack.c.b16 %v708, %v707
    %v718 = vpack.c.b16 %v710, %v709
    %v743 = vunpack.c.l.b16 %v551
    %v744 = vunpack.c.l.b16 %v552
    %v745 = vunpack.c.l.b16 %v553
    %v746 = vunpack.c.l.b16 %v554
    %v747 = vunpack.c.l.b16 %v555
    %v748 = vunpack.c.l.b16 %v556
    %v749 = vunpack.c.l.b16 %v557
    %v750 = vunpack.c.l.b16 %v558
    %v751 = vunpack.c.l.b16 %v559
    %v752 = vunpack.c.l.b16 %v560
    %v753 = vunpack.c.l.b16 %v561
    %v754 = vunpack.c.l.b16 %v562
    %v755 = vunpack.c.l.b16 %v563
    %v756 = vunpack.c.l.b16 %v564
    %v757 = vunpack.c.l.b16 %v565
    %v758 = vunpack.c.l.b16 %v566
    %v759 = vpack.c.b16 %v744, %v743
    %v760 = vpack.c.b16 %v746, %v745
    %v761 = vpack.c.b16 %v748, %v747
    %v762 = vpack.c.b16 %v750, %v749
    %v763 = vpack.c.b16 %v752, %v751
    %v764 = vpack.c.b16 %v754, %v753
    %v765 = vpack.c.b16 %v756, %v755
    %v766 = vpack.c.b16 %v758, %v757
    %v791 = vunpack.c.l.b16 %v583
    %v792 = vunpack.c.l.b16 %v584
    %v793 = vunpack.c.l.b16 %v585
    %v794 = vunpack.c.l.b16 %v586
    %v795 = vunpack.c.l.b16 %v587
    %v796 = vunpack.c.l.b16 %v588
    %v797 = vunpack.c.l.b16 %v589
    %v798 = vunpack.c.l.b16 %v590
    %v799 = vunpack.c.l.b16 %v591
    %v800 = vunpack.c.l.b16 %v592
    %v801 = vunpack.c.l.b16 %v593
    %v802 = vunpack.c.l.b16 %v594
    %v803 = vunpack.c.l.b16 %v595
    %v804 = vunpack.c.l.b16 %v596
    %v805 = vunpack.c.l.b16 %v597
    %v806 = vunpack.c.l.b16 %v598
    %v807 = vpack.c.b16 %v792, %v791
    %v808 = vpack.c.b16 %v794, %v793
    %v809 = vpack.c.b16 %v796, %v795
    %v810 = vpack.c.b16 %v798, %v797
    %v811 = vpack.c.b16 %v800, %v799
    %v812 = vpack.c.b16 %v802, %v801
    %v813 = vpack.c.b16 %v804, %v803
    %v814 = vpack.c.b16 %v806, %v805
    %v839 = vunpack.c.l.b16 %v615
    %v840 = vunpack.c.l.b16 %v616
    %v841 = vunpack.c.l.b16 %v617
    %v842 = vunpack.c.l.b16 %v618
    %v843 = vunpack.c.l.b16 %v619
    %v844 = vunpack.c.l.b16 %v620
    %v845 = vunpack.c.l.b16 %v621
    %v846 = vunpack.c.l.b16 %v622
    %v847 = vunpack.c.l.b16 %v623
    %v848 = vunpack.c.l.b16 %v624
    %v849 = vunpack.c.l.b16 %v625
    %v850 = vunpack.c.l.b16 %v626
    %v851 = vunpack.c.l.b16 %v627
    %v852 = vunpack.c.l.b16 %v628
    %v853 = vunpack.c.l.b16 %v629
    %v854 = vunpack.c.l.b16 %v630
    %v855 = vpack.c.b16 %v840, %v839
    %v856 = vpack.c.b16 %v842, %v841
    %v857 = vpack.c.b16 %v844, %v843
    %v858 = vpack.c.b16 %v846, %v845
    %v859 = vpack.c.b16 %v848, %v847
    %v860 = vpack.c.b16 %v850, %v849
    %v861 = vpack.c.b16 %v852, %v851
    %v862 = vpack.c.b16 %v854, %v853
    %v871 = vld [vmem:[%s2] sm:$0xf]
    %v872 = vld [vmem:[%s2 + $0x4] sm:$0xf]
    %v873 = vld [vmem:[%s2 + $0x8] sm:$0xf]
    %v874 = vld [vmem:[%s2 + $0xc] sm:$0xf]
    %v875 = vld [vmem:[%s2 + $0x10] sm:$0xf]
    %v876 = vld [vmem:[%s2 + $0x14] sm:$0xf]
    %v877 = vld [vmem:[%s2 + $0x18] sm:$0xf]
    %v878 = vld [vmem:[%s2 + $0x1c] sm:$0xf]
    %v879 = vld [vmem:[%s2 + $0x20] sm:$0xf]
    %v880 = vld [vmem:[%s2 + $0x24] sm:$0xf]
    %v881 = vld [vmem:[%s2 + $0x28] sm:$0xf]
    %v882 = vld [vmem:[%s2 + $0x2c] sm:$0xf]
    %v883 = vld [vmem:[%s2 + $0x30] sm:$0xf]
    %v884 = vld [vmem:[%s2 + $0x34] sm:$0xf]
    %v885 = vld [vmem:[%s2 + $0x38] sm:$0xf]
    %v886 = vld [vmem:[%s2 + $0x3c] sm:$0xf]
    %v887 = vld [vmem:[%s2 + $0x40] sm:$0xf]
    %v888 = vld [vmem:[%s2 + $0x44] sm:$0xf]
    %v889 = vld [vmem:[%s2 + $0x48] sm:$0xf]
    %v890 = vld [vmem:[%s2 + $0x4c] sm:$0xf]
    %v891 = vld [vmem:[%s2 + $0x50] sm:$0xf]
    %v892 = vld [vmem:[%s2 + $0x54] sm:$0xf]
    %v893 = vld [vmem:[%s2 + $0x58] sm:$0xf]
    %v894 = vld [vmem:[%s2 + $0x5c] sm:$0xf]
    %v895 = vld [vmem:[%s2 + $0x60] sm:$0xf]
    %v896 = vld [vmem:[%s2 + $0x64] sm:$0xf]
    %v897 = vld [vmem:[%s2 + $0x68] sm:$0xf]
    %v898 = vld [vmem:[%s2 + $0x6c] sm:$0xf]
    %v899 = vld [vmem:[%s2 + $0x70] sm:$0xf]
    %v900 = vld [vmem:[%s2 + $0x74] sm:$0xf]
    %v901 = vld [vmem:[%s2 + $0x78] sm:$0xf]
    %v902 = vld [vmem:[%s2 + $0x7c] sm:$0xf]
    %v903 = vld [vmem:[%s2 + $0x80] sm:$0xf]
    %v904 = vld [vmem:[%s2 + $0x84] sm:$0xf]
    %v905 = vld [vmem:[%s2 + $0x88] sm:$0xf]
    %v906 = vld [vmem:[%s2 + $0x8c] sm:$0xf]
    %v907 = vld [vmem:[%s2 + $0x90] sm:$0xf]
    %v908 = vld [vmem:[%s2 + $0x94] sm:$0xf]
    %v909 = vld [vmem:[%s2 + $0x98] sm:$0xf]
    %v910 = vld [vmem:[%s2 + $0x9c] sm:$0xf]
    %v911 = vld [vmem:[%s2 + $0xa0] sm:$0xf]
    %v912 = vld [vmem:[%s2 + $0xa4] sm:$0xf]
    %v913 = vld [vmem:[%s2 + $0xa8] sm:$0xf]
    %v914 = vld [vmem:[%s2 + $0xac] sm:$0xf]
    %v915 = vld [vmem:[%s2 + $0xb0] sm:$0xf]
    %v916 = vld [vmem:[%s2 + $0xb4] sm:$0xf]
    %v917 = vld [vmem:[%s2 + $0xb8] sm:$0xf]
    %v918 = vld [vmem:[%s2 + $0xbc] sm:$0xf]
    %v919 = vld [vmem:[%s2 + $0xc0] sm:$0xf]
    %v920 = vld [vmem:[%s2 + $0xc4] sm:$0xf]
    %v921 = vld [vmem:[%s2 + $0xc8] sm:$0xf]
    %v922 = vld [vmem:[%s2 + $0xcc] sm:$0xf]
    %v923 = vld [vmem:[%s2 + $0xd0] sm:$0xf]
    %v924 = vld [vmem:[%s2 + $0xd4] sm:$0xf]
    %v925 = vld [vmem:[%s2 + $0xd8] sm:$0xf]
    %v926 = vld [vmem:[%s2 + $0xdc] sm:$0xf]
    %v927 = vld [vmem:[%s2 + $0xe0] sm:$0xf]
    %v928 = vld [vmem:[%s2 + $0xe4] sm:$0xf]
    %v929 = vld [vmem:[%s2 + $0xe8] sm:$0xf]
    %v930 = vld [vmem:[%s2 + $0xec] sm:$0xf]
    %v931 = vld [vmem:[%s2 + $0xf0] sm:$0xf]
    %v932 = vld [vmem:[%s2 + $0xf4] sm:$0xf]
    %v933 = vld [vmem:[%s2 + $0xf8] sm:$0xf]
    %v934 = vld [vmem:[%s2 + $0xfc] sm:$0xf]
    %v935 = vld [vmem:[%s2 + $0x100] sm:$0xf]
    %v936 = vld [vmem:[%s2 + $0x104] sm:$0xf]
    %v937 = vld [vmem:[%s2 + $0x108] sm:$0xf]
    %v938 = vld [vmem:[%s2 + $0x10c] sm:$0xf]
    %v939 = vld [vmem:[%s2 + $0x110] sm:$0xf]
    %v940 = vld [vmem:[%s2 + $0x114] sm:$0xf]
    %v941 = vld [vmem:[%s2 + $0x118] sm:$0xf]
    %v942 = vld [vmem:[%s2 + $0x11c] sm:$0xf]
    %v943 = vld [vmem:[%s2 + $0x120] sm:$0xf]
    %v944 = vld [vmem:[%s2 + $0x124] sm:$0xf]
    %v945 = vld [vmem:[%s2 + $0x128] sm:$0xf]
    %v946 = vld [vmem:[%s2 + $0x12c] sm:$0xf]
    %v947 = vld [vmem:[%s2 + $0x130] sm:$0xf]
    %v948 = vld [vmem:[%s2 + $0x134] sm:$0xf]
    %v949 = vld [vmem:[%s2 + $0x138] sm:$0xf]
    %v950 = vld [vmem:[%s2 + $0x13c] sm:$0xf]
    %s951 = scalar_lea.vmem [#allocation2], 16
    %v952 = vld [vmem:[%s951] sm:$0xff]
    %v953 = vld [vmem:[%s951 + $0x10] sm:$0xff]
    %v954 = vld [vmem:[%s951 + $0x20] sm:$0xff]
    %v955 = vld [vmem:[%s951 + $0x30] sm:$0xff]
    %v956 = vld [vmem:[%s951 + $0x40] sm:$0xff]
    %v957 = vld [vmem:[%s951 + $0x50] sm:$0xff]
    %v958 = vld [vmem:[%s951 + $0x60] sm:$0xff]
    %v959 = vld [vmem:[%s951 + $0x70] sm:$0xff]
    %v960 = vld [vmem:[%s951 + $0xc0] sm:$0xff]
    %v961 = vld [vmem:[%s951 + $0xd0] sm:$0xff]
    %v962 = vld [vmem:[%s951 + $0xe0] sm:$0xff]
    %v963 = vld [vmem:[%s951 + $0xf0] sm:$0xff]
    %v964 = vld [vmem:[%s951 + $0x100] sm:$0xff]
    %v965 = vld [vmem:[%s951 + $0x110] sm:$0xff]
    %v966 = vld [vmem:[%s951 + $0x120] sm:$0xff]
    %v967 = vld [vmem:[%s951 + $0x130] sm:$0xff]
    %v968 = vpack.c.bf16 %v952, %v952
    %v969 = vpack.c.bf16 %v953, %v953
    %v970 = vpack.c.bf16 %v954, %v954
    %v971 = vpack.c.bf16 %v955, %v955
    %v972 = vpack.c.bf16 %v956, %v956
    %v973 = vpack.c.bf16 %v957, %v957
    %v974 = vpack.c.bf16 %v958, %v958
    %v975 = vpack.c.bf16 %v959, %v959
    %v976 = vpack.c.bf16 %v960, %v960
    %v977 = vpack.c.bf16 %v961, %v961
    %v978 = vpack.c.bf16 %v962, %v962
    %v979 = vpack.c.bf16 %v963, %v963
    %v980 = vpack.c.bf16 %v964, %v964
    %v981 = vpack.c.bf16 %v965, %v965
    %v982 = vpack.c.bf16 %v966, %v966
    %v983 = vpack.c.bf16 %v967, %v967
    %v984 = vld [vmem:[%s951 + $0x1] sm:$0xff]
    %v985 = vld [vmem:[%s951 + $0x11] sm:$0xff]
    %v986 = vld [vmem:[%s951 + $0x21] sm:$0xff]
    %v987 = vld [vmem:[%s951 + $0x31] sm:$0xff]
    %v988 = vld [vmem:[%s951 + $0x41] sm:$0xff]
    %v989 = vld [vmem:[%s951 + $0x51] sm:$0xff]
    %v990 = vld [vmem:[%s951 + $0x61] sm:$0xff]
    %v991 = vld [vmem:[%s951 + $0x71] sm:$0xff]
    %v992 = vld [vmem:[%s951 + $0xc1] sm:$0xff]
    %v993 = vld [vmem:[%s951 + $0xd1] sm:$0xff]
    %v994 = vld [vmem:[%s951 + $0xe1] sm:$0xff]
    %v995 = vld [vmem:[%s951 + $0xf1] sm:$0xff]
    %v996 = vld [vmem:[%s951 + $0x101] sm:$0xff]
    %v997 = vld [vmem:[%s951 + $0x111] sm:$0xff]
    %v998 = vld [vmem:[%s951 + $0x121] sm:$0xff]
    %v999 = vld [vmem:[%s951 + $0x131] sm:$0xff]
    %v1000 = vpack.c.bf16 %v984, %v984
    %v1001 = vpack.c.bf16 %v985, %v985
    %v1002 = vpack.c.bf16 %v986, %v986
    %v1003 = vpack.c.bf16 %v987, %v987
    %v1004 = vpack.c.bf16 %v988, %v988
    %v1005 = vpack.c.bf16 %v989, %v989
    %v1006 = vpack.c.bf16 %v990, %v990
    %v1007 = vpack.c.bf16 %v991, %v991
    %v1008 = vpack.c.bf16 %v992, %v992
    %v1009 = vpack.c.bf16 %v993, %v993
    %v1010 = vpack.c.bf16 %v994, %v994
    %v1011 = vpack.c.bf16 %v995, %v995
    %v1012 = vpack.c.bf16 %v996, %v996
    %v1013 = vpack.c.bf16 %v997, %v997
    %v1014 = vpack.c.bf16 %v998, %v998
    %v1015 = vpack.c.bf16 %v999, %v999
    %v1016 = vld [vmem:[%s951 + $0x2] sm:$0xff]
    %v1017 = vld [vmem:[%s951 + $0x12] sm:$0xff]
    %v1018 = vld [vmem:[%s951 + $0x22] sm:$0xff]
    %v1019 = vld [vmem:[%s951 + $0x32] sm:$0xff]
    %v1020 = vld [vmem:[%s951 + $0x42] sm:$0xff]
    %v1021 = vld [vmem:[%s951 + $0x52] sm:$0xff]
    %v1022 = vld [vmem:[%s951 + $0x62] sm:$0xff]
    %v1023 = vld [vmem:[%s951 + $0x72] sm:$0xff]
    %v1024 = vld [vmem:[%s951 + $0xc2] sm:$0xff]
    %v1025 = vld [vmem:[%s951 + $0xd2] sm:$0xff]
    %v1026 = vld [vmem:[%s951 + $0xe2] sm:$0xff]
    %v1027 = vld [vmem:[%s951 + $0xf2] sm:$0xff]
    %v1028 = vld [vmem:[%s951 + $0x102] sm:$0xff]
    %v1029 = vld [vmem:[%s951 + $0x112] sm:$0xff]
    %v1030 = vld [vmem:[%s951 + $0x122] sm:$0xff]
    %v1031 = vld [vmem:[%s951 + $0x132] sm:$0xff]
    %v1032 = vpack.c.bf16 %v1016, %v1016
    %v1033 = vpack.c.bf16 %v1017, %v1017
    %v1034 = vpack.c.bf16 %v1018, %v1018
    %v1035 = vpack.c.bf16 %v1019, %v1019
    %v1036 = vpack.c.bf16 %v1020, %v1020
    %v1037 = vpack.c.bf16 %v1021, %v1021
    %v1038 = vpack.c.bf16 %v1022, %v1022
    %v1039 = vpack.c.bf16 %v1023, %v1023
    %v1040 = vpack.c.bf16 %v1024, %v1024
    %v1041 = vpack.c.bf16 %v1025, %v1025
    %v1042 = vpack.c.bf16 %v1026, %v1026
    %v1043 = vpack.c.bf16 %v1027, %v1027
    %v1044 = vpack.c.bf16 %v1028, %v1028
    %v1045 = vpack.c.bf16 %v1029, %v1029
    %v1046 = vpack.c.bf16 %v1030, %v1030
    %v1047 = vpack.c.bf16 %v1031, %v1031
    %v1048 = vld [vmem:[%s951 + $0x3] sm:$0xff]
    %v1049 = vld [vmem:[%s951 + $0x13] sm:$0xff]
    %v1050 = vld [vmem:[%s951 + $0x23] sm:$0xff]
    %v1051 = vld [vmem:[%s951 + $0x33] sm:$0xff]
    %v1052 = vld [vmem:[%s951 + $0x43] sm:$0xff]
    %v1053 = vld [vmem:[%s951 + $0x53] sm:$0xff]
    %v1054 = vld [vmem:[%s951 + $0x63] sm:$0xff]
    %v1055 = vld [vmem:[%s951 + $0x73] sm:$0xff]
    %v1056 = vld [vmem:[%s951 + $0xc3] sm:$0xff]
    %v1057 = vld [vmem:[%s951 + $0xd3] sm:$0xff]
    %v1058 = vld [vmem:[%s951 + $0xe3] sm:$0xff]
    %v1059 = vld [vmem:[%s951 + $0xf3] sm:$0xff]
    %v1060 = vld [vmem:[%s951 + $0x103] sm:$0xff]
    %v1061 = vld [vmem:[%s951 + $0x113] sm:$0xff]
    %v1062 = vld [vmem:[%s951 + $0x123] sm:$0xff]
    %v1063 = vld [vmem:[%s951 + $0x133] sm:$0xff]
    %v1064 = vpack.c.bf16 %v1048, %v1048
    %v1065 = vpack.c.bf16 %v1049, %v1049
    %v1066 = vpack.c.bf16 %v1050, %v1050
    %v1067 = vpack.c.bf16 %v1051, %v1051
    %v1068 = vpack.c.bf16 %v1052, %v1052
    %v1069 = vpack.c.bf16 %v1053, %v1053
    %v1070 = vpack.c.bf16 %v1054, %v1054
    %v1071 = vpack.c.bf16 %v1055, %v1055
    %v1072 = vpack.c.bf16 %v1056, %v1056
    %v1073 = vpack.c.bf16 %v1057, %v1057
    %v1074 = vpack.c.bf16 %v1058, %v1058
    %v1075 = vpack.c.bf16 %v1059, %v1059
    %v1076 = vpack.c.bf16 %v1060, %v1060
    %v1077 = vpack.c.bf16 %v1061, %v1061
    %v1078 = vpack.c.bf16 %v1062, %v1062
    %v1079 = vpack.c.bf16 %v1063, %v1063
    %v1080 = vld [vmem:[%s951 + $0x4] sm:$0xff]
    %v1081 = vld [vmem:[%s951 + $0x14] sm:$0xff]
    %v1082 = vld [vmem:[%s951 + $0x24] sm:$0xff]
    %v1083 = vld [vmem:[%s951 + $0x34] sm:$0xff]
    %v1084 = vld [vmem:[%s951 + $0x44] sm:$0xff]
    %v1085 = vld [vmem:[%s951 + $0x54] sm:$0xff]
    %v1086 = vld [vmem:[%s951 + $0x64] sm:$0xff]
    %v1087 = vld [vmem:[%s951 + $0x74] sm:$0xff]
    %v1088 = vld [vmem:[%s951 + $0xc4] sm:$0xff]
    %v1089 = vld [vmem:[%s951 + $0xd4] sm:$0xff]
    %v1090 = vld [vmem:[%s951 + $0xe4] sm:$0xff]
    %v1091 = vld [vmem:[%s951 + $0xf4] sm:$0xff]
    %v1092 = vld [vmem:[%s951 + $0x104] sm:$0xff]
    %v1093 = vld [vmem:[%s951 + $0x114] sm:$0xff]
    %v1094 = vld [vmem:[%s951 + $0x124] sm:$0xff]
    %v1095 = vld [vmem:[%s951 + $0x134] sm:$0xff]
    %v1096 = vpack.c.bf16 %v1080, %v1080
    %v1097 = vpack.c.bf16 %v1081, %v1081
    %v1098 = vpack.c.bf16 %v1082, %v1082
    %v1099 = vpack.c.bf16 %v1083, %v1083
    %v1100 = vpack.c.bf16 %v1084, %v1084
    %v1101 = vpack.c.bf16 %v1085, %v1085
    %v1102 = vpack.c.bf16 %v1086, %v1086
    %v1103 = vpack.c.bf16 %v1087, %v1087
    %v1104 = vpack.c.bf16 %v1088, %v1088
    %v1105 = vpack.c.bf16 %v1089, %v1089
    %v1106 = vpack.c.bf16 %v1090, %v1090
    %v1107 = vpack.c.bf16 %v1091, %v1091
    %v1108 = vpack.c.bf16 %v1092, %v1092
    %v1109 = vpack.c.bf16 %v1093, %v1093
    %v1110 = vpack.c.bf16 %v1094, %v1094
    %v1111 = vpack.c.bf16 %v1095, %v1095
    %v1128 = vunpack.c.l.b16 %v968
    %v1129 = vunpack.c.l.b16 %v969
    %v1130 = vunpack.c.l.b16 %v970
    %v1131 = vunpack.c.l.b16 %v971
    %v1132 = vunpack.c.l.b16 %v972
    %v1133 = vunpack.c.l.b16 %v973
    %v1134 = vunpack.c.l.b16 %v974
    %v1135 = vunpack.c.l.b16 %v975
    %v1136 = vunpack.c.l.b16 %v976
    %v1137 = vunpack.c.l.b16 %v977
    %v1138 = vunpack.c.l.b16 %v978
    %v1139 = vunpack.c.l.b16 %v979
    %v1140 = vunpack.c.l.b16 %v980
    %v1141 = vunpack.c.l.b16 %v981
    %v1142 = vunpack.c.l.b16 %v982
    %v1143 = vunpack.c.l.b16 %v983
    %v1144 = vpack.c.b16 %v1129, %v1128
    %v1145 = vpack.c.b16 %v1131, %v1130
    %v1146 = vpack.c.b16 %v1133, %v1132
    %v1147 = vpack.c.b16 %v1135, %v1134
    %v1148 = vpack.c.b16 %v1137, %v1136
    %v1149 = vpack.c.b16 %v1139, %v1138
    %v1150 = vpack.c.b16 %v1141, %v1140
    %v1151 = vpack.c.b16 %v1143, %v1142
    %v1176 = vunpack.c.l.b16 %v1000
    %v1177 = vunpack.c.l.b16 %v1001
    %v1178 = vunpack.c.l.b16 %v1002
    %v1179 = vunpack.c.l.b16 %v1003
    %v1180 = vunpack.c.l.b16 %v1004
    %v1181 = vunpack.c.l.b16 %v1005
    %v1182 = vunpack.c.l.b16 %v1006
    %v1183 = vunpack.c.l.b16 %v1007
    %v1184 = vunpack.c.l.b16 %v1008
    %v1185 = vunpack.c.l.b16 %v1009
    %v1186 = vunpack.c.l.b16 %v1010
    %v1187 = vunpack.c.l.b16 %v1011
    %v1188 = vunpack.c.l.b16 %v1012
    %v1189 = vunpack.c.l.b16 %v1013
    %v1190 = vunpack.c.l.b16 %v1014
    %v1191 = vunpack.c.l.b16 %v1015
    %v1192 = vpack.c.b16 %v1177, %v1176
    %v1193 = vpack.c.b16 %v1179, %v1178
    %v1194 = vpack.c.b16 %v1181, %v1180
    %v1195 = vpack.c.b16 %v1183, %v1182
    %v1196 = vpack.c.b16 %v1185, %v1184
    %v1197 = vpack.c.b16 %v1187, %v1186
    %v1198 = vpack.c.b16 %v1189, %v1188
    %v1199 = vpack.c.b16 %v1191, %v1190
    %v1224 = vunpack.c.l.b16 %v1032
    %v1225 = vunpack.c.l.b16 %v1033
    %v1226 = vunpack.c.l.b16 %v1034
    %v1227 = vunpack.c.l.b16 %v1035
    %v1228 = vunpack.c.l.b16 %v1036
    %v1229 = vunpack.c.l.b16 %v1037
    %v1230 = vunpack.c.l.b16 %v1038
    %v1231 = vunpack.c.l.b16 %v1039
    %v1232 = vunpack.c.l.b16 %v1040
    %v1233 = vunpack.c.l.b16 %v1041
    %v1234 = vunpack.c.l.b16 %v1042
    %v1235 = vunpack.c.l.b16 %v1043
    %v1236 = vunpack.c.l.b16 %v1044
    %v1237 = vunpack.c.l.b16 %v1045
    %v1238 = vunpack.c.l.b16 %v1046
    %v1239 = vunpack.c.l.b16 %v1047
    %v1240 = vpack.c.b16 %v1225, %v1224
    %v1241 = vpack.c.b16 %v1227, %v1226
    %v1242 = vpack.c.b16 %v1229, %v1228
    %v1243 = vpack.c.b16 %v1231, %v1230
    %v1244 = vpack.c.b16 %v1233, %v1232
    %v1245 = vpack.c.b16 %v1235, %v1234
    %v1246 = vpack.c.b16 %v1237, %v1236
    %v1247 = vpack.c.b16 %v1239, %v1238
    %v1272 = vunpack.c.l.b16 %v1064
    %v1273 = vunpack.c.l.b16 %v1065
    %v1274 = vunpack.c.l.b16 %v1066
    %v1275 = vunpack.c.l.b16 %v1067
    %v1276 = vunpack.c.l.b16 %v1068
    %v1277 = vunpack.c.l.b16 %v1069
    %v1278 = vunpack.c.l.b16 %v1070
    %v1279 = vunpack.c.l.b16 %v1071
    %v1280 = vunpack.c.l.b16 %v1072
    %v1281 = vunpack.c.l.b16 %v1073
    %v1282 = vunpack.c.l.b16 %v1074
    %v1283 = vunpack.c.l.b16 %v1075
    %v1284 = vunpack.c.l.b16 %v1076
    %v1285 = vunpack.c.l.b16 %v1077
    %v1286 = vunpack.c.l.b16 %v1078
    %v1287 = vunpack.c.l.b16 %v1079
    %v1288 = vpack.c.b16 %v1273, %v1272
    %v1289 = vpack.c.b16 %v1275, %v1274
    %v1290 = vpack.c.b16 %v1277, %v1276
    %v1291 = vpack.c.b16 %v1279, %v1278
    %v1292 = vpack.c.b16 %v1281, %v1280
    %v1293 = vpack.c.b16 %v1283, %v1282
    %v1294 = vpack.c.b16 %v1285, %v1284
    %v1295 = vpack.c.b16 %v1287, %v1286
    %v1320 = vunpack.c.l.b16 %v1096
    %v1321 = vunpack.c.l.b16 %v1097
    %v1322 = vunpack.c.l.b16 %v1098
    %v1323 = vunpack.c.l.b16 %v1099
    %v1324 = vunpack.c.l.b16 %v1100
    %v1325 = vunpack.c.l.b16 %v1101
    %v1326 = vunpack.c.l.b16 %v1102
    %v1327 = vunpack.c.l.b16 %v1103
    %v1328 = vunpack.c.l.b16 %v1104
    %v1329 = vunpack.c.l.b16 %v1105
    %v1330 = vunpack.c.l.b16 %v1106
    %v1331 = vunpack.c.l.b16 %v1107
    %v1332 = vunpack.c.l.b16 %v1108
    %v1333 = vunpack.c.l.b16 %v1109
    %v1334 = vunpack.c.l.b16 %v1110
    %v1335 = vunpack.c.l.b16 %v1111
    %v1336 = vpack.c.b16 %v1321, %v1320
    %v1337 = vpack.c.b16 %v1323, %v1322
    %v1338 = vpack.c.b16 %v1325, %v1324
    %v1339 = vpack.c.b16 %v1327, %v1326
    %v1340 = vpack.c.b16 %v1329, %v1328
    %v1341 = vpack.c.b16 %v1331, %v1330
    %v1342 = vpack.c.b16 %v1333, %v1332
    %v1343 = vpack.c.b16 %v1335, %v1334
    %v1352 = vld [vmem:[%s2 + $0x140] sm:$0xf]
    %v1353 = vld [vmem:[%s2 + $0x144] sm:$0xf]
    %v1354 = vld [vmem:[%s2 + $0x148] sm:$0xf]
    %v1355 = vld [vmem:[%s2 + $0x14c] sm:$0xf]
    %v1356 = vld [vmem:[%s2 + $0x150] sm:$0xf]
    %v1357 = vld [vmem:[%s2 + $0x154] sm:$0xf]
    %v1358 = vld [vmem:[%s2 + $0x158] sm:$0xf]
    %v1359 = vld [vmem:[%s2 + $0x15c] sm:$0xf]
    %v1360 = vld [vmem:[%s2 + $0x160] sm:$0xf]
    %v1361 = vld [vmem:[%s2 + $0x164] sm:$0xf]
    %v1362 = vld [vmem:[%s2 + $0x168] sm:$0xf]
    %v1363 = vld [vmem:[%s2 + $0x16c] sm:$0xf]
    %v1364 = vld [vmem:[%s2 + $0x170] sm:$0xf]
    %v1365 = vld [vmem:[%s2 + $0x174] sm:$0xf]
    %v1366 = vld [vmem:[%s2 + $0x178] sm:$0xf]
    %v1367 = vld [vmem:[%s2 + $0x17c] sm:$0xf]
    %v1368 = vld [vmem:[%s2 + $0x180] sm:$0xf]
    %v1369 = vld [vmem:[%s2 + $0x184] sm:$0xf]
    %v1370 = vld [vmem:[%s2 + $0x188] sm:$0xf]
    %v1371 = vld [vmem:[%s2 + $0x18c] sm:$0xf]
    %v1372 = vld [vmem:[%s2 + $0x190] sm:$0xf]
    %v1373 = vld [vmem:[%s2 + $0x194] sm:$0xf]
    %v1374 = vld [vmem:[%s2 + $0x198] sm:$0xf]
    %v1375 = vld [vmem:[%s2 + $0x19c] sm:$0xf]
    %v1376 = vld [vmem:[%s2 + $0x1a0] sm:$0xf]
    %v1377 = vld [vmem:[%s2 + $0x1a4] sm:$0xf]
    %v1378 = vld [vmem:[%s2 + $0x1a8] sm:$0xf]
    %v1379 = vld [vmem:[%s2 + $0x1ac] sm:$0xf]
    %v1380 = vld [vmem:[%s2 + $0x1b0] sm:$0xf]
    %v1381 = vld [vmem:[%s2 + $0x1b4] sm:$0xf]
    %v1382 = vld [vmem:[%s2 + $0x1b8] sm:$0xf]
    %v1383 = vld [vmem:[%s2 + $0x1bc] sm:$0xf]
    %v1384 = vld [vmem:[%s2 + $0x1c0] sm:$0xf]
    %v1385 = vld [vmem:[%s2 + $0x1c4] sm:$0xf]
    %v1386 = vld [vmem:[%s2 + $0x1c8] sm:$0xf]
    %v1387 = vld [vmem:[%s2 + $0x1cc] sm:$0xf]
    %v1388 = vld [vmem:[%s2 + $0x1d0] sm:$0xf]
    %v1389 = vld [vmem:[%s2 + $0x1d4] sm:$0xf]
    %v1390 = vld [vmem:[%s2 + $0x1d8] sm:$0xf]
    %v1391 = vld [vmem:[%s2 + $0x1dc] sm:$0xf]
    %v1392 = vld [vmem:[%s2 + $0x1e0] sm:$0xf]
    %v1393 = vld [vmem:[%s2 + $0x1e4] sm:$0xf]
    %v1394 = vld [vmem:[%s2 + $0x1e8] sm:$0xf]
    %v1395 = vld [vmem:[%s2 + $0x1ec] sm:$0xf]
    %v1396 = vld [vmem:[%s2 + $0x1f0] sm:$0xf]
    %v1397 = vld [vmem:[%s2 + $0x1f4] sm:$0xf]
    %v1398 = vld [vmem:[%s2 + $0x1f8] sm:$0xf]
    %v1399 = vld [vmem:[%s2 + $0x1fc] sm:$0xf]
    %v1400 = vld [vmem:[%s2 + $0x200] sm:$0xf]
    %v1401 = vld [vmem:[%s2 + $0x204] sm:$0xf]
    %v1402 = vld [vmem:[%s2 + $0x208] sm:$0xf]
    %v1403 = vld [vmem:[%s2 + $0x20c] sm:$0xf]
    %v1404 = vld [vmem:[%s2 + $0x210] sm:$0xf]
    %v1405 = vld [vmem:[%s2 + $0x214] sm:$0xf]
    %v1406 = vld [vmem:[%s2 + $0x218] sm:$0xf]
    %v1407 = vld [vmem:[%s2 + $0x21c] sm:$0xf]
    %v1408 = vld [vmem:[%s2 + $0x220] sm:$0xf]
    %v1409 = vld [vmem:[%s2 + $0x224] sm:$0xf]
    %v1410 = vld [vmem:[%s2 + $0x228] sm:$0xf]
    %v1411 = vld [vmem:[%s2 + $0x22c] sm:$0xf]
    %v1412 = vld [vmem:[%s2 + $0x230] sm:$0xf]
    %v1413 = vld [vmem:[%s2 + $0x234] sm:$0xf]
    %v1414 = vld [vmem:[%s2 + $0x238] sm:$0xf]
    %v1415 = vld [vmem:[%s2 + $0x23c] sm:$0xf]
    %v1416 = vld [vmem:[%s2 + $0x240] sm:$0xf]
    %v1417 = vld [vmem:[%s2 + $0x244] sm:$0xf]
    %v1418 = vld [vmem:[%s2 + $0x248] sm:$0xf]
    %v1419 = vld [vmem:[%s2 + $0x24c] sm:$0xf]
    %v1420 = vld [vmem:[%s2 + $0x250] sm:$0xf]
    %v1421 = vld [vmem:[%s2 + $0x254] sm:$0xf]
    %v1422 = vld [vmem:[%s2 + $0x258] sm:$0xf]
    %v1423 = vld [vmem:[%s2 + $0x25c] sm:$0xf]
    %v1424 = vld [vmem:[%s2 + $0x260] sm:$0xf]
    %v1425 = vld [vmem:[%s2 + $0x264] sm:$0xf]
    %v1426 = vld [vmem:[%s2 + $0x268] sm:$0xf]
    %v1427 = vld [vmem:[%s2 + $0x26c] sm:$0xf]
    %v1428 = vld [vmem:[%s2 + $0x270] sm:$0xf]
    %v1429 = vld [vmem:[%s2 + $0x274] sm:$0xf]
    %v1430 = vld [vmem:[%s2 + $0x278] sm:$0xf]
    %v1431 = vld [vmem:[%s2 + $0x27c] sm:$0xf]
    %v1512 = vunpack.c.l.b16 %v1352
    %v1513 = vunpack.c.l.b16 %v1353
    %v1514 = vunpack.c.l.b16 %v1354
    %v1515 = vunpack.c.l.b16 %v1355
    %v1516 = vunpack.c.l.b16 %v1356
    %v1517 = vunpack.c.l.b16 %v1357
    %v1518 = vunpack.c.l.b16 %v1358
    %v1519 = vunpack.c.l.b16 %v1359
    %v1520 = vunpack.c.l.b16 %v1360
    %v1521 = vunpack.c.l.b16 %v1361
    %v1522 = vunpack.c.l.b16 %v1362
    %v1523 = vunpack.c.l.b16 %v1363
    %v1524 = vunpack.c.l.b16 %v1364
    %v1525 = vunpack.c.l.b16 %v1365
    %v1526 = vunpack.c.l.b16 %v1366
    %v1527 = vunpack.c.l.b16 %v1367
    %v1528 = vunpack.c.l.b16 %v1368
    %v1529 = vunpack.c.l.b16 %v1369
    %v1530 = vunpack.c.l.b16 %v1370
    %v1531 = vunpack.c.l.b16 %v1371
    %v1532 = vunpack.c.l.b16 %v1372
    %v1533 = vunpack.c.l.b16 %v1373
    %v1534 = vunpack.c.l.b16 %v1374
    %v1535 = vunpack.c.l.b16 %v1375
    %v1536 = vunpack.c.l.b16 %v1376
    %v1537 = vunpack.c.l.b16 %v1377
    %v1538 = vunpack.c.l.b16 %v1378
    %v1539 = vunpack.c.l.b16 %v1379
    %v1540 = vunpack.c.l.b16 %v1380
    %v1541 = vunpack.c.l.b16 %v1381
    %v1542 = vunpack.c.l.b16 %v1382
    %v1543 = vunpack.c.l.b16 %v1383
    %v1544 = vunpack.c.l.b16 %v1384
    %v1545 = vunpack.c.l.b16 %v1385
    %v1546 = vunpack.c.l.b16 %v1386
    %v1547 = vunpack.c.l.b16 %v1387
    %v1548 = vunpack.c.l.b16 %v1388
    %v1549 = vunpack.c.l.b16 %v1389
    %v1550 = vunpack.c.l.b16 %v1390
    %v1551 = vunpack.c.l.b16 %v1391
    %v1552 = vunpack.c.l.b16 %v1392
    %v1553 = vunpack.c.l.b16 %v1393
    %v1554 = vunpack.c.l.b16 %v1394
    %v1555 = vunpack.c.l.b16 %v1395
    %v1556 = vunpack.c.l.b16 %v1396
    %v1557 = vunpack.c.l.b16 %v1397
    %v1558 = vunpack.c.l.b16 %v1398
    %v1559 = vunpack.c.l.b16 %v1399
    %v1560 = vunpack.c.l.b16 %v1400
    %v1561 = vunpack.c.l.b16 %v1401
    %v1562 = vunpack.c.l.b16 %v1402
    %v1563 = vunpack.c.l.b16 %v1403
    %v1564 = vunpack.c.l.b16 %v1404
    %v1565 = vunpack.c.l.b16 %v1405
    %v1566 = vunpack.c.l.b16 %v1406
    %v1567 = vunpack.c.l.b16 %v1407
    %v1568 = vunpack.c.l.b16 %v1408
    %v1569 = vunpack.c.l.b16 %v1409
    %v1570 = vunpack.c.l.b16 %v1410
    %v1571 = vunpack.c.l.b16 %v1411
    %v1572 = vunpack.c.l.b16 %v1412
    %v1573 = vunpack.c.l.b16 %v1413
    %v1574 = vunpack.c.l.b16 %v1414
    %v1575 = vunpack.c.l.b16 %v1415
    %v1576 = vunpack.c.l.b16 %v1416
    %v1577 = vunpack.c.l.b16 %v1417
    %v1578 = vunpack.c.l.b16 %v1418
    %v1579 = vunpack.c.l.b16 %v1419
    %v1580 = vunpack.c.l.b16 %v1420
    %v1581 = vunpack.c.l.b16 %v1421
    %v1582 = vunpack.c.l.b16 %v1422
    %v1583 = vunpack.c.l.b16 %v1423
    %v1584 = vunpack.c.l.b16 %v1424
    %v1585 = vunpack.c.l.b16 %v1425
    %v1586 = vunpack.c.l.b16 %v1426
    %v1587 = vunpack.c.l.b16 %v1427
    %v1588 = vunpack.c.l.b16 %v1428
    %v1589 = vunpack.c.l.b16 %v1429
    %v1590 = vunpack.c.l.b16 %v1430
    %v1591 = vunpack.c.l.b16 %v1431
    %v1592 = vpack.c.b16 %v1513, %v1512
    %v1593 = vpack.c.b16 %v1515, %v1514
    %v1594 = vpack.c.b16 %v1517, %v1516
    %v1595 = vpack.c.b16 %v1519, %v1518
    %v1596 = vpack.c.b16 %v1521, %v1520
    %v1597 = vpack.c.b16 %v1523, %v1522
    %v1598 = vpack.c.b16 %v1525, %v1524
    %v1599 = vpack.c.b16 %v1527, %v1526
    %v1600 = vpack.c.b16 %v1529, %v1528
    %v1601 = vpack.c.b16 %v1531, %v1530
    %v1602 = vpack.c.b16 %v1533, %v1532
    %v1603 = vpack.c.b16 %v1535, %v1534
    %v1604 = vpack.c.b16 %v1537, %v1536
    %v1605 = vpack.c.b16 %v1539, %v1538
    %v1606 = vpack.c.b16 %v1541, %v1540
    %v1607 = vpack.c.b16 %v1543, %v1542
    %v1608 = vpack.c.b16 %v1545, %v1544
    %v1609 = vpack.c.b16 %v1547, %v1546
    %v1610 = vpack.c.b16 %v1549, %v1548
    %v1611 = vpack.c.b16 %v1551, %v1550
    %v1612 = vpack.c.b16 %v1553, %v1552
    %v1613 = vpack.c.b16 %v1555, %v1554
    %v1614 = vpack.c.b16 %v1557, %v1556
    %v1615 = vpack.c.b16 %v1559, %v1558
    %v1616 = vpack.c.b16 %v1561, %v1560
    %v1617 = vpack.c.b16 %v1563, %v1562
    %v1618 = vpack.c.b16 %v1565, %v1564
    %v1619 = vpack.c.b16 %v1567, %v1566
    %v1620 = vpack.c.b16 %v1569, %v1568
    %v1621 = vpack.c.b16 %v1571, %v1570
    %v1622 = vpack.c.b16 %v1573, %v1572
    %v1623 = vpack.c.b16 %v1575, %v1574
    %v1624 = vpack.c.b16 %v1577, %v1576
    %v1625 = vpack.c.b16 %v1579, %v1578
    %v1626 = vpack.c.b16 %v1581, %v1580
    %v1627 = vpack.c.b16 %v1583, %v1582
    %v1628 = vpack.c.b16 %v1585, %v1584
    %v1629 = vpack.c.b16 %v1587, %v1586
    %v1630 = vpack.c.b16 %v1589, %v1588
    %v1631 = vpack.c.b16 %v1591, %v1590
    %1672 = vmatpush.bf16.msra.mxu0 %v1599
    %1673 = vmatpush.bf16.msra.mxu0 %v1598
    %1674 = vmatpush.bf16.msra.mxu0 %v1597
    %1675 = vmatpush.bf16.msra.mxu0 %v1596
    %1676 = vmatpush.bf16.msra.mxu0 %v1595
    %1677 = vmatpush.bf16.msra.mxu0 %v1594
    %1678 = vmatpush.bf16.msra.mxu0 %v1593
    %1679 = vmatpush.bf16.msra.mxu0 %v1592
    %1680 = vmatmul.bf16.gmra.mxu0 %v1144
    %v1681 = vpop.f32.mrf.mxu0
    %v1682 = vadd.f32 0.0, %v1681
    %v1683 = vpop.f32.mrf.mxu0
    %v1684 = vadd.f32 0.0, %v1683
    %1685 = vmatmul.bf16.gmra.mxu0 %v1145
    %v1686 = vpop.f32.mrf.mxu0
    %v1687 = vadd.f32 0.0, %v1686
    %v1688 = vpop.f32.mrf.mxu0
    %v1689 = vadd.f32 0.0, %v1688
    %1690 = vmatmul.bf16.gmra.mxu0 %v1146
    %v1691 = vpop.f32.mrf.mxu0
    %v1692 = vadd.f32 0.0, %v1691
    %v1693 = vpop.f32.mrf.mxu0
    %v1694 = vadd.f32 0.0, %v1693
    %1695 = vmatmul.bf16.gmra.mxu0 %v1147
    %v1696 = vpop.f32.mrf.mxu0
    %v1697 = vadd.f32 0.0, %v1696
    %v1698 = vpop.f32.mrf.mxu0
    %v1699 = vadd.f32 0.0, %v1698
    %1700 = vmatmul.bf16.gmra.mxu0 %v1148
    %v1701 = vpop.f32.mrf.mxu0
    %v1702 = vadd.f32 0.0, %v1701
    %v1703 = vpop.f32.mrf.mxu0
    %v1704 = vadd.f32 0.0, %v1703
    %1705 = vmatmul.bf16.gmra.mxu0 %v1149
    %v1706 = vpop.f32.mrf.mxu0
    %v1707 = vadd.f32 0.0, %v1706
    %v1708 = vpop.f32.mrf.mxu0
    %v1709 = vadd.f32 0.0, %v1708
    %1710 = vmatmul.bf16.gmra.mxu0 %v1150
    %v1711 = vpop.f32.mrf.mxu0
    %v1712 = vadd.f32 0.0, %v1711
    %v1713 = vpop.f32.mrf.mxu0
    %v1714 = vadd.f32 0.0, %v1713
    %1715 = vmatmul.bf16.gmra.mxu0 %v1151
    %v1716 = vpop.f32.mrf.mxu0
    %v1717 = vadd.f32 0.0, %v1716
    %v1718 = vpop.f32.mrf.mxu0
    %v1719 = vadd.f32 0.0, %v1718
    %1720 = vdwg.mxu0
    %1721 = vmatpush.bf16.msra.mxu0 %v1607
    %1722 = vmatpush.bf16.msra.mxu0 %v1606
    %1723 = vmatpush.bf16.msra.mxu0 %v1605
    %1724 = vmatpush.bf16.msra.mxu0 %v1604
    %1725 = vmatpush.bf16.msra.mxu0 %v1603
    %1726 = vmatpush.bf16.msra.mxu0 %v1602
    %1727 = vmatpush.bf16.msra.mxu0 %v1601
    %1728 = vmatpush.bf16.msra.mxu0 %v1600
    %1729 = vmatmul.bf16.gmra.mxu0 %v1192
    %v1730 = vpop.f32.mrf.mxu0
    %v1731 = vadd.f32 %v1682, %v1730
    %v1732 = vpop.f32.mrf.mxu0
    %v1733 = vadd.f32 %v1684, %v1732
    %1734 = vmatmul.bf16.gmra.mxu0 %v1193
    %v1735 = vpop.f32.mrf.mxu0
    %v1736 = vadd.f32 %v1687, %v1735
    %v1737 = vpop.f32.mrf.mxu0
    %v1738 = vadd.f32 %v1689, %v1737
    %1739 = vmatmul.bf16.gmra.mxu0 %v1194
    %v1740 = vpop.f32.mrf.mxu0
    %v1741 = vadd.f32 %v1692, %v1740
    %v1742 = vpop.f32.mrf.mxu0
    %v1743 = vadd.f32 %v1694, %v1742
    %1744 = vmatmul.bf16.gmra.mxu0 %v1195
    %v1745 = vpop.f32.mrf.mxu0
    %v1746 = vadd.f32 %v1697, %v1745
    %v1747 = vpop.f32.mrf.mxu0
    %v1748 = vadd.f32 %v1699, %v1747
    %1749 = vmatmul.bf16.gmra.mxu0 %v1196
    %v1750 = vpop.f32.mrf.mxu0
    %v1751 = vadd.f32 %v1702, %v1750
    %v1752 = vpop.f32.mrf.mxu0
    %v1753 = vadd.f32 %v1704, %v1752
    %1754 = vmatmul.bf16.gmra.mxu0 %v1197
    %v1755 = vpop.f32.mrf.mxu0
    %v1756 = vadd.f32 %v1707, %v1755
    %v1757 = vpop.f32.mrf.mxu0
    %v1758 = vadd.f32 %v1709, %v1757
    %1759 = vmatmul.bf16.gmra.mxu0 %v1198
    %v1760 = vpop.f32.mrf.mxu0
    %v1761 = vadd.f32 %v1712, %v1760
    %v1762 = vpop.f32.mrf.mxu0
    %v1763 = vadd.f32 %v1714, %v1762
    %1764 = vmatmul.bf16.gmra.mxu0 %v1199
    %v1765 = vpop.f32.mrf.mxu0
    %v1766 = vadd.f32 %v1717, %v1765
    %v1767 = vpop.f32.mrf.mxu0
    %v1768 = vadd.f32 %v1719, %v1767
    %1769 = vdwg.mxu0
    %1770 = vmatpush.bf16.msra.mxu0 %v1615
    %1771 = vmatpush.bf16.msra.mxu0 %v1614
    %1772 = vmatpush.bf16.msra.mxu0 %v1613
    %1773 = vmatpush.bf16.msra.mxu0 %v1612
    %1774 = vmatpush.bf16.msra.mxu0 %v1611
    %1775 = vmatpush.bf16.msra.mxu0 %v1610
    %1776 = vmatpush.bf16.msra.mxu0 %v1609
    %1777 = vmatpush.bf16.msra.mxu0 %v1608
    %1778 = vmatmul.bf16.gmra.mxu0 %v1240
    %v1779 = vpop.f32.mrf.mxu0
    %v1780 = vadd.f32 %v1731, %v1779
    %v1781 = vpop.f32.mrf.mxu0
    %v1782 = vadd.f32 %v1733, %v1781
    %1783 = vmatmul.bf16.gmra.mxu0 %v1241
    %v1784 = vpop.f32.mrf.mxu0
    %v1785 = vadd.f32 %v1736, %v1784
    %v1786 = vpop.f32.mrf.mxu0
    %v1787 = vadd.f32 %v1738, %v1786
    %1788 = vmatmul.bf16.gmra.mxu0 %v1242
    %v1789 = vpop.f32.mrf.mxu0
    %v1790 = vadd.f32 %v1741, %v1789
    %v1791 = vpop.f32.mrf.mxu0
    %v1792 = vadd.f32 %v1743, %v1791
    %1793 = vmatmul.bf16.gmra.mxu0 %v1243
    %v1794 = vpop.f32.mrf.mxu0
    %v1795 = vadd.f32 %v1746, %v1794
    %v1796 = vpop.f32.mrf.mxu0
    %v1797 = vadd.f32 %v1748, %v1796
    %1798 = vmatmul.bf16.gmra.mxu0 %v1244
    %v1799 = vpop.f32.mrf.mxu0
    %v1800 = vadd.f32 %v1751, %v1799
    %v1801 = vpop.f32.mrf.mxu0
    %v1802 = vadd.f32 %v1753, %v1801
    %1803 = vmatmul.bf16.gmra.mxu0 %v1245
    %v1804 = vpop.f32.mrf.mxu0
    %v1805 = vadd.f32 %v1756, %v1804
    %v1806 = vpop.f32.mrf.mxu0
    %v1807 = vadd.f32 %v1758, %v1806
    %1808 = vmatmul.bf16.gmra.mxu0 %v1246
    %v1809 = vpop.f32.mrf.mxu0
    %v1810 = vadd.f32 %v1761, %v1809
    %v1811 = vpop.f32.mrf.mxu0
    %v1812 = vadd.f32 %v1763, %v1811
    %1813 = vmatmul.bf16.gmra.mxu0 %v1247
    %v1814 = vpop.f32.mrf.mxu0
    %v1815 = vadd.f32 %v1766, %v1814
    %v1816 = vpop.f32.mrf.mxu0
    %v1817 = vadd.f32 %v1768, %v1816
    %1818 = vdwg.mxu0
    %1819 = vmatpush.bf16.msra.mxu0 %v1623
    %1820 = vmatpush.bf16.msra.mxu0 %v1622
    %1821 = vmatpush.bf16.msra.mxu0 %v1621
    %1822 = vmatpush.bf16.msra.mxu0 %v1620
    %1823 = vmatpush.bf16.msra.mxu0 %v1619
    %1824 = vmatpush.bf16.msra.mxu0 %v1618
    %1825 = vmatpush.bf16.msra.mxu0 %v1617
    %1826 = vmatpush.bf16.msra.mxu0 %v1616
    %1827 = vmatmul.bf16.gmra.mxu0 %v1288
    %v1828 = vpop.f32.mrf.mxu0
    %v1829 = vadd.f32 %v1780, %v1828
    %v1830 = vpop.f32.mrf.mxu0
    %v1831 = vadd.f32 %v1782, %v1830
    %1832 = vmatmul.bf16.gmra.mxu0 %v1289
    %v1833 = vpop.f32.mrf.mxu0
    %v1834 = vadd.f32 %v1785, %v1833
    %v1835 = vpop.f32.mrf.mxu0
    %v1836 = vadd.f32 %v1787, %v1835
    %1837 = vmatmul.bf16.gmra.mxu0 %v1290
    %v1838 = vpop.f32.mrf.mxu0
    %v1839 = vadd.f32 %v1790, %v1838
    %v1840 = vpop.f32.mrf.mxu0
    %v1841 = vadd.f32 %v1792, %v1840
    %1842 = vmatmul.bf16.gmra.mxu0 %v1291
    %v1843 = vpop.f32.mrf.mxu0
    %v1844 = vadd.f32 %v1795, %v1843
    %v1845 = vpop.f32.mrf.mxu0
    %v1846 = vadd.f32 %v1797, %v1845
    %1847 = vmatmul.bf16.gmra.mxu0 %v1292
    %v1848 = vpop.f32.mrf.mxu0
    %v1849 = vadd.f32 %v1800, %v1848
    %v1850 = vpop.f32.mrf.mxu0
    %v1851 = vadd.f32 %v1802, %v1850
    %1852 = vmatmul.bf16.gmra.mxu0 %v1293
    %v1853 = vpop.f32.mrf.mxu0
    %v1854 = vadd.f32 %v1805, %v1853
    %v1855 = vpop.f32.mrf.mxu0
    %v1856 = vadd.f32 %v1807, %v1855
    %1857 = vmatmul.bf16.gmra.mxu0 %v1294
    %v1858 = vpop.f32.mrf.mxu0
    %v1859 = vadd.f32 %v1810, %v1858
    %v1860 = vpop.f32.mrf.mxu0
    %v1861 = vadd.f32 %v1812, %v1860
    %1862 = vmatmul.bf16.gmra.mxu0 %v1295
    %v1863 = vpop.f32.mrf.mxu0
    %v1864 = vadd.f32 %v1815, %v1863
    %v1865 = vpop.f32.mrf.mxu0
    %v1866 = vadd.f32 %v1817, %v1865
    %1867 = vdwg.mxu0
    %1868 = vmatpush.bf16.msra.mxu0 %v1631
    %1869 = vmatpush.bf16.msra.mxu0 %v1630
    %1870 = vmatpush.bf16.msra.mxu0 %v1629
    %1871 = vmatpush.bf16.msra.mxu0 %v1628
    %1872 = vmatpush.bf16.msra.mxu0 %v1627
    %1873 = vmatpush.bf16.msra.mxu0 %v1626
    %1874 = vmatpush.bf16.msra.mxu0 %v1625
    %1875 = vmatpush.bf16.msra.mxu0 %v1624
    %1876 = vmatmul.bf16.gmra.mxu0 %v1336
    %v1877 = vpop.f32.mrf.mxu0
    %v1878 = vadd.f32 %v1829, %v1877
    %v1879 = vpop.f32.mrf.mxu0
    %v1880 = vadd.f32 %v1831, %v1879
    %1881 = vmatmul.bf16.gmra.mxu0 %v1337
    %v1882 = vpop.f32.mrf.mxu0
    %v1883 = vadd.f32 %v1834, %v1882
    %v1884 = vpop.f32.mrf.mxu0
    %v1885 = vadd.f32 %v1836, %v1884
    %1886 = vmatmul.bf16.gmra.mxu0 %v1338
    %v1887 = vpop.f32.mrf.mxu0
    %v1888 = vadd.f32 %v1839, %v1887
    %v1889 = vpop.f32.mrf.mxu0
    %v1890 = vadd.f32 %v1841, %v1889
    %1891 = vmatmul.bf16.gmra.mxu0 %v1339
    %v1892 = vpop.f32.mrf.mxu0
    %v1893 = vadd.f32 %v1844, %v1892
    %v1894 = vpop.f32.mrf.mxu0
    %v1895 = vadd.f32 %v1846, %v1894
    %1896 = vmatmul.bf16.gmra.mxu0 %v1340
    %v1897 = vpop.f32.mrf.mxu0
    %v1898 = vadd.f32 %v1849, %v1897
    %v1899 = vpop.f32.mrf.mxu0
    %v1900 = vadd.f32 %v1851, %v1899
    %1901 = vmatmul.bf16.gmra.mxu0 %v1341
    %v1902 = vpop.f32.mrf.mxu0
    %v1903 = vadd.f32 %v1854, %v1902
    %v1904 = vpop.f32.mrf.mxu0
    %v1905 = vadd.f32 %v1856, %v1904
    %1906 = vmatmul.bf16.gmra.mxu0 %v1342
    %v1907 = vpop.f32.mrf.mxu0
    %v1908 = vadd.f32 %v1859, %v1907
    %v1909 = vpop.f32.mrf.mxu0
    %v1910 = vadd.f32 %v1861, %v1909
    %1911 = vmatmul.bf16.gmra.mxu0 %v1343
    %v1912 = vpop.f32.mrf.mxu0
    %v1913 = vadd.f32 %v1864, %v1912
    %v1914 = vpop.f32.mrf.mxu0
    %v1915 = vadd.f32 %v1866, %v1914
    %1916 = vdwg.mxu0
    %v1997 = vunpack.c.l.b16 %v871
    %v1998 = vunpack.c.l.b16 %v872
    %v1999 = vunpack.c.l.b16 %v873
    %v2000 = vunpack.c.l.b16 %v874
    %v2001 = vunpack.c.l.b16 %v875
    %v2002 = vunpack.c.l.b16 %v876
    %v2003 = vunpack.c.l.b16 %v877
    %v2004 = vunpack.c.l.b16 %v878
    %v2005 = vunpack.c.l.b16 %v879
    %v2006 = vunpack.c.l.b16 %v880
    %v2007 = vunpack.c.l.b16 %v881
    %v2008 = vunpack.c.l.b16 %v882
    %v2009 = vunpack.c.l.b16 %v883
    %v2010 = vunpack.c.l.b16 %v884
    %v2011 = vunpack.c.l.b16 %v885
    %v2012 = vunpack.c.l.b16 %v886
    %v2013 = vunpack.c.l.b16 %v887
    %v2014 = vunpack.c.l.b16 %v888
    %v2015 = vunpack.c.l.b16 %v889
    %v2016 = vunpack.c.l.b16 %v890
    %v2017 = vunpack.c.l.b16 %v891
    %v2018 = vunpack.c.l.b16 %v892
    %v2019 = vunpack.c.l.b16 %v893
    %v2020 = vunpack.c.l.b16 %v894
    %v2021 = vunpack.c.l.b16 %v895
    %v2022 = vunpack.c.l.b16 %v896
    %v2023 = vunpack.c.l.b16 %v897
    %v2024 = vunpack.c.l.b16 %v898
    %v2025 = vunpack.c.l.b16 %v899
    %v2026 = vunpack.c.l.b16 %v900
    %v2027 = vunpack.c.l.b16 %v901
    %v2028 = vunpack.c.l.b16 %v902
    %v2029 = vunpack.c.l.b16 %v903
    %v2030 = vunpack.c.l.b16 %v904
    %v2031 = vunpack.c.l.b16 %v905
    %v2032 = vunpack.c.l.b16 %v906
    %v2033 = vunpack.c.l.b16 %v907
    %v2034 = vunpack.c.l.b16 %v908
    %v2035 = vunpack.c.l.b16 %v909
    %v2036 = vunpack.c.l.b16 %v910
    %v2037 = vunpack.c.l.b16 %v911
    %v2038 = vunpack.c.l.b16 %v912
    %v2039 = vunpack.c.l.b16 %v913
    %v2040 = vunpack.c.l.b16 %v914
    %v2041 = vunpack.c.l.b16 %v915
    %v2042 = vunpack.c.l.b16 %v916
    %v2043 = vunpack.c.l.b16 %v917
    %v2044 = vunpack.c.l.b16 %v918
    %v2045 = vunpack.c.l.b16 %v919
    %v2046 = vunpack.c.l.b16 %v920
    %v2047 = vunpack.c.l.b16 %v921
    %v2048 = vunpack.c.l.b16 %v922
    %v2049 = vunpack.c.l.b16 %v923
    %v2050 = vunpack.c.l.b16 %v924
    %v2051 = vunpack.c.l.b16 %v925
    %v2052 = vunpack.c.l.b16 %v926
    %v2053 = vunpack.c.l.b16 %v927
    %v2054 = vunpack.c.l.b16 %v928
    %v2055 = vunpack.c.l.b16 %v929
    %v2056 = vunpack.c.l.b16 %v930
    %v2057 = vunpack.c.l.b16 %v931
    %v2058 = vunpack.c.l.b16 %v932
    %v2059 = vunpack.c.l.b16 %v933
    %v2060 = vunpack.c.l.b16 %v934
    %v2061 = vunpack.c.l.b16 %v935
    %v2062 = vunpack.c.l.b16 %v936
    %v2063 = vunpack.c.l.b16 %v937
    %v2064 = vunpack.c.l.b16 %v938
    %v2065 = vunpack.c.l.b16 %v939
    %v2066 = vunpack.c.l.b16 %v940
    %v2067 = vunpack.c.l.b16 %v941
    %v2068 = vunpack.c.l.b16 %v942
    %v2069 = vunpack.c.l.b16 %v943
    %v2070 = vunpack.c.l.b16 %v944
    %v2071 = vunpack.c.l.b16 %v945
    %v2072 = vunpack.c.l.b16 %v946
    %v2073 = vunpack.c.l.b16 %v947
    %v2074 = vunpack.c.l.b16 %v948
    %v2075 = vunpack.c.l.b16 %v949
    %v2076 = vunpack.c.l.b16 %v950
    %v2077 = vpack.c.b16 %v1998, %v1997
    %v2078 = vpack.c.b16 %v2000, %v1999
    %v2079 = vpack.c.b16 %v2002, %v2001
    %v2080 = vpack.c.b16 %v2004, %v2003
    %v2081 = vpack.c.b16 %v2006, %v2005
    %v2082 = vpack.c.b16 %v2008, %v2007
    %v2083 = vpack.c.b16 %v2010, %v2009
    %v2084 = vpack.c.b16 %v2012, %v2011
    %v2085 = vpack.c.b16 %v2014, %v2013
    %v2086 = vpack.c.b16 %v2016, %v2015
    %v2087 = vpack.c.b16 %v2018, %v2017
    %v2088 = vpack.c.b16 %v2020, %v2019
    %v2089 = vpack.c.b16 %v2022, %v2021
    %v2090 = vpack.c.b16 %v2024, %v2023
    %v2091 = vpack.c.b16 %v2026, %v2025
    %v2092 = vpack.c.b16 %v2028, %v2027
    %v2093 = vpack.c.b16 %v2030, %v2029
    %v2094 = vpack.c.b16 %v2032, %v2031
    %v2095 = vpack.c.b16 %v2034, %v2033
    %v2096 = vpack.c.b16 %v2036, %v2035
    %v2097 = vpack.c.b16 %v2038, %v2037
    %v2098 = vpack.c.b16 %v2040, %v2039
    %v2099 = vpack.c.b16 %v2042, %v2041
    %v2100 = vpack.c.b16 %v2044, %v2043
    %v2101 = vpack.c.b16 %v2046, %v2045
    %v2102 = vpack.c.b16 %v2048, %v2047
    %v2103 = vpack.c.b16 %v2050, %v2049
    %v2104 = vpack.c.b16 %v2052, %v2051
    %v2105 = vpack.c.b16 %v2054, %v2053
    %v2106 = vpack.c.b16 %v2056, %v2055
    %v2107 = vpack.c.b16 %v2058, %v2057
    %v2108 = vpack.c.b16 %v2060, %v2059
    %v2109 = vpack.c.b16 %v2062, %v2061
    %v2110 = vpack.c.b16 %v2064, %v2063
    %v2111 = vpack.c.b16 %v2066, %v2065
    %v2112 = vpack.c.b16 %v2068, %v2067
    %v2113 = vpack.c.b16 %v2070, %v2069
    %v2114 = vpack.c.b16 %v2072, %v2071
    %v2115 = vpack.c.b16 %v2074, %v2073
    %v2116 = vpack.c.b16 %v2076, %v2075
    %2157 = vmatpush.bf16.msra.mxu0 %v2084
    %2158 = vmatpush.bf16.msra.mxu0 %v2083
    %2159 = vmatpush.bf16.msra.mxu0 %v2082
    %2160 = vmatpush.bf16.msra.mxu0 %v2081
    %2161 = vmatpush.bf16.msra.mxu0 %v2080
    %2162 = vmatpush.bf16.msra.mxu0 %v2079
    %2163 = vmatpush.bf16.msra.mxu0 %v2078
    %2164 = vmatpush.bf16.msra.mxu0 %v2077
    %2165 = vmatmul.bf16.gmra.mxu0 %v663
    %v2166 = vpop.f32.mrf.mxu0
    %v2167 = vadd.f32 %v1878, %v2166
    %v2168 = vpop.f32.mrf.mxu0
    %v2169 = vadd.f32 %v1880, %v2168
    %2170 = vmatmul.bf16.gmra.mxu0 %v664
    %v2171 = vpop.f32.mrf.mxu0
    %v2172 = vadd.f32 %v1883, %v2171
    %v2173 = vpop.f32.mrf.mxu0
    %v2174 = vadd.f32 %v1885, %v2173
    %2175 = vmatmul.bf16.gmra.mxu0 %v665
    %v2176 = vpop.f32.mrf.mxu0
    %v2177 = vadd.f32 %v1888, %v2176
    %v2178 = vpop.f32.mrf.mxu0
    %v2179 = vadd.f32 %v1890, %v2178
    %2180 = vmatmul.bf16.gmra.mxu0 %v666
    %v2181 = vpop.f32.mrf.mxu0
    %v2182 = vadd.f32 %v1893, %v2181
    %v2183 = vpop.f32.mrf.mxu0
    %v2184 = vadd.f32 %v1895, %v2183
    %2185 = vmatmul.bf16.gmra.mxu0 %v667
    %v2186 = vpop.f32.mrf.mxu0
    %v2187 = vadd.f32 %v1898, %v2186
    %v2188 = vpop.f32.mrf.mxu0
    %v2189 = vadd.f32 %v1900, %v2188
    %2190 = vmatmul.bf16.gmra.mxu0 %v668
    %v2191 = vpop.f32.mrf.mxu0
    %v2192 = vadd.f32 %v1903, %v2191
    %v2193 = vpop.f32.mrf.mxu0
    %v2194 = vadd.f32 %v1905, %v2193
    %2195 = vmatmul.bf16.gmra.mxu0 %v669
    %v2196 = vpop.f32.mrf.mxu0
    %v2197 = vadd.f32 %v1908, %v2196
    %v2198 = vpop.f32.mrf.mxu0
    %v2199 = vadd.f32 %v1910, %v2198
    %2200 = vmatmul.bf16.gmra.mxu0 %v670
    %v2201 = vpop.f32.mrf.mxu0
    %v2202 = vadd.f32 %v1913, %v2201
    %v2203 = vpop.f32.mrf.mxu0
    %v2204 = vadd.f32 %v1915, %v2203
    %2205 = vdwg.mxu0
    %2206 = vmatpush.bf16.msra.mxu0 %v2092
    %2207 = vmatpush.bf16.msra.mxu0 %v2091
    %2208 = vmatpush.bf16.msra.mxu0 %v2090
    %2209 = vmatpush.bf16.msra.mxu0 %v2089
    %2210 = vmatpush.bf16.msra.mxu0 %v2088
    %2211 = vmatpush.bf16.msra.mxu0 %v2087
    %2212 = vmatpush.bf16.msra.mxu0 %v2086
    %2213 = vmatpush.bf16.msra.mxu0 %v2085
    %2214 = vmatmul.bf16.gmra.mxu0 %v711
    %v2215 = vpop.f32.mrf.mxu0
    %v2216 = vadd.f32 %v2167, %v2215
    %v2217 = vpop.f32.mrf.mxu0
    %v2218 = vadd.f32 %v2169, %v2217
    %2219 = vmatmul.bf16.gmra.mxu0 %v712
    %v2220 = vpop.f32.mrf.mxu0
    %v2221 = vadd.f32 %v2172, %v2220
    %v2222 = vpop.f32.mrf.mxu0
    %v2223 = vadd.f32 %v2174, %v2222
    %2224 = vmatmul.bf16.gmra.mxu0 %v713
    %v2225 = vpop.f32.mrf.mxu0
    %v2226 = vadd.f32 %v2177, %v2225
    %v2227 = vpop.f32.mrf.mxu0
    %v2228 = vadd.f32 %v2179, %v2227
    %2229 = vmatmul.bf16.gmra.mxu0 %v714
    %v2230 = vpop.f32.mrf.mxu0
    %v2231 = vadd.f32 %v2182, %v2230
    %v2232 = vpop.f32.mrf.mxu0
    %v2233 = vadd.f32 %v2184, %v2232
    %2234 = vmatmul.bf16.gmra.mxu0 %v715
    %v2235 = vpop.f32.mrf.mxu0
    %v2236 = vadd.f32 %v2187, %v2235
    %v2237 = vpop.f32.mrf.mxu0
    %v2238 = vadd.f32 %v2189, %v2237
    %2239 = vmatmul.bf16.gmra.mxu0 %v716
    %v2240 = vpop.f32.mrf.mxu0
    %v2241 = vadd.f32 %v2192, %v2240
    %v2242 = vpop.f32.mrf.mxu0
    %v2243 = vadd.f32 %v2194, %v2242
    %2244 = vmatmul.bf16.gmra.mxu0 %v717
    %v2245 = vpop.f32.mrf.mxu0
    %v2246 = vadd.f32 %v2197, %v2245
    %v2247 = vpop.f32.mrf.mxu0
    %v2248 = vadd.f32 %v2199, %v2247
    %2249 = vmatmul.bf16.gmra.mxu0 %v718
    %v2250 = vpop.f32.mrf.mxu0
    %v2251 = vadd.f32 %v2202, %v2250
    %v2252 = vpop.f32.mrf.mxu0
    %v2253 = vadd.f32 %v2204, %v2252
    %2254 = vdwg.mxu0
    %2255 = vmatpush.bf16.msra.mxu0 %v2100
    %2256 = vmatpush.bf16.msra.mxu0 %v2099
    %2257 = vmatpush.bf16.msra.mxu0 %v2098
    %2258 = vmatpush.bf16.msra.mxu0 %v2097
    %2259 = vmatpush.bf16.msra.mxu0 %v2096
    %2260 = vmatpush.bf16.msra.mxu0 %v2095
    %2261 = vmatpush.bf16.msra.mxu0 %v2094
    %2262 = vmatpush.bf16.msra.mxu0 %v2093
    %2263 = vmatmul.bf16.gmra.mxu0 %v759
    %v2264 = vpop.f32.mrf.mxu0
    %v2265 = vadd.f32 %v2216, %v2264
    %v2266 = vpop.f32.mrf.mxu0
    %v2267 = vadd.f32 %v2218, %v2266
    %2268 = vmatmul.bf16.gmra.mxu0 %v760
    %v2269 = vpop.f32.mrf.mxu0
    %v2270 = vadd.f32 %v2221, %v2269
    %v2271 = vpop.f32.mrf.mxu0
    %v2272 = vadd.f32 %v2223, %v2271
    %2273 = vmatmul.bf16.gmra.mxu0 %v761
    %v2274 = vpop.f32.mrf.mxu0
    %v2275 = vadd.f32 %v2226, %v2274
    %v2276 = vpop.f32.mrf.mxu0
    %v2277 = vadd.f32 %v2228, %v2276
    %2278 = vmatmul.bf16.gmra.mxu0 %v762
    %v2279 = vpop.f32.mrf.mxu0
    %v2280 = vadd.f32 %v2231, %v2279
    %v2281 = vpop.f32.mrf.mxu0
    %v2282 = vadd.f32 %v2233, %v2281
    %2283 = vmatmul.bf16.gmra.mxu0 %v763
    %v2284 = vpop.f32.mrf.mxu0
    %v2285 = vadd.f32 %v2236, %v2284
    %v2286 = vpop.f32.mrf.mxu0
    %v2287 = vadd.f32 %v2238, %v2286
    %2288 = vmatmul.bf16.gmra.mxu0 %v764
    %v2289 = vpop.f32.mrf.mxu0
    %v2290 = vadd.f32 %v2241, %v2289
    %v2291 = vpop.f32.mrf.mxu0
    %v2292 = vadd.f32 %v2243, %v2291
    %2293 = vmatmul.bf16.gmra.mxu0 %v765
    %v2294 = vpop.f32.mrf.mxu0
    %v2295 = vadd.f32 %v2246, %v2294
    %v2296 = vpop.f32.mrf.mxu0
    %v2297 = vadd.f32 %v2248, %v2296
    %2298 = vmatmul.bf16.gmra.mxu0 %v766
    %v2299 = vpop.f32.mrf.mxu0
    %v2300 = vadd.f32 %v2251, %v2299
    %v2301 = vpop.f32.mrf.mxu0
    %v2302 = vadd.f32 %v2253, %v2301
    %2303 = vdwg.mxu0
    %2304 = vmatpush.bf16.msra.mxu0 %v2108
    %2305 = vmatpush.bf16.msra.mxu0 %v2107
    %2306 = vmatpush.bf16.msra.mxu0 %v2106
    %2307 = vmatpush.bf16.msra.mxu0 %v2105
    %2308 = vmatpush.bf16.msra.mxu0 %v2104
    %2309 = vmatpush.bf16.msra.mxu0 %v2103
    %2310 = vmatpush.bf16.msra.mxu0 %v2102
    %2311 = vmatpush.bf16.msra.mxu0 %v2101
    %2312 = vmatmul.bf16.gmra.mxu0 %v807
    %v2313 = vpop.f32.mrf.mxu0
    %v2314 = vadd.f32 %v2265, %v2313
    %v2315 = vpop.f32.mrf.mxu0
    %v2316 = vadd.f32 %v2267, %v2315
    %2317 = vmatmul.bf16.gmra.mxu0 %v808
    %v2318 = vpop.f32.mrf.mxu0
    %v2319 = vadd.f32 %v2270, %v2318
    %v2320 = vpop.f32.mrf.mxu0
    %v2321 = vadd.f32 %v2272, %v2320
    %2322 = vmatmul.bf16.gmra.mxu0 %v809
    %v2323 = vpop.f32.mrf.mxu0
    %v2324 = vadd.f32 %v2275, %v2323
    %v2325 = vpop.f32.mrf.mxu0
    %v2326 = vadd.f32 %v2277, %v2325
    %2327 = vmatmul.bf16.gmra.mxu0 %v810
    %v2328 = vpop.f32.mrf.mxu0
    %v2329 = vadd.f32 %v2280, %v2328
    %v2330 = vpop.f32.mrf.mxu0
    %v2331 = vadd.f32 %v2282, %v2330
    %2332 = vmatmul.bf16.gmra.mxu0 %v811
    %v2333 = vpop.f32.mrf.mxu0
    %v2334 = vadd.f32 %v2285, %v2333
    %v2335 = vpop.f32.mrf.mxu0
    %v2336 = vadd.f32 %v2287, %v2335
    %2337 = vmatmul.bf16.gmra.mxu0 %v812
    %v2338 = vpop.f32.mrf.mxu0
    %v2339 = vadd.f32 %v2290, %v2338
    %v2340 = vpop.f32.mrf.mxu0
    %v2341 = vadd.f32 %v2292, %v2340
    %2342 = vmatmul.bf16.gmra.mxu0 %v813
    %v2343 = vpop.f32.mrf.mxu0
    %v2344 = vadd.f32 %v2295, %v2343
    %v2345 = vpop.f32.mrf.mxu0
    %v2346 = vadd.f32 %v2297, %v2345
    %2347 = vmatmul.bf16.gmra.mxu0 %v814
    %v2348 = vpop.f32.mrf.mxu0
    %v2349 = vadd.f32 %v2300, %v2348
    %v2350 = vpop.f32.mrf.mxu0
    %v2351 = vadd.f32 %v2302, %v2350
    %2352 = vdwg.mxu0
    %2353 = vmatpush.bf16.msra.mxu0 %v2116
    %2354 = vmatpush.bf16.msra.mxu0 %v2115
    %2355 = vmatpush.bf16.msra.mxu0 %v2114
    %2356 = vmatpush.bf16.msra.mxu0 %v2113
    %2357 = vmatpush.bf16.msra.mxu0 %v2112
    %2358 = vmatpush.bf16.msra.mxu0 %v2111
    %2359 = vmatpush.bf16.msra.mxu0 %v2110
    %2360 = vmatpush.bf16.msra.mxu0 %v2109
    %2361 = vmatmul.bf16.gmra.mxu0 %v855
    %v2362 = vpop.f32.mrf.mxu0
    %v2363 = vadd.f32 %v2314, %v2362
    %v2364 = vpop.f32.mrf.mxu0
    %v2365 = vadd.f32 %v2316, %v2364
    %2366 = vmatmul.bf16.gmra.mxu0 %v856
    %v2367 = vpop.f32.mrf.mxu0
    %v2368 = vadd.f32 %v2319, %v2367
    %v2369 = vpop.f32.mrf.mxu0
    %v2370 = vadd.f32 %v2321, %v2369
    %2371 = vmatmul.bf16.gmra.mxu0 %v857
    %v2372 = vpop.f32.mrf.mxu0
    %v2373 = vadd.f32 %v2324, %v2372
    %v2374 = vpop.f32.mrf.mxu0
    %v2375 = vadd.f32 %v2326, %v2374
    %2376 = vmatmul.bf16.gmra.mxu0 %v858
    %v2377 = vpop.f32.mrf.mxu0
    %v2378 = vadd.f32 %v2329, %v2377
    %v2379 = vpop.f32.mrf.mxu0
    %v2380 = vadd.f32 %v2331, %v2379
    %2381 = vmatmul.bf16.gmra.mxu0 %v859
    %v2382 = vpop.f32.mrf.mxu0
    %v2383 = vadd.f32 %v2334, %v2382
    %v2384 = vpop.f32.mrf.mxu0
    %v2385 = vadd.f32 %v2336, %v2384
    %2386 = vmatmul.bf16.gmra.mxu0 %v860
    %v2387 = vpop.f32.mrf.mxu0
    %v2388 = vadd.f32 %v2339, %v2387
    %v2389 = vpop.f32.mrf.mxu0
    %v2390 = vadd.f32 %v2341, %v2389
    %2391 = vmatmul.bf16.gmra.mxu0 %v861
    %v2392 = vpop.f32.mrf.mxu0
    %v2393 = vadd.f32 %v2344, %v2392
    %v2394 = vpop.f32.mrf.mxu0
    %v2395 = vadd.f32 %v2346, %v2394
    %2396 = vmatmul.bf16.gmra.mxu0 %v862
    %v2397 = vpop.f32.mrf.mxu0
    %v2398 = vadd.f32 %v2349, %v2397
    %v2399 = vpop.f32.mrf.mxu0
    %v2400 = vadd.f32 %v2351, %v2399
    %2401 = vdwg.mxu0
    %v2402 = vld [vmem:[%s454] sm:$0xff]
    %v2403 = vld [vmem:[%s454 + $0x10] sm:$0xff]
    %v2404 = vld [vmem:[%s454 + $0x20] sm:$0xff]
    %v2405 = vld [vmem:[%s454 + $0x30] sm:$0xff]
    %v2406 = vld [vmem:[%s454 + $0x40] sm:$0xff]
    %v2407 = vld [vmem:[%s454 + $0x50] sm:$0xff]
    %v2408 = vld [vmem:[%s454 + $0x60] sm:$0xff]
    %v2409 = vld [vmem:[%s454 + $0x70] sm:$0xff]
    %v2410 = vld [vmem:[%s454 + $0xc0] sm:$0xff]
    %v2411 = vld [vmem:[%s454 + $0xd0] sm:$0xff]
    %v2412 = vld [vmem:[%s454 + $0xe0] sm:$0xff]
    %v2413 = vld [vmem:[%s454 + $0xf0] sm:$0xff]
    %v2414 = vld [vmem:[%s454 + $0x100] sm:$0xff]
    %v2415 = vld [vmem:[%s454 + $0x110] sm:$0xff]
    %v2416 = vld [vmem:[%s454 + $0x120] sm:$0xff]
    %v2417 = vld [vmem:[%s454 + $0x130] sm:$0xff]
    %v2418 = vpack.c.bf16 %v2402, %v2402
    %v2419 = vpack.c.bf16 %v2403, %v2403
    %v2420 = vpack.c.bf16 %v2404, %v2404
    %v2421 = vpack.c.bf16 %v2405, %v2405
    %v2422 = vpack.c.bf16 %v2406, %v2406
    %v2423 = vpack.c.bf16 %v2407, %v2407
    %v2424 = vpack.c.bf16 %v2408, %v2408
    %v2425 = vpack.c.bf16 %v2409, %v2409
    %v2426 = vpack.c.bf16 %v2410, %v2410
    %v2427 = vpack.c.bf16 %v2411, %v2411
    %v2428 = vpack.c.bf16 %v2412, %v2412
    %v2429 = vpack.c.bf16 %v2413, %v2413
    %v2430 = vpack.c.bf16 %v2414, %v2414
    %v2431 = vpack.c.bf16 %v2415, %v2415
    %v2432 = vpack.c.bf16 %v2416, %v2416
    %v2433 = vpack.c.bf16 %v2417, %v2417
    %v2434 = vld [vmem:[%s454 + $0x1] sm:$0xff]
    %v2435 = vld [vmem:[%s454 + $0x11] sm:$0xff]
    %v2436 = vld [vmem:[%s454 + $0x21] sm:$0xff]
    %v2437 = vld [vmem:[%s454 + $0x31] sm:$0xff]
    %v2438 = vld [vmem:[%s454 + $0x41] sm:$0xff]
    %v2439 = vld [vmem:[%s454 + $0x51] sm:$0xff]
    %v2440 = vld [vmem:[%s454 + $0x61] sm:$0xff]
    %v2441 = vld [vmem:[%s454 + $0x71] sm:$0xff]
    %v2442 = vld [vmem:[%s454 + $0xc1] sm:$0xff]
    %v2443 = vld [vmem:[%s454 + $0xd1] sm:$0xff]
    %v2444 = vld [vmem:[%s454 + $0xe1] sm:$0xff]
    %v2445 = vld [vmem:[%s454 + $0xf1] sm:$0xff]
    %v2446 = vld [vmem:[%s454 + $0x101] sm:$0xff]
    %v2447 = vld [vmem:[%s454 + $0x111] sm:$0xff]
    %v2448 = vld [vmem:[%s454 + $0x121] sm:$0xff]
    %v2449 = vld [vmem:[%s454 + $0x131] sm:$0xff]
    %v2450 = vpack.c.bf16 %v2434, %v2434
    %v2451 = vpack.c.bf16 %v2435, %v2435
    %v2452 = vpack.c.bf16 %v2436, %v2436
    %v2453 = vpack.c.bf16 %v2437, %v2437
    %v2454 = vpack.c.bf16 %v2438, %v2438
    %v2455 = vpack.c.bf16 %v2439, %v2439
    %v2456 = vpack.c.bf16 %v2440, %v2440
    %v2457 = vpack.c.bf16 %v2441, %v2441
    %v2458 = vpack.c.bf16 %v2442, %v2442
    %v2459 = vpack.c.bf16 %v2443, %v2443
    %v2460 = vpack.c.bf16 %v2444, %v2444
    %v2461 = vpack.c.bf16 %v2445, %v2445
    %v2462 = vpack.c.bf16 %v2446, %v2446
    %v2463 = vpack.c.bf16 %v2447, %v2447
    %v2464 = vpack.c.bf16 %v2448, %v2448
    %v2465 = vpack.c.bf16 %v2449, %v2449
    %v2466 = vld [vmem:[%s454 + $0x2] sm:$0xff]
    %v2467 = vld [vmem:[%s454 + $0x12] sm:$0xff]
    %v2468 = vld [vmem:[%s454 + $0x22] sm:$0xff]
    %v2469 = vld [vmem:[%s454 + $0x32] sm:$0xff]
    %v2470 = vld [vmem:[%s454 + $0x42] sm:$0xff]
    %v2471 = vld [vmem:[%s454 + $0x52] sm:$0xff]
    %v2472 = vld [vmem:[%s454 + $0x62] sm:$0xff]
    %v2473 = vld [vmem:[%s454 + $0x72] sm:$0xff]
    %v2474 = vld [vmem:[%s454 + $0xc2] sm:$0xff]
    %v2475 = vld [vmem:[%s454 + $0xd2] sm:$0xff]
    %v2476 = vld [vmem:[%s454 + $0xe2] sm:$0xff]
    %v2477 = vld [vmem:[%s454 + $0xf2] sm:$0xff]
    %v2478 = vld [vmem:[%s454 + $0x102] sm:$0xff]
    %v2479 = vld [vmem:[%s454 + $0x112] sm:$0xff]
    %v2480 = vld [vmem:[%s454 + $0x122] sm:$0xff]
    %v2481 = vld [vmem:[%s454 + $0x132] sm:$0xff]
    %v2482 = vpack.c.bf16 %v2466, %v2466
    %v2483 = vpack.c.bf16 %v2467, %v2467
    %v2484 = vpack.c.bf16 %v2468, %v2468
    %v2485 = vpack.c.bf16 %v2469, %v2469
    %v2486 = vpack.c.bf16 %v2470, %v2470
    %v2487 = vpack.c.bf16 %v2471, %v2471
    %v2488 = vpack.c.bf16 %v2472, %v2472
    %v2489 = vpack.c.bf16 %v2473, %v2473
    %v2490 = vpack.c.bf16 %v2474, %v2474
    %v2491 = vpack.c.bf16 %v2475, %v2475
    %v2492 = vpack.c.bf16 %v2476, %v2476
    %v2493 = vpack.c.bf16 %v2477, %v2477
    %v2494 = vpack.c.bf16 %v2478, %v2478
    %v2495 = vpack.c.bf16 %v2479, %v2479
    %v2496 = vpack.c.bf16 %v2480, %v2480
    %v2497 = vpack.c.bf16 %v2481, %v2481
    %v2498 = vld [vmem:[%s454 + $0x3] sm:$0xff]
    %v2499 = vld [vmem:[%s454 + $0x13] sm:$0xff]
    %v2500 = vld [vmem:[%s454 + $0x23] sm:$0xff]
    %v2501 = vld [vmem:[%s454 + $0x33] sm:$0xff]
    %v2502 = vld [vmem:[%s454 + $0x43] sm:$0xff]
    %v2503 = vld [vmem:[%s454 + $0x53] sm:$0xff]
    %v2504 = vld [vmem:[%s454 + $0x63] sm:$0xff]
    %v2505 = vld [vmem:[%s454 + $0x73] sm:$0xff]
    %v2506 = vld [vmem:[%s454 + $0xc3] sm:$0xff]
    %v2507 = vld [vmem:[%s454 + $0xd3] sm:$0xff]
    %v2508 = vld [vmem:[%s454 + $0xe3] sm:$0xff]
    %v2509 = vld [vmem:[%s454 + $0xf3] sm:$0xff]
    %v2510 = vld [vmem:[%s454 + $0x103] sm:$0xff]
    %v2511 = vld [vmem:[%s454 + $0x113] sm:$0xff]
    %v2512 = vld [vmem:[%s454 + $0x123] sm:$0xff]
    %v2513 = vld [vmem:[%s454 + $0x133] sm:$0xff]
    %v2514 = vpack.c.bf16 %v2498, %v2498
    %v2515 = vpack.c.bf16 %v2499, %v2499
    %v2516 = vpack.c.bf16 %v2500, %v2500
    %v2517 = vpack.c.bf16 %v2501, %v2501
    %v2518 = vpack.c.bf16 %v2502, %v2502
    %v2519 = vpack.c.bf16 %v2503, %v2503
    %v2520 = vpack.c.bf16 %v2504, %v2504
    %v2521 = vpack.c.bf16 %v2505, %v2505
    %v2522 = vpack.c.bf16 %v2506, %v2506
    %v2523 = vpack.c.bf16 %v2507, %v2507
    %v2524 = vpack.c.bf16 %v2508, %v2508
    %v2525 = vpack.c.bf16 %v2509, %v2509
    %v2526 = vpack.c.bf16 %v2510, %v2510
    %v2527 = vpack.c.bf16 %v2511, %v2511
    %v2528 = vpack.c.bf16 %v2512, %v2512
    %v2529 = vpack.c.bf16 %v2513, %v2513
    %v2530 = vld [vmem:[%s454 + $0x4] sm:$0xff]
    %v2531 = vld [vmem:[%s454 + $0x14] sm:$0xff]
    %v2532 = vld [vmem:[%s454 + $0x24] sm:$0xff]
    %v2533 = vld [vmem:[%s454 + $0x34] sm:$0xff]
    %v2534 = vld [vmem:[%s454 + $0x44] sm:$0xff]
    %v2535 = vld [vmem:[%s454 + $0x54] sm:$0xff]
    %v2536 = vld [vmem:[%s454 + $0x64] sm:$0xff]
    %v2537 = vld [vmem:[%s454 + $0x74] sm:$0xff]
    %v2538 = vld [vmem:[%s454 + $0xc4] sm:$0xff]
    %v2539 = vld [vmem:[%s454 + $0xd4] sm:$0xff]
    %v2540 = vld [vmem:[%s454 + $0xe4] sm:$0xff]
    %v2541 = vld [vmem:[%s454 + $0xf4] sm:$0xff]
    %v2542 = vld [vmem:[%s454 + $0x104] sm:$0xff]
    %v2543 = vld [vmem:[%s454 + $0x114] sm:$0xff]
    %v2544 = vld [vmem:[%s454 + $0x124] sm:$0xff]
    %v2545 = vld [vmem:[%s454 + $0x134] sm:$0xff]
    %v2546 = vpack.c.bf16 %v2530, %v2530
    %v2547 = vpack.c.bf16 %v2531, %v2531
    %v2548 = vpack.c.bf16 %v2532, %v2532
    %v2549 = vpack.c.bf16 %v2533, %v2533
    %v2550 = vpack.c.bf16 %v2534, %v2534
    %v2551 = vpack.c.bf16 %v2535, %v2535
    %v2552 = vpack.c.bf16 %v2536, %v2536
    %v2553 = vpack.c.bf16 %v2537, %v2537
    %v2554 = vpack.c.bf16 %v2538, %v2538
    %v2555 = vpack.c.bf16 %v2539, %v2539
    %v2556 = vpack.c.bf16 %v2540, %v2540
    %v2557 = vpack.c.bf16 %v2541, %v2541
    %v2558 = vpack.c.bf16 %v2542, %v2542
    %v2559 = vpack.c.bf16 %v2543, %v2543
    %v2560 = vpack.c.bf16 %v2544, %v2544
    %v2561 = vpack.c.bf16 %v2545, %v2545
    %v2578 = vunpack.c.l.b16 %v2418
    %v2579 = vunpack.c.l.b16 %v2419
    %v2580 = vunpack.c.l.b16 %v2420
    %v2581 = vunpack.c.l.b16 %v2421
    %v2582 = vunpack.c.l.b16 %v2422
    %v2583 = vunpack.c.l.b16 %v2423
    %v2584 = vunpack.c.l.b16 %v2424
    %v2585 = vunpack.c.l.b16 %v2425
    %v2586 = vunpack.c.l.b16 %v2426
    %v2587 = vunpack.c.l.b16 %v2427
    %v2588 = vunpack.c.l.b16 %v2428
    %v2589 = vunpack.c.l.b16 %v2429
    %v2590 = vunpack.c.l.b16 %v2430
    %v2591 = vunpack.c.l.b16 %v2431
    %v2592 = vunpack.c.l.b16 %v2432
    %v2593 = vunpack.c.l.b16 %v2433
    %v2594 = vpack.c.b16 %v2579, %v2578
    %v2595 = vpack.c.b16 %v2581, %v2580
    %v2596 = vpack.c.b16 %v2583, %v2582
    %v2597 = vpack.c.b16 %v2585, %v2584
    %v2598 = vpack.c.b16 %v2587, %v2586
    %v2599 = vpack.c.b16 %v2589, %v2588
    %v2600 = vpack.c.b16 %v2591, %v2590
    %v2601 = vpack.c.b16 %v2593, %v2592
    %v2626 = vunpack.c.l.b16 %v2450
    %v2627 = vunpack.c.l.b16 %v2451
    %v2628 = vunpack.c.l.b16 %v2452
    %v2629 = vunpack.c.l.b16 %v2453
    %v2630 = vunpack.c.l.b16 %v2454
    %v2631 = vunpack.c.l.b16 %v2455
    %v2632 = vunpack.c.l.b16 %v2456
    %v2633 = vunpack.c.l.b16 %v2457
    %v2634 = vunpack.c.l.b16 %v2458
    %v2635 = vunpack.c.l.b16 %v2459
    %v2636 = vunpack.c.l.b16 %v2460
    %v2637 = vunpack.c.l.b16 %v2461
    %v2638 = vunpack.c.l.b16 %v2462
    %v2639 = vunpack.c.l.b16 %v2463
    %v2640 = vunpack.c.l.b16 %v2464
    %v2641 = vunpack.c.l.b16 %v2465
    %v2642 = vpack.c.b16 %v2627, %v2626
    %v2643 = vpack.c.b16 %v2629, %v2628
    %v2644 = vpack.c.b16 %v2631, %v2630
    %v2645 = vpack.c.b16 %v2633, %v2632
    %v2646 = vpack.c.b16 %v2635, %v2634
    %v2647 = vpack.c.b16 %v2637, %v2636
    %v2648 = vpack.c.b16 %v2639, %v2638
    %v2649 = vpack.c.b16 %v2641, %v2640
    %v2674 = vunpack.c.l.b16 %v2482
    %v2675 = vunpack.c.l.b16 %v2483
    %v2676 = vunpack.c.l.b16 %v2484
    %v2677 = vunpack.c.l.b16 %v2485
    %v2678 = vunpack.c.l.b16 %v2486
    %v2679 = vunpack.c.l.b16 %v2487
    %v2680 = vunpack.c.l.b16 %v2488
    %v2681 = vunpack.c.l.b16 %v2489
    %v2682 = vunpack.c.l.b16 %v2490
    %v2683 = vunpack.c.l.b16 %v2491
    %v2684 = vunpack.c.l.b16 %v2492
    %v2685 = vunpack.c.l.b16 %v2493
    %v2686 = vunpack.c.l.b16 %v2494
    %v2687 = vunpack.c.l.b16 %v2495
    %v2688 = vunpack.c.l.b16 %v2496
    %v2689 = vunpack.c.l.b16 %v2497
    %v2690 = vpack.c.b16 %v2675, %v2674
    %v2691 = vpack.c.b16 %v2677, %v2676
    %v2692 = vpack.c.b16 %v2679, %v2678
    %v2693 = vpack.c.b16 %v2681, %v2680
    %v2694 = vpack.c.b16 %v2683, %v2682
    %v2695 = vpack.c.b16 %v2685, %v2684
    %v2696 = vpack.c.b16 %v2687, %v2686
    %v2697 = vpack.c.b16 %v2689, %v2688
    %v2722 = vunpack.c.l.b16 %v2514
    %v2723 = vunpack.c.l.b16 %v2515
    %v2724 = vunpack.c.l.b16 %v2516
    %v2725 = vunpack.c.l.b16 %v2517
    %v2726 = vunpack.c.l.b16 %v2518
    %v2727 = vunpack.c.l.b16 %v2519
    %v2728 = vunpack.c.l.b16 %v2520
    %v2729 = vunpack.c.l.b16 %v2521
    %v2730 = vunpack.c.l.b16 %v2522
    %v2731 = vunpack.c.l.b16 %v2523
    %v2732 = vunpack.c.l.b16 %v2524
    %v2733 = vunpack.c.l.b16 %v2525
    %v2734 = vunpack.c.l.b16 %v2526
    %v2735 = vunpack.c.l.b16 %v2527
    %v2736 = vunpack.c.l.b16 %v2528
    %v2737 = vunpack.c.l.b16 %v2529
    %v2738 = vpack.c.b16 %v2723, %v2722
    %v2739 = vpack.c.b16 %v2725, %v2724
    %v2740 = vpack.c.b16 %v2727, %v2726
    %v2741 = vpack.c.b16 %v2729, %v2728
    %v2742 = vpack.c.b16 %v2731, %v2730
    %v2743 = vpack.c.b16 %v2733, %v2732
    %v2744 = vpack.c.b16 %v2735, %v2734
    %v2745 = vpack.c.b16 %v2737, %v2736
    %v2770 = vunpack.c.l.b16 %v2546
    %v2771 = vunpack.c.l.b16 %v2547
    %v2772 = vunpack.c.l.b16 %v2548
    %v2773 = vunpack.c.l.b16 %v2549
    %v2774 = vunpack.c.l.b16 %v2550
    %v2775 = vunpack.c.l.b16 %v2551
    %v2776 = vunpack.c.l.b16 %v2552
    %v2777 = vunpack.c.l.b16 %v2553
    %v2778 = vunpack.c.l.b16 %v2554
    %v2779 = vunpack.c.l.b16 %v2555
    %v2780 = vunpack.c.l.b16 %v2556
    %v2781 = vunpack.c.l.b16 %v2557
    %v2782 = vunpack.c.l.b16 %v2558
    %v2783 = vunpack.c.l.b16 %v2559
    %v2784 = vunpack.c.l.b16 %v2560
    %v2785 = vunpack.c.l.b16 %v2561
    %v2786 = vpack.c.b16 %v2771, %v2770
    %v2787 = vpack.c.b16 %v2773, %v2772
    %v2788 = vpack.c.b16 %v2775, %v2774
    %v2789 = vpack.c.b16 %v2777, %v2776
    %v2790 = vpack.c.b16 %v2779, %v2778
    %v2791 = vpack.c.b16 %v2781, %v2780
    %v2792 = vpack.c.b16 %v2783, %v2782
    %v2793 = vpack.c.b16 %v2785, %v2784
    %v2802 = vld [vmem:[%s2 + $0x280] sm:$0xf]
    %v2803 = vld [vmem:[%s2 + $0x284] sm:$0xf]
    %v2804 = vld [vmem:[%s2 + $0x288] sm:$0xf]
    %v2805 = vld [vmem:[%s2 + $0x28c] sm:$0xf]
    %v2806 = vld [vmem:[%s2 + $0x290] sm:$0xf]
    %v2807 = vld [vmem:[%s2 + $0x294] sm:$0xf]
    %v2808 = vld [vmem:[%s2 + $0x298] sm:$0xf]
    %v2809 = vld [vmem:[%s2 + $0x29c] sm:$0xf]
    %v2810 = vld [vmem:[%s2 + $0x2a0] sm:$0xf]
    %v2811 = vld [vmem:[%s2 + $0x2a4] sm:$0xf]
    %v2812 = vld [vmem:[%s2 + $0x2a8] sm:$0xf]
    %v2813 = vld [vmem:[%s2 + $0x2ac] sm:$0xf]
    %v2814 = vld [vmem:[%s2 + $0x2b0] sm:$0xf]
    %v2815 = vld [vmem:[%s2 + $0x2b4] sm:$0xf]
    %v2816 = vld [vmem:[%s2 + $0x2b8] sm:$0xf]
    %v2817 = vld [vmem:[%s2 + $0x2bc] sm:$0xf]
    %v2818 = vld [vmem:[%s2 + $0x2c0] sm:$0xf]
    %v2819 = vld [vmem:[%s2 + $0x2c4] sm:$0xf]
    %v2820 = vld [vmem:[%s2 + $0x2c8] sm:$0xf]
    %v2821 = vld [vmem:[%s2 + $0x2cc] sm:$0xf]
    %v2822 = vld [vmem:[%s2 + $0x2d0] sm:$0xf]
    %v2823 = vld [vmem:[%s2 + $0x2d4] sm:$0xf]
    %v2824 = vld [vmem:[%s2 + $0x2d8] sm:$0xf]
    %v2825 = vld [vmem:[%s2 + $0x2dc] sm:$0xf]
    %v2826 = vld [vmem:[%s2 + $0x2e0] sm:$0xf]
    %v2827 = vld [vmem:[%s2 + $0x2e4] sm:$0xf]
    %v2828 = vld [vmem:[%s2 + $0x2e8] sm:$0xf]
    %v2829 = vld [vmem:[%s2 + $0x2ec] sm:$0xf]
    %v2830 = vld [vmem:[%s2 + $0x2f0] sm:$0xf]
    %v2831 = vld [vmem:[%s2 + $0x2f4] sm:$0xf]
    %v2832 = vld [vmem:[%s2 + $0x2f8] sm:$0xf]
    %v2833 = vld [vmem:[%s2 + $0x2fc] sm:$0xf]
    %v2834 = vld [vmem:[%s2 + $0x300] sm:$0xf]
    %v2835 = vld [vmem:[%s2 + $0x304] sm:$0xf]
    %v2836 = vld [vmem:[%s2 + $0x308] sm:$0xf]
    %v2837 = vld [vmem:[%s2 + $0x30c] sm:$0xf]
    %v2838 = vld [vmem:[%s2 + $0x310] sm:$0xf]
    %v2839 = vld [vmem:[%s2 + $0x314] sm:$0xf]
    %v2840 = vld [vmem:[%s2 + $0x318] sm:$0xf]
    %v2841 = vld [vmem:[%s2 + $0x31c] sm:$0xf]
    %v2842 = vld [vmem:[%s2 + $0x320] sm:$0xf]
    %v2843 = vld [vmem:[%s2 + $0x324] sm:$0xf]
    %v2844 = vld [vmem:[%s2 + $0x328] sm:$0xf]
    %v2845 = vld [vmem:[%s2 + $0x32c] sm:$0xf]
    %v2846 = vld [vmem:[%s2 + $0x330] sm:$0xf]
    %v2847 = vld [vmem:[%s2 + $0x334] sm:$0xf]
    %v2848 = vld [vmem:[%s2 + $0x338] sm:$0xf]
    %v2849 = vld [vmem:[%s2 + $0x33c] sm:$0xf]
    %v2850 = vld [vmem:[%s2 + $0x340] sm:$0xf]
    %v2851 = vld [vmem:[%s2 + $0x344] sm:$0xf]
    %v2852 = vld [vmem:[%s2 + $0x348] sm:$0xf]
    %v2853 = vld [vmem:[%s2 + $0x34c] sm:$0xf]
    %v2854 = vld [vmem:[%s2 + $0x350] sm:$0xf]
    %v2855 = vld [vmem:[%s2 + $0x354] sm:$0xf]
    %v2856 = vld [vmem:[%s2 + $0x358] sm:$0xf]
    %v2857 = vld [vmem:[%s2 + $0x35c] sm:$0xf]
    %v2858 = vld [vmem:[%s2 + $0x360] sm:$0xf]
    %v2859 = vld [vmem:[%s2 + $0x364] sm:$0xf]
    %v2860 = vld [vmem:[%s2 + $0x368] sm:$0xf]
    %v2861 = vld [vmem:[%s2 + $0x36c] sm:$0xf]
    %v2862 = vld [vmem:[%s2 + $0x370] sm:$0xf]
    %v2863 = vld [vmem:[%s2 + $0x374] sm:$0xf]
    %v2864 = vld [vmem:[%s2 + $0x378] sm:$0xf]
    %v2865 = vld [vmem:[%s2 + $0x37c] sm:$0xf]
    %v2866 = vld [vmem:[%s2 + $0x380] sm:$0xf]
    %v2867 = vld [vmem:[%s2 + $0x384] sm:$0xf]
    %v2868 = vld [vmem:[%s2 + $0x388] sm:$0xf]
    %v2869 = vld [vmem:[%s2 + $0x38c] sm:$0xf]
    %v2870 = vld [vmem:[%s2 + $0x390] sm:$0xf]
    %v2871 = vld [vmem:[%s2 + $0x394] sm:$0xf]
    %v2872 = vld [vmem:[%s2 + $0x398] sm:$0xf]
    %v2873 = vld [vmem:[%s2 + $0x39c] sm:$0xf]
    %v2874 = vld [vmem:[%s2 + $0x3a0] sm:$0xf]
    %v2875 = vld [vmem:[%s2 + $0x3a4] sm:$0xf]
    %v2876 = vld [vmem:[%s2 + $0x3a8] sm:$0xf]
    %v2877 = vld [vmem:[%s2 + $0x3ac] sm:$0xf]
    %v2878 = vld [vmem:[%s2 + $0x3b0] sm:$0xf]
    %v2879 = vld [vmem:[%s2 + $0x3b4] sm:$0xf]
    %v2880 = vld [vmem:[%s2 + $0x3b8] sm:$0xf]
    %v2881 = vld [vmem:[%s2 + $0x3bc] sm:$0xf]
    %v2962 = vunpack.c.l.b16 %v2802
    %v2963 = vunpack.c.l.b16 %v2803
    %v2964 = vunpack.c.l.b16 %v2804
    %v2965 = vunpack.c.l.b16 %v2805
    %v2966 = vunpack.c.l.b16 %v2806
    %v2967 = vunpack.c.l.b16 %v2807
    %v2968 = vunpack.c.l.b16 %v2808
    %v2969 = vunpack.c.l.b16 %v2809
    %v2970 = vunpack.c.l.b16 %v2810
    %v2971 = vunpack.c.l.b16 %v2811
    %v2972 = vunpack.c.l.b16 %v2812
    %v2973 = vunpack.c.l.b16 %v2813
    %v2974 = vunpack.c.l.b16 %v2814
    %v2975 = vunpack.c.l.b16 %v2815
    %v2976 = vunpack.c.l.b16 %v2816
    %v2977 = vunpack.c.l.b16 %v2817
    %v2978 = vunpack.c.l.b16 %v2818
    %v2979 = vunpack.c.l.b16 %v2819
    %v2980 = vunpack.c.l.b16 %v2820
    %v2981 = vunpack.c.l.b16 %v2821
    %v2982 = vunpack.c.l.b16 %v2822
    %v2983 = vunpack.c.l.b16 %v2823
    %v2984 = vunpack.c.l.b16 %v2824
    %v2985 = vunpack.c.l.b16 %v2825
    %v2986 = vunpack.c.l.b16 %v2826
    %v2987 = vunpack.c.l.b16 %v2827
    %v2988 = vunpack.c.l.b16 %v2828
    %v2989 = vunpack.c.l.b16 %v2829
    %v2990 = vunpack.c.l.b16 %v2830
    %v2991 = vunpack.c.l.b16 %v2831
    %v2992 = vunpack.c.l.b16 %v2832
    %v2993 = vunpack.c.l.b16 %v2833
    %v2994 = vunpack.c.l.b16 %v2834
    %v2995 = vunpack.c.l.b16 %v2835
    %v2996 = vunpack.c.l.b16 %v2836
    %v2997 = vunpack.c.l.b16 %v2837
    %v2998 = vunpack.c.l.b16 %v2838
    %v2999 = vunpack.c.l.b16 %v2839
    %v3000 = vunpack.c.l.b16 %v2840
    %v3001 = vunpack.c.l.b16 %v2841
    %v3002 = vunpack.c.l.b16 %v2842
    %v3003 = vunpack.c.l.b16 %v2843
    %v3004 = vunpack.c.l.b16 %v2844
    %v3005 = vunpack.c.l.b16 %v2845
    %v3006 = vunpack.c.l.b16 %v2846
    %v3007 = vunpack.c.l.b16 %v2847
    %v3008 = vunpack.c.l.b16 %v2848
    %v3009 = vunpack.c.l.b16 %v2849
    %v3010 = vunpack.c.l.b16 %v2850
    %v3011 = vunpack.c.l.b16 %v2851
    %v3012 = vunpack.c.l.b16 %v2852
    %v3013 = vunpack.c.l.b16 %v2853
    %v3014 = vunpack.c.l.b16 %v2854
    %v3015 = vunpack.c.l.b16 %v2855
    %v3016 = vunpack.c.l.b16 %v2856
    %v3017 = vunpack.c.l.b16 %v2857
    %v3018 = vunpack.c.l.b16 %v2858
    %v3019 = vunpack.c.l.b16 %v2859
    %v3020 = vunpack.c.l.b16 %v2860
    %v3021 = vunpack.c.l.b16 %v2861
    %v3022 = vunpack.c.l.b16 %v2862
    %v3023 = vunpack.c.l.b16 %v2863
    %v3024 = vunpack.c.l.b16 %v2864
    %v3025 = vunpack.c.l.b16 %v2865
    %v3026 = vunpack.c.l.b16 %v2866
    %v3027 = vunpack.c.l.b16 %v2867
    %v3028 = vunpack.c.l.b16 %v2868
    %v3029 = vunpack.c.l.b16 %v2869
    %v3030 = vunpack.c.l.b16 %v2870
    %v3031 = vunpack.c.l.b16 %v2871
    %v3032 = vunpack.c.l.b16 %v2872
    %v3033 = vunpack.c.l.b16 %v2873
    %v3034 = vunpack.c.l.b16 %v2874
    %v3035 = vunpack.c.l.b16 %v2875
    %v3036 = vunpack.c.l.b16 %v2876
    %v3037 = vunpack.c.l.b16 %v2877
    %v3038 = vunpack.c.l.b16 %v2878
    %v3039 = vunpack.c.l.b16 %v2879
    %v3040 = vunpack.c.l.b16 %v2880
    %v3041 = vunpack.c.l.b16 %v2881
    %v3042 = vpack.c.b16 %v2963, %v2962
    %v3043 = vpack.c.b16 %v2965, %v2964
    %v3044 = vpack.c.b16 %v2967, %v2966
    %v3045 = vpack.c.b16 %v2969, %v2968
    %v3046 = vpack.c.b16 %v2971, %v2970
    %v3047 = vpack.c.b16 %v2973, %v2972
    %v3048 = vpack.c.b16 %v2975, %v2974
    %v3049 = vpack.c.b16 %v2977, %v2976
    %v3050 = vpack.c.b16 %v2979, %v2978
    %v3051 = vpack.c.b16 %v2981, %v2980
    %v3052 = vpack.c.b16 %v2983, %v2982
    %v3053 = vpack.c.b16 %v2985, %v2984
    %v3054 = vpack.c.b16 %v2987, %v2986
    %v3055 = vpack.c.b16 %v2989, %v2988
    %v3056 = vpack.c.b16 %v2991, %v2990
    %v3057 = vpack.c.b16 %v2993, %v2992
    %v3058 = vpack.c.b16 %v2995, %v2994
    %v3059 = vpack.c.b16 %v2997, %v2996
    %v3060 = vpack.c.b16 %v2999, %v2998
    %v3061 = vpack.c.b16 %v3001, %v3000
    %v3062 = vpack.c.b16 %v3003, %v3002
    %v3063 = vpack.c.b16 %v3005, %v3004
    %v3064 = vpack.c.b16 %v3007, %v3006
    %v3065 = vpack.c.b16 %v3009, %v3008
    %v3066 = vpack.c.b16 %v3011, %v3010
    %v3067 = vpack.c.b16 %v3013, %v3012
    %v3068 = vpack.c.b16 %v3015, %v3014
    %v3069 = vpack.c.b16 %v3017, %v3016
    %v3070 = vpack.c.b16 %v3019, %v3018
    %v3071 = vpack.c.b16 %v3021, %v3020
    %v3072 = vpack.c.b16 %v3023, %v3022
    %v3073 = vpack.c.b16 %v3025, %v3024
    %v3074 = vpack.c.b16 %v3027, %v3026
    %v3075 = vpack.c.b16 %v3029, %v3028
    %v3076 = vpack.c.b16 %v3031, %v3030
    %v3077 = vpack.c.b16 %v3033, %v3032
    %v3078 = vpack.c.b16 %v3035, %v3034
    %v3079 = vpack.c.b16 %v3037, %v3036
    %v3080 = vpack.c.b16 %v3039, %v3038
    %v3081 = vpack.c.b16 %v3041, %v3040
    %3122 = vmatpush.bf16.msra.mxu0 %v3049
    %3123 = vmatpush.bf16.msra.mxu0 %v3048
    %3124 = vmatpush.bf16.msra.mxu0 %v3047
    %3125 = vmatpush.bf16.msra.mxu0 %v3046
    %3126 = vmatpush.bf16.msra.mxu0 %v3045
    %3127 = vmatpush.bf16.msra.mxu0 %v3044
    %3128 = vmatpush.bf16.msra.mxu0 %v3043
    %3129 = vmatpush.bf16.msra.mxu0 %v3042
    %3130 = vmatmul.bf16.gmra.mxu0 %v2594
    %v3131 = vpop.f32.mrf.mxu0
    %v3132 = vadd.f32 0.0, %v3131
    %v3133 = vpop.f32.mrf.mxu0
    %v3134 = vadd.f32 0.0, %v3133
    %3135 = vmatmul.bf16.gmra.mxu0 %v2595
    %v3136 = vpop.f32.mrf.mxu0
    %v3137 = vadd.f32 0.0, %v3136
    %v3138 = vpop.f32.mrf.mxu0
    %v3139 = vadd.f32 0.0, %v3138
    %3140 = vmatmul.bf16.gmra.mxu0 %v2596
    %v3141 = vpop.f32.mrf.mxu0
    %v3142 = vadd.f32 0.0, %v3141
    %v3143 = vpop.f32.mrf.mxu0
    %v3144 = vadd.f32 0.0, %v3143
    %3145 = vmatmul.bf16.gmra.mxu0 %v2597
    %v3146 = vpop.f32.mrf.mxu0
    %v3147 = vadd.f32 0.0, %v3146
    %v3148 = vpop.f32.mrf.mxu0
    %v3149 = vadd.f32 0.0, %v3148
    %3150 = vmatmul.bf16.gmra.mxu0 %v2598
    %v3151 = vpop.f32.mrf.mxu0
    %v3152 = vadd.f32 0.0, %v3151
    %v3153 = vpop.f32.mrf.mxu0
    %v3154 = vadd.f32 0.0, %v3153
    %3155 = vmatmul.bf16.gmra.mxu0 %v2599
    %v3156 = vpop.f32.mrf.mxu0
    %v3157 = vadd.f32 0.0, %v3156
    %v3158 = vpop.f32.mrf.mxu0
    %v3159 = vadd.f32 0.0, %v3158
    %3160 = vmatmul.bf16.gmra.mxu0 %v2600
    %v3161 = vpop.f32.mrf.mxu0
    %v3162 = vadd.f32 0.0, %v3161
    %v3163 = vpop.f32.mrf.mxu0
    %v3164 = vadd.f32 0.0, %v3163
    %3165 = vmatmul.bf16.gmra.mxu0 %v2601
    %v3166 = vpop.f32.mrf.mxu0
    %v3167 = vadd.f32 0.0, %v3166
    %v3168 = vpop.f32.mrf.mxu0
    %v3169 = vadd.f32 0.0, %v3168
    %3170 = vdwg.mxu0
    %3171 = vmatpush.bf16.msra.mxu0 %v3057
    %3172 = vmatpush.bf16.msra.mxu0 %v3056
    %3173 = vmatpush.bf16.msra.mxu0 %v3055
    %3174 = vmatpush.bf16.msra.mxu0 %v3054
    %3175 = vmatpush.bf16.msra.mxu0 %v3053
    %3176 = vmatpush.bf16.msra.mxu0 %v3052
    %3177 = vmatpush.bf16.msra.mxu0 %v3051
    %3178 = vmatpush.bf16.msra.mxu0 %v3050
    %3179 = vmatmul.bf16.gmra.mxu0 %v2642
    %v3180 = vpop.f32.mrf.mxu0
    %v3181 = vadd.f32 %v3132, %v3180
    %v3182 = vpop.f32.mrf.mxu0
    %v3183 = vadd.f32 %v3134, %v3182
    %3184 = vmatmul.bf16.gmra.mxu0 %v2643
    %v3185 = vpop.f32.mrf.mxu0
    %v3186 = vadd.f32 %v3137, %v3185
    %v3187 = vpop.f32.mrf.mxu0
    %v3188 = vadd.f32 %v3139, %v3187
    %3189 = vmatmul.bf16.gmra.mxu0 %v2644
    %v3190 = vpop.f32.mrf.mxu0
    %v3191 = vadd.f32 %v3142, %v3190
    %v3192 = vpop.f32.mrf.mxu0
    %v3193 = vadd.f32 %v3144, %v3192
    %3194 = vmatmul.bf16.gmra.mxu0 %v2645
    %v3195 = vpop.f32.mrf.mxu0
    %v3196 = vadd.f32 %v3147, %v3195
    %v3197 = vpop.f32.mrf.mxu0
    %v3198 = vadd.f32 %v3149, %v3197
    %3199 = vmatmul.bf16.gmra.mxu0 %v2646
    %v3200 = vpop.f32.mrf.mxu0
    %v3201 = vadd.f32 %v3152, %v3200
    %v3202 = vpop.f32.mrf.mxu0
    %v3203 = vadd.f32 %v3154, %v3202
    %3204 = vmatmul.bf16.gmra.mxu0 %v2647
    %v3205 = vpop.f32.mrf.mxu0
    %v3206 = vadd.f32 %v3157, %v3205
    %v3207 = vpop.f32.mrf.mxu0
    %v3208 = vadd.f32 %v3159, %v3207
    %3209 = vmatmul.bf16.gmra.mxu0 %v2648
    %v3210 = vpop.f32.mrf.mxu0
    %v3211 = vadd.f32 %v3162, %v3210
    %v3212 = vpop.f32.mrf.mxu0
    %v3213 = vadd.f32 %v3164, %v3212
    %3214 = vmatmul.bf16.gmra.mxu0 %v2649
    %v3215 = vpop.f32.mrf.mxu0
    %v3216 = vadd.f32 %v3167, %v3215
    %v3217 = vpop.f32.mrf.mxu0
    %v3218 = vadd.f32 %v3169, %v3217
    %3219 = vdwg.mxu0
    %3220 = vmatpush.bf16.msra.mxu0 %v3065
    %3221 = vmatpush.bf16.msra.mxu0 %v3064
    %3222 = vmatpush.bf16.msra.mxu0 %v3063
    %3223 = vmatpush.bf16.msra.mxu0 %v3062
    %3224 = vmatpush.bf16.msra.mxu0 %v3061
    %3225 = vmatpush.bf16.msra.mxu0 %v3060
    %3226 = vmatpush.bf16.msra.mxu0 %v3059
    %3227 = vmatpush.bf16.msra.mxu0 %v3058
    %3228 = vmatmul.bf16.gmra.mxu0 %v2690
    %v3229 = vpop.f32.mrf.mxu0
    %v3230 = vadd.f32 %v3181, %v3229
    %v3231 = vpop.f32.mrf.mxu0
    %v3232 = vadd.f32 %v3183, %v3231
    %3233 = vmatmul.bf16.gmra.mxu0 %v2691
    %v3234 = vpop.f32.mrf.mxu0
    %v3235 = vadd.f32 %v3186, %v3234
    %v3236 = vpop.f32.mrf.mxu0
    %v3237 = vadd.f32 %v3188, %v3236
    %3238 = vmatmul.bf16.gmra.mxu0 %v2692
    %v3239 = vpop.f32.mrf.mxu0
    %v3240 = vadd.f32 %v3191, %v3239
    %v3241 = vpop.f32.mrf.mxu0
    %v3242 = vadd.f32 %v3193, %v3241
    %3243 = vmatmul.bf16.gmra.mxu0 %v2693
    %v3244 = vpop.f32.mrf.mxu0
    %v3245 = vadd.f32 %v3196, %v3244
    %v3246 = vpop.f32.mrf.mxu0
    %v3247 = vadd.f32 %v3198, %v3246
    %3248 = vmatmul.bf16.gmra.mxu0 %v2694
    %v3249 = vpop.f32.mrf.mxu0
    %v3250 = vadd.f32 %v3201, %v3249
    %v3251 = vpop.f32.mrf.mxu0
    %v3252 = vadd.f32 %v3203, %v3251
    %3253 = vmatmul.bf16.gmra.mxu0 %v2695
    %v3254 = vpop.f32.mrf.mxu0
    %v3255 = vadd.f32 %v3206, %v3254
    %v3256 = vpop.f32.mrf.mxu0
    %v3257 = vadd.f32 %v3208, %v3256
    %3258 = vmatmul.bf16.gmra.mxu0 %v2696
    %v3259 = vpop.f32.mrf.mxu0
    %v3260 = vadd.f32 %v3211, %v3259
    %v3261 = vpop.f32.mrf.mxu0
    %v3262 = vadd.f32 %v3213, %v3261
    %3263 = vmatmul.bf16.gmra.mxu0 %v2697
    %v3264 = vpop.f32.mrf.mxu0
    %v3265 = vadd.f32 %v3216, %v3264
    %v3266 = vpop.f32.mrf.mxu0
    %v3267 = vadd.f32 %v3218, %v3266
    %3268 = vdwg.mxu0
    %3269 = vmatpush.bf16.msra.mxu0 %v3073
    %3270 = vmatpush.bf16.msra.mxu0 %v3072
    %3271 = vmatpush.bf16.msra.mxu0 %v3071
    %3272 = vmatpush.bf16.msra.mxu0 %v3070
    %3273 = vmatpush.bf16.msra.mxu0 %v3069
    %3274 = vmatpush.bf16.msra.mxu0 %v3068
    %3275 = vmatpush.bf16.msra.mxu0 %v3067
    %3276 = vmatpush.bf16.msra.mxu0 %v3066
    %3277 = vmatmul.bf16.gmra.mxu0 %v2738
    %v3278 = vpop.f32.mrf.mxu0
    %v3279 = vadd.f32 %v3230, %v3278
    %v3280 = vpop.f32.mrf.mxu0
    %v3281 = vadd.f32 %v3232, %v3280
    %3282 = vmatmul.bf16.gmra.mxu0 %v2739
    %v3283 = vpop.f32.mrf.mxu0
    %v3284 = vadd.f32 %v3235, %v3283
    %v3285 = vpop.f32.mrf.mxu0
    %v3286 = vadd.f32 %v3237, %v3285
    %3287 = vmatmul.bf16.gmra.mxu0 %v2740
    %v3288 = vpop.f32.mrf.mxu0
    %v3289 = vadd.f32 %v3240, %v3288
    %v3290 = vpop.f32.mrf.mxu0
    %v3291 = vadd.f32 %v3242, %v3290
    %3292 = vmatmul.bf16.gmra.mxu0 %v2741
    %v3293 = vpop.f32.mrf.mxu0
    %v3294 = vadd.f32 %v3245, %v3293
    %v3295 = vpop.f32.mrf.mxu0
    %v3296 = vadd.f32 %v3247, %v3295
    %3297 = vmatmul.bf16.gmra.mxu0 %v2742
    %v3298 = vpop.f32.mrf.mxu0
    %v3299 = vadd.f32 %v3250, %v3298
    %v3300 = vpop.f32.mrf.mxu0
    %v3301 = vadd.f32 %v3252, %v3300
    %3302 = vmatmul.bf16.gmra.mxu0 %v2743
    %v3303 = vpop.f32.mrf.mxu0
    %v3304 = vadd.f32 %v3255, %v3303
    %v3305 = vpop.f32.mrf.mxu0
    %v3306 = vadd.f32 %v3257, %v3305
    %3307 = vmatmul.bf16.gmra.mxu0 %v2744
    %v3308 = vpop.f32.mrf.mxu0
    %v3309 = vadd.f32 %v3260, %v3308
    %v3310 = vpop.f32.mrf.mxu0
    %v3311 = vadd.f32 %v3262, %v3310
    %3312 = vmatmul.bf16.gmra.mxu0 %v2745
    %v3313 = vpop.f32.mrf.mxu0
    %v3314 = vadd.f32 %v3265, %v3313
    %v3315 = vpop.f32.mrf.mxu0
    %v3316 = vadd.f32 %v3267, %v3315
    %3317 = vdwg.mxu0
    %3318 = vmatpush.bf16.msra.mxu0 %v3081
    %3319 = vmatpush.bf16.msra.mxu0 %v3080
    %3320 = vmatpush.bf16.msra.mxu0 %v3079
    %3321 = vmatpush.bf16.msra.mxu0 %v3078
    %3322 = vmatpush.bf16.msra.mxu0 %v3077
    %3323 = vmatpush.bf16.msra.mxu0 %v3076
    %3324 = vmatpush.bf16.msra.mxu0 %v3075
    %3325 = vmatpush.bf16.msra.mxu0 %v3074
    %3326 = vmatmul.bf16.gmra.mxu0 %v2786
    %v3327 = vpop.f32.mrf.mxu0
    %v3328 = vadd.f32 %v3279, %v3327
    %v3329 = vpop.f32.mrf.mxu0
    %v3330 = vadd.f32 %v3281, %v3329
    %3331 = vmatmul.bf16.gmra.mxu0 %v2787
    %v3332 = vpop.f32.mrf.mxu0
    %v3333 = vadd.f32 %v3284, %v3332
    %v3334 = vpop.f32.mrf.mxu0
    %v3335 = vadd.f32 %v3286, %v3334
    %3336 = vmatmul.bf16.gmra.mxu0 %v2788
    %v3337 = vpop.f32.mrf.mxu0
    %v3338 = vadd.f32 %v3289, %v3337
    %v3339 = vpop.f32.mrf.mxu0
    %v3340 = vadd.f32 %v3291, %v3339
    %3341 = vmatmul.bf16.gmra.mxu0 %v2789
    %v3342 = vpop.f32.mrf.mxu0
    %v3343 = vadd.f32 %v3294, %v3342
    %v3344 = vpop.f32.mrf.mxu0
    %v3345 = vadd.f32 %v3296, %v3344
    %3346 = vmatmul.bf16.gmra.mxu0 %v2790
    %v3347 = vpop.f32.mrf.mxu0
    %v3348 = vadd.f32 %v3299, %v3347
    %v3349 = vpop.f32.mrf.mxu0
    %v3350 = vadd.f32 %v3301, %v3349
    %3351 = vmatmul.bf16.gmra.mxu0 %v2791
    %v3352 = vpop.f32.mrf.mxu0
    %v3353 = vadd.f32 %v3304, %v3352
    %v3354 = vpop.f32.mrf.mxu0
    %v3355 = vadd.f32 %v3306, %v3354
    %3356 = vmatmul.bf16.gmra.mxu0 %v2792
    %v3357 = vpop.f32.mrf.mxu0
    %v3358 = vadd.f32 %v3309, %v3357
    %v3359 = vpop.f32.mrf.mxu0
    %v3360 = vadd.f32 %v3311, %v3359
    %3361 = vmatmul.bf16.gmra.mxu0 %v2793
    %v3362 = vpop.f32.mrf.mxu0
    %v3363 = vadd.f32 %v3314, %v3362
    %v3364 = vpop.f32.mrf.mxu0
    %v3365 = vadd.f32 %v3316, %v3364
    %3366 = vdwg.mxu0
    %v3367 = vadd.f32 %v2363, %v3328
    %v3368 = vadd.f32 %v2365, %v3330
    %v3369 = vadd.f32 %v2368, %v3333
    %v3370 = vadd.f32 %v2370, %v3335
    %v3371 = vadd.f32 %v2373, %v3338
    %v3372 = vadd.f32 %v2375, %v3340
    %v3373 = vadd.f32 %v2378, %v3343
    %v3374 = vadd.f32 %v2380, %v3345
    %v3375 = vadd.f32 %v2383, %v3348
    %v3376 = vadd.f32 %v2385, %v3350
    %v3377 = vadd.f32 %v2388, %v3353
    %v3378 = vadd.f32 %v2390, %v3355
    %v3379 = vadd.f32 %v2393, %v3358
    %v3380 = vadd.f32 %v2395, %v3360
    %v3381 = vadd.f32 %v2398, %v3363
    %v3382 = vadd.f32 %v2400, %v3365
    %s3383 = scalar_lea.vmem [#allocation2], 48
    %v3384 = vld [vmem:[%s3383] sm:$0xff]
    %v3385 = vld [vmem:[%s3383 + $0x10] sm:$0xff]
    %v3386 = vld [vmem:[%s3383 + $0x20] sm:$0xff]
    %v3387 = vld [vmem:[%s3383 + $0x30] sm:$0xff]
    %v3388 = vld [vmem:[%s3383 + $0x40] sm:$0xff]
    %v3389 = vld [vmem:[%s3383 + $0x50] sm:$0xff]
    %v3390 = vld [vmem:[%s3383 + $0x60] sm:$0xff]
    %v3391 = vld [vmem:[%s3383 + $0x70] sm:$0xff]
    %v3392 = vld [vmem:[%s3383 + $0xc0] sm:$0xff]
    %v3393 = vld [vmem:[%s3383 + $0xd0] sm:$0xff]
    %v3394 = vld [vmem:[%s3383 + $0xe0] sm:$0xff]
    %v3395 = vld [vmem:[%s3383 + $0xf0] sm:$0xff]
    %v3396 = vld [vmem:[%s3383 + $0x100] sm:$0xff]
    %v3397 = vld [vmem:[%s3383 + $0x110] sm:$0xff]
    %v3398 = vld [vmem:[%s3383 + $0x120] sm:$0xff]
    %v3399 = vld [vmem:[%s3383 + $0x130] sm:$0xff]
    %v3400 = vpack.c.bf16 %v3384, %v3384
    %v3401 = vpack.c.bf16 %v3385, %v3385
    %v3402 = vpack.c.bf16 %v3386, %v3386
    %v3403 = vpack.c.bf16 %v3387, %v3387
    %v3404 = vpack.c.bf16 %v3388, %v3388
    %v3405 = vpack.c.bf16 %v3389, %v3389
    %v3406 = vpack.c.bf16 %v3390, %v3390
    %v3407 = vpack.c.bf16 %v3391, %v3391
    %v3408 = vpack.c.bf16 %v3392, %v3392
    %v3409 = vpack.c.bf16 %v3393, %v3393
    %v3410 = vpack.c.bf16 %v3394, %v3394
    %v3411 = vpack.c.bf16 %v3395, %v3395
    %v3412 = vpack.c.bf16 %v3396, %v3396
    %v3413 = vpack.c.bf16 %v3397, %v3397
    %v3414 = vpack.c.bf16 %v3398, %v3398
    %v3415 = vpack.c.bf16 %v3399, %v3399
    %v3416 = vld [vmem:[%s3383 + $0x1] sm:$0xff]
    %v3417 = vld [vmem:[%s3383 + $0x11] sm:$0xff]
    %v3418 = vld [vmem:[%s3383 + $0x21] sm:$0xff]
    %v3419 = vld [vmem:[%s3383 + $0x31] sm:$0xff]
    %v3420 = vld [vmem:[%s3383 + $0x41] sm:$0xff]
    %v3421 = vld [vmem:[%s3383 + $0x51] sm:$0xff]
    %v3422 = vld [vmem:[%s3383 + $0x61] sm:$0xff]
    %v3423 = vld [vmem:[%s3383 + $0x71] sm:$0xff]
    %v3424 = vld [vmem:[%s3383 + $0xc1] sm:$0xff]
    %v3425 = vld [vmem:[%s3383 + $0xd1] sm:$0xff]
    %v3426 = vld [vmem:[%s3383 + $0xe1] sm:$0xff]
    %v3427 = vld [vmem:[%s3383 + $0xf1] sm:$0xff]
    %v3428 = vld [vmem:[%s3383 + $0x101] sm:$0xff]
    %v3429 = vld [vmem:[%s3383 + $0x111] sm:$0xff]
    %v3430 = vld [vmem:[%s3383 + $0x121] sm:$0xff]
    %v3431 = vld [vmem:[%s3383 + $0x131] sm:$0xff]
    %v3432 = vpack.c.bf16 %v3416, %v3416
    %v3433 = vpack.c.bf16 %v3417, %v3417
    %v3434 = vpack.c.bf16 %v3418, %v3418
    %v3435 = vpack.c.bf16 %v3419, %v3419
    %v3436 = vpack.c.bf16 %v3420, %v3420
    %v3437 = vpack.c.bf16 %v3421, %v3421
    %v3438 = vpack.c.bf16 %v3422, %v3422
    %v3439 = vpack.c.bf16 %v3423, %v3423
    %v3440 = vpack.c.bf16 %v3424, %v3424
    %v3441 = vpack.c.bf16 %v3425, %v3425
    %v3442 = vpack.c.bf16 %v3426, %v3426
    %v3443 = vpack.c.bf16 %v3427, %v3427
    %v3444 = vpack.c.bf16 %v3428, %v3428
    %v3445 = vpack.c.bf16 %v3429, %v3429
    %v3446 = vpack.c.bf16 %v3430, %v3430
    %v3447 = vpack.c.bf16 %v3431, %v3431
    %v3448 = vld [vmem:[%s3383 + $0x2] sm:$0xff]
    %v3449 = vld [vmem:[%s3383 + $0x12] sm:$0xff]
    %v3450 = vld [vmem:[%s3383 + $0x22] sm:$0xff]
    %v3451 = vld [vmem:[%s3383 + $0x32] sm:$0xff]
    %v3452 = vld [vmem:[%s3383 + $0x42] sm:$0xff]
    %v3453 = vld [vmem:[%s3383 + $0x52] sm:$0xff]
    %v3454 = vld [vmem:[%s3383 + $0x62] sm:$0xff]
    %v3455 = vld [vmem:[%s3383 + $0x72] sm:$0xff]
    %v3456 = vld [vmem:[%s3383 + $0xc2] sm:$0xff]
    %v3457 = vld [vmem:[%s3383 + $0xd2] sm:$0xff]
    %v3458 = vld [vmem:[%s3383 + $0xe2] sm:$0xff]
    %v3459 = vld [vmem:[%s3383 + $0xf2] sm:$0xff]
    %v3460 = vld [vmem:[%s3383 + $0x102] sm:$0xff]
    %v3461 = vld [vmem:[%s3383 + $0x112] sm:$0xff]
    %v3462 = vld [vmem:[%s3383 + $0x122] sm:$0xff]
    %v3463 = vld [vmem:[%s3383 + $0x132] sm:$0xff]
    %v3464 = vpack.c.bf16 %v3448, %v3448
    %v3465 = vpack.c.bf16 %v3449, %v3449
    %v3466 = vpack.c.bf16 %v3450, %v3450
    %v3467 = vpack.c.bf16 %v3451, %v3451
    %v3468 = vpack.c.bf16 %v3452, %v3452
    %v3469 = vpack.c.bf16 %v3453, %v3453
    %v3470 = vpack.c.bf16 %v3454, %v3454
    %v3471 = vpack.c.bf16 %v3455, %v3455
    %v3472 = vpack.c.bf16 %v3456, %v3456
    %v3473 = vpack.c.bf16 %v3457, %v3457
    %v3474 = vpack.c.bf16 %v3458, %v3458
    %v3475 = vpack.c.bf16 %v3459, %v3459
    %v3476 = vpack.c.bf16 %v3460, %v3460
    %v3477 = vpack.c.bf16 %v3461, %v3461
    %v3478 = vpack.c.bf16 %v3462, %v3462
    %v3479 = vpack.c.bf16 %v3463, %v3463
    %v3480 = vld [vmem:[%s3383 + $0x3] sm:$0xff]
    %v3481 = vld [vmem:[%s3383 + $0x13] sm:$0xff]
    %v3482 = vld [vmem:[%s3383 + $0x23] sm:$0xff]
    %v3483 = vld [vmem:[%s3383 + $0x33] sm:$0xff]
    %v3484 = vld [vmem:[%s3383 + $0x43] sm:$0xff]
    %v3485 = vld [vmem:[%s3383 + $0x53] sm:$0xff]
    %v3486 = vld [vmem:[%s3383 + $0x63] sm:$0xff]
    %v3487 = vld [vmem:[%s3383 + $0x73] sm:$0xff]
    %v3488 = vld [vmem:[%s3383 + $0xc3] sm:$0xff]
    %v3489 = vld [vmem:[%s3383 + $0xd3] sm:$0xff]
    %v3490 = vld [vmem:[%s3383 + $0xe3] sm:$0xff]
    %v3491 = vld [vmem:[%s3383 + $0xf3] sm:$0xff]
    %v3492 = vld [vmem:[%s3383 + $0x103] sm:$0xff]
    %v3493 = vld [vmem:[%s3383 + $0x113] sm:$0xff]
    %v3494 = vld [vmem:[%s3383 + $0x123] sm:$0xff]
    %v3495 = vld [vmem:[%s3383 + $0x133] sm:$0xff]
    %v3496 = vpack.c.bf16 %v3480, %v3480
    %v3497 = vpack.c.bf16 %v3481, %v3481
    %v3498 = vpack.c.bf16 %v3482, %v3482
    %v3499 = vpack.c.bf16 %v3483, %v3483
    %v3500 = vpack.c.bf16 %v3484, %v3484
    %v3501 = vpack.c.bf16 %v3485, %v3485
    %v3502 = vpack.c.bf16 %v3486, %v3486
    %v3503 = vpack.c.bf16 %v3487, %v3487
    %v3504 = vpack.c.bf16 %v3488, %v3488
    %v3505 = vpack.c.bf16 %v3489, %v3489
    %v3506 = vpack.c.bf16 %v3490, %v3490
    %v3507 = vpack.c.bf16 %v3491, %v3491
    %v3508 = vpack.c.bf16 %v3492, %v3492
    %v3509 = vpack.c.bf16 %v3493, %v3493
    %v3510 = vpack.c.bf16 %v3494, %v3494
    %v3511 = vpack.c.bf16 %v3495, %v3495
    %v3512 = vld [vmem:[%s3383 + $0x4] sm:$0xff]
    %v3513 = vld [vmem:[%s3383 + $0x14] sm:$0xff]
    %v3514 = vld [vmem:[%s3383 + $0x24] sm:$0xff]
    %v3515 = vld [vmem:[%s3383 + $0x34] sm:$0xff]
    %v3516 = vld [vmem:[%s3383 + $0x44] sm:$0xff]
    %v3517 = vld [vmem:[%s3383 + $0x54] sm:$0xff]
    %v3518 = vld [vmem:[%s3383 + $0x64] sm:$0xff]
    %v3519 = vld [vmem:[%s3383 + $0x74] sm:$0xff]
    %v3520 = vld [vmem:[%s3383 + $0xc4] sm:$0xff]
    %v3521 = vld [vmem:[%s3383 + $0xd4] sm:$0xff]
    %v3522 = vld [vmem:[%s3383 + $0xe4] sm:$0xff]
    %v3523 = vld [vmem:[%s3383 + $0xf4] sm:$0xff]
    %v3524 = vld [vmem:[%s3383 + $0x104] sm:$0xff]
    %v3525 = vld [vmem:[%s3383 + $0x114] sm:$0xff]
    %v3526 = vld [vmem:[%s3383 + $0x124] sm:$0xff]
    %v3527 = vld [vmem:[%s3383 + $0x134] sm:$0xff]
    %v3528 = vpack.c.bf16 %v3512, %v3512
    %v3529 = vpack.c.bf16 %v3513, %v3513
    %v3530 = vpack.c.bf16 %v3514, %v3514
    %v3531 = vpack.c.bf16 %v3515, %v3515
    %v3532 = vpack.c.bf16 %v3516, %v3516
    %v3533 = vpack.c.bf16 %v3517, %v3517
    %v3534 = vpack.c.bf16 %v3518, %v3518
    %v3535 = vpack.c.bf16 %v3519, %v3519
    %v3536 = vpack.c.bf16 %v3520, %v3520
    %v3537 = vpack.c.bf16 %v3521, %v3521
    %v3538 = vpack.c.bf16 %v3522, %v3522
    %v3539 = vpack.c.bf16 %v3523, %v3523
    %v3540 = vpack.c.bf16 %v3524, %v3524
    %v3541 = vpack.c.bf16 %v3525, %v3525
    %v3542 = vpack.c.bf16 %v3526, %v3526
    %v3543 = vpack.c.bf16 %v3527, %v3527
    %v3560 = vunpack.c.l.b16 %v3400
    %v3561 = vunpack.c.l.b16 %v3401
    %v3562 = vunpack.c.l.b16 %v3402
    %v3563 = vunpack.c.l.b16 %v3403
    %v3564 = vunpack.c.l.b16 %v3404
    %v3565 = vunpack.c.l.b16 %v3405
    %v3566 = vunpack.c.l.b16 %v3406
    %v3567 = vunpack.c.l.b16 %v3407
    %v3568 = vunpack.c.l.b16 %v3408
    %v3569 = vunpack.c.l.b16 %v3409
    %v3570 = vunpack.c.l.b16 %v3410
    %v3571 = vunpack.c.l.b16 %v3411
    %v3572 = vunpack.c.l.b16 %v3412
    %v3573 = vunpack.c.l.b16 %v3413
    %v3574 = vunpack.c.l.b16 %v3414
    %v3575 = vunpack.c.l.b16 %v3415
    %v3576 = vpack.c.b16 %v3561, %v3560
    %v3577 = vpack.c.b16 %v3563, %v3562
    %v3578 = vpack.c.b16 %v3565, %v3564
    %v3579 = vpack.c.b16 %v3567, %v3566
    %v3580 = vpack.c.b16 %v3569, %v3568
    %v3581 = vpack.c.b16 %v3571, %v3570
    %v3582 = vpack.c.b16 %v3573, %v3572
    %v3583 = vpack.c.b16 %v3575, %v3574
    %v3608 = vunpack.c.l.b16 %v3432
    %v3609 = vunpack.c.l.b16 %v3433
    %v3610 = vunpack.c.l.b16 %v3434
    %v3611 = vunpack.c.l.b16 %v3435
    %v3612 = vunpack.c.l.b16 %v3436
    %v3613 = vunpack.c.l.b16 %v3437
    %v3614 = vunpack.c.l.b16 %v3438
    %v3615 = vunpack.c.l.b16 %v3439
    %v3616 = vunpack.c.l.b16 %v3440
    %v3617 = vunpack.c.l.b16 %v3441
    %v3618 = vunpack.c.l.b16 %v3442
    %v3619 = vunpack.c.l.b16 %v3443
    %v3620 = vunpack.c.l.b16 %v3444
    %v3621 = vunpack.c.l.b16 %v3445
    %v3622 = vunpack.c.l.b16 %v3446
    %v3623 = vunpack.c.l.b16 %v3447
    %v3624 = vpack.c.b16 %v3609, %v3608
    %v3625 = vpack.c.b16 %v3611, %v3610
    %v3626 = vpack.c.b16 %v3613, %v3612
    %v3627 = vpack.c.b16 %v3615, %v3614
    %v3628 = vpack.c.b16 %v3617, %v3616
    %v3629 = vpack.c.b16 %v3619, %v3618
    %v3630 = vpack.c.b16 %v3621, %v3620
    %v3631 = vpack.c.b16 %v3623, %v3622
    %v3656 = vunpack.c.l.b16 %v3464
    %v3657 = vunpack.c.l.b16 %v3465
    %v3658 = vunpack.c.l.b16 %v3466
    %v3659 = vunpack.c.l.b16 %v3467
    %v3660 = vunpack.c.l.b16 %v3468
    %v3661 = vunpack.c.l.b16 %v3469
    %v3662 = vunpack.c.l.b16 %v3470
    %v3663 = vunpack.c.l.b16 %v3471
    %v3664 = vunpack.c.l.b16 %v3472
    %v3665 = vunpack.c.l.b16 %v3473
    %v3666 = vunpack.c.l.b16 %v3474
    %v3667 = vunpack.c.l.b16 %v3475
    %v3668 = vunpack.c.l.b16 %v3476
    %v3669 = vunpack.c.l.b16 %v3477
    %v3670 = vunpack.c.l.b16 %v3478
    %v3671 = vunpack.c.l.b16 %v3479
    %v3672 = vpack.c.b16 %v3657, %v3656
    %v3673 = vpack.c.b16 %v3659, %v3658
    %v3674 = vpack.c.b16 %v3661, %v3660
    %v3675 = vpack.c.b16 %v3663, %v3662
    %v3676 = vpack.c.b16 %v3665, %v3664
    %v3677 = vpack.c.b16 %v3667, %v3666
    %v3678 = vpack.c.b16 %v3669, %v3668
    %v3679 = vpack.c.b16 %v3671, %v3670
    %v3704 = vunpack.c.l.b16 %v3496
    %v3705 = vunpack.c.l.b16 %v3497
    %v3706 = vunpack.c.l.b16 %v3498
    %v3707 = vunpack.c.l.b16 %v3499
    %v3708 = vunpack.c.l.b16 %v3500
    %v3709 = vunpack.c.l.b16 %v3501
    %v3710 = vunpack.c.l.b16 %v3502
    %v3711 = vunpack.c.l.b16 %v3503
    %v3712 = vunpack.c.l.b16 %v3504
    %v3713 = vunpack.c.l.b16 %v3505
    %v3714 = vunpack.c.l.b16 %v3506
    %v3715 = vunpack.c.l.b16 %v3507
    %v3716 = vunpack.c.l.b16 %v3508
    %v3717 = vunpack.c.l.b16 %v3509
    %v3718 = vunpack.c.l.b16 %v3510
    %v3719 = vunpack.c.l.b16 %v3511
    %v3720 = vpack.c.b16 %v3705, %v3704
    %v3721 = vpack.c.b16 %v3707, %v3706
    %v3722 = vpack.c.b16 %v3709, %v3708
    %v3723 = vpack.c.b16 %v3711, %v3710
    %v3724 = vpack.c.b16 %v3713, %v3712
    %v3725 = vpack.c.b16 %v3715, %v3714
    %v3726 = vpack.c.b16 %v3717, %v3716
    %v3727 = vpack.c.b16 %v3719, %v3718
    %v3752 = vunpack.c.l.b16 %v3528
    %v3753 = vunpack.c.l.b16 %v3529
    %v3754 = vunpack.c.l.b16 %v3530
    %v3755 = vunpack.c.l.b16 %v3531
    %v3756 = vunpack.c.l.b16 %v3532
    %v3757 = vunpack.c.l.b16 %v3533
    %v3758 = vunpack.c.l.b16 %v3534
    %v3759 = vunpack.c.l.b16 %v3535
    %v3760 = vunpack.c.l.b16 %v3536
    %v3761 = vunpack.c.l.b16 %v3537
    %v3762 = vunpack.c.l.b16 %v3538
    %v3763 = vunpack.c.l.b16 %v3539
    %v3764 = vunpack.c.l.b16 %v3540
    %v3765 = vunpack.c.l.b16 %v3541
    %v3766 = vunpack.c.l.b16 %v3542
    %v3767 = vunpack.c.l.b16 %v3543
    %v3768 = vpack.c.b16 %v3753, %v3752
    %v3769 = vpack.c.b16 %v3755, %v3754
    %v3770 = vpack.c.b16 %v3757, %v3756
    %v3771 = vpack.c.b16 %v3759, %v3758
    %v3772 = vpack.c.b16 %v3761, %v3760
    %v3773 = vpack.c.b16 %v3763, %v3762
    %v3774 = vpack.c.b16 %v3765, %v3764
    %v3775 = vpack.c.b16 %v3767, %v3766
    %v3784 = vld [vmem:[%s2 + $0x3c0] sm:$0xf]
    %v3785 = vld [vmem:[%s2 + $0x3c4] sm:$0xf]
    %v3786 = vld [vmem:[%s2 + $0x3c8] sm:$0xf]
    %v3787 = vld [vmem:[%s2 + $0x3cc] sm:$0xf]
    %v3788 = vld [vmem:[%s2 + $0x3d0] sm:$0xf]
    %v3789 = vld [vmem:[%s2 + $0x3d4] sm:$0xf]
    %v3790 = vld [vmem:[%s2 + $0x3d8] sm:$0xf]
    %v3791 = vld [vmem:[%s2 + $0x3dc] sm:$0xf]
    %v3792 = vld [vmem:[%s2 + $0x3e0] sm:$0xf]
    %v3793 = vld [vmem:[%s2 + $0x3e4] sm:$0xf]
    %v3794 = vld [vmem:[%s2 + $0x3e8] sm:$0xf]
    %v3795 = vld [vmem:[%s2 + $0x3ec] sm:$0xf]
    %v3796 = vld [vmem:[%s2 + $0x3f0] sm:$0xf]
    %v3797 = vld [vmem:[%s2 + $0x3f4] sm:$0xf]
    %v3798 = vld [vmem:[%s2 + $0x3f8] sm:$0xf]
    %v3799 = vld [vmem:[%s2 + $0x3fc] sm:$0xf]
    %v3800 = vld [vmem:[%s2 + $0x400] sm:$0xf]
    %v3801 = vld [vmem:[%s2 + $0x404] sm:$0xf]
    %v3802 = vld [vmem:[%s2 + $0x408] sm:$0xf]
    %v3803 = vld [vmem:[%s2 + $0x40c] sm:$0xf]
    %v3804 = vld [vmem:[%s2 + $0x410] sm:$0xf]
    %v3805 = vld [vmem:[%s2 + $0x414] sm:$0xf]
    %v3806 = vld [vmem:[%s2 + $0x418] sm:$0xf]
    %v3807 = vld [vmem:[%s2 + $0x41c] sm:$0xf]
    %v3808 = vld [vmem:[%s2 + $0x420] sm:$0xf]
    %v3809 = vld [vmem:[%s2 + $0x424] sm:$0xf]
    %v3810 = vld [vmem:[%s2 + $0x428] sm:$0xf]
    %v3811 = vld [vmem:[%s2 + $0x42c] sm:$0xf]
    %v3812 = vld [vmem:[%s2 + $0x430] sm:$0xf]
    %v3813 = vld [vmem:[%s2 + $0x434] sm:$0xf]
    %v3814 = vld [vmem:[%s2 + $0x438] sm:$0xf]
    %v3815 = vld [vmem:[%s2 + $0x43c] sm:$0xf]
    %v3816 = vld [vmem:[%s2 + $0x440] sm:$0xf]
    %v3817 = vld [vmem:[%s2 + $0x444] sm:$0xf]
    %v3818 = vld [vmem:[%s2 + $0x448] sm:$0xf]
    %v3819 = vld [vmem:[%s2 + $0x44c] sm:$0xf]
    %v3820 = vld [vmem:[%s2 + $0x450] sm:$0xf]
    %v3821 = vld [vmem:[%s2 + $0x454] sm:$0xf]
    %v3822 = vld [vmem:[%s2 + $0x458] sm:$0xf]
    %v3823 = vld [vmem:[%s2 + $0x45c] sm:$0xf]
    %v3824 = vld [vmem:[%s2 + $0x460] sm:$0xf]
    %v3825 = vld [vmem:[%s2 + $0x464] sm:$0xf]
    %v3826 = vld [vmem:[%s2 + $0x468] sm:$0xf]
    %v3827 = vld [vmem:[%s2 + $0x46c] sm:$0xf]
    %v3828 = vld [vmem:[%s2 + $0x470] sm:$0xf]
    %v3829 = vld [vmem:[%s2 + $0x474] sm:$0xf]
    %v3830 = vld [vmem:[%s2 + $0x478] sm:$0xf]
    %v3831 = vld [vmem:[%s2 + $0x47c] sm:$0xf]
    %v3832 = vld [vmem:[%s2 + $0x480] sm:$0xf]
    %v3833 = vld [vmem:[%s2 + $0x484] sm:$0xf]
    %v3834 = vld [vmem:[%s2 + $0x488] sm:$0xf]
    %v3835 = vld [vmem:[%s2 + $0x48c] sm:$0xf]
    %v3836 = vld [vmem:[%s2 + $0x490] sm:$0xf]
    %v3837 = vld [vmem:[%s2 + $0x494] sm:$0xf]
    %v3838 = vld [vmem:[%s2 + $0x498] sm:$0xf]
    %v3839 = vld [vmem:[%s2 + $0x49c] sm:$0xf]
    %v3840 = vld [vmem:[%s2 + $0x4a0] sm:$0xf]
    %v3841 = vld [vmem:[%s2 + $0x4a4] sm:$0xf]
    %v3842 = vld [vmem:[%s2 + $0x4a8] sm:$0xf]
    %v3843 = vld [vmem:[%s2 + $0x4ac] sm:$0xf]
    %v3844 = vld [vmem:[%s2 + $0x4b0] sm:$0xf]
    %v3845 = vld [vmem:[%s2 + $0x4b4] sm:$0xf]
    %v3846 = vld [vmem:[%s2 + $0x4b8] sm:$0xf]
    %v3847 = vld [vmem:[%s2 + $0x4bc] sm:$0xf]
    %v3848 = vld [vmem:[%s2 + $0x4c0] sm:$0xf]
    %v3849 = vld [vmem:[%s2 + $0x4c4] sm:$0xf]
    %v3850 = vld [vmem:[%s2 + $0x4c8] sm:$0xf]
    %v3851 = vld [vmem:[%s2 + $0x4cc] sm:$0xf]
    %v3852 = vld [vmem:[%s2 + $0x4d0] sm:$0xf]
    %v3853 = vld [vmem:[%s2 + $0x4d4] sm:$0xf]
    %v3854 = vld [vmem:[%s2 + $0x4d8] sm:$0xf]
    %v3855 = vld [vmem:[%s2 + $0x4dc] sm:$0xf]
    %v3856 = vld [vmem:[%s2 + $0x4e0] sm:$0xf]
    %v3857 = vld [vmem:[%s2 + $0x4e4] sm:$0xf]
    %v3858 = vld [vmem:[%s2 + $0x4e8] sm:$0xf]
    %v3859 = vld [vmem:[%s2 + $0x4ec] sm:$0xf]
    %v3860 = vld [vmem:[%s2 + $0x4f0] sm:$0xf]
    %v3861 = vld [vmem:[%s2 + $0x4f4] sm:$0xf]
    %v3862 = vld [vmem:[%s2 + $0x4f8] sm:$0xf]
    %v3863 = vld [vmem:[%s2 + $0x4fc] sm:$0xf]
    %v3944 = vunpack.c.l.b16 %v3784
    %v3945 = vunpack.c.l.b16 %v3785
    %v3946 = vunpack.c.l.b16 %v3786
    %v3947 = vunpack.c.l.b16 %v3787
    %v3948 = vunpack.c.l.b16 %v3788
    %v3949 = vunpack.c.l.b16 %v3789
    %v3950 = vunpack.c.l.b16 %v3790
    %v3951 = vunpack.c.l.b16 %v3791
    %v3952 = vunpack.c.l.b16 %v3792
    %v3953 = vunpack.c.l.b16 %v3793
    %v3954 = vunpack.c.l.b16 %v3794
    %v3955 = vunpack.c.l.b16 %v3795
    %v3956 = vunpack.c.l.b16 %v3796
    %v3957 = vunpack.c.l.b16 %v3797
    %v3958 = vunpack.c.l.b16 %v3798
    %v3959 = vunpack.c.l.b16 %v3799
    %v3960 = vunpack.c.l.b16 %v3800
    %v3961 = vunpack.c.l.b16 %v3801
    %v3962 = vunpack.c.l.b16 %v3802
    %v3963 = vunpack.c.l.b16 %v3803
    %v3964 = vunpack.c.l.b16 %v3804
    %v3965 = vunpack.c.l.b16 %v3805
    %v3966 = vunpack.c.l.b16 %v3806
    %v3967 = vunpack.c.l.b16 %v3807
    %v3968 = vunpack.c.l.b16 %v3808
    %v3969 = vunpack.c.l.b16 %v3809
    %v3970 = vunpack.c.l.b16 %v3810
    %v3971 = vunpack.c.l.b16 %v3811
    %v3972 = vunpack.c.l.b16 %v3812
    %v3973 = vunpack.c.l.b16 %v3813
    %v3974 = vunpack.c.l.b16 %v3814
    %v3975 = vunpack.c.l.b16 %v3815
    %v3976 = vunpack.c.l.b16 %v3816
    %v3977 = vunpack.c.l.b16 %v3817
    %v3978 = vunpack.c.l.b16 %v3818
    %v3979 = vunpack.c.l.b16 %v3819
    %v3980 = vunpack.c.l.b16 %v3820
    %v3981 = vunpack.c.l.b16 %v3821
    %v3982 = vunpack.c.l.b16 %v3822
    %v3983 = vunpack.c.l.b16 %v3823
    %v3984 = vunpack.c.l.b16 %v3824
    %v3985 = vunpack.c.l.b16 %v3825
    %v3986 = vunpack.c.l.b16 %v3826
    %v3987 = vunpack.c.l.b16 %v3827
    %v3988 = vunpack.c.l.b16 %v3828
    %v3989 = vunpack.c.l.b16 %v3829
    %v3990 = vunpack.c.l.b16 %v3830
    %v3991 = vunpack.c.l.b16 %v3831
    %v3992 = vunpack.c.l.b16 %v3832
    %v3993 = vunpack.c.l.b16 %v3833
    %v3994 = vunpack.c.l.b16 %v3834
    %v3995 = vunpack.c.l.b16 %v3835
    %v3996 = vunpack.c.l.b16 %v3836
    %v3997 = vunpack.c.l.b16 %v3837
    %v3998 = vunpack.c.l.b16 %v3838
    %v3999 = vunpack.c.l.b16 %v3839
    %v4000 = vunpack.c.l.b16 %v3840
    %v4001 = vunpack.c.l.b16 %v3841
    %v4002 = vunpack.c.l.b16 %v3842
    %v4003 = vunpack.c.l.b16 %v3843
    %v4004 = vunpack.c.l.b16 %v3844
    %v4005 = vunpack.c.l.b16 %v3845
    %v4006 = vunpack.c.l.b16 %v3846
    %v4007 = vunpack.c.l.b16 %v3847
    %v4008 = vunpack.c.l.b16 %v3848
    %v4009 = vunpack.c.l.b16 %v3849
    %v4010 = vunpack.c.l.b16 %v3850
    %v4011 = vunpack.c.l.b16 %v3851
    %v4012 = vunpack.c.l.b16 %v3852
    %v4013 = vunpack.c.l.b16 %v3853
    %v4014 = vunpack.c.l.b16 %v3854
    %v4015 = vunpack.c.l.b16 %v3855
    %v4016 = vunpack.c.l.b16 %v3856
    %v4017 = vunpack.c.l.b16 %v3857
    %v4018 = vunpack.c.l.b16 %v3858
    %v4019 = vunpack.c.l.b16 %v3859
    %v4020 = vunpack.c.l.b16 %v3860
    %v4021 = vunpack.c.l.b16 %v3861
    %v4022 = vunpack.c.l.b16 %v3862
    %v4023 = vunpack.c.l.b16 %v3863
    %v4024 = vpack.c.b16 %v3945, %v3944
    %v4025 = vpack.c.b16 %v3947, %v3946
    %v4026 = vpack.c.b16 %v3949, %v3948
    %v4027 = vpack.c.b16 %v3951, %v3950
    %v4028 = vpack.c.b16 %v3953, %v3952
    %v4029 = vpack.c.b16 %v3955, %v3954
    %v4030 = vpack.c.b16 %v3957, %v3956
    %v4031 = vpack.c.b16 %v3959, %v3958
    %v4032 = vpack.c.b16 %v3961, %v3960
    %v4033 = vpack.c.b16 %v3963, %v3962
    %v4034 = vpack.c.b16 %v3965, %v3964
    %v4035 = vpack.c.b16 %v3967, %v3966
    %v4036 = vpack.c.b16 %v3969, %v3968
    %v4037 = vpack.c.b16 %v3971, %v3970
    %v4038 = vpack.c.b16 %v3973, %v3972
    %v4039 = vpack.c.b16 %v3975, %v3974
    %v4040 = vpack.c.b16 %v3977, %v3976
    %v4041 = vpack.c.b16 %v3979, %v3978
    %v4042 = vpack.c.b16 %v3981, %v3980
    %v4043 = vpack.c.b16 %v3983, %v3982
    %v4044 = vpack.c.b16 %v3985, %v3984
    %v4045 = vpack.c.b16 %v3987, %v3986
    %v4046 = vpack.c.b16 %v3989, %v3988
    %v4047 = vpack.c.b16 %v3991, %v3990
    %v4048 = vpack.c.b16 %v3993, %v3992
    %v4049 = vpack.c.b16 %v3995, %v3994
    %v4050 = vpack.c.b16 %v3997, %v3996
    %v4051 = vpack.c.b16 %v3999, %v3998
    %v4052 = vpack.c.b16 %v4001, %v4000
    %v4053 = vpack.c.b16 %v4003, %v4002
    %v4054 = vpack.c.b16 %v4005, %v4004
    %v4055 = vpack.c.b16 %v4007, %v4006
    %v4056 = vpack.c.b16 %v4009, %v4008
    %v4057 = vpack.c.b16 %v4011, %v4010
    %v4058 = vpack.c.b16 %v4013, %v4012
    %v4059 = vpack.c.b16 %v4015, %v4014
    %v4060 = vpack.c.b16 %v4017, %v4016
    %v4061 = vpack.c.b16 %v4019, %v4018
    %v4062 = vpack.c.b16 %v4021, %v4020
    %v4063 = vpack.c.b16 %v4023, %v4022
    %4104 = vmatpush.bf16.msra.mxu0 %v4031
    %4105 = vmatpush.bf16.msra.mxu0 %v4030
    %4106 = vmatpush.bf16.msra.mxu0 %v4029
    %4107 = vmatpush.bf16.msra.mxu0 %v4028
    %4108 = vmatpush.bf16.msra.mxu0 %v4027
    %4109 = vmatpush.bf16.msra.mxu0 %v4026
    %4110 = vmatpush.bf16.msra.mxu0 %v4025
    %4111 = vmatpush.bf16.msra.mxu0 %v4024
    %4112 = vmatmul.bf16.gmra.mxu0 %v3576
    %v4113 = vpop.f32.mrf.mxu0
    %v4114 = vadd.f32 0.0, %v4113
    %v4115 = vpop.f32.mrf.mxu0
    %v4116 = vadd.f32 0.0, %v4115
    %4117 = vmatmul.bf16.gmra.mxu0 %v3577
    %v4118 = vpop.f32.mrf.mxu0
    %v4119 = vadd.f32 0.0, %v4118
    %v4120 = vpop.f32.mrf.mxu0
    %v4121 = vadd.f32 0.0, %v4120
    %4122 = vmatmul.bf16.gmra.mxu0 %v3578
    %v4123 = vpop.f32.mrf.mxu0
    %v4124 = vadd.f32 0.0, %v4123
    %v4125 = vpop.f32.mrf.mxu0
    %v4126 = vadd.f32 0.0, %v4125
    %4127 = vmatmul.bf16.gmra.mxu0 %v3579
    %v4128 = vpop.f32.mrf.mxu0
    %v4129 = vadd.f32 0.0, %v4128
    %v4130 = vpop.f32.mrf.mxu0
    %v4131 = vadd.f32 0.0, %v4130
    %4132 = vmatmul.bf16.gmra.mxu0 %v3580
    %v4133 = vpop.f32.mrf.mxu0
    %v4134 = vadd.f32 0.0, %v4133
    %v4135 = vpop.f32.mrf.mxu0
    %v4136 = vadd.f32 0.0, %v4135
    %4137 = vmatmul.bf16.gmra.mxu0 %v3581
    %v4138 = vpop.f32.mrf.mxu0
    %v4139 = vadd.f32 0.0, %v4138
    %v4140 = vpop.f32.mrf.mxu0
    %v4141 = vadd.f32 0.0, %v4140
    %4142 = vmatmul.bf16.gmra.mxu0 %v3582
    %v4143 = vpop.f32.mrf.mxu0
    %v4144 = vadd.f32 0.0, %v4143
    %v4145 = vpop.f32.mrf.mxu0
    %v4146 = vadd.f32 0.0, %v4145
    %4147 = vmatmul.bf16.gmra.mxu0 %v3583
    %v4148 = vpop.f32.mrf.mxu0
    %v4149 = vadd.f32 0.0, %v4148
    %v4150 = vpop.f32.mrf.mxu0
    %v4151 = vadd.f32 0.0, %v4150
    %4152 = vdwg.mxu0
    %4153 = vmatpush.bf16.msra.mxu0 %v4039
    %4154 = vmatpush.bf16.msra.mxu0 %v4038
    %4155 = vmatpush.bf16.msra.mxu0 %v4037
    %4156 = vmatpush.bf16.msra.mxu0 %v4036
    %4157 = vmatpush.bf16.msra.mxu0 %v4035
    %4158 = vmatpush.bf16.msra.mxu0 %v4034
    %4159 = vmatpush.bf16.msra.mxu0 %v4033
    %4160 = vmatpush.bf16.msra.mxu0 %v4032
    %4161 = vmatmul.bf16.gmra.mxu0 %v3624
    %v4162 = vpop.f32.mrf.mxu0
    %v4163 = vadd.f32 %v4114, %v4162
    %v4164 = vpop.f32.mrf.mxu0
    %v4165 = vadd.f32 %v4116, %v4164
    %4166 = vmatmul.bf16.gmra.mxu0 %v3625
    %v4167 = vpop.f32.mrf.mxu0
    %v4168 = vadd.f32 %v4119, %v4167
    %v4169 = vpop.f32.mrf.mxu0
    %v4170 = vadd.f32 %v4121, %v4169
    %4171 = vmatmul.bf16.gmra.mxu0 %v3626
    %v4172 = vpop.f32.mrf.mxu0
    %v4173 = vadd.f32 %v4124, %v4172
    %v4174 = vpop.f32.mrf.mxu0
    %v4175 = vadd.f32 %v4126, %v4174
    %4176 = vmatmul.bf16.gmra.mxu0 %v3627
    %v4177 = vpop.f32.mrf.mxu0
    %v4178 = vadd.f32 %v4129, %v4177
    %v4179 = vpop.f32.mrf.mxu0
    %v4180 = vadd.f32 %v4131, %v4179
    %4181 = vmatmul.bf16.gmra.mxu0 %v3628
    %v4182 = vpop.f32.mrf.mxu0
    %v4183 = vadd.f32 %v4134, %v4182
    %v4184 = vpop.f32.mrf.mxu0
    %v4185 = vadd.f32 %v4136, %v4184
    %4186 = vmatmul.bf16.gmra.mxu0 %v3629
    %v4187 = vpop.f32.mrf.mxu0
    %v4188 = vadd.f32 %v4139, %v4187
    %v4189 = vpop.f32.mrf.mxu0
    %v4190 = vadd.f32 %v4141, %v4189
    %4191 = vmatmul.bf16.gmra.mxu0 %v3630
    %v4192 = vpop.f32.mrf.mxu0
    %v4193 = vadd.f32 %v4144, %v4192
    %v4194 = vpop.f32.mrf.mxu0
    %v4195 = vadd.f32 %v4146, %v4194
    %4196 = vmatmul.bf16.gmra.mxu0 %v3631
    %v4197 = vpop.f32.mrf.mxu0
    %v4198 = vadd.f32 %v4149, %v4197
    %v4199 = vpop.f32.mrf.mxu0
    %v4200 = vadd.f32 %v4151, %v4199
    %4201 = vdwg.mxu0
    %4202 = vmatpush.bf16.msra.mxu0 %v4047
    %4203 = vmatpush.bf16.msra.mxu0 %v4046
    %4204 = vmatpush.bf16.msra.mxu0 %v4045
    %4205 = vmatpush.bf16.msra.mxu0 %v4044
    %4206 = vmatpush.bf16.msra.mxu0 %v4043
    %4207 = vmatpush.bf16.msra.mxu0 %v4042
    %4208 = vmatpush.bf16.msra.mxu0 %v4041
    %4209 = vmatpush.bf16.msra.mxu0 %v4040
    %4210 = vmatmul.bf16.gmra.mxu0 %v3672
    %v4211 = vpop.f32.mrf.mxu0
    %v4212 = vadd.f32 %v4163, %v4211
    %v4213 = vpop.f32.mrf.mxu0
    %v4214 = vadd.f32 %v4165, %v4213
    %4215 = vmatmul.bf16.gmra.mxu0 %v3673
    %v4216 = vpop.f32.mrf.mxu0
    %v4217 = vadd.f32 %v4168, %v4216
    %v4218 = vpop.f32.mrf.mxu0
    %v4219 = vadd.f32 %v4170, %v4218
    %4220 = vmatmul.bf16.gmra.mxu0 %v3674
    %v4221 = vpop.f32.mrf.mxu0
    %v4222 = vadd.f32 %v4173, %v4221
    %v4223 = vpop.f32.mrf.mxu0
    %v4224 = vadd.f32 %v4175, %v4223
    %4225 = vmatmul.bf16.gmra.mxu0 %v3675
    %v4226 = vpop.f32.mrf.mxu0
    %v4227 = vadd.f32 %v4178, %v4226
    %v4228 = vpop.f32.mrf.mxu0
    %v4229 = vadd.f32 %v4180, %v4228
    %4230 = vmatmul.bf16.gmra.mxu0 %v3676
    %v4231 = vpop.f32.mrf.mxu0
    %v4232 = vadd.f32 %v4183, %v4231
    %v4233 = vpop.f32.mrf.mxu0
    %v4234 = vadd.f32 %v4185, %v4233
    %4235 = vmatmul.bf16.gmra.mxu0 %v3677
    %v4236 = vpop.f32.mrf.mxu0
    %v4237 = vadd.f32 %v4188, %v4236
    %v4238 = vpop.f32.mrf.mxu0
    %v4239 = vadd.f32 %v4190, %v4238
    %4240 = vmatmul.bf16.gmra.mxu0 %v3678
    %v4241 = vpop.f32.mrf.mxu0
    %v4242 = vadd.f32 %v4193, %v4241
    %v4243 = vpop.f32.mrf.mxu0
    %v4244 = vadd.f32 %v4195, %v4243
    %4245 = vmatmul.bf16.gmra.mxu0 %v3679
    %v4246 = vpop.f32.mrf.mxu0
    %v4247 = vadd.f32 %v4198, %v4246
    %v4248 = vpop.f32.mrf.mxu0
    %v4249 = vadd.f32 %v4200, %v4248
    %4250 = vdwg.mxu0
    %4251 = vmatpush.bf16.msra.mxu0 %v4055
    %4252 = vmatpush.bf16.msra.mxu0 %v4054
    %4253 = vmatpush.bf16.msra.mxu0 %v4053
    %4254 = vmatpush.bf16.msra.mxu0 %v4052
    %4255 = vmatpush.bf16.msra.mxu0 %v4051
    %4256 = vmatpush.bf16.msra.mxu0 %v4050
    %4257 = vmatpush.bf16.msra.mxu0 %v4049
    %4258 = vmatpush.bf16.msra.mxu0 %v4048
    %4259 = vmatmul.bf16.gmra.mxu0 %v3720
    %v4260 = vpop.f32.mrf.mxu0
    %v4261 = vadd.f32 %v4212, %v4260
    %v4262 = vpop.f32.mrf.mxu0
    %v4263 = vadd.f32 %v4214, %v4262
    %4264 = vmatmul.bf16.gmra.mxu0 %v3721
    %v4265 = vpop.f32.mrf.mxu0
    %v4266 = vadd.f32 %v4217, %v4265
    %v4267 = vpop.f32.mrf.mxu0
    %v4268 = vadd.f32 %v4219, %v4267
    %4269 = vmatmul.bf16.gmra.mxu0 %v3722
    %v4270 = vpop.f32.mrf.mxu0
    %v4271 = vadd.f32 %v4222, %v4270
    %v4272 = vpop.f32.mrf.mxu0
    %v4273 = vadd.f32 %v4224, %v4272
    %4274 = vmatmul.bf16.gmra.mxu0 %v3723
    %v4275 = vpop.f32.mrf.mxu0
    %v4276 = vadd.f32 %v4227, %v4275
    %v4277 = vpop.f32.mrf.mxu0
    %v4278 = vadd.f32 %v4229, %v4277
    %4279 = vmatmul.bf16.gmra.mxu0 %v3724
    %v4280 = vpop.f32.mrf.mxu0
    %v4281 = vadd.f32 %v4232, %v4280
    %v4282 = vpop.f32.mrf.mxu0
    %v4283 = vadd.f32 %v4234, %v4282
    %4284 = vmatmul.bf16.gmra.mxu0 %v3725
    %v4285 = vpop.f32.mrf.mxu0
    %v4286 = vadd.f32 %v4237, %v4285
    %v4287 = vpop.f32.mrf.mxu0
    %v4288 = vadd.f32 %v4239, %v4287
    %4289 = vmatmul.bf16.gmra.mxu0 %v3726
    %v4290 = vpop.f32.mrf.mxu0
    %v4291 = vadd.f32 %v4242, %v4290
    %v4292 = vpop.f32.mrf.mxu0
    %v4293 = vadd.f32 %v4244, %v4292
    %4294 = vmatmul.bf16.gmra.mxu0 %v3727
    %v4295 = vpop.f32.mrf.mxu0
    %v4296 = vadd.f32 %v4247, %v4295
    %v4297 = vpop.f32.mrf.mxu0
    %v4298 = vadd.f32 %v4249, %v4297
    %4299 = vdwg.mxu0
    %4300 = vmatpush.bf16.msra.mxu0 %v4063
    %4301 = vmatpush.bf16.msra.mxu0 %v4062
    %4302 = vmatpush.bf16.msra.mxu0 %v4061
    %4303 = vmatpush.bf16.msra.mxu0 %v4060
    %4304 = vmatpush.bf16.msra.mxu0 %v4059
    %4305 = vmatpush.bf16.msra.mxu0 %v4058
    %4306 = vmatpush.bf16.msra.mxu0 %v4057
    %4307 = vmatpush.bf16.msra.mxu0 %v4056
    %4308 = vmatmul.bf16.gmra.mxu0 %v3768
    %v4309 = vpop.f32.mrf.mxu0
    %v4310 = vadd.f32 %v4261, %v4309
    %v4311 = vpop.f32.mrf.mxu0
    %v4312 = vadd.f32 %v4263, %v4311
    %4313 = vmatmul.bf16.gmra.mxu0 %v3769
    %v4314 = vpop.f32.mrf.mxu0
    %v4315 = vadd.f32 %v4266, %v4314
    %v4316 = vpop.f32.mrf.mxu0
    %v4317 = vadd.f32 %v4268, %v4316
    %4318 = vmatmul.bf16.gmra.mxu0 %v3770
    %v4319 = vpop.f32.mrf.mxu0
    %v4320 = vadd.f32 %v4271, %v4319
    %v4321 = vpop.f32.mrf.mxu0
    %v4322 = vadd.f32 %v4273, %v4321
    %4323 = vmatmul.bf16.gmra.mxu0 %v3771
    %v4324 = vpop.f32.mrf.mxu0
    %v4325 = vadd.f32 %v4276, %v4324
    %v4326 = vpop.f32.mrf.mxu0
    %v4327 = vadd.f32 %v4278, %v4326
    %4328 = vmatmul.bf16.gmra.mxu0 %v3772
    %v4329 = vpop.f32.mrf.mxu0
    %v4330 = vadd.f32 %v4281, %v4329
    %v4331 = vpop.f32.mrf.mxu0
    %v4332 = vadd.f32 %v4283, %v4331
    %4333 = vmatmul.bf16.gmra.mxu0 %v3773
    %v4334 = vpop.f32.mrf.mxu0
    %v4335 = vadd.f32 %v4286, %v4334
    %v4336 = vpop.f32.mrf.mxu0
    %v4337 = vadd.f32 %v4288, %v4336
    %4338 = vmatmul.bf16.gmra.mxu0 %v3774
    %v4339 = vpop.f32.mrf.mxu0
    %v4340 = vadd.f32 %v4291, %v4339
    %v4341 = vpop.f32.mrf.mxu0
    %v4342 = vadd.f32 %v4293, %v4341
    %4343 = vmatmul.bf16.gmra.mxu0 %v3775
    %v4344 = vpop.f32.mrf.mxu0
    %v4345 = vadd.f32 %v4296, %v4344
    %v4346 = vpop.f32.mrf.mxu0
    %v4347 = vadd.f32 %v4298, %v4346
    %4348 = vdwg.mxu0
    %v4349 = vadd.f32 %v3367, %v4310
    %v4350 = vadd.f32 %v3368, %v4312
    %v4351 = vadd.f32 %v3369, %v4315
    %v4352 = vadd.f32 %v3370, %v4317
    %v4353 = vadd.f32 %v3371, %v4320
    %v4354 = vadd.f32 %v3372, %v4322
    %v4355 = vadd.f32 %v3373, %v4325
    %v4356 = vadd.f32 %v3374, %v4327
    %v4357 = vadd.f32 %v3375, %v4330
    %v4358 = vadd.f32 %v3376, %v4332
    %v4359 = vadd.f32 %v3377, %v4335
    %v4360 = vadd.f32 %v3378, %v4337
    %v4361 = vadd.f32 %v3379, %v4340
    %v4362 = vadd.f32 %v3380, %v4342
    %v4363 = vadd.f32 %v3381, %v4345
    %v4364 = vadd.f32 %v3382, %v4347
    %s4365 = scalar_lea.vmem [#allocation2], 64
    %v4366 = vld [vmem:[%s4365] sm:$0xff]
    %v4367 = vld [vmem:[%s4365 + $0x10] sm:$0xff]
    %v4368 = vld [vmem:[%s4365 + $0x20] sm:$0xff]
    %v4369 = vld [vmem:[%s4365 + $0x30] sm:$0xff]
    %v4370 = vld [vmem:[%s4365 + $0x40] sm:$0xff]
    %v4371 = vld [vmem:[%s4365 + $0x50] sm:$0xff]
    %v4372 = vld [vmem:[%s4365 + $0x60] sm:$0xff]
    %v4373 = vld [vmem:[%s4365 + $0x70] sm:$0xff]
    %v4374 = vld [vmem:[%s4365 + $0xc0] sm:$0xff]
    %v4375 = vld [vmem:[%s4365 + $0xd0] sm:$0xff]
    %v4376 = vld [vmem:[%s4365 + $0xe0] sm:$0xff]
    %v4377 = vld [vmem:[%s4365 + $0xf0] sm:$0xff]
    %v4378 = vld [vmem:[%s4365 + $0x100] sm:$0xff]
    %v4379 = vld [vmem:[%s4365 + $0x110] sm:$0xff]
    %v4380 = vld [vmem:[%s4365 + $0x120] sm:$0xff]
    %v4381 = vld [vmem:[%s4365 + $0x130] sm:$0xff]
    %v4382 = vpack.c.bf16 %v4366, %v4366
    %v4383 = vpack.c.bf16 %v4367, %v4367
    %v4384 = vpack.c.bf16 %v4368, %v4368
    %v4385 = vpack.c.bf16 %v4369, %v4369
    %v4386 = vpack.c.bf16 %v4370, %v4370
    %v4387 = vpack.c.bf16 %v4371, %v4371
    %v4388 = vpack.c.bf16 %v4372, %v4372
    %v4389 = vpack.c.bf16 %v4373, %v4373
    %v4390 = vpack.c.bf16 %v4374, %v4374
    %v4391 = vpack.c.bf16 %v4375, %v4375
    %v4392 = vpack.c.bf16 %v4376, %v4376
    %v4393 = vpack.c.bf16 %v4377, %v4377
    %v4394 = vpack.c.bf16 %v4378, %v4378
    %v4395 = vpack.c.bf16 %v4379, %v4379
    %v4396 = vpack.c.bf16 %v4380, %v4380
    %v4397 = vpack.c.bf16 %v4381, %v4381
    %v4398 = vld [vmem:[%s4365 + $0x1] sm:$0xff]
    %v4399 = vld [vmem:[%s4365 + $0x11] sm:$0xff]
    %v4400 = vld [vmem:[%s4365 + $0x21] sm:$0xff]
    %v4401 = vld [vmem:[%s4365 + $0x31] sm:$0xff]
    %v4402 = vld [vmem:[%s4365 + $0x41] sm:$0xff]
    %v4403 = vld [vmem:[%s4365 + $0x51] sm:$0xff]
    %v4404 = vld [vmem:[%s4365 + $0x61] sm:$0xff]
    %v4405 = vld [vmem:[%s4365 + $0x71] sm:$0xff]
    %v4406 = vld [vmem:[%s4365 + $0xc1] sm:$0xff]
    %v4407 = vld [vmem:[%s4365 + $0xd1] sm:$0xff]
    %v4408 = vld [vmem:[%s4365 + $0xe1] sm:$0xff]
    %v4409 = vld [vmem:[%s4365 + $0xf1] sm:$0xff]
    %v4410 = vld [vmem:[%s4365 + $0x101] sm:$0xff]
    %v4411 = vld [vmem:[%s4365 + $0x111] sm:$0xff]
    %v4412 = vld [vmem:[%s4365 + $0x121] sm:$0xff]
    %v4413 = vld [vmem:[%s4365 + $0x131] sm:$0xff]
    %v4414 = vpack.c.bf16 %v4398, %v4398
    %v4415 = vpack.c.bf16 %v4399, %v4399
    %v4416 = vpack.c.bf16 %v4400, %v4400
    %v4417 = vpack.c.bf16 %v4401, %v4401
    %v4418 = vpack.c.bf16 %v4402, %v4402
    %v4419 = vpack.c.bf16 %v4403, %v4403
    %v4420 = vpack.c.bf16 %v4404, %v4404
    %v4421 = vpack.c.bf16 %v4405, %v4405
    %v4422 = vpack.c.bf16 %v4406, %v4406
    %v4423 = vpack.c.bf16 %v4407, %v4407
    %v4424 = vpack.c.bf16 %v4408, %v4408
    %v4425 = vpack.c.bf16 %v4409, %v4409
    %v4426 = vpack.c.bf16 %v4410, %v4410
    %v4427 = vpack.c.bf16 %v4411, %v4411
    %v4428 = vpack.c.bf16 %v4412, %v4412
    %v4429 = vpack.c.bf16 %v4413, %v4413
    %v4430 = vld [vmem:[%s4365 + $0x2] sm:$0xff]
    %v4431 = vld [vmem:[%s4365 + $0x12] sm:$0xff]
    %v4432 = vld [vmem:[%s4365 + $0x22] sm:$0xff]
    %v4433 = vld [vmem:[%s4365 + $0x32] sm:$0xff]
    %v4434 = vld [vmem:[%s4365 + $0x42] sm:$0xff]
    %v4435 = vld [vmem:[%s4365 + $0x52] sm:$0xff]
    %v4436 = vld [vmem:[%s4365 + $0x62] sm:$0xff]
    %v4437 = vld [vmem:[%s4365 + $0x72] sm:$0xff]
    %v4438 = vld [vmem:[%s4365 + $0xc2] sm:$0xff]
    %v4439 = vld [vmem:[%s4365 + $0xd2] sm:$0xff]
    %v4440 = vld [vmem:[%s4365 + $0xe2] sm:$0xff]
    %v4441 = vld [vmem:[%s4365 + $0xf2] sm:$0xff]
    %v4442 = vld [vmem:[%s4365 + $0x102] sm:$0xff]
    %v4443 = vld [vmem:[%s4365 + $0x112] sm:$0xff]
    %v4444 = vld [vmem:[%s4365 + $0x122] sm:$0xff]
    %v4445 = vld [vmem:[%s4365 + $0x132] sm:$0xff]
    %v4446 = vpack.c.bf16 %v4430, %v4430
    %v4447 = vpack.c.bf16 %v4431, %v4431
    %v4448 = vpack.c.bf16 %v4432, %v4432
    %v4449 = vpack.c.bf16 %v4433, %v4433
    %v4450 = vpack.c.bf16 %v4434, %v4434
    %v4451 = vpack.c.bf16 %v4435, %v4435
    %v4452 = vpack.c.bf16 %v4436, %v4436
    %v4453 = vpack.c.bf16 %v4437, %v4437
    %v4454 = vpack.c.bf16 %v4438, %v4438
    %v4455 = vpack.c.bf16 %v4439, %v4439
    %v4456 = vpack.c.bf16 %v4440, %v4440
    %v4457 = vpack.c.bf16 %v4441, %v4441
    %v4458 = vpack.c.bf16 %v4442, %v4442
    %v4459 = vpack.c.bf16 %v4443, %v4443
    %v4460 = vpack.c.bf16 %v4444, %v4444
    %v4461 = vpack.c.bf16 %v4445, %v4445
    %v4462 = vld [vmem:[%s4365 + $0x3] sm:$0xff]
    %v4463 = vld [vmem:[%s4365 + $0x13] sm:$0xff]
    %v4464 = vld [vmem:[%s4365 + $0x23] sm:$0xff]
    %v4465 = vld [vmem:[%s4365 + $0x33] sm:$0xff]
    %v4466 = vld [vmem:[%s4365 + $0x43] sm:$0xff]
    %v4467 = vld [vmem:[%s4365 + $0x53] sm:$0xff]
    %v4468 = vld [vmem:[%s4365 + $0x63] sm:$0xff]
    %v4469 = vld [vmem:[%s4365 + $0x73] sm:$0xff]
    %v4470 = vld [vmem:[%s4365 + $0xc3] sm:$0xff]
    %v4471 = vld [vmem:[%s4365 + $0xd3] sm:$0xff]
    %v4472 = vld [vmem:[%s4365 + $0xe3] sm:$0xff]
    %v4473 = vld [vmem:[%s4365 + $0xf3] sm:$0xff]
    %v4474 = vld [vmem:[%s4365 + $0x103] sm:$0xff]
    %v4475 = vld [vmem:[%s4365 + $0x113] sm:$0xff]
    %v4476 = vld [vmem:[%s4365 + $0x123] sm:$0xff]
    %v4477 = vld [vmem:[%s4365 + $0x133] sm:$0xff]
    %v4478 = vpack.c.bf16 %v4462, %v4462
    %v4479 = vpack.c.bf16 %v4463, %v4463
    %v4480 = vpack.c.bf16 %v4464, %v4464
    %v4481 = vpack.c.bf16 %v4465, %v4465
    %v4482 = vpack.c.bf16 %v4466, %v4466
    %v4483 = vpack.c.bf16 %v4467, %v4467
    %v4484 = vpack.c.bf16 %v4468, %v4468
    %v4485 = vpack.c.bf16 %v4469, %v4469
    %v4486 = vpack.c.bf16 %v4470, %v4470
    %v4487 = vpack.c.bf16 %v4471, %v4471
    %v4488 = vpack.c.bf16 %v4472, %v4472
    %v4489 = vpack.c.bf16 %v4473, %v4473
    %v4490 = vpack.c.bf16 %v4474, %v4474
    %v4491 = vpack.c.bf16 %v4475, %v4475
    %v4492 = vpack.c.bf16 %v4476, %v4476
    %v4493 = vpack.c.bf16 %v4477, %v4477
    %v4494 = vld [vmem:[%s4365 + $0x4] sm:$0xff]
    %v4495 = vld [vmem:[%s4365 + $0x14] sm:$0xff]
    %v4496 = vld [vmem:[%s4365 + $0x24] sm:$0xff]
    %v4497 = vld [vmem:[%s4365 + $0x34] sm:$0xff]
    %v4498 = vld [vmem:[%s4365 + $0x44] sm:$0xff]
    %v4499 = vld [vmem:[%s4365 + $0x54] sm:$0xff]
    %v4500 = vld [vmem:[%s4365 + $0x64] sm:$0xff]
    %v4501 = vld [vmem:[%s4365 + $0x74] sm:$0xff]
    %v4502 = vld [vmem:[%s4365 + $0xc4] sm:$0xff]
    %v4503 = vld [vmem:[%s4365 + $0xd4] sm:$0xff]
    %v4504 = vld [vmem:[%s4365 + $0xe4] sm:$0xff]
    %v4505 = vld [vmem:[%s4365 + $0xf4] sm:$0xff]
    %v4506 = vld [vmem:[%s4365 + $0x104] sm:$0xff]
    %v4507 = vld [vmem:[%s4365 + $0x114] sm:$0xff]
    %v4508 = vld [vmem:[%s4365 + $0x124] sm:$0xff]
    %v4509 = vld [vmem:[%s4365 + $0x134] sm:$0xff]
    %v4510 = vpack.c.bf16 %v4494, %v4494
    %v4511 = vpack.c.bf16 %v4495, %v4495
    %v4512 = vpack.c.bf16 %v4496, %v4496
    %v4513 = vpack.c.bf16 %v4497, %v4497
    %v4514 = vpack.c.bf16 %v4498, %v4498
    %v4515 = vpack.c.bf16 %v4499, %v4499
    %v4516 = vpack.c.bf16 %v4500, %v4500
    %v4517 = vpack.c.bf16 %v4501, %v4501
    %v4518 = vpack.c.bf16 %v4502, %v4502
    %v4519 = vpack.c.bf16 %v4503, %v4503
    %v4520 = vpack.c.bf16 %v4504, %v4504
    %v4521 = vpack.c.bf16 %v4505, %v4505
    %v4522 = vpack.c.bf16 %v4506, %v4506
    %v4523 = vpack.c.bf16 %v4507, %v4507
    %v4524 = vpack.c.bf16 %v4508, %v4508
    %v4525 = vpack.c.bf16 %v4509, %v4509
    %v4542 = vunpack.c.l.b16 %v4382
    %v4543 = vunpack.c.l.b16 %v4383
    %v4544 = vunpack.c.l.b16 %v4384
    %v4545 = vunpack.c.l.b16 %v4385
    %v4546 = vunpack.c.l.b16 %v4386
    %v4547 = vunpack.c.l.b16 %v4387
    %v4548 = vunpack.c.l.b16 %v4388
    %v4549 = vunpack.c.l.b16 %v4389
    %v4550 = vunpack.c.l.b16 %v4390
    %v4551 = vunpack.c.l.b16 %v4391
    %v4552 = vunpack.c.l.b16 %v4392
    %v4553 = vunpack.c.l.b16 %v4393
    %v4554 = vunpack.c.l.b16 %v4394
    %v4555 = vunpack.c.l.b16 %v4395
    %v4556 = vunpack.c.l.b16 %v4396
    %v4557 = vunpack.c.l.b16 %v4397
    %v4558 = vpack.c.b16 %v4543, %v4542
    %v4559 = vpack.c.b16 %v4545, %v4544
    %v4560 = vpack.c.b16 %v4547, %v4546
    %v4561 = vpack.c.b16 %v4549, %v4548
    %v4562 = vpack.c.b16 %v4551, %v4550
    %v4563 = vpack.c.b16 %v4553, %v4552
    %v4564 = vpack.c.b16 %v4555, %v4554
    %v4565 = vpack.c.b16 %v4557, %v4556
    %v4590 = vunpack.c.l.b16 %v4414
    %v4591 = vunpack.c.l.b16 %v4415
    %v4592 = vunpack.c.l.b16 %v4416
    %v4593 = vunpack.c.l.b16 %v4417
    %v4594 = vunpack.c.l.b16 %v4418
    %v4595 = vunpack.c.l.b16 %v4419
    %v4596 = vunpack.c.l.b16 %v4420
    %v4597 = vunpack.c.l.b16 %v4421
    %v4598 = vunpack.c.l.b16 %v4422
    %v4599 = vunpack.c.l.b16 %v4423
    %v4600 = vunpack.c.l.b16 %v4424
    %v4601 = vunpack.c.l.b16 %v4425
    %v4602 = vunpack.c.l.b16 %v4426
    %v4603 = vunpack.c.l.b16 %v4427
    %v4604 = vunpack.c.l.b16 %v4428
    %v4605 = vunpack.c.l.b16 %v4429
    %v4606 = vpack.c.b16 %v4591, %v4590
    %v4607 = vpack.c.b16 %v4593, %v4592
    %v4608 = vpack.c.b16 %v4595, %v4594
    %v4609 = vpack.c.b16 %v4597, %v4596
    %v4610 = vpack.c.b16 %v4599, %v4598
    %v4611 = vpack.c.b16 %v4601, %v4600
    %v4612 = vpack.c.b16 %v4603, %v4602
    %v4613 = vpack.c.b16 %v4605, %v4604
    %v4638 = vunpack.c.l.b16 %v4446
    %v4639 = vunpack.c.l.b16 %v4447
    %v4640 = vunpack.c.l.b16 %v4448
    %v4641 = vunpack.c.l.b16 %v4449
    %v4642 = vunpack.c.l.b16 %v4450
    %v4643 = vunpack.c.l.b16 %v4451
    %v4644 = vunpack.c.l.b16 %v4452
    %v4645 = vunpack.c.l.b16 %v4453
    %v4646 = vunpack.c.l.b16 %v4454
    %v4647 = vunpack.c.l.b16 %v4455
    %v4648 = vunpack.c.l.b16 %v4456
    %v4649 = vunpack.c.l.b16 %v4457
    %v4650 = vunpack.c.l.b16 %v4458
    %v4651 = vunpack.c.l.b16 %v4459
    %v4652 = vunpack.c.l.b16 %v4460
    %v4653 = vunpack.c.l.b16 %v4461
    %v4654 = vpack.c.b16 %v4639, %v4638
    %v4655 = vpack.c.b16 %v4641, %v4640
    %v4656 = vpack.c.b16 %v4643, %v4642
    %v4657 = vpack.c.b16 %v4645, %v4644
    %v4658 = vpack.c.b16 %v4647, %v4646
    %v4659 = vpack.c.b16 %v4649, %v4648
    %v4660 = vpack.c.b16 %v4651, %v4650
    %v4661 = vpack.c.b16 %v4653, %v4652
    %v4686 = vunpack.c.l.b16 %v4478
    %v4687 = vunpack.c.l.b16 %v4479
    %v4688 = vunpack.c.l.b16 %v4480
    %v4689 = vunpack.c.l.b16 %v4481
    %v4690 = vunpack.c.l.b16 %v4482
    %v4691 = vunpack.c.l.b16 %v4483
    %v4692 = vunpack.c.l.b16 %v4484
    %v4693 = vunpack.c.l.b16 %v4485
    %v4694 = vunpack.c.l.b16 %v4486
    %v4695 = vunpack.c.l.b16 %v4487
    %v4696 = vunpack.c.l.b16 %v4488
    %v4697 = vunpack.c.l.b16 %v4489
    %v4698 = vunpack.c.l.b16 %v4490
    %v4699 = vunpack.c.l.b16 %v4491
    %v4700 = vunpack.c.l.b16 %v4492
    %v4701 = vunpack.c.l.b16 %v4493
    %v4702 = vpack.c.b16 %v4687, %v4686
    %v4703 = vpack.c.b16 %v4689, %v4688
    %v4704 = vpack.c.b16 %v4691, %v4690
    %v4705 = vpack.c.b16 %v4693, %v4692
    %v4706 = vpack.c.b16 %v4695, %v4694
    %v4707 = vpack.c.b16 %v4697, %v4696
    %v4708 = vpack.c.b16 %v4699, %v4698
    %v4709 = vpack.c.b16 %v4701, %v4700
    %v4734 = vunpack.c.l.b16 %v4510
    %v4735 = vunpack.c.l.b16 %v4511
    %v4736 = vunpack.c.l.b16 %v4512
    %v4737 = vunpack.c.l.b16 %v4513
    %v4738 = vunpack.c.l.b16 %v4514
    %v4739 = vunpack.c.l.b16 %v4515
    %v4740 = vunpack.c.l.b16 %v4516
    %v4741 = vunpack.c.l.b16 %v4517
    %v4742 = vunpack.c.l.b16 %v4518
    %v4743 = vunpack.c.l.b16 %v4519
    %v4744 = vunpack.c.l.b16 %v4520
    %v4745 = vunpack.c.l.b16 %v4521
    %v4746 = vunpack.c.l.b16 %v4522
    %v4747 = vunpack.c.l.b16 %v4523
    %v4748 = vunpack.c.l.b16 %v4524
    %v4749 = vunpack.c.l.b16 %v4525
    %v4750 = vpack.c.b16 %v4735, %v4734
    %v4751 = vpack.c.b16 %v4737, %v4736
    %v4752 = vpack.c.b16 %v4739, %v4738
    %v4753 = vpack.c.b16 %v4741, %v4740
    %v4754 = vpack.c.b16 %v4743, %v4742
    %v4755 = vpack.c.b16 %v4745, %v4744
    %v4756 = vpack.c.b16 %v4747, %v4746
    %v4757 = vpack.c.b16 %v4749, %v4748
    %v4766 = vld [vmem:[%s2 + $0x500] sm:$0xf]
    %v4767 = vld [vmem:[%s2 + $0x504] sm:$0xf]
    %v4768 = vld [vmem:[%s2 + $0x508] sm:$0xf]
    %v4769 = vld [vmem:[%s2 + $0x50c] sm:$0xf]
    %v4770 = vld [vmem:[%s2 + $0x510] sm:$0xf]
    %v4771 = vld [vmem:[%s2 + $0x514] sm:$0xf]
    %v4772 = vld [vmem:[%s2 + $0x518] sm:$0xf]
    %v4773 = vld [vmem:[%s2 + $0x51c] sm:$0xf]
    %v4774 = vld [vmem:[%s2 + $0x520] sm:$0xf]
    %v4775 = vld [vmem:[%s2 + $0x524] sm:$0xf]
    %v4776 = vld [vmem:[%s2 + $0x528] sm:$0xf]
    %v4777 = vld [vmem:[%s2 + $0x52c] sm:$0xf]
    %v4778 = vld [vmem:[%s2 + $0x530] sm:$0xf]
    %v4779 = vld [vmem:[%s2 + $0x534] sm:$0xf]
    %v4780 = vld [vmem:[%s2 + $0x538] sm:$0xf]
    %v4781 = vld [vmem:[%s2 + $0x53c] sm:$0xf]
    %v4782 = vld [vmem:[%s2 + $0x540] sm:$0xf]
    %v4783 = vld [vmem:[%s2 + $0x544] sm:$0xf]
    %v4784 = vld [vmem:[%s2 + $0x548] sm:$0xf]
    %v4785 = vld [vmem:[%s2 + $0x54c] sm:$0xf]
    %v4786 = vld [vmem:[%s2 + $0x550] sm:$0xf]
    %v4787 = vld [vmem:[%s2 + $0x554] sm:$0xf]
    %v4788 = vld [vmem:[%s2 + $0x558] sm:$0xf]
    %v4789 = vld [vmem:[%s2 + $0x55c] sm:$0xf]
    %v4790 = vld [vmem:[%s2 + $0x560] sm:$0xf]
    %v4791 = vld [vmem:[%s2 + $0x564] sm:$0xf]
    %v4792 = vld [vmem:[%s2 + $0x568] sm:$0xf]
    %v4793 = vld [vmem:[%s2 + $0x56c] sm:$0xf]
    %v4794 = vld [vmem:[%s2 + $0x570] sm:$0xf]
    %v4795 = vld [vmem:[%s2 + $0x574] sm:$0xf]
    %v4796 = vld [vmem:[%s2 + $0x578] sm:$0xf]
    %v4797 = vld [vmem:[%s2 + $0x57c] sm:$0xf]
    %v4798 = vld [vmem:[%s2 + $0x580] sm:$0xf]
    %v4799 = vld [vmem:[%s2 + $0x584] sm:$0xf]
    %v4800 = vld [vmem:[%s2 + $0x588] sm:$0xf]
    %v4801 = vld [vmem:[%s2 + $0x58c] sm:$0xf]
    %v4802 = vld [vmem:[%s2 + $0x590] sm:$0xf]
    %v4803 = vld [vmem:[%s2 + $0x594] sm:$0xf]
    %v4804 = vld [vmem:[%s2 + $0x598] sm:$0xf]
    %v4805 = vld [vmem:[%s2 + $0x59c] sm:$0xf]
    %v4806 = vld [vmem:[%s2 + $0x5a0] sm:$0xf]
    %v4807 = vld [vmem:[%s2 + $0x5a4] sm:$0xf]
    %v4808 = vld [vmem:[%s2 + $0x5a8] sm:$0xf]
    %v4809 = vld [vmem:[%s2 + $0x5ac] sm:$0xf]
    %v4810 = vld [vmem:[%s2 + $0x5b0] sm:$0xf]
    %v4811 = vld [vmem:[%s2 + $0x5b4] sm:$0xf]
    %v4812 = vld [vmem:[%s2 + $0x5b8] sm:$0xf]
    %v4813 = vld [vmem:[%s2 + $0x5bc] sm:$0xf]
    %v4814 = vld [vmem:[%s2 + $0x5c0] sm:$0xf]
    %v4815 = vld [vmem:[%s2 + $0x5c4] sm:$0xf]
    %v4816 = vld [vmem:[%s2 + $0x5c8] sm:$0xf]
    %v4817 = vld [vmem:[%s2 + $0x5cc] sm:$0xf]
    %v4818 = vld [vmem:[%s2 + $0x5d0] sm:$0xf]
    %v4819 = vld [vmem:[%s2 + $0x5d4] sm:$0xf]
    %v4820 = vld [vmem:[%s2 + $0x5d8] sm:$0xf]
    %v4821 = vld [vmem:[%s2 + $0x5dc] sm:$0xf]
    %v4822 = vld [vmem:[%s2 + $0x5e0] sm:$0xf]
    %v4823 = vld [vmem:[%s2 + $0x5e4] sm:$0xf]
    %v4824 = vld [vmem:[%s2 + $0x5e8] sm:$0xf]
    %v4825 = vld [vmem:[%s2 + $0x5ec] sm:$0xf]
    %v4826 = vld [vmem:[%s2 + $0x5f0] sm:$0xf]
    %v4827 = vld [vmem:[%s2 + $0x5f4] sm:$0xf]
    %v4828 = vld [vmem:[%s2 + $0x5f8] sm:$0xf]
    %v4829 = vld [vmem:[%s2 + $0x5fc] sm:$0xf]
    %v4830 = vld [vmem:[%s2 + $0x600] sm:$0xf]
    %v4831 = vld [vmem:[%s2 + $0x604] sm:$0xf]
    %v4832 = vld [vmem:[%s2 + $0x608] sm:$0xf]
    %v4833 = vld [vmem:[%s2 + $0x60c] sm:$0xf]
    %v4834 = vld [vmem:[%s2 + $0x610] sm:$0xf]
    %v4835 = vld [vmem:[%s2 + $0x614] sm:$0xf]
    %v4836 = vld [vmem:[%s2 + $0x618] sm:$0xf]
    %v4837 = vld [vmem:[%s2 + $0x61c] sm:$0xf]
    %v4838 = vld [vmem:[%s2 + $0x620] sm:$0xf]
    %v4839 = vld [vmem:[%s2 + $0x624] sm:$0xf]
    %v4840 = vld [vmem:[%s2 + $0x628] sm:$0xf]
    %v4841 = vld [vmem:[%s2 + $0x62c] sm:$0xf]
    %v4842 = vld [vmem:[%s2 + $0x630] sm:$0xf]
    %v4843 = vld [vmem:[%s2 + $0x634] sm:$0xf]
    %v4844 = vld [vmem:[%s2 + $0x638] sm:$0xf]
    %v4845 = vld [vmem:[%s2 + $0x63c] sm:$0xf]
    %v4926 = vunpack.c.l.b16 %v4766
    %v4927 = vunpack.c.l.b16 %v4767
    %v4928 = vunpack.c.l.b16 %v4768
    %v4929 = vunpack.c.l.b16 %v4769
    %v4930 = vunpack.c.l.b16 %v4770
    %v4931 = vunpack.c.l.b16 %v4771
    %v4932 = vunpack.c.l.b16 %v4772
    %v4933 = vunpack.c.l.b16 %v4773
    %v4934 = vunpack.c.l.b16 %v4774
    %v4935 = vunpack.c.l.b16 %v4775
    %v4936 = vunpack.c.l.b16 %v4776
    %v4937 = vunpack.c.l.b16 %v4777
    %v4938 = vunpack.c.l.b16 %v4778
    %v4939 = vunpack.c.l.b16 %v4779
    %v4940 = vunpack.c.l.b16 %v4780
    %v4941 = vunpack.c.l.b16 %v4781
    %v4942 = vunpack.c.l.b16 %v4782
    %v4943 = vunpack.c.l.b16 %v4783
    %v4944 = vunpack.c.l.b16 %v4784
    %v4945 = vunpack.c.l.b16 %v4785
    %v4946 = vunpack.c.l.b16 %v4786
    %v4947 = vunpack.c.l.b16 %v4787
    %v4948 = vunpack.c.l.b16 %v4788
    %v4949 = vunpack.c.l.b16 %v4789
    %v4950 = vunpack.c.l.b16 %v4790
    %v4951 = vunpack.c.l.b16 %v4791
    %v4952 = vunpack.c.l.b16 %v4792
    %v4953 = vunpack.c.l.b16 %v4793
    %v4954 = vunpack.c.l.b16 %v4794
    %v4955 = vunpack.c.l.b16 %v4795
    %v4956 = vunpack.c.l.b16 %v4796
    %v4957 = vunpack.c.l.b16 %v4797
    %v4958 = vunpack.c.l.b16 %v4798
    %v4959 = vunpack.c.l.b16 %v4799
    %v4960 = vunpack.c.l.b16 %v4800
    %v4961 = vunpack.c.l.b16 %v4801
    %v4962 = vunpack.c.l.b16 %v4802
    %v4963 = vunpack.c.l.b16 %v4803
    %v4964 = vunpack.c.l.b16 %v4804
    %v4965 = vunpack.c.l.b16 %v4805
    %v4966 = vunpack.c.l.b16 %v4806
    %v4967 = vunpack.c.l.b16 %v4807
    %v4968 = vunpack.c.l.b16 %v4808
    %v4969 = vunpack.c.l.b16 %v4809
    %v4970 = vunpack.c.l.b16 %v4810
    %v4971 = vunpack.c.l.b16 %v4811
    %v4972 = vunpack.c.l.b16 %v4812
    %v4973 = vunpack.c.l.b16 %v4813
    %v4974 = vunpack.c.l.b16 %v4814
    %v4975 = vunpack.c.l.b16 %v4815
    %v4976 = vunpack.c.l.b16 %v4816
    %v4977 = vunpack.c.l.b16 %v4817
    %v4978 = vunpack.c.l.b16 %v4818
    %v4979 = vunpack.c.l.b16 %v4819
    %v4980 = vunpack.c.l.b16 %v4820
    %v4981 = vunpack.c.l.b16 %v4821
    %v4982 = vunpack.c.l.b16 %v4822
    %v4983 = vunpack.c.l.b16 %v4823
    %v4984 = vunpack.c.l.b16 %v4824
    %v4985 = vunpack.c.l.b16 %v4825
    %v4986 = vunpack.c.l.b16 %v4826
    %v4987 = vunpack.c.l.b16 %v4827
    %v4988 = vunpack.c.l.b16 %v4828
    %v4989 = vunpack.c.l.b16 %v4829
    %v4990 = vunpack.c.l.b16 %v4830
    %v4991 = vunpack.c.l.b16 %v4831
    %v4992 = vunpack.c.l.b16 %v4832
    %v4993 = vunpack.c.l.b16 %v4833
    %v4994 = vunpack.c.l.b16 %v4834
    %v4995 = vunpack.c.l.b16 %v4835
    %v4996 = vunpack.c.l.b16 %v4836
    %v4997 = vunpack.c.l.b16 %v4837
    %v4998 = vunpack.c.l.b16 %v4838
    %v4999 = vunpack.c.l.b16 %v4839
    %v5000 = vunpack.c.l.b16 %v4840
    %v5001 = vunpack.c.l.b16 %v4841
    %v5002 = vunpack.c.l.b16 %v4842
    %v5003 = vunpack.c.l.b16 %v4843
    %v5004 = vunpack.c.l.b16 %v4844
    %v5005 = vunpack.c.l.b16 %v4845
    %v5006 = vpack.c.b16 %v4927, %v4926
    %v5007 = vpack.c.b16 %v4929, %v4928
    %v5008 = vpack.c.b16 %v4931, %v4930
    %v5009 = vpack.c.b16 %v4933, %v4932
    %v5010 = vpack.c.b16 %v4935, %v4934
    %v5011 = vpack.c.b16 %v4937, %v4936
    %v5012 = vpack.c.b16 %v4939, %v4938
    %v5013 = vpack.c.b16 %v4941, %v4940
    %v5014 = vpack.c.b16 %v4943, %v4942
    %v5015 = vpack.c.b16 %v4945, %v4944
    %v5016 = vpack.c.b16 %v4947, %v4946
    %v5017 = vpack.c.b16 %v4949, %v4948
    %v5018 = vpack.c.b16 %v4951, %v4950
    %v5019 = vpack.c.b16 %v4953, %v4952
    %v5020 = vpack.c.b16 %v4955, %v4954
    %v5021 = vpack.c.b16 %v4957, %v4956
    %v5022 = vpack.c.b16 %v4959, %v4958
    %v5023 = vpack.c.b16 %v4961, %v4960
    %v5024 = vpack.c.b16 %v4963, %v4962
    %v5025 = vpack.c.b16 %v4965, %v4964
    %v5026 = vpack.c.b16 %v4967, %v4966
    %v5027 = vpack.c.b16 %v4969, %v4968
    %v5028 = vpack.c.b16 %v4971, %v4970
    %v5029 = vpack.c.b16 %v4973, %v4972
    %v5030 = vpack.c.b16 %v4975, %v4974
    %v5031 = vpack.c.b16 %v4977, %v4976
    %v5032 = vpack.c.b16 %v4979, %v4978
    %v5033 = vpack.c.b16 %v4981, %v4980
    %v5034 = vpack.c.b16 %v4983, %v4982
    %v5035 = vpack.c.b16 %v4985, %v4984
    %v5036 = vpack.c.b16 %v4987, %v4986
    %v5037 = vpack.c.b16 %v4989, %v4988
    %v5038 = vpack.c.b16 %v4991, %v4990
    %v5039 = vpack.c.b16 %v4993, %v4992
    %v5040 = vpack.c.b16 %v4995, %v4994
    %v5041 = vpack.c.b16 %v4997, %v4996
    %v5042 = vpack.c.b16 %v4999, %v4998
    %v5043 = vpack.c.b16 %v5001, %v5000
    %v5044 = vpack.c.b16 %v5003, %v5002
    %v5045 = vpack.c.b16 %v5005, %v5004
    %5086 = vmatpush.bf16.msra.mxu0 %v5013
    %5087 = vmatpush.bf16.msra.mxu0 %v5012
    %5088 = vmatpush.bf16.msra.mxu0 %v5011
    %5089 = vmatpush.bf16.msra.mxu0 %v5010
    %5090 = vmatpush.bf16.msra.mxu0 %v5009
    %5091 = vmatpush.bf16.msra.mxu0 %v5008
    %5092 = vmatpush.bf16.msra.mxu0 %v5007
    %5093 = vmatpush.bf16.msra.mxu0 %v5006
    %5094 = vmatmul.bf16.gmra.mxu0 %v4558
    %v5095 = vpop.f32.mrf.mxu0
    %v5096 = vadd.f32 0.0, %v5095
    %v5097 = vpop.f32.mrf.mxu0
    %v5098 = vadd.f32 0.0, %v5097
    %5099 = vmatmul.bf16.gmra.mxu0 %v4559
    %v5100 = vpop.f32.mrf.mxu0
    %v5101 = vadd.f32 0.0, %v5100
    %v5102 = vpop.f32.mrf.mxu0
    %v5103 = vadd.f32 0.0, %v5102
    %5104 = vmatmul.bf16.gmra.mxu0 %v4560
    %v5105 = vpop.f32.mrf.mxu0
    %v5106 = vadd.f32 0.0, %v5105
    %v5107 = vpop.f32.mrf.mxu0
    %v5108 = vadd.f32 0.0, %v5107
    %5109 = vmatmul.bf16.gmra.mxu0 %v4561
    %v5110 = vpop.f32.mrf.mxu0
    %v5111 = vadd.f32 0.0, %v5110
    %v5112 = vpop.f32.mrf.mxu0
    %v5113 = vadd.f32 0.0, %v5112
    %5114 = vmatmul.bf16.gmra.mxu0 %v4562
    %v5115 = vpop.f32.mrf.mxu0
    %v5116 = vadd.f32 0.0, %v5115
    %v5117 = vpop.f32.mrf.mxu0
    %v5118 = vadd.f32 0.0, %v5117
    %5119 = vmatmul.bf16.gmra.mxu0 %v4563
    %v5120 = vpop.f32.mrf.mxu0
    %v5121 = vadd.f32 0.0, %v5120
    %v5122 = vpop.f32.mrf.mxu0
    %v5123 = vadd.f32 0.0, %v5122
    %5124 = vmatmul.bf16.gmra.mxu0 %v4564
    %v5125 = vpop.f32.mrf.mxu0
    %v5126 = vadd.f32 0.0, %v5125
    %v5127 = vpop.f32.mrf.mxu0
    %v5128 = vadd.f32 0.0, %v5127
    %5129 = vmatmul.bf16.gmra.mxu0 %v4565
    %v5130 = vpop.f32.mrf.mxu0
    %v5131 = vadd.f32 0.0, %v5130
    %v5132 = vpop.f32.mrf.mxu0
    %v5133 = vadd.f32 0.0, %v5132
    %5134 = vdwg.mxu0
    %5135 = vmatpush.bf16.msra.mxu0 %v5021
    %5136 = vmatpush.bf16.msra.mxu0 %v5020
    %5137 = vmatpush.bf16.msra.mxu0 %v5019
    %5138 = vmatpush.bf16.msra.mxu0 %v5018
    %5139 = vmatpush.bf16.msra.mxu0 %v5017
    %5140 = vmatpush.bf16.msra.mxu0 %v5016
    %5141 = vmatpush.bf16.msra.mxu0 %v5015
    %5142 = vmatpush.bf16.msra.mxu0 %v5014
    %5143 = vmatmul.bf16.gmra.mxu0 %v4606
    %v5144 = vpop.f32.mrf.mxu0
    %v5145 = vadd.f32 %v5096, %v5144
    %v5146 = vpop.f32.mrf.mxu0
    %v5147 = vadd.f32 %v5098, %v5146
    %5148 = vmatmul.bf16.gmra.mxu0 %v4607
    %v5149 = vpop.f32.mrf.mxu0
    %v5150 = vadd.f32 %v5101, %v5149
    %v5151 = vpop.f32.mrf.mxu0
    %v5152 = vadd.f32 %v5103, %v5151
    %5153 = vmatmul.bf16.gmra.mxu0 %v4608
    %v5154 = vpop.f32.mrf.mxu0
    %v5155 = vadd.f32 %v5106, %v5154
    %v5156 = vpop.f32.mrf.mxu0
    %v5157 = vadd.f32 %v5108, %v5156
    %5158 = vmatmul.bf16.gmra.mxu0 %v4609
    %v5159 = vpop.f32.mrf.mxu0
    %v5160 = vadd.f32 %v5111, %v5159
    %v5161 = vpop.f32.mrf.mxu0
    %v5162 = vadd.f32 %v5113, %v5161
    %5163 = vmatmul.bf16.gmra.mxu0 %v4610
    %v5164 = vpop.f32.mrf.mxu0
    %v5165 = vadd.f32 %v5116, %v5164
    %v5166 = vpop.f32.mrf.mxu0
    %v5167 = vadd.f32 %v5118, %v5166
    %5168 = vmatmul.bf16.gmra.mxu0 %v4611
    %v5169 = vpop.f32.mrf.mxu0
    %v5170 = vadd.f32 %v5121, %v5169
    %v5171 = vpop.f32.mrf.mxu0
    %v5172 = vadd.f32 %v5123, %v5171
    %5173 = vmatmul.bf16.gmra.mxu0 %v4612
    %v5174 = vpop.f32.mrf.mxu0
    %v5175 = vadd.f32 %v5126, %v5174
    %v5176 = vpop.f32.mrf.mxu0
    %v5177 = vadd.f32 %v5128, %v5176
    %5178 = vmatmul.bf16.gmra.mxu0 %v4613
    %v5179 = vpop.f32.mrf.mxu0
    %v5180 = vadd.f32 %v5131, %v5179
    %v5181 = vpop.f32.mrf.mxu0
    %v5182 = vadd.f32 %v5133, %v5181
    %5183 = vdwg.mxu0
    %5184 = vmatpush.bf16.msra.mxu0 %v5029
    %5185 = vmatpush.bf16.msra.mxu0 %v5028
    %5186 = vmatpush.bf16.msra.mxu0 %v5027
    %5187 = vmatpush.bf16.msra.mxu0 %v5026
    %5188 = vmatpush.bf16.msra.mxu0 %v5025
    %5189 = vmatpush.bf16.msra.mxu0 %v5024
    %5190 = vmatpush.bf16.msra.mxu0 %v5023
    %5191 = vmatpush.bf16.msra.mxu0 %v5022
    %5192 = vmatmul.bf16.gmra.mxu0 %v4654
    %v5193 = vpop.f32.mrf.mxu0
    %v5194 = vadd.f32 %v5145, %v5193
    %v5195 = vpop.f32.mrf.mxu0
    %v5196 = vadd.f32 %v5147, %v5195
    %5197 = vmatmul.bf16.gmra.mxu0 %v4655
    %v5198 = vpop.f32.mrf.mxu0
    %v5199 = vadd.f32 %v5150, %v5198
    %v5200 = vpop.f32.mrf.mxu0
    %v5201 = vadd.f32 %v5152, %v5200
    %5202 = vmatmul.bf16.gmra.mxu0 %v4656
    %v5203 = vpop.f32.mrf.mxu0
    %v5204 = vadd.f32 %v5155, %v5203
    %v5205 = vpop.f32.mrf.mxu0
    %v5206 = vadd.f32 %v5157, %v5205
    %5207 = vmatmul.bf16.gmra.mxu0 %v4657
    %v5208 = vpop.f32.mrf.mxu0
    %v5209 = vadd.f32 %v5160, %v5208
    %v5210 = vpop.f32.mrf.mxu0
    %v5211 = vadd.f32 %v5162, %v5210
    %5212 = vmatmul.bf16.gmra.mxu0 %v4658
    %v5213 = vpop.f32.mrf.mxu0
    %v5214 = vadd.f32 %v5165, %v5213
    %v5215 = vpop.f32.mrf.mxu0
    %v5216 = vadd.f32 %v5167, %v5215
    %5217 = vmatmul.bf16.gmra.mxu0 %v4659
    %v5218 = vpop.f32.mrf.mxu0
    %v5219 = vadd.f32 %v5170, %v5218
    %v5220 = vpop.f32.mrf.mxu0
    %v5221 = vadd.f32 %v5172, %v5220
    %5222 = vmatmul.bf16.gmra.mxu0 %v4660
    %v5223 = vpop.f32.mrf.mxu0
    %v5224 = vadd.f32 %v5175, %v5223
    %v5225 = vpop.f32.mrf.mxu0
    %v5226 = vadd.f32 %v5177, %v5225
    %5227 = vmatmul.bf16.gmra.mxu0 %v4661
    %v5228 = vpop.f32.mrf.mxu0
    %v5229 = vadd.f32 %v5180, %v5228
    %v5230 = vpop.f32.mrf.mxu0
    %v5231 = vadd.f32 %v5182, %v5230
    %5232 = vdwg.mxu0
    %5233 = vmatpush.bf16.msra.mxu0 %v5037
    %5234 = vmatpush.bf16.msra.mxu0 %v5036
    %5235 = vmatpush.bf16.msra.mxu0 %v5035
    %5236 = vmatpush.bf16.msra.mxu0 %v5034
    %5237 = vmatpush.bf16.msra.mxu0 %v5033
    %5238 = vmatpush.bf16.msra.mxu0 %v5032
    %5239 = vmatpush.bf16.msra.mxu0 %v5031
    %5240 = vmatpush.bf16.msra.mxu0 %v5030
    %5241 = vmatmul.bf16.gmra.mxu0 %v4702
    %v5242 = vpop.f32.mrf.mxu0
    %v5243 = vadd.f32 %v5194, %v5242
    %v5244 = vpop.f32.mrf.mxu0
    %v5245 = vadd.f32 %v5196, %v5244
    %5246 = vmatmul.bf16.gmra.mxu0 %v4703
    %v5247 = vpop.f32.mrf.mxu0
    %v5248 = vadd.f32 %v5199, %v5247
    %v5249 = vpop.f32.mrf.mxu0
    %v5250 = vadd.f32 %v5201, %v5249
    %5251 = vmatmul.bf16.gmra.mxu0 %v4704
    %v5252 = vpop.f32.mrf.mxu0
    %v5253 = vadd.f32 %v5204, %v5252
    %v5254 = vpop.f32.mrf.mxu0
    %v5255 = vadd.f32 %v5206, %v5254
    %5256 = vmatmul.bf16.gmra.mxu0 %v4705
    %v5257 = vpop.f32.mrf.mxu0
    %v5258 = vadd.f32 %v5209, %v5257
    %v5259 = vpop.f32.mrf.mxu0
    %v5260 = vadd.f32 %v5211, %v5259
    %5261 = vmatmul.bf16.gmra.mxu0 %v4706
    %v5262 = vpop.f32.mrf.mxu0
    %v5263 = vadd.f32 %v5214, %v5262
    %v5264 = vpop.f32.mrf.mxu0
    %v5265 = vadd.f32 %v5216, %v5264
    %5266 = vmatmul.bf16.gmra.mxu0 %v4707
    %v5267 = vpop.f32.mrf.mxu0
    %v5268 = vadd.f32 %v5219, %v5267
    %v5269 = vpop.f32.mrf.mxu0
    %v5270 = vadd.f32 %v5221, %v5269
    %5271 = vmatmul.bf16.gmra.mxu0 %v4708
    %v5272 = vpop.f32.mrf.mxu0
    %v5273 = vadd.f32 %v5224, %v5272
    %v5274 = vpop.f32.mrf.mxu0
    %v5275 = vadd.f32 %v5226, %v5274
    %5276 = vmatmul.bf16.gmra.mxu0 %v4709
    %v5277 = vpop.f32.mrf.mxu0
    %v5278 = vadd.f32 %v5229, %v5277
    %v5279 = vpop.f32.mrf.mxu0
    %v5280 = vadd.f32 %v5231, %v5279
    %5281 = vdwg.mxu0
    %5282 = vmatpush.bf16.msra.mxu0 %v5045
    %5283 = vmatpush.bf16.msra.mxu0 %v5044
    %5284 = vmatpush.bf16.msra.mxu0 %v5043
    %5285 = vmatpush.bf16.msra.mxu0 %v5042
    %5286 = vmatpush.bf16.msra.mxu0 %v5041
    %5287 = vmatpush.bf16.msra.mxu0 %v5040
    %5288 = vmatpush.bf16.msra.mxu0 %v5039
    %5289 = vmatpush.bf16.msra.mxu0 %v5038
    %5290 = vmatmul.bf16.gmra.mxu0 %v4750
    %v5291 = vpop.f32.mrf.mxu0
    %v5292 = vadd.f32 %v5243, %v5291
    %v5293 = vpop.f32.mrf.mxu0
    %v5294 = vadd.f32 %v5245, %v5293
    %5295 = vmatmul.bf16.gmra.mxu0 %v4751
    %v5296 = vpop.f32.mrf.mxu0
    %v5297 = vadd.f32 %v5248, %v5296
    %v5298 = vpop.f32.mrf.mxu0
    %v5299 = vadd.f32 %v5250, %v5298
    %5300 = vmatmul.bf16.gmra.mxu0 %v4752
    %v5301 = vpop.f32.mrf.mxu0
    %v5302 = vadd.f32 %v5253, %v5301
    %v5303 = vpop.f32.mrf.mxu0
    %v5304 = vadd.f32 %v5255, %v5303
    %5305 = vmatmul.bf16.gmra.mxu0 %v4753
    %v5306 = vpop.f32.mrf.mxu0
    %v5307 = vadd.f32 %v5258, %v5306
    %v5308 = vpop.f32.mrf.mxu0
    %v5309 = vadd.f32 %v5260, %v5308
    %5310 = vmatmul.bf16.gmra.mxu0 %v4754
    %v5311 = vpop.f32.mrf.mxu0
    %v5312 = vadd.f32 %v5263, %v5311
    %v5313 = vpop.f32.mrf.mxu0
    %v5314 = vadd.f32 %v5265, %v5313
    %5315 = vmatmul.bf16.gmra.mxu0 %v4755
    %v5316 = vpop.f32.mrf.mxu0
    %v5317 = vadd.f32 %v5268, %v5316
    %v5318 = vpop.f32.mrf.mxu0
    %v5319 = vadd.f32 %v5270, %v5318
    %5320 = vmatmul.bf16.gmra.mxu0 %v4756
    %v5321 = vpop.f32.mrf.mxu0
    %v5322 = vadd.f32 %v5273, %v5321
    %v5323 = vpop.f32.mrf.mxu0
    %v5324 = vadd.f32 %v5275, %v5323
    %5325 = vmatmul.bf16.gmra.mxu0 %v4757
    %v5326 = vpop.f32.mrf.mxu0
    %v5327 = vadd.f32 %v5278, %v5326
    %v5328 = vpop.f32.mrf.mxu0
    %v5329 = vadd.f32 %v5280, %v5328
    %5330 = vdwg.mxu0
    %v5331 = vadd.f32 %v4349, %v5292
    %v5332 = vadd.f32 %v4350, %v5294
    %v5333 = vadd.f32 %v4351, %v5297
    %v5334 = vadd.f32 %v4352, %v5299
    %v5335 = vadd.f32 %v4353, %v5302
    %v5336 = vadd.f32 %v4354, %v5304
    %v5337 = vadd.f32 %v4355, %v5307
    %v5338 = vadd.f32 %v4356, %v5309
    %v5339 = vadd.f32 %v4357, %v5312
    %v5340 = vadd.f32 %v4358, %v5314
    %v5341 = vadd.f32 %v4359, %v5317
    %v5342 = vadd.f32 %v4360, %v5319
    %v5343 = vadd.f32 %v4361, %v5322
    %v5344 = vadd.f32 %v4362, %v5324
    %v5345 = vadd.f32 %v4363, %v5327
    %v5346 = vadd.f32 %v4364, %v5329
    %v5347 = vld [vmem:[%s5 + $0x2] sm:$0x1]
    %v5348 = vperm.slane %v5347, 0
    %v5349 = vmul.f32 %v5331, %v5348
    %v5350 = vmul.f32 %v5332, %v5348
    %v5351 = vmul.f32 %v5333, %v5348
    %v5352 = vmul.f32 %v5334, %v5348
    %v5353 = vmul.f32 %v5335, %v5348
    %v5354 = vmul.f32 %v5336, %v5348
    %v5355 = vmul.f32 %v5337, %v5348
    %v5356 = vmul.f32 %v5338, %v5348
    %v5357 = vmul.f32 %v5339, %v5348
    %v5358 = vmul.f32 %v5340, %v5348
    %v5359 = vmul.f32 %v5341, %v5348
    %v5360 = vmul.f32 %v5342, %v5348
    %v5361 = vmul.f32 %v5343, %v5348
    %v5362 = vmul.f32 %v5344, %v5348
    %v5363 = vmul.f32 %v5345, %v5348
    %v5364 = vmul.f32 %v5346, %v5348
    %v5365 = vld [vmem:[%s5 + $0x3] sm:$0x1]
    %v5366 = vperm.slane %v5365, 0
    %v5367 = vadd.f32 %v5349, %v5366
    %v5368 = vadd.f32 %v5350, %v5366
    %v5369 = vadd.f32 %v5351, %v5366
    %v5370 = vadd.f32 %v5352, %v5366
    %v5371 = vadd.f32 %v5353, %v5366
    %v5372 = vadd.f32 %v5354, %v5366
    %v5373 = vadd.f32 %v5355, %v5366
    %v5374 = vadd.f32 %v5356, %v5366
    %v5375 = vadd.f32 %v5357, %v5366
    %v5376 = vadd.f32 %v5358, %v5366
    %v5377 = vadd.f32 %v5359, %v5366
    %v5378 = vadd.f32 %v5360, %v5366
    %v5379 = vadd.f32 %v5361, %v5366
    %v5380 = vadd.f32 %v5362, %v5366
    %v5381 = vadd.f32 %v5363, %v5366
    %v5382 = vadd.f32 %v5364, %v5366
    %vm5383 = vcmp.ge.f32.partialorder %v5367, 0.0
    %vm5384 = vcmp.ge.f32.partialorder %v5368, 0.0
    %vm5385 = vcmp.ge.f32.partialorder %v5369, 0.0
    %vm5386 = vcmp.ge.f32.partialorder %v5370, 0.0
    %vm5387 = vcmp.ge.f32.partialorder %v5371, 0.0
    %vm5388 = vcmp.ge.f32.partialorder %v5372, 0.0
    %vm5389 = vcmp.ge.f32.partialorder %v5373, 0.0
    %vm5390 = vcmp.ge.f32.partialorder %v5374, 0.0
    %vm5391 = vcmp.ge.f32.partialorder %v5375, 0.0
    %vm5392 = vcmp.ge.f32.partialorder %v5376, 0.0
    %vm5393 = vcmp.ge.f32.partialorder %v5377, 0.0
    %vm5394 = vcmp.ge.f32.partialorder %v5378, 0.0
    %vm5395 = vcmp.ge.f32.partialorder %v5379, 0.0
    %vm5396 = vcmp.ge.f32.partialorder %v5380, 0.0
    %vm5397 = vcmp.ge.f32.partialorder %v5381, 0.0
    %vm5398 = vcmp.ge.f32.partialorder %v5382, 0.0
    %v5399 = vmul.f32 %v5367, 0.01
    %v5400 = vmul.f32 %v5368, 0.01
    %v5401 = vmul.f32 %v5369, 0.01
    %v5402 = vmul.f32 %v5370, 0.01
    %v5403 = vmul.f32 %v5371, 0.01
    %v5404 = vmul.f32 %v5372, 0.01
    %v5405 = vmul.f32 %v5373, 0.01
    %v5406 = vmul.f32 %v5374, 0.01
    %v5407 = vmul.f32 %v5375, 0.01
    %v5408 = vmul.f32 %v5376, 0.01
    %v5409 = vmul.f32 %v5377, 0.01
    %v5410 = vmul.f32 %v5378, 0.01
    %v5411 = vmul.f32 %v5379, 0.01
    %v5412 = vmul.f32 %v5380, 0.01
    %v5413 = vmul.f32 %v5381, 0.01
    %v5414 = vmul.f32 %v5382, 0.01
    %v5415 = vsel %vm5383, %v5367, %v5399
    %v5416 = vsel %vm5384, %v5368, %v5400
    %v5417 = vsel %vm5385, %v5369, %v5401
    %v5418 = vsel %vm5386, %v5370, %v5402
    %v5419 = vsel %vm5387, %v5371, %v5403
    %v5420 = vsel %vm5388, %v5372, %v5404
    %v5421 = vsel %vm5389, %v5373, %v5405
    %v5422 = vsel %vm5390, %v5374, %v5406
    %v5423 = vsel %vm5391, %v5375, %v5407
    %v5424 = vsel %vm5392, %v5376, %v5408
    %v5425 = vsel %vm5393, %v5377, %v5409
    %v5426 = vsel %vm5394, %v5378, %v5410
    %v5427 = vsel %vm5395, %v5379, %v5411
    %v5428 = vsel %vm5396, %v5380, %v5412
    %v5429 = vsel %vm5397, %v5381, %v5413
    %v5430 = vsel %vm5398, %v5382, %v5414
    %5431 = vst [vmem:[%s454 + $0x2] sm:$0xff] %v5415
    %5432 = vst [vmem:[%s454 + $0x12] sm:$0xff] %v5416
    %5433 = vst [vmem:[%s454 + $0x22] sm:$0xff] %v5417
    %5434 = vst [vmem:[%s454 + $0x32] sm:$0xff] %v5418
    %5435 = vst [vmem:[%s454 + $0x42] sm:$0xff] %v5419
    %5436 = vst [vmem:[%s454 + $0x52] sm:$0xff] %v5420
    %5437 = vst [vmem:[%s454 + $0x62] sm:$0xff] %v5421
    %5438 = vst [vmem:[%s454 + $0x72] sm:$0xff] %v5422
    %5439 = vst [vmem:[%s454 + $0xc2] sm:$0xff] %v5423
    %5440 = vst [vmem:[%s454 + $0xd2] sm:$0xff] %v5424
    %5441 = vst [vmem:[%s454 + $0xe2] sm:$0xff] %v5425
    %5442 = vst [vmem:[%s454 + $0xf2] sm:$0xff] %v5426
    %5443 = vst [vmem:[%s454 + $0x102] sm:$0xff] %v5427
    %5444 = vst [vmem:[%s454 + $0x112] sm:$0xff] %v5428
    %5445 = vst [vmem:[%s454 + $0x122] sm:$0xff] %v5429
    %5446 = vst [vmem:[%s454 + $0x132] sm:$0xff] %v5430
    %v5447 = vld [vmem:[#allocation2] sm:$0xff]
    %v5448 = vld [vmem:[#allocation2 + $0x10] sm:$0xff]
    %v5449 = vld [vmem:[#allocation2 + $0x20] sm:$0xff]
    %v5450 = vld [vmem:[#allocation2 + $0x30] sm:$0xff]
    %v5451 = vld [vmem:[#allocation2 + $0x40] sm:$0xff]
    %v5452 = vld [vmem:[#allocation2 + $0x50] sm:$0xff]
    %v5453 = vld [vmem:[#allocation2 + $0x60] sm:$0xff]
    %v5454 = vld [vmem:[#allocation2 + $0x70] sm:$0xff]
    %v5455 = vld [vmem:[#allocation2 + $0xc0] sm:$0xff]
    %v5456 = vld [vmem:[#allocation2 + $0xd0] sm:$0xff]
    %v5457 = vld [vmem:[#allocation2 + $0xe0] sm:$0xff]
    %v5458 = vld [vmem:[#allocation2 + $0xf0] sm:$0xff]
    %v5459 = vld [vmem:[#allocation2 + $0x100] sm:$0xff]
    %v5460 = vld [vmem:[#allocation2 + $0x110] sm:$0xff]
    %v5461 = vld [vmem:[#allocation2 + $0x120] sm:$0xff]
    %v5462 = vld [vmem:[#allocation2 + $0x130] sm:$0xff]
    %v5463 = vpack.c.bf16 %v5447, %v5447
    %v5464 = vpack.c.bf16 %v5448, %v5448
    %v5465 = vpack.c.bf16 %v5449, %v5449
    %v5466 = vpack.c.bf16 %v5450, %v5450
    %v5467 = vpack.c.bf16 %v5451, %v5451
    %v5468 = vpack.c.bf16 %v5452, %v5452
    %v5469 = vpack.c.bf16 %v5453, %v5453
    %v5470 = vpack.c.bf16 %v5454, %v5454
    %v5471 = vpack.c.bf16 %v5455, %v5455
    %v5472 = vpack.c.bf16 %v5456, %v5456
    %v5473 = vpack.c.bf16 %v5457, %v5457
    %v5474 = vpack.c.bf16 %v5458, %v5458
    %v5475 = vpack.c.bf16 %v5459, %v5459
    %v5476 = vpack.c.bf16 %v5460, %v5460
    %v5477 = vpack.c.bf16 %v5461, %v5461
    %v5478 = vpack.c.bf16 %v5462, %v5462
    %v5479 = vld [vmem:[#allocation2 + $0x2] sm:$0xff]
    %v5480 = vld [vmem:[#allocation2 + $0x12] sm:$0xff]
    %v5481 = vld [vmem:[#allocation2 + $0x22] sm:$0xff]
    %v5482 = vld [vmem:[#allocation2 + $0x32] sm:$0xff]
    %v5483 = vld [vmem:[#allocation2 + $0x42] sm:$0xff]
    %v5484 = vld [vmem:[#allocation2 + $0x52] sm:$0xff]
    %v5485 = vld [vmem:[#allocation2 + $0x62] sm:$0xff]
    %v5486 = vld [vmem:[#allocation2 + $0x72] sm:$0xff]
    %v5487 = vld [vmem:[#allocation2 + $0xc2] sm:$0xff]
    %v5488 = vld [vmem:[#allocation2 + $0xd2] sm:$0xff]
    %v5489 = vld [vmem:[#allocation2 + $0xe2] sm:$0xff]
    %v5490 = vld [vmem:[#allocation2 + $0xf2] sm:$0xff]
    %v5491 = vld [vmem:[#allocation2 + $0x102] sm:$0xff]
    %v5492 = vld [vmem:[#allocation2 + $0x112] sm:$0xff]
    %v5493 = vld [vmem:[#allocation2 + $0x122] sm:$0xff]
    %v5494 = vld [vmem:[#allocation2 + $0x132] sm:$0xff]
    %v5495 = vpack.c.bf16 %v5479, %v5479
    %v5496 = vpack.c.bf16 %v5480, %v5480
    %v5497 = vpack.c.bf16 %v5481, %v5481
    %v5498 = vpack.c.bf16 %v5482, %v5482
    %v5499 = vpack.c.bf16 %v5483, %v5483
    %v5500 = vpack.c.bf16 %v5484, %v5484
    %v5501 = vpack.c.bf16 %v5485, %v5485
    %v5502 = vpack.c.bf16 %v5486, %v5486
    %v5503 = vpack.c.bf16 %v5487, %v5487
    %v5504 = vpack.c.bf16 %v5488, %v5488
    %v5505 = vpack.c.bf16 %v5489, %v5489
    %v5506 = vpack.c.bf16 %v5490, %v5490
    %v5507 = vpack.c.bf16 %v5491, %v5491
    %v5508 = vpack.c.bf16 %v5492, %v5492
    %v5509 = vpack.c.bf16 %v5493, %v5493
    %v5510 = vpack.c.bf16 %v5494, %v5494
    %v5511 = vld [vmem:[#allocation2 + $0x4] sm:$0xff]
    %v5512 = vld [vmem:[#allocation2 + $0x14] sm:$0xff]
    %v5513 = vld [vmem:[#allocation2 + $0x24] sm:$0xff]
    %v5514 = vld [vmem:[#allocation2 + $0x34] sm:$0xff]
    %v5515 = vld [vmem:[#allocation2 + $0x44] sm:$0xff]
    %v5516 = vld [vmem:[#allocation2 + $0x54] sm:$0xff]
    %v5517 = vld [vmem:[#allocation2 + $0x64] sm:$0xff]
    %v5518 = vld [vmem:[#allocation2 + $0x74] sm:$0xff]
    %v5519 = vld [vmem:[#allocation2 + $0xc4] sm:$0xff]
    %v5520 = vld [vmem:[#allocation2 + $0xd4] sm:$0xff]
    %v5521 = vld [vmem:[#allocation2 + $0xe4] sm:$0xff]
    %v5522 = vld [vmem:[#allocation2 + $0xf4] sm:$0xff]
    %v5523 = vld [vmem:[#allocation2 + $0x104] sm:$0xff]
    %v5524 = vld [vmem:[#allocation2 + $0x114] sm:$0xff]
    %v5525 = vld [vmem:[#allocation2 + $0x124] sm:$0xff]
    %v5526 = vld [vmem:[#allocation2 + $0x134] sm:$0xff]
    %v5527 = vpack.c.bf16 %v5511, %v5511
    %v5528 = vpack.c.bf16 %v5512, %v5512
    %v5529 = vpack.c.bf16 %v5513, %v5513
    %v5530 = vpack.c.bf16 %v5514, %v5514
    %v5531 = vpack.c.bf16 %v5515, %v5515
    %v5532 = vpack.c.bf16 %v5516, %v5516
    %v5533 = vpack.c.bf16 %v5517, %v5517
    %v5534 = vpack.c.bf16 %v5518, %v5518
    %v5535 = vpack.c.bf16 %v5519, %v5519
    %v5536 = vpack.c.bf16 %v5520, %v5520
    %v5537 = vpack.c.bf16 %v5521, %v5521
    %v5538 = vpack.c.bf16 %v5522, %v5522
    %v5539 = vpack.c.bf16 %v5523, %v5523
    %v5540 = vpack.c.bf16 %v5524, %v5524
    %v5541 = vpack.c.bf16 %v5525, %v5525
    %v5542 = vpack.c.bf16 %v5526, %v5526
    %v5559 = vunpack.c.l.b16 %v5463
    %v5560 = vunpack.c.l.b16 %v5464
    %v5561 = vunpack.c.l.b16 %v5465
    %v5562 = vunpack.c.l.b16 %v5466
    %v5563 = vunpack.c.l.b16 %v5467
    %v5564 = vunpack.c.l.b16 %v5468
    %v5565 = vunpack.c.l.b16 %v5469
    %v5566 = vunpack.c.l.b16 %v5470
    %v5567 = vunpack.c.l.b16 %v5471
    %v5568 = vunpack.c.l.b16 %v5472
    %v5569 = vunpack.c.l.b16 %v5473
    %v5570 = vunpack.c.l.b16 %v5474
    %v5571 = vunpack.c.l.b16 %v5475
    %v5572 = vunpack.c.l.b16 %v5476
    %v5573 = vunpack.c.l.b16 %v5477
    %v5574 = vunpack.c.l.b16 %v5478
    %v5575 = vpack.c.b16 %v5560, %v5559
    %v5576 = vpack.c.b16 %v5562, %v5561
    %v5577 = vpack.c.b16 %v5564, %v5563
    %v5578 = vpack.c.b16 %v5566, %v5565
    %v5579 = vpack.c.b16 %v5568, %v5567
    %v5580 = vpack.c.b16 %v5570, %v5569
    %v5581 = vpack.c.b16 %v5572, %v5571
    %v5582 = vpack.c.b16 %v5574, %v5573
    %v5607 = vunpack.c.l.b16 %v5495
    %v5608 = vunpack.c.l.b16 %v5496
    %v5609 = vunpack.c.l.b16 %v5497
    %v5610 = vunpack.c.l.b16 %v5498
    %v5611 = vunpack.c.l.b16 %v5499
    %v5612 = vunpack.c.l.b16 %v5500
    %v5613 = vunpack.c.l.b16 %v5501
    %v5614 = vunpack.c.l.b16 %v5502
    %v5615 = vunpack.c.l.b16 %v5503
    %v5616 = vunpack.c.l.b16 %v5504
    %v5617 = vunpack.c.l.b16 %v5505
    %v5618 = vunpack.c.l.b16 %v5506
    %v5619 = vunpack.c.l.b16 %v5507
    %v5620 = vunpack.c.l.b16 %v5508
    %v5621 = vunpack.c.l.b16 %v5509
    %v5622 = vunpack.c.l.b16 %v5510
    %v5623 = vpack.c.b16 %v5608, %v5607
    %v5624 = vpack.c.b16 %v5610, %v5609
    %v5625 = vpack.c.b16 %v5612, %v5611
    %v5626 = vpack.c.b16 %v5614, %v5613
    %v5627 = vpack.c.b16 %v5616, %v5615
    %v5628 = vpack.c.b16 %v5618, %v5617
    %v5629 = vpack.c.b16 %v5620, %v5619
    %v5630 = vpack.c.b16 %v5622, %v5621
    %v5655 = vunpack.c.l.b16 %v5527
    %v5656 = vunpack.c.l.b16 %v5528
    %v5657 = vunpack.c.l.b16 %v5529
    %v5658 = vunpack.c.l.b16 %v5530
    %v5659 = vunpack.c.l.b16 %v5531
    %v5660 = vunpack.c.l.b16 %v5532
    %v5661 = vunpack.c.l.b16 %v5533
    %v5662 = vunpack.c.l.b16 %v5534
    %v5663 = vunpack.c.l.b16 %v5535
    %v5664 = vunpack.c.l.b16 %v5536
    %v5665 = vunpack.c.l.b16 %v5537
    %v5666 = vunpack.c.l.b16 %v5538
    %v5667 = vunpack.c.l.b16 %v5539
    %v5668 = vunpack.c.l.b16 %v5540
    %v5669 = vunpack.c.l.b16 %v5541
    %v5670 = vunpack.c.l.b16 %v5542
    %v5671 = vpack.c.b16 %v5656, %v5655
    %v5672 = vpack.c.b16 %v5658, %v5657
    %v5673 = vpack.c.b16 %v5660, %v5659
    %v5674 = vpack.c.b16 %v5662, %v5661
    %v5675 = vpack.c.b16 %v5664, %v5663
    %v5676 = vpack.c.b16 %v5666, %v5665
    %v5677 = vpack.c.b16 %v5668, %v5667
    %v5678 = vpack.c.b16 %v5670, %v5669
    %v5687 = vld [vmem:[%s3] sm:$0xf]
    %v5688 = vld [vmem:[%s3 + $0x4] sm:$0xf]
    %v5689 = vld [vmem:[%s3 + $0x8] sm:$0xf]
    %v5690 = vld [vmem:[%s3 + $0xc] sm:$0xf]
    %v5691 = vld [vmem:[%s3 + $0x10] sm:$0xf]
    %v5692 = vld [vmem:[%s3 + $0x14] sm:$0xf]
    %v5693 = vld [vmem:[%s3 + $0x18] sm:$0xf]
    %v5694 = vld [vmem:[%s3 + $0x1c] sm:$0xf]
    %v5695 = vld [vmem:[%s3 + $0x20] sm:$0xf]
    %v5696 = vld [vmem:[%s3 + $0x24] sm:$0xf]
    %v5697 = vld [vmem:[%s3 + $0x28] sm:$0xf]
    %v5698 = vld [vmem:[%s3 + $0x2c] sm:$0xf]
    %v5699 = vld [vmem:[%s3 + $0x30] sm:$0xf]
    %v5700 = vld [vmem:[%s3 + $0x34] sm:$0xf]
    %v5701 = vld [vmem:[%s3 + $0x38] sm:$0xf]
    %v5702 = vld [vmem:[%s3 + $0x3c] sm:$0xf]
    %v5703 = vld [vmem:[%s3 + $0x40] sm:$0xf]
    %v5704 = vld [vmem:[%s3 + $0x44] sm:$0xf]
    %v5705 = vld [vmem:[%s3 + $0x48] sm:$0xf]
    %v5706 = vld [vmem:[%s3 + $0x4c] sm:$0xf]
    %v5707 = vld [vmem:[%s3 + $0x50] sm:$0xf]
    %v5708 = vld [vmem:[%s3 + $0x54] sm:$0xf]
    %v5709 = vld [vmem:[%s3 + $0x58] sm:$0xf]
    %v5710 = vld [vmem:[%s3 + $0x5c] sm:$0xf]
    %v5711 = vld [vmem:[%s3 + $0x60] sm:$0xf]
    %v5712 = vld [vmem:[%s3 + $0x64] sm:$0xf]
    %v5713 = vld [vmem:[%s3 + $0x68] sm:$0xf]
    %v5714 = vld [vmem:[%s3 + $0x6c] sm:$0xf]
    %v5715 = vld [vmem:[%s3 + $0x70] sm:$0xf]
    %v5716 = vld [vmem:[%s3 + $0x74] sm:$0xf]
    %v5717 = vld [vmem:[%s3 + $0x78] sm:$0xf]
    %v5718 = vld [vmem:[%s3 + $0x7c] sm:$0xf]
    %v5719 = vld [vmem:[%s3 + $0x80] sm:$0xf]
    %v5720 = vld [vmem:[%s3 + $0x84] sm:$0xf]
    %v5721 = vld [vmem:[%s3 + $0x88] sm:$0xf]
    %v5722 = vld [vmem:[%s3 + $0x8c] sm:$0xf]
    %v5723 = vld [vmem:[%s3 + $0x90] sm:$0xf]
    %v5724 = vld [vmem:[%s3 + $0x94] sm:$0xf]
    %v5725 = vld [vmem:[%s3 + $0x98] sm:$0xf]
    %v5726 = vld [vmem:[%s3 + $0x9c] sm:$0xf]
    %v5727 = vld [vmem:[%s3 + $0xa0] sm:$0xf]
    %v5728 = vld [vmem:[%s3 + $0xa4] sm:$0xf]
    %v5729 = vld [vmem:[%s3 + $0xa8] sm:$0xf]
    %v5730 = vld [vmem:[%s3 + $0xac] sm:$0xf]
    %v5731 = vld [vmem:[%s3 + $0xb0] sm:$0xf]
    %v5732 = vld [vmem:[%s3 + $0xb4] sm:$0xf]
    %v5733 = vld [vmem:[%s3 + $0xb8] sm:$0xf]
    %v5734 = vld [vmem:[%s3 + $0xbc] sm:$0xf]
    %v5735 = vld [vmem:[%s454] sm:$0xff]
    %v5736 = vld [vmem:[%s454 + $0x10] sm:$0xff]
    %v5737 = vld [vmem:[%s454 + $0x20] sm:$0xff]
    %v5738 = vld [vmem:[%s454 + $0x30] sm:$0xff]
    %v5739 = vld [vmem:[%s454 + $0x40] sm:$0xff]
    %v5740 = vld [vmem:[%s454 + $0x50] sm:$0xff]
    %v5741 = vld [vmem:[%s454 + $0x60] sm:$0xff]
    %v5742 = vld [vmem:[%s454 + $0x70] sm:$0xff]
    %v5743 = vld [vmem:[%s454 + $0xc0] sm:$0xff]
    %v5744 = vld [vmem:[%s454 + $0xd0] sm:$0xff]
    %v5745 = vld [vmem:[%s454 + $0xe0] sm:$0xff]
    %v5746 = vld [vmem:[%s454 + $0xf0] sm:$0xff]
    %v5747 = vld [vmem:[%s454 + $0x100] sm:$0xff]
    %v5748 = vld [vmem:[%s454 + $0x110] sm:$0xff]
    %v5749 = vld [vmem:[%s454 + $0x120] sm:$0xff]
    %v5750 = vld [vmem:[%s454 + $0x130] sm:$0xff]
    %v5751 = vpack.c.bf16 %v5735, %v5735
    %v5752 = vpack.c.bf16 %v5736, %v5736
    %v5753 = vpack.c.bf16 %v5737, %v5737
    %v5754 = vpack.c.bf16 %v5738, %v5738
    %v5755 = vpack.c.bf16 %v5739, %v5739
    %v5756 = vpack.c.bf16 %v5740, %v5740
    %v5757 = vpack.c.bf16 %v5741, %v5741
    %v5758 = vpack.c.bf16 %v5742, %v5742
    %v5759 = vpack.c.bf16 %v5743, %v5743
    %v5760 = vpack.c.bf16 %v5744, %v5744
    %v5761 = vpack.c.bf16 %v5745, %v5745
    %v5762 = vpack.c.bf16 %v5746, %v5746
    %v5763 = vpack.c.bf16 %v5747, %v5747
    %v5764 = vpack.c.bf16 %v5748, %v5748
    %v5765 = vpack.c.bf16 %v5749, %v5749
    %v5766 = vpack.c.bf16 %v5750, %v5750
    %v5767 = vld [vmem:[%s454 + $0x2] sm:$0xff]
    %v5768 = vld [vmem:[%s454 + $0x12] sm:$0xff]
    %v5769 = vld [vmem:[%s454 + $0x22] sm:$0xff]
    %v5770 = vld [vmem:[%s454 + $0x32] sm:$0xff]
    %v5771 = vld [vmem:[%s454 + $0x42] sm:$0xff]
    %v5772 = vld [vmem:[%s454 + $0x52] sm:$0xff]
    %v5773 = vld [vmem:[%s454 + $0x62] sm:$0xff]
    %v5774 = vld [vmem:[%s454 + $0x72] sm:$0xff]
    %v5775 = vld [vmem:[%s454 + $0xc2] sm:$0xff]
    %v5776 = vld [vmem:[%s454 + $0xd2] sm:$0xff]
    %v5777 = vld [vmem:[%s454 + $0xe2] sm:$0xff]
    %v5778 = vld [vmem:[%s454 + $0xf2] sm:$0xff]
    %v5779 = vld [vmem:[%s454 + $0x102] sm:$0xff]
    %v5780 = vld [vmem:[%s454 + $0x112] sm:$0xff]
    %v5781 = vld [vmem:[%s454 + $0x122] sm:$0xff]
    %v5782 = vld [vmem:[%s454 + $0x132] sm:$0xff]
    %v5783 = vpack.c.bf16 %v5767, %v5767
    %v5784 = vpack.c.bf16 %v5768, %v5768
    %v5785 = vpack.c.bf16 %v5769, %v5769
    %v5786 = vpack.c.bf16 %v5770, %v5770
    %v5787 = vpack.c.bf16 %v5771, %v5771
    %v5788 = vpack.c.bf16 %v5772, %v5772
    %v5789 = vpack.c.bf16 %v5773, %v5773
    %v5790 = vpack.c.bf16 %v5774, %v5774
    %v5791 = vpack.c.bf16 %v5775, %v5775
    %v5792 = vpack.c.bf16 %v5776, %v5776
    %v5793 = vpack.c.bf16 %v5777, %v5777
    %v5794 = vpack.c.bf16 %v5778, %v5778
    %v5795 = vpack.c.bf16 %v5779, %v5779
    %v5796 = vpack.c.bf16 %v5780, %v5780
    %v5797 = vpack.c.bf16 %v5781, %v5781
    %v5798 = vpack.c.bf16 %v5782, %v5782
    %v5799 = vld [vmem:[%s454 + $0x4] sm:$0xff]
    %v5800 = vld [vmem:[%s454 + $0x14] sm:$0xff]
    %v5801 = vld [vmem:[%s454 + $0x24] sm:$0xff]
    %v5802 = vld [vmem:[%s454 + $0x34] sm:$0xff]
    %v5803 = vld [vmem:[%s454 + $0x44] sm:$0xff]
    %v5804 = vld [vmem:[%s454 + $0x54] sm:$0xff]
    %v5805 = vld [vmem:[%s454 + $0x64] sm:$0xff]
    %v5806 = vld [vmem:[%s454 + $0x74] sm:$0xff]
    %v5807 = vld [vmem:[%s454 + $0xc4] sm:$0xff]
    %v5808 = vld [vmem:[%s454 + $0xd4] sm:$0xff]
    %v5809 = vld [vmem:[%s454 + $0xe4] sm:$0xff]
    %v5810 = vld [vmem:[%s454 + $0xf4] sm:$0xff]
    %v5811 = vld [vmem:[%s454 + $0x104] sm:$0xff]
    %v5812 = vld [vmem:[%s454 + $0x114] sm:$0xff]
    %v5813 = vld [vmem:[%s454 + $0x124] sm:$0xff]
    %v5814 = vld [vmem:[%s454 + $0x134] sm:$0xff]
    %v5815 = vpack.c.bf16 %v5799, %v5799
    %v5816 = vpack.c.bf16 %v5800, %v5800
    %v5817 = vpack.c.bf16 %v5801, %v5801
    %v5818 = vpack.c.bf16 %v5802, %v5802
    %v5819 = vpack.c.bf16 %v5803, %v5803
    %v5820 = vpack.c.bf16 %v5804, %v5804
    %v5821 = vpack.c.bf16 %v5805, %v5805
    %v5822 = vpack.c.bf16 %v5806, %v5806
    %v5823 = vpack.c.bf16 %v5807, %v5807
    %v5824 = vpack.c.bf16 %v5808, %v5808
    %v5825 = vpack.c.bf16 %v5809, %v5809
    %v5826 = vpack.c.bf16 %v5810, %v5810
    %v5827 = vpack.c.bf16 %v5811, %v5811
    %v5828 = vpack.c.bf16 %v5812, %v5812
    %v5829 = vpack.c.bf16 %v5813, %v5813
    %v5830 = vpack.c.bf16 %v5814, %v5814
    %v5847 = vunpack.c.l.b16 %v5751
    %v5848 = vunpack.c.l.b16 %v5752
    %v5849 = vunpack.c.l.b16 %v5753
    %v5850 = vunpack.c.l.b16 %v5754
    %v5851 = vunpack.c.l.b16 %v5755
    %v5852 = vunpack.c.l.b16 %v5756
    %v5853 = vunpack.c.l.b16 %v5757
    %v5854 = vunpack.c.l.b16 %v5758
    %v5855 = vunpack.c.l.b16 %v5759
    %v5856 = vunpack.c.l.b16 %v5760
    %v5857 = vunpack.c.l.b16 %v5761
    %v5858 = vunpack.c.l.b16 %v5762
    %v5859 = vunpack.c.l.b16 %v5763
    %v5860 = vunpack.c.l.b16 %v5764
    %v5861 = vunpack.c.l.b16 %v5765
    %v5862 = vunpack.c.l.b16 %v5766
    %v5863 = vpack.c.b16 %v5848, %v5847
    %v5864 = vpack.c.b16 %v5850, %v5849
    %v5865 = vpack.c.b16 %v5852, %v5851
    %v5866 = vpack.c.b16 %v5854, %v5853
    %v5867 = vpack.c.b16 %v5856, %v5855
    %v5868 = vpack.c.b16 %v5858, %v5857
    %v5869 = vpack.c.b16 %v5860, %v5859
    %v5870 = vpack.c.b16 %v5862, %v5861
    %v5895 = vunpack.c.l.b16 %v5783
    %v5896 = vunpack.c.l.b16 %v5784
    %v5897 = vunpack.c.l.b16 %v5785
    %v5898 = vunpack.c.l.b16 %v5786
    %v5899 = vunpack.c.l.b16 %v5787
    %v5900 = vunpack.c.l.b16 %v5788
    %v5901 = vunpack.c.l.b16 %v5789
    %v5902 = vunpack.c.l.b16 %v5790
    %v5903 = vunpack.c.l.b16 %v5791
    %v5904 = vunpack.c.l.b16 %v5792
    %v5905 = vunpack.c.l.b16 %v5793
    %v5906 = vunpack.c.l.b16 %v5794
    %v5907 = vunpack.c.l.b16 %v5795
    %v5908 = vunpack.c.l.b16 %v5796
    %v5909 = vunpack.c.l.b16 %v5797
    %v5910 = vunpack.c.l.b16 %v5798
    %v5911 = vpack.c.b16 %v5896, %v5895
    %v5912 = vpack.c.b16 %v5898, %v5897
    %v5913 = vpack.c.b16 %v5900, %v5899
    %v5914 = vpack.c.b16 %v5902, %v5901
    %v5915 = vpack.c.b16 %v5904, %v5903
    %v5916 = vpack.c.b16 %v5906, %v5905
    %v5917 = vpack.c.b16 %v5908, %v5907
    %v5918 = vpack.c.b16 %v5910, %v5909
    %v5943 = vunpack.c.l.b16 %v5815
    %v5944 = vunpack.c.l.b16 %v5816
    %v5945 = vunpack.c.l.b16 %v5817
    %v5946 = vunpack.c.l.b16 %v5818
    %v5947 = vunpack.c.l.b16 %v5819
    %v5948 = vunpack.c.l.b16 %v5820
    %v5949 = vunpack.c.l.b16 %v5821
    %v5950 = vunpack.c.l.b16 %v5822
    %v5951 = vunpack.c.l.b16 %v5823
    %v5952 = vunpack.c.l.b16 %v5824
    %v5953 = vunpack.c.l.b16 %v5825
    %v5954 = vunpack.c.l.b16 %v5826
    %v5955 = vunpack.c.l.b16 %v5827
    %v5956 = vunpack.c.l.b16 %v5828
    %v5957 = vunpack.c.l.b16 %v5829
    %v5958 = vunpack.c.l.b16 %v5830
    %v5959 = vpack.c.b16 %v5944, %v5943
    %v5960 = vpack.c.b16 %v5946, %v5945
    %v5961 = vpack.c.b16 %v5948, %v5947
    %v5962 = vpack.c.b16 %v5950, %v5949
    %v5963 = vpack.c.b16 %v5952, %v5951
    %v5964 = vpack.c.b16 %v5954, %v5953
    %v5965 = vpack.c.b16 %v5956, %v5955
    %v5966 = vpack.c.b16 %v5958, %v5957
    %v5975 = vld [vmem:[%s3 + $0xc0] sm:$0xf]
    %v5976 = vld [vmem:[%s3 + $0xc4] sm:$0xf]
    %v5977 = vld [vmem:[%s3 + $0xc8] sm:$0xf]
    %v5978 = vld [vmem:[%s3 + $0xcc] sm:$0xf]
    %v5979 = vld [vmem:[%s3 + $0xd0] sm:$0xf]
    %v5980 = vld [vmem:[%s3 + $0xd4] sm:$0xf]
    %v5981 = vld [vmem:[%s3 + $0xd8] sm:$0xf]
    %v5982 = vld [vmem:[%s3 + $0xdc] sm:$0xf]
    %v5983 = vld [vmem:[%s3 + $0xe0] sm:$0xf]
    %v5984 = vld [vmem:[%s3 + $0xe4] sm:$0xf]
    %v5985 = vld [vmem:[%s3 + $0xe8] sm:$0xf]
    %v5986 = vld [vmem:[%s3 + $0xec] sm:$0xf]
    %v5987 = vld [vmem:[%s3 + $0xf0] sm:$0xf]
    %v5988 = vld [vmem:[%s3 + $0xf4] sm:$0xf]
    %v5989 = vld [vmem:[%s3 + $0xf8] sm:$0xf]
    %v5990 = vld [vmem:[%s3 + $0xfc] sm:$0xf]
    %v5991 = vld [vmem:[%s3 + $0x100] sm:$0xf]
    %v5992 = vld [vmem:[%s3 + $0x104] sm:$0xf]
    %v5993 = vld [vmem:[%s3 + $0x108] sm:$0xf]
    %v5994 = vld [vmem:[%s3 + $0x10c] sm:$0xf]
    %v5995 = vld [vmem:[%s3 + $0x110] sm:$0xf]
    %v5996 = vld [vmem:[%s3 + $0x114] sm:$0xf]
    %v5997 = vld [vmem:[%s3 + $0x118] sm:$0xf]
    %v5998 = vld [vmem:[%s3 + $0x11c] sm:$0xf]
    %v5999 = vld [vmem:[%s3 + $0x120] sm:$0xf]
    %v6000 = vld [vmem:[%s3 + $0x124] sm:$0xf]
    %v6001 = vld [vmem:[%s3 + $0x128] sm:$0xf]
    %v6002 = vld [vmem:[%s3 + $0x12c] sm:$0xf]
    %v6003 = vld [vmem:[%s3 + $0x130] sm:$0xf]
    %v6004 = vld [vmem:[%s3 + $0x134] sm:$0xf]
    %v6005 = vld [vmem:[%s3 + $0x138] sm:$0xf]
    %v6006 = vld [vmem:[%s3 + $0x13c] sm:$0xf]
    %v6007 = vld [vmem:[%s3 + $0x140] sm:$0xf]
    %v6008 = vld [vmem:[%s3 + $0x144] sm:$0xf]
    %v6009 = vld [vmem:[%s3 + $0x148] sm:$0xf]
    %v6010 = vld [vmem:[%s3 + $0x14c] sm:$0xf]
    %v6011 = vld [vmem:[%s3 + $0x150] sm:$0xf]
    %v6012 = vld [vmem:[%s3 + $0x154] sm:$0xf]
    %v6013 = vld [vmem:[%s3 + $0x158] sm:$0xf]
    %v6014 = vld [vmem:[%s3 + $0x15c] sm:$0xf]
    %v6015 = vld [vmem:[%s3 + $0x160] sm:$0xf]
    %v6016 = vld [vmem:[%s3 + $0x164] sm:$0xf]
    %v6017 = vld [vmem:[%s3 + $0x168] sm:$0xf]
    %v6018 = vld [vmem:[%s3 + $0x16c] sm:$0xf]
    %v6019 = vld [vmem:[%s3 + $0x170] sm:$0xf]
    %v6020 = vld [vmem:[%s3 + $0x174] sm:$0xf]
    %v6021 = vld [vmem:[%s3 + $0x178] sm:$0xf]
    %v6022 = vld [vmem:[%s3 + $0x17c] sm:$0xf]
    %v6071 = vunpack.c.l.b16 %v5975
    %v6072 = vunpack.c.l.b16 %v5976
    %v6073 = vunpack.c.l.b16 %v5977
    %v6074 = vunpack.c.l.b16 %v5978
    %v6075 = vunpack.c.l.b16 %v5979
    %v6076 = vunpack.c.l.b16 %v5980
    %v6077 = vunpack.c.l.b16 %v5981
    %v6078 = vunpack.c.l.b16 %v5982
    %v6079 = vunpack.c.l.b16 %v5983
    %v6080 = vunpack.c.l.b16 %v5984
    %v6081 = vunpack.c.l.b16 %v5985
    %v6082 = vunpack.c.l.b16 %v5986
    %v6083 = vunpack.c.l.b16 %v5987
    %v6084 = vunpack.c.l.b16 %v5988
    %v6085 = vunpack.c.l.b16 %v5989
    %v6086 = vunpack.c.l.b16 %v5990
    %v6087 = vunpack.c.l.b16 %v5991
    %v6088 = vunpack.c.l.b16 %v5992
    %v6089 = vunpack.c.l.b16 %v5993
    %v6090 = vunpack.c.l.b16 %v5994
    %v6091 = vunpack.c.l.b16 %v5995
    %v6092 = vunpack.c.l.b16 %v5996
    %v6093 = vunpack.c.l.b16 %v5997
    %v6094 = vunpack.c.l.b16 %v5998
    %v6095 = vunpack.c.l.b16 %v5999
    %v6096 = vunpack.c.l.b16 %v6000
    %v6097 = vunpack.c.l.b16 %v6001
    %v6098 = vunpack.c.l.b16 %v6002
    %v6099 = vunpack.c.l.b16 %v6003
    %v6100 = vunpack.c.l.b16 %v6004
    %v6101 = vunpack.c.l.b16 %v6005
    %v6102 = vunpack.c.l.b16 %v6006
    %v6103 = vunpack.c.l.b16 %v6007
    %v6104 = vunpack.c.l.b16 %v6008
    %v6105 = vunpack.c.l.b16 %v6009
    %v6106 = vunpack.c.l.b16 %v6010
    %v6107 = vunpack.c.l.b16 %v6011
    %v6108 = vunpack.c.l.b16 %v6012
    %v6109 = vunpack.c.l.b16 %v6013
    %v6110 = vunpack.c.l.b16 %v6014
    %v6111 = vunpack.c.l.b16 %v6015
    %v6112 = vunpack.c.l.b16 %v6016
    %v6113 = vunpack.c.l.b16 %v6017
    %v6114 = vunpack.c.l.b16 %v6018
    %v6115 = vunpack.c.l.b16 %v6019
    %v6116 = vunpack.c.l.b16 %v6020
    %v6117 = vunpack.c.l.b16 %v6021
    %v6118 = vunpack.c.l.b16 %v6022
    %v6119 = vpack.c.b16 %v6072, %v6071
    %v6120 = vpack.c.b16 %v6074, %v6073
    %v6121 = vpack.c.b16 %v6076, %v6075
    %v6122 = vpack.c.b16 %v6078, %v6077
    %v6123 = vpack.c.b16 %v6080, %v6079
    %v6124 = vpack.c.b16 %v6082, %v6081
    %v6125 = vpack.c.b16 %v6084, %v6083
    %v6126 = vpack.c.b16 %v6086, %v6085
    %v6127 = vpack.c.b16 %v6088, %v6087
    %v6128 = vpack.c.b16 %v6090, %v6089
    %v6129 = vpack.c.b16 %v6092, %v6091
    %v6130 = vpack.c.b16 %v6094, %v6093
    %v6131 = vpack.c.b16 %v6096, %v6095
    %v6132 = vpack.c.b16 %v6098, %v6097
    %v6133 = vpack.c.b16 %v6100, %v6099
    %v6134 = vpack.c.b16 %v6102, %v6101
    %v6135 = vpack.c.b16 %v6104, %v6103
    %v6136 = vpack.c.b16 %v6106, %v6105
    %v6137 = vpack.c.b16 %v6108, %v6107
    %v6138 = vpack.c.b16 %v6110, %v6109
    %v6139 = vpack.c.b16 %v6112, %v6111
    %v6140 = vpack.c.b16 %v6114, %v6113
    %v6141 = vpack.c.b16 %v6116, %v6115
    %v6142 = vpack.c.b16 %v6118, %v6117
    %6167 = vmatpush.bf16.msra.mxu0 %v6126
    %6168 = vmatpush.bf16.msra.mxu0 %v6125
    %6169 = vmatpush.bf16.msra.mxu0 %v6124
    %6170 = vmatpush.bf16.msra.mxu0 %v6123
    %6171 = vmatpush.bf16.msra.mxu0 %v6122
    %6172 = vmatpush.bf16.msra.mxu0 %v6121
    %6173 = vmatpush.bf16.msra.mxu0 %v6120
    %6174 = vmatpush.bf16.msra.mxu0 %v6119
    %6175 = vmatmul.bf16.gmra.mxu0 %v5863
    %v6176 = vpop.f32.mrf.mxu0
    %v6177 = vadd.f32 0.0, %v6176
    %v6178 = vpop.f32.mrf.mxu0
    %v6179 = vadd.f32 0.0, %v6178
    %6180 = vmatmul.bf16.gmra.mxu0 %v5864
    %v6181 = vpop.f32.mrf.mxu0
    %v6182 = vadd.f32 0.0, %v6181
    %v6183 = vpop.f32.mrf.mxu0
    %v6184 = vadd.f32 0.0, %v6183
    %6185 = vmatmul.bf16.gmra.mxu0 %v5865
    %v6186 = vpop.f32.mrf.mxu0
    %v6187 = vadd.f32 0.0, %v6186
    %v6188 = vpop.f32.mrf.mxu0
    %v6189 = vadd.f32 0.0, %v6188
    %6190 = vmatmul.bf16.gmra.mxu0 %v5866
    %v6191 = vpop.f32.mrf.mxu0
    %v6192 = vadd.f32 0.0, %v6191
    %v6193 = vpop.f32.mrf.mxu0
    %v6194 = vadd.f32 0.0, %v6193
    %6195 = vmatmul.bf16.gmra.mxu0 %v5867
    %v6196 = vpop.f32.mrf.mxu0
    %v6197 = vadd.f32 0.0, %v6196
    %v6198 = vpop.f32.mrf.mxu0
    %v6199 = vadd.f32 0.0, %v6198
    %6200 = vmatmul.bf16.gmra.mxu0 %v5868
    %v6201 = vpop.f32.mrf.mxu0
    %v6202 = vadd.f32 0.0, %v6201
    %v6203 = vpop.f32.mrf.mxu0
    %v6204 = vadd.f32 0.0, %v6203
    %6205 = vmatmul.bf16.gmra.mxu0 %v5869
    %v6206 = vpop.f32.mrf.mxu0
    %v6207 = vadd.f32 0.0, %v6206
    %v6208 = vpop.f32.mrf.mxu0
    %v6209 = vadd.f32 0.0, %v6208
    %6210 = vmatmul.bf16.gmra.mxu0 %v5870
    %v6211 = vpop.f32.mrf.mxu0
    %v6212 = vadd.f32 0.0, %v6211
    %v6213 = vpop.f32.mrf.mxu0
    %v6214 = vadd.f32 0.0, %v6213
    %6215 = vdwg.mxu0
    %6216 = vmatpush.bf16.msra.mxu0 %v6134
    %6217 = vmatpush.bf16.msra.mxu0 %v6133
    %6218 = vmatpush.bf16.msra.mxu0 %v6132
    %6219 = vmatpush.bf16.msra.mxu0 %v6131
    %6220 = vmatpush.bf16.msra.mxu0 %v6130
    %6221 = vmatpush.bf16.msra.mxu0 %v6129
    %6222 = vmatpush.bf16.msra.mxu0 %v6128
    %6223 = vmatpush.bf16.msra.mxu0 %v6127
    %6224 = vmatmul.bf16.gmra.mxu0 %v5911
    %v6225 = vpop.f32.mrf.mxu0
    %v6226 = vadd.f32 %v6177, %v6225
    %v6227 = vpop.f32.mrf.mxu0
    %v6228 = vadd.f32 %v6179, %v6227
    %6229 = vmatmul.bf16.gmra.mxu0 %v5912
    %v6230 = vpop.f32.mrf.mxu0
    %v6231 = vadd.f32 %v6182, %v6230
    %v6232 = vpop.f32.mrf.mxu0
    %v6233 = vadd.f32 %v6184, %v6232
    %6234 = vmatmul.bf16.gmra.mxu0 %v5913
    %v6235 = vpop.f32.mrf.mxu0
    %v6236 = vadd.f32 %v6187, %v6235
    %v6237 = vpop.f32.mrf.mxu0
    %v6238 = vadd.f32 %v6189, %v6237
    %6239 = vmatmul.bf16.gmra.mxu0 %v5914
    %v6240 = vpop.f32.mrf.mxu0
    %v6241 = vadd.f32 %v6192, %v6240
    %v6242 = vpop.f32.mrf.mxu0
    %v6243 = vadd.f32 %v6194, %v6242
    %6244 = vmatmul.bf16.gmra.mxu0 %v5915
    %v6245 = vpop.f32.mrf.mxu0
    %v6246 = vadd.f32 %v6197, %v6245
    %v6247 = vpop.f32.mrf.mxu0
    %v6248 = vadd.f32 %v6199, %v6247
    %6249 = vmatmul.bf16.gmra.mxu0 %v5916
    %v6250 = vpop.f32.mrf.mxu0
    %v6251 = vadd.f32 %v6202, %v6250
    %v6252 = vpop.f32.mrf.mxu0
    %v6253 = vadd.f32 %v6204, %v6252
    %6254 = vmatmul.bf16.gmra.mxu0 %v5917
    %v6255 = vpop.f32.mrf.mxu0
    %v6256 = vadd.f32 %v6207, %v6255
    %v6257 = vpop.f32.mrf.mxu0
    %v6258 = vadd.f32 %v6209, %v6257
    %6259 = vmatmul.bf16.gmra.mxu0 %v5918
    %v6260 = vpop.f32.mrf.mxu0
    %v6261 = vadd.f32 %v6212, %v6260
    %v6262 = vpop.f32.mrf.mxu0
    %v6263 = vadd.f32 %v6214, %v6262
    %6264 = vdwg.mxu0
    %6265 = vmatpush.bf16.msra.mxu0 %v6142
    %6266 = vmatpush.bf16.msra.mxu0 %v6141
    %6267 = vmatpush.bf16.msra.mxu0 %v6140
    %6268 = vmatpush.bf16.msra.mxu0 %v6139
    %6269 = vmatpush.bf16.msra.mxu0 %v6138
    %6270 = vmatpush.bf16.msra.mxu0 %v6137
    %6271 = vmatpush.bf16.msra.mxu0 %v6136
    %6272 = vmatpush.bf16.msra.mxu0 %v6135
    %6273 = vmatmul.bf16.gmra.mxu0 %v5959
    %v6274 = vpop.f32.mrf.mxu0
    %v6275 = vadd.f32 %v6226, %v6274
    %v6276 = vpop.f32.mrf.mxu0
    %v6277 = vadd.f32 %v6228, %v6276
    %6278 = vmatmul.bf16.gmra.mxu0 %v5960
    %v6279 = vpop.f32.mrf.mxu0
    %v6280 = vadd.f32 %v6231, %v6279
    %v6281 = vpop.f32.mrf.mxu0
    %v6282 = vadd.f32 %v6233, %v6281
    %6283 = vmatmul.bf16.gmra.mxu0 %v5961
    %v6284 = vpop.f32.mrf.mxu0
    %v6285 = vadd.f32 %v6236, %v6284
    %v6286 = vpop.f32.mrf.mxu0
    %v6287 = vadd.f32 %v6238, %v6286
    %6288 = vmatmul.bf16.gmra.mxu0 %v5962
    %v6289 = vpop.f32.mrf.mxu0
    %v6290 = vadd.f32 %v6241, %v6289
    %v6291 = vpop.f32.mrf.mxu0
    %v6292 = vadd.f32 %v6243, %v6291
    %6293 = vmatmul.bf16.gmra.mxu0 %v5963
    %v6294 = vpop.f32.mrf.mxu0
    %v6295 = vadd.f32 %v6246, %v6294
    %v6296 = vpop.f32.mrf.mxu0
    %v6297 = vadd.f32 %v6248, %v6296
    %6298 = vmatmul.bf16.gmra.mxu0 %v5964
    %v6299 = vpop.f32.mrf.mxu0
    %v6300 = vadd.f32 %v6251, %v6299
    %v6301 = vpop.f32.mrf.mxu0
    %v6302 = vadd.f32 %v6253, %v6301
    %6303 = vmatmul.bf16.gmra.mxu0 %v5965
    %v6304 = vpop.f32.mrf.mxu0
    %v6305 = vadd.f32 %v6256, %v6304
    %v6306 = vpop.f32.mrf.mxu0
    %v6307 = vadd.f32 %v6258, %v6306
    %6308 = vmatmul.bf16.gmra.mxu0 %v5966
    %v6309 = vpop.f32.mrf.mxu0
    %v6310 = vadd.f32 %v6261, %v6309
    %v6311 = vpop.f32.mrf.mxu0
    %v6312 = vadd.f32 %v6263, %v6311
    %6313 = vdwg.mxu0
    %v6362 = vunpack.c.l.b16 %v5687
    %v6363 = vunpack.c.l.b16 %v5688
    %v6364 = vunpack.c.l.b16 %v5689
    %v6365 = vunpack.c.l.b16 %v5690
    %v6366 = vunpack.c.l.b16 %v5691
    %v6367 = vunpack.c.l.b16 %v5692
    %v6368 = vunpack.c.l.b16 %v5693
    %v6369 = vunpack.c.l.b16 %v5694
    %v6370 = vunpack.c.l.b16 %v5695
    %v6371 = vunpack.c.l.b16 %v5696
    %v6372 = vunpack.c.l.b16 %v5697
    %v6373 = vunpack.c.l.b16 %v5698
    %v6374 = vunpack.c.l.b16 %v5699
    %v6375 = vunpack.c.l.b16 %v5700
    %v6376 = vunpack.c.l.b16 %v5701
    %v6377 = vunpack.c.l.b16 %v5702
    %v6378 = vunpack.c.l.b16 %v5703
    %v6379 = vunpack.c.l.b16 %v5704
    %v6380 = vunpack.c.l.b16 %v5705
    %v6381 = vunpack.c.l.b16 %v5706
    %v6382 = vunpack.c.l.b16 %v5707
    %v6383 = vunpack.c.l.b16 %v5708
    %v6384 = vunpack.c.l.b16 %v5709
    %v6385 = vunpack.c.l.b16 %v5710
    %v6386 = vunpack.c.l.b16 %v5711
    %v6387 = vunpack.c.l.b16 %v5712
    %v6388 = vunpack.c.l.b16 %v5713
    %v6389 = vunpack.c.l.b16 %v5714
    %v6390 = vunpack.c.l.b16 %v5715
    %v6391 = vunpack.c.l.b16 %v5716
    %v6392 = vunpack.c.l.b16 %v5717
    %v6393 = vunpack.c.l.b16 %v5718
    %v6394 = vunpack.c.l.b16 %v5719
    %v6395 = vunpack.c.l.b16 %v5720
    %v6396 = vunpack.c.l.b16 %v5721
    %v6397 = vunpack.c.l.b16 %v5722
    %v6398 = vunpack.c.l.b16 %v5723
    %v6399 = vunpack.c.l.b16 %v5724
    %v6400 = vunpack.c.l.b16 %v5725
    %v6401 = vunpack.c.l.b16 %v5726
    %v6402 = vunpack.c.l.b16 %v5727
    %v6403 = vunpack.c.l.b16 %v5728
    %v6404 = vunpack.c.l.b16 %v5729
    %v6405 = vunpack.c.l.b16 %v5730
    %v6406 = vunpack.c.l.b16 %v5731
    %v6407 = vunpack.c.l.b16 %v5732
    %v6408 = vunpack.c.l.b16 %v5733
    %v6409 = vunpack.c.l.b16 %v5734
    %v6410 = vpack.c.b16 %v6363, %v6362
    %v6411 = vpack.c.b16 %v6365, %v6364
    %v6412 = vpack.c.b16 %v6367, %v6366
    %v6413 = vpack.c.b16 %v6369, %v6368
    %v6414 = vpack.c.b16 %v6371, %v6370
    %v6415 = vpack.c.b16 %v6373, %v6372
    %v6416 = vpack.c.b16 %v6375, %v6374
    %v6417 = vpack.c.b16 %v6377, %v6376
    %v6418 = vpack.c.b16 %v6379, %v6378
    %v6419 = vpack.c.b16 %v6381, %v6380
    %v6420 = vpack.c.b16 %v6383, %v6382
    %v6421 = vpack.c.b16 %v6385, %v6384
    %v6422 = vpack.c.b16 %v6387, %v6386
    %v6423 = vpack.c.b16 %v6389, %v6388
    %v6424 = vpack.c.b16 %v6391, %v6390
    %v6425 = vpack.c.b16 %v6393, %v6392
    %v6426 = vpack.c.b16 %v6395, %v6394
    %v6427 = vpack.c.b16 %v6397, %v6396
    %v6428 = vpack.c.b16 %v6399, %v6398
    %v6429 = vpack.c.b16 %v6401, %v6400
    %v6430 = vpack.c.b16 %v6403, %v6402
    %v6431 = vpack.c.b16 %v6405, %v6404
    %v6432 = vpack.c.b16 %v6407, %v6406
    %v6433 = vpack.c.b16 %v6409, %v6408
    %6458 = vmatpush.bf16.msra.mxu0 %v6417
    %6459 = vmatpush.bf16.msra.mxu0 %v6416
    %6460 = vmatpush.bf16.msra.mxu0 %v6415
    %6461 = vmatpush.bf16.msra.mxu0 %v6414
    %6462 = vmatpush.bf16.msra.mxu0 %v6413
    %6463 = vmatpush.bf16.msra.mxu0 %v6412
    %6464 = vmatpush.bf16.msra.mxu0 %v6411
    %6465 = vmatpush.bf16.msra.mxu0 %v6410
    %6466 = vmatmul.bf16.gmra.mxu0 %v5575
    %v6467 = vpop.f32.mrf.mxu0
    %v6468 = vadd.f32 %v6275, %v6467
    %v6469 = vpop.f32.mrf.mxu0
    %v6470 = vadd.f32 %v6277, %v6469
    %6471 = vmatmul.bf16.gmra.mxu0 %v5576
    %v6472 = vpop.f32.mrf.mxu0
    %v6473 = vadd.f32 %v6280, %v6472
    %v6474 = vpop.f32.mrf.mxu0
    %v6475 = vadd.f32 %v6282, %v6474
    %6476 = vmatmul.bf16.gmra.mxu0 %v5577
    %v6477 = vpop.f32.mrf.mxu0
    %v6478 = vadd.f32 %v6285, %v6477
    %v6479 = vpop.f32.mrf.mxu0
    %v6480 = vadd.f32 %v6287, %v6479
    %6481 = vmatmul.bf16.gmra.mxu0 %v5578
    %v6482 = vpop.f32.mrf.mxu0
    %v6483 = vadd.f32 %v6290, %v6482
    %v6484 = vpop.f32.mrf.mxu0
    %v6485 = vadd.f32 %v6292, %v6484
    %6486 = vmatmul.bf16.gmra.mxu0 %v5579
    %v6487 = vpop.f32.mrf.mxu0
    %v6488 = vadd.f32 %v6295, %v6487
    %v6489 = vpop.f32.mrf.mxu0
    %v6490 = vadd.f32 %v6297, %v6489
    %6491 = vmatmul.bf16.gmra.mxu0 %v5580
    %v6492 = vpop.f32.mrf.mxu0
    %v6493 = vadd.f32 %v6300, %v6492
    %v6494 = vpop.f32.mrf.mxu0
    %v6495 = vadd.f32 %v6302, %v6494
    %6496 = vmatmul.bf16.gmra.mxu0 %v5581
    %v6497 = vpop.f32.mrf.mxu0
    %v6498 = vadd.f32 %v6305, %v6497
    %v6499 = vpop.f32.mrf.mxu0
    %v6500 = vadd.f32 %v6307, %v6499
    %6501 = vmatmul.bf16.gmra.mxu0 %v5582
    %v6502 = vpop.f32.mrf.mxu0
    %v6503 = vadd.f32 %v6310, %v6502
    %v6504 = vpop.f32.mrf.mxu0
    %v6505 = vadd.f32 %v6312, %v6504
    %6506 = vdwg.mxu0
    %6507 = vmatpush.bf16.msra.mxu0 %v6425
    %6508 = vmatpush.bf16.msra.mxu0 %v6424
    %6509 = vmatpush.bf16.msra.mxu0 %v6423
    %6510 = vmatpush.bf16.msra.mxu0 %v6422
    %6511 = vmatpush.bf16.msra.mxu0 %v6421
    %6512 = vmatpush.bf16.msra.mxu0 %v6420
    %6513 = vmatpush.bf16.msra.mxu0 %v6419
    %6514 = vmatpush.bf16.msra.mxu0 %v6418
    %6515 = vmatmul.bf16.gmra.mxu0 %v5623
    %v6516 = vpop.f32.mrf.mxu0
    %v6517 = vadd.f32 %v6468, %v6516
    %v6518 = vpop.f32.mrf.mxu0
    %v6519 = vadd.f32 %v6470, %v6518
    %6520 = vmatmul.bf16.gmra.mxu0 %v5624
    %v6521 = vpop.f32.mrf.mxu0
    %v6522 = vadd.f32 %v6473, %v6521
    %v6523 = vpop.f32.mrf.mxu0
    %v6524 = vadd.f32 %v6475, %v6523
    %6525 = vmatmul.bf16.gmra.mxu0 %v5625
    %v6526 = vpop.f32.mrf.mxu0
    %v6527 = vadd.f32 %v6478, %v6526
    %v6528 = vpop.f32.mrf.mxu0
    %v6529 = vadd.f32 %v6480, %v6528
    %6530 = vmatmul.bf16.gmra.mxu0 %v5626
    %v6531 = vpop.f32.mrf.mxu0
    %v6532 = vadd.f32 %v6483, %v6531
    %v6533 = vpop.f32.mrf.mxu0
    %v6534 = vadd.f32 %v6485, %v6533
    %6535 = vmatmul.bf16.gmra.mxu0 %v5627
    %v6536 = vpop.f32.mrf.mxu0
    %v6537 = vadd.f32 %v6488, %v6536
    %v6538 = vpop.f32.mrf.mxu0
    %v6539 = vadd.f32 %v6490, %v6538
    %6540 = vmatmul.bf16.gmra.mxu0 %v5628
    %v6541 = vpop.f32.mrf.mxu0
    %v6542 = vadd.f32 %v6493, %v6541
    %v6543 = vpop.f32.mrf.mxu0
    %v6544 = vadd.f32 %v6495, %v6543
    %6545 = vmatmul.bf16.gmra.mxu0 %v5629
    %v6546 = vpop.f32.mrf.mxu0
    %v6547 = vadd.f32 %v6498, %v6546
    %v6548 = vpop.f32.mrf.mxu0
    %v6549 = vadd.f32 %v6500, %v6548
    %6550 = vmatmul.bf16.gmra.mxu0 %v5630
    %v6551 = vpop.f32.mrf.mxu0
    %v6552 = vadd.f32 %v6503, %v6551
    %v6553 = vpop.f32.mrf.mxu0
    %v6554 = vadd.f32 %v6505, %v6553
    %6555 = vdwg.mxu0
    %6556 = vmatpush.bf16.msra.mxu0 %v6433
    %6557 = vmatpush.bf16.msra.mxu0 %v6432
    %6558 = vmatpush.bf16.msra.mxu0 %v6431
    %6559 = vmatpush.bf16.msra.mxu0 %v6430
    %6560 = vmatpush.bf16.msra.mxu0 %v6429
    %6561 = vmatpush.bf16.msra.mxu0 %v6428
    %6562 = vmatpush.bf16.msra.mxu0 %v6427
    %6563 = vmatpush.bf16.msra.mxu0 %v6426
    %6564 = vmatmul.bf16.gmra.mxu0 %v5671
    %v6565 = vpop.f32.mrf.mxu0
    %v6566 = vadd.f32 %v6517, %v6565
    %v6567 = vpop.f32.mrf.mxu0
    %v6568 = vadd.f32 %v6519, %v6567
    %6569 = vmatmul.bf16.gmra.mxu0 %v5672
    %v6570 = vpop.f32.mrf.mxu0
    %v6571 = vadd.f32 %v6522, %v6570
    %v6572 = vpop.f32.mrf.mxu0
    %v6573 = vadd.f32 %v6524, %v6572
    %6574 = vmatmul.bf16.gmra.mxu0 %v5673
    %v6575 = vpop.f32.mrf.mxu0
    %v6576 = vadd.f32 %v6527, %v6575
    %v6577 = vpop.f32.mrf.mxu0
    %v6578 = vadd.f32 %v6529, %v6577
    %6579 = vmatmul.bf16.gmra.mxu0 %v5674
    %v6580 = vpop.f32.mrf.mxu0
    %v6581 = vadd.f32 %v6532, %v6580
    %v6582 = vpop.f32.mrf.mxu0
    %v6583 = vadd.f32 %v6534, %v6582
    %6584 = vmatmul.bf16.gmra.mxu0 %v5675
    %v6585 = vpop.f32.mrf.mxu0
    %v6586 = vadd.f32 %v6537, %v6585
    %v6587 = vpop.f32.mrf.mxu0
    %v6588 = vadd.f32 %v6539, %v6587
    %6589 = vmatmul.bf16.gmra.mxu0 %v5676
    %v6590 = vpop.f32.mrf.mxu0
    %v6591 = vadd.f32 %v6542, %v6590
    %v6592 = vpop.f32.mrf.mxu0
    %v6593 = vadd.f32 %v6544, %v6592
    %6594 = vmatmul.bf16.gmra.mxu0 %v5677
    %v6595 = vpop.f32.mrf.mxu0
    %v6596 = vadd.f32 %v6547, %v6595
    %v6597 = vpop.f32.mrf.mxu0
    %v6598 = vadd.f32 %v6549, %v6597
    %6599 = vmatmul.bf16.gmra.mxu0 %v5678
    %v6600 = vpop.f32.mrf.mxu0
    %v6601 = vadd.f32 %v6552, %v6600
    %v6602 = vpop.f32.mrf.mxu0
    %v6603 = vadd.f32 %v6554, %v6602
    %6604 = vdwg.mxu0
    %v6605 = vld [vmem:[%s4365] sm:$0xff]
    %v6606 = vld [vmem:[%s4365 + $0x10] sm:$0xff]
    %v6607 = vld [vmem:[%s4365 + $0x20] sm:$0xff]
    %v6608 = vld [vmem:[%s4365 + $0x30] sm:$0xff]
    %v6609 = vld [vmem:[%s4365 + $0x40] sm:$0xff]
    %v6610 = vld [vmem:[%s4365 + $0x50] sm:$0xff]
    %v6611 = vld [vmem:[%s4365 + $0x60] sm:$0xff]
    %v6612 = vld [vmem:[%s4365 + $0x70] sm:$0xff]
    %v6613 = vld [vmem:[%s4365 + $0xc0] sm:$0xff]
    %v6614 = vld [vmem:[%s4365 + $0xd0] sm:$0xff]
    %v6615 = vld [vmem:[%s4365 + $0xe0] sm:$0xff]
    %v6616 = vld [vmem:[%s4365 + $0xf0] sm:$0xff]
    %v6617 = vld [vmem:[%s4365 + $0x100] sm:$0xff]
    %v6618 = vld [vmem:[%s4365 + $0x110] sm:$0xff]
    %v6619 = vld [vmem:[%s4365 + $0x120] sm:$0xff]
    %v6620 = vld [vmem:[%s4365 + $0x130] sm:$0xff]
    %v6621 = vpack.c.bf16 %v6605, %v6605
    %v6622 = vpack.c.bf16 %v6606, %v6606
    %v6623 = vpack.c.bf16 %v6607, %v6607
    %v6624 = vpack.c.bf16 %v6608, %v6608
    %v6625 = vpack.c.bf16 %v6609, %v6609
    %v6626 = vpack.c.bf16 %v6610, %v6610
    %v6627 = vpack.c.bf16 %v6611, %v6611
    %v6628 = vpack.c.bf16 %v6612, %v6612
    %v6629 = vpack.c.bf16 %v6613, %v6613
    %v6630 = vpack.c.bf16 %v6614, %v6614
    %v6631 = vpack.c.bf16 %v6615, %v6615
    %v6632 = vpack.c.bf16 %v6616, %v6616
    %v6633 = vpack.c.bf16 %v6617, %v6617
    %v6634 = vpack.c.bf16 %v6618, %v6618
    %v6635 = vpack.c.bf16 %v6619, %v6619
    %v6636 = vpack.c.bf16 %v6620, %v6620
    %v6637 = vld [vmem:[%s4365 + $0x2] sm:$0xff]
    %v6638 = vld [vmem:[%s4365 + $0x12] sm:$0xff]
    %v6639 = vld [vmem:[%s4365 + $0x22] sm:$0xff]
    %v6640 = vld [vmem:[%s4365 + $0x32] sm:$0xff]
    %v6641 = vld [vmem:[%s4365 + $0x42] sm:$0xff]
    %v6642 = vld [vmem:[%s4365 + $0x52] sm:$0xff]
    %v6643 = vld [vmem:[%s4365 + $0x62] sm:$0xff]
    %v6644 = vld [vmem:[%s4365 + $0x72] sm:$0xff]
    %v6645 = vld [vmem:[%s4365 + $0xc2] sm:$0xff]
    %v6646 = vld [vmem:[%s4365 + $0xd2] sm:$0xff]
    %v6647 = vld [vmem:[%s4365 + $0xe2] sm:$0xff]
    %v6648 = vld [vmem:[%s4365 + $0xf2] sm:$0xff]
    %v6649 = vld [vmem:[%s4365 + $0x102] sm:$0xff]
    %v6650 = vld [vmem:[%s4365 + $0x112] sm:$0xff]
    %v6651 = vld [vmem:[%s4365 + $0x122] sm:$0xff]
    %v6652 = vld [vmem:[%s4365 + $0x132] sm:$0xff]
    %v6653 = vpack.c.bf16 %v6637, %v6637
    %v6654 = vpack.c.bf16 %v6638, %v6638
    %v6655 = vpack.c.bf16 %v6639, %v6639
    %v6656 = vpack.c.bf16 %v6640, %v6640
    %v6657 = vpack.c.bf16 %v6641, %v6641
    %v6658 = vpack.c.bf16 %v6642, %v6642
    %v6659 = vpack.c.bf16 %v6643, %v6643
    %v6660 = vpack.c.bf16 %v6644, %v6644
    %v6661 = vpack.c.bf16 %v6645, %v6645
    %v6662 = vpack.c.bf16 %v6646, %v6646
    %v6663 = vpack.c.bf16 %v6647, %v6647
    %v6664 = vpack.c.bf16 %v6648, %v6648
    %v6665 = vpack.c.bf16 %v6649, %v6649
    %v6666 = vpack.c.bf16 %v6650, %v6650
    %v6667 = vpack.c.bf16 %v6651, %v6651
    %v6668 = vpack.c.bf16 %v6652, %v6652
    %v6669 = vld [vmem:[%s4365 + $0x4] sm:$0xff]
    %v6670 = vld [vmem:[%s4365 + $0x14] sm:$0xff]
    %v6671 = vld [vmem:[%s4365 + $0x24] sm:$0xff]
    %v6672 = vld [vmem:[%s4365 + $0x34] sm:$0xff]
    %v6673 = vld [vmem:[%s4365 + $0x44] sm:$0xff]
    %v6674 = vld [vmem:[%s4365 + $0x54] sm:$0xff]
    %v6675 = vld [vmem:[%s4365 + $0x64] sm:$0xff]
    %v6676 = vld [vmem:[%s4365 + $0x74] sm:$0xff]
    %v6677 = vld [vmem:[%s4365 + $0xc4] sm:$0xff]
    %v6678 = vld [vmem:[%s4365 + $0xd4] sm:$0xff]
    %v6679 = vld [vmem:[%s4365 + $0xe4] sm:$0xff]
    %v6680 = vld [vmem:[%s4365 + $0xf4] sm:$0xff]
    %v6681 = vld [vmem:[%s4365 + $0x104] sm:$0xff]
    %v6682 = vld [vmem:[%s4365 + $0x114] sm:$0xff]
    %v6683 = vld [vmem:[%s4365 + $0x124] sm:$0xff]
    %v6684 = vld [vmem:[%s4365 + $0x134] sm:$0xff]
    %v6685 = vpack.c.bf16 %v6669, %v6669
    %v6686 = vpack.c.bf16 %v6670, %v6670
    %v6687 = vpack.c.bf16 %v6671, %v6671
    %v6688 = vpack.c.bf16 %v6672, %v6672
    %v6689 = vpack.c.bf16 %v6673, %v6673
    %v6690 = vpack.c.bf16 %v6674, %v6674
    %v6691 = vpack.c.bf16 %v6675, %v6675
    %v6692 = vpack.c.bf16 %v6676, %v6676
    %v6693 = vpack.c.bf16 %v6677, %v6677
    %v6694 = vpack.c.bf16 %v6678, %v6678
    %v6695 = vpack.c.bf16 %v6679, %v6679
    %v6696 = vpack.c.bf16 %v6680, %v6680
    %v6697 = vpack.c.bf16 %v6681, %v6681
    %v6698 = vpack.c.bf16 %v6682, %v6682
    %v6699 = vpack.c.bf16 %v6683, %v6683
    %v6700 = vpack.c.bf16 %v6684, %v6684
    %v6717 = vunpack.c.l.b16 %v6621
    %v6718 = vunpack.c.l.b16 %v6622
    %v6719 = vunpack.c.l.b16 %v6623
    %v6720 = vunpack.c.l.b16 %v6624
    %v6721 = vunpack.c.l.b16 %v6625
    %v6722 = vunpack.c.l.b16 %v6626
    %v6723 = vunpack.c.l.b16 %v6627
    %v6724 = vunpack.c.l.b16 %v6628
    %v6725 = vunpack.c.l.b16 %v6629
    %v6726 = vunpack.c.l.b16 %v6630
    %v6727 = vunpack.c.l.b16 %v6631
    %v6728 = vunpack.c.l.b16 %v6632
    %v6729 = vunpack.c.l.b16 %v6633
    %v6730 = vunpack.c.l.b16 %v6634
    %v6731 = vunpack.c.l.b16 %v6635
    %v6732 = vunpack.c.l.b16 %v6636
    %v6733 = vpack.c.b16 %v6718, %v6717
    %v6734 = vpack.c.b16 %v6720, %v6719
    %v6735 = vpack.c.b16 %v6722, %v6721
    %v6736 = vpack.c.b16 %v6724, %v6723
    %v6737 = vpack.c.b16 %v6726, %v6725
    %v6738 = vpack.c.b16 %v6728, %v6727
    %v6739 = vpack.c.b16 %v6730, %v6729
    %v6740 = vpack.c.b16 %v6732, %v6731
    %v6765 = vunpack.c.l.b16 %v6653
    %v6766 = vunpack.c.l.b16 %v6654
    %v6767 = vunpack.c.l.b16 %v6655
    %v6768 = vunpack.c.l.b16 %v6656
    %v6769 = vunpack.c.l.b16 %v6657
    %v6770 = vunpack.c.l.b16 %v6658
    %v6771 = vunpack.c.l.b16 %v6659
    %v6772 = vunpack.c.l.b16 %v6660
    %v6773 = vunpack.c.l.b16 %v6661
    %v6774 = vunpack.c.l.b16 %v6662
    %v6775 = vunpack.c.l.b16 %v6663
    %v6776 = vunpack.c.l.b16 %v6664
    %v6777 = vunpack.c.l.b16 %v6665
    %v6778 = vunpack.c.l.b16 %v6666
    %v6779 = vunpack.c.l.b16 %v6667
    %v6780 = vunpack.c.l.b16 %v6668
    %v6781 = vpack.c.b16 %v6766, %v6765
    %v6782 = vpack.c.b16 %v6768, %v6767
    %v6783 = vpack.c.b16 %v6770, %v6769
    %v6784 = vpack.c.b16 %v6772, %v6771
    %v6785 = vpack.c.b16 %v6774, %v6773
    %v6786 = vpack.c.b16 %v6776, %v6775
    %v6787 = vpack.c.b16 %v6778, %v6777
    %v6788 = vpack.c.b16 %v6780, %v6779
    %v6813 = vunpack.c.l.b16 %v6685
    %v6814 = vunpack.c.l.b16 %v6686
    %v6815 = vunpack.c.l.b16 %v6687
    %v6816 = vunpack.c.l.b16 %v6688
    %v6817 = vunpack.c.l.b16 %v6689
    %v6818 = vunpack.c.l.b16 %v6690
    %v6819 = vunpack.c.l.b16 %v6691
    %v6820 = vunpack.c.l.b16 %v6692
    %v6821 = vunpack.c.l.b16 %v6693
    %v6822 = vunpack.c.l.b16 %v6694
    %v6823 = vunpack.c.l.b16 %v6695
    %v6824 = vunpack.c.l.b16 %v6696
    %v6825 = vunpack.c.l.b16 %v6697
    %v6826 = vunpack.c.l.b16 %v6698
    %v6827 = vunpack.c.l.b16 %v6699
    %v6828 = vunpack.c.l.b16 %v6700
    %v6829 = vpack.c.b16 %v6814, %v6813
    %v6830 = vpack.c.b16 %v6816, %v6815
    %v6831 = vpack.c.b16 %v6818, %v6817
    %v6832 = vpack.c.b16 %v6820, %v6819
    %v6833 = vpack.c.b16 %v6822, %v6821
    %v6834 = vpack.c.b16 %v6824, %v6823
    %v6835 = vpack.c.b16 %v6826, %v6825
    %v6836 = vpack.c.b16 %v6828, %v6827
    %v6845 = vld [vmem:[%s3 + $0x180] sm:$0xf]
    %v6846 = vld [vmem:[%s3 + $0x184] sm:$0xf]
    %v6847 = vld [vmem:[%s3 + $0x188] sm:$0xf]
    %v6848 = vld [vmem:[%s3 + $0x18c] sm:$0xf]
    %v6849 = vld [vmem:[%s3 + $0x190] sm:$0xf]
    %v6850 = vld [vmem:[%s3 + $0x194] sm:$0xf]
    %v6851 = vld [vmem:[%s3 + $0x198] sm:$0xf]
    %v6852 = vld [vmem:[%s3 + $0x19c] sm:$0xf]
    %v6853 = vld [vmem:[%s3 + $0x1a0] sm:$0xf]
    %v6854 = vld [vmem:[%s3 + $0x1a4] sm:$0xf]
    %v6855 = vld [vmem:[%s3 + $0x1a8] sm:$0xf]
    %v6856 = vld [vmem:[%s3 + $0x1ac] sm:$0xf]
    %v6857 = vld [vmem:[%s3 + $0x1b0] sm:$0xf]
    %v6858 = vld [vmem:[%s3 + $0x1b4] sm:$0xf]
    %v6859 = vld [vmem:[%s3 + $0x1b8] sm:$0xf]
    %v6860 = vld [vmem:[%s3 + $0x1bc] sm:$0xf]
    %v6861 = vld [vmem:[%s3 + $0x1c0] sm:$0xf]
    %v6862 = vld [vmem:[%s3 + $0x1c4] sm:$0xf]
    %v6863 = vld [vmem:[%s3 + $0x1c8] sm:$0xf]
    %v6864 = vld [vmem:[%s3 + $0x1cc] sm:$0xf]
    %v6865 = vld [vmem:[%s3 + $0x1d0] sm:$0xf]
    %v6866 = vld [vmem:[%s3 + $0x1d4] sm:$0xf]
    %v6867 = vld [vmem:[%s3 + $0x1d8] sm:$0xf]
    %v6868 = vld [vmem:[%s3 + $0x1dc] sm:$0xf]
    %v6869 = vld [vmem:[%s3 + $0x1e0] sm:$0xf]
    %v6870 = vld [vmem:[%s3 + $0x1e4] sm:$0xf]
    %v6871 = vld [vmem:[%s3 + $0x1e8] sm:$0xf]
    %v6872 = vld [vmem:[%s3 + $0x1ec] sm:$0xf]
    %v6873 = vld [vmem:[%s3 + $0x1f0] sm:$0xf]
    %v6874 = vld [vmem:[%s3 + $0x1f4] sm:$0xf]
    %v6875 = vld [vmem:[%s3 + $0x1f8] sm:$0xf]
    %v6876 = vld [vmem:[%s3 + $0x1fc] sm:$0xf]
    %v6877 = vld [vmem:[%s3 + $0x200] sm:$0xf]
    %v6878 = vld [vmem:[%s3 + $0x204] sm:$0xf]
    %v6879 = vld [vmem:[%s3 + $0x208] sm:$0xf]
    %v6880 = vld [vmem:[%s3 + $0x20c] sm:$0xf]
    %v6881 = vld [vmem:[%s3 + $0x210] sm:$0xf]
    %v6882 = vld [vmem:[%s3 + $0x214] sm:$0xf]
    %v6883 = vld [vmem:[%s3 + $0x218] sm:$0xf]
    %v6884 = vld [vmem:[%s3 + $0x21c] sm:$0xf]
    %v6885 = vld [vmem:[%s3 + $0x220] sm:$0xf]
    %v6886 = vld [vmem:[%s3 + $0x224] sm:$0xf]
    %v6887 = vld [vmem:[%s3 + $0x228] sm:$0xf]
    %v6888 = vld [vmem:[%s3 + $0x22c] sm:$0xf]
    %v6889 = vld [vmem:[%s3 + $0x230] sm:$0xf]
    %v6890 = vld [vmem:[%s3 + $0x234] sm:$0xf]
    %v6891 = vld [vmem:[%s3 + $0x238] sm:$0xf]
    %v6892 = vld [vmem:[%s3 + $0x23c] sm:$0xf]
    %v6941 = vunpack.c.l.b16 %v6845
    %v6942 = vunpack.c.l.b16 %v6846
    %v6943 = vunpack.c.l.b16 %v6847
    %v6944 = vunpack.c.l.b16 %v6848
    %v6945 = vunpack.c.l.b16 %v6849
    %v6946 = vunpack.c.l.b16 %v6850
    %v6947 = vunpack.c.l.b16 %v6851
    %v6948 = vunpack.c.l.b16 %v6852
    %v6949 = vunpack.c.l.b16 %v6853
    %v6950 = vunpack.c.l.b16 %v6854
    %v6951 = vunpack.c.l.b16 %v6855
    %v6952 = vunpack.c.l.b16 %v6856
    %v6953 = vunpack.c.l.b16 %v6857
    %v6954 = vunpack.c.l.b16 %v6858
    %v6955 = vunpack.c.l.b16 %v6859
    %v6956 = vunpack.c.l.b16 %v6860
    %v6957 = vunpack.c.l.b16 %v6861
    %v6958 = vunpack.c.l.b16 %v6862
    %v6959 = vunpack.c.l.b16 %v6863
    %v6960 = vunpack.c.l.b16 %v6864
    %v6961 = vunpack.c.l.b16 %v6865
    %v6962 = vunpack.c.l.b16 %v6866
    %v6963 = vunpack.c.l.b16 %v6867
    %v6964 = vunpack.c.l.b16 %v6868
    %v6965 = vunpack.c.l.b16 %v6869
    %v6966 = vunpack.c.l.b16 %v6870
    %v6967 = vunpack.c.l.b16 %v6871
    %v6968 = vunpack.c.l.b16 %v6872
    %v6969 = vunpack.c.l.b16 %v6873
    %v6970 = vunpack.c.l.b16 %v6874
    %v6971 = vunpack.c.l.b16 %v6875
    %v6972 = vunpack.c.l.b16 %v6876
    %v6973 = vunpack.c.l.b16 %v6877
    %v6974 = vunpack.c.l.b16 %v6878
    %v6975 = vunpack.c.l.b16 %v6879
    %v6976 = vunpack.c.l.b16 %v6880
    %v6977 = vunpack.c.l.b16 %v6881
    %v6978 = vunpack.c.l.b16 %v6882
    %v6979 = vunpack.c.l.b16 %v6883
    %v6980 = vunpack.c.l.b16 %v6884
    %v6981 = vunpack.c.l.b16 %v6885
    %v6982 = vunpack.c.l.b16 %v6886
    %v6983 = vunpack.c.l.b16 %v6887
    %v6984 = vunpack.c.l.b16 %v6888
    %v6985 = vunpack.c.l.b16 %v6889
    %v6986 = vunpack.c.l.b16 %v6890
    %v6987 = vunpack.c.l.b16 %v6891
    %v6988 = vunpack.c.l.b16 %v6892
    %v6989 = vpack.c.b16 %v6942, %v6941
    %v6990 = vpack.c.b16 %v6944, %v6943
    %v6991 = vpack.c.b16 %v6946, %v6945
    %v6992 = vpack.c.b16 %v6948, %v6947
    %v6993 = vpack.c.b16 %v6950, %v6949
    %v6994 = vpack.c.b16 %v6952, %v6951
    %v6995 = vpack.c.b16 %v6954, %v6953
    %v6996 = vpack.c.b16 %v6956, %v6955
    %v6997 = vpack.c.b16 %v6958, %v6957
    %v6998 = vpack.c.b16 %v6960, %v6959
    %v6999 = vpack.c.b16 %v6962, %v6961
    %v7000 = vpack.c.b16 %v6964, %v6963
    %v7001 = vpack.c.b16 %v6966, %v6965
    %v7002 = vpack.c.b16 %v6968, %v6967
    %v7003 = vpack.c.b16 %v6970, %v6969
    %v7004 = vpack.c.b16 %v6972, %v6971
    %v7005 = vpack.c.b16 %v6974, %v6973
    %v7006 = vpack.c.b16 %v6976, %v6975
    %v7007 = vpack.c.b16 %v6978, %v6977
    %v7008 = vpack.c.b16 %v6980, %v6979
    %v7009 = vpack.c.b16 %v6982, %v6981
    %v7010 = vpack.c.b16 %v6984, %v6983
    %v7011 = vpack.c.b16 %v6986, %v6985
    %v7012 = vpack.c.b16 %v6988, %v6987
    %7037 = vmatpush.bf16.msra.mxu0 %v6996
    %7038 = vmatpush.bf16.msra.mxu0 %v6995
    %7039 = vmatpush.bf16.msra.mxu0 %v6994
    %7040 = vmatpush.bf16.msra.mxu0 %v6993
    %7041 = vmatpush.bf16.msra.mxu0 %v6992
    %7042 = vmatpush.bf16.msra.mxu0 %v6991
    %7043 = vmatpush.bf16.msra.mxu0 %v6990
    %7044 = vmatpush.bf16.msra.mxu0 %v6989
    %7045 = vmatmul.bf16.gmra.mxu0 %v6733
    %v7046 = vpop.f32.mrf.mxu0
    %v7047 = vadd.f32 0.0, %v7046
    %v7048 = vpop.f32.mrf.mxu0
    %v7049 = vadd.f32 0.0, %v7048
    %7050 = vmatmul.bf16.gmra.mxu0 %v6734
    %v7051 = vpop.f32.mrf.mxu0
    %v7052 = vadd.f32 0.0, %v7051
    %v7053 = vpop.f32.mrf.mxu0
    %v7054 = vadd.f32 0.0, %v7053
    %7055 = vmatmul.bf16.gmra.mxu0 %v6735
    %v7056 = vpop.f32.mrf.mxu0
    %v7057 = vadd.f32 0.0, %v7056
    %v7058 = vpop.f32.mrf.mxu0
    %v7059 = vadd.f32 0.0, %v7058
    %7060 = vmatmul.bf16.gmra.mxu0 %v6736
    %v7061 = vpop.f32.mrf.mxu0
    %v7062 = vadd.f32 0.0, %v7061
    %v7063 = vpop.f32.mrf.mxu0
    %v7064 = vadd.f32 0.0, %v7063
    %7065 = vmatmul.bf16.gmra.mxu0 %v6737
    %v7066 = vpop.f32.mrf.mxu0
    %v7067 = vadd.f32 0.0, %v7066
    %v7068 = vpop.f32.mrf.mxu0
    %v7069 = vadd.f32 0.0, %v7068
    %7070 = vmatmul.bf16.gmra.mxu0 %v6738
    %v7071 = vpop.f32.mrf.mxu0
    %v7072 = vadd.f32 0.0, %v7071
    %v7073 = vpop.f32.mrf.mxu0
    %v7074 = vadd.f32 0.0, %v7073
    %7075 = vmatmul.bf16.gmra.mxu0 %v6739
    %v7076 = vpop.f32.mrf.mxu0
    %v7077 = vadd.f32 0.0, %v7076
    %v7078 = vpop.f32.mrf.mxu0
    %v7079 = vadd.f32 0.0, %v7078
    %7080 = vmatmul.bf16.gmra.mxu0 %v6740
    %v7081 = vpop.f32.mrf.mxu0
    %v7082 = vadd.f32 0.0, %v7081
    %v7083 = vpop.f32.mrf.mxu0
    %v7084 = vadd.f32 0.0, %v7083
    %7085 = vdwg.mxu0
    %7086 = vmatpush.bf16.msra.mxu0 %v7004
    %7087 = vmatpush.bf16.msra.mxu0 %v7003
    %7088 = vmatpush.bf16.msra.mxu0 %v7002
    %7089 = vmatpush.bf16.msra.mxu0 %v7001
    %7090 = vmatpush.bf16.msra.mxu0 %v7000
    %7091 = vmatpush.bf16.msra.mxu0 %v6999
    %7092 = vmatpush.bf16.msra.mxu0 %v6998
    %7093 = vmatpush.bf16.msra.mxu0 %v6997
    %7094 = vmatmul.bf16.gmra.mxu0 %v6781
    %v7095 = vpop.f32.mrf.mxu0
    %v7096 = vadd.f32 %v7047, %v7095
    %v7097 = vpop.f32.mrf.mxu0
    %v7098 = vadd.f32 %v7049, %v7097
    %7099 = vmatmul.bf16.gmra.mxu0 %v6782
    %v7100 = vpop.f32.mrf.mxu0
    %v7101 = vadd.f32 %v7052, %v7100
    %v7102 = vpop.f32.mrf.mxu0
    %v7103 = vadd.f32 %v7054, %v7102
    %7104 = vmatmul.bf16.gmra.mxu0 %v6783
    %v7105 = vpop.f32.mrf.mxu0
    %v7106 = vadd.f32 %v7057, %v7105
    %v7107 = vpop.f32.mrf.mxu0
    %v7108 = vadd.f32 %v7059, %v7107
    %7109 = vmatmul.bf16.gmra.mxu0 %v6784
    %v7110 = vpop.f32.mrf.mxu0
    %v7111 = vadd.f32 %v7062, %v7110
    %v7112 = vpop.f32.mrf.mxu0
    %v7113 = vadd.f32 %v7064, %v7112
    %7114 = vmatmul.bf16.gmra.mxu0 %v6785
    %v7115 = vpop.f32.mrf.mxu0
    %v7116 = vadd.f32 %v7067, %v7115
    %v7117 = vpop.f32.mrf.mxu0
    %v7118 = vadd.f32 %v7069, %v7117
    %7119 = vmatmul.bf16.gmra.mxu0 %v6786
    %v7120 = vpop.f32.mrf.mxu0
    %v7121 = vadd.f32 %v7072, %v7120
    %v7122 = vpop.f32.mrf.mxu0
    %v7123 = vadd.f32 %v7074, %v7122
    %7124 = vmatmul.bf16.gmra.mxu0 %v6787
    %v7125 = vpop.f32.mrf.mxu0
    %v7126 = vadd.f32 %v7077, %v7125
    %v7127 = vpop.f32.mrf.mxu0
    %v7128 = vadd.f32 %v7079, %v7127
    %7129 = vmatmul.bf16.gmra.mxu0 %v6788
    %v7130 = vpop.f32.mrf.mxu0
    %v7131 = vadd.f32 %v7082, %v7130
    %v7132 = vpop.f32.mrf.mxu0
    %v7133 = vadd.f32 %v7084, %v7132
    %7134 = vdwg.mxu0
    %7135 = vmatpush.bf16.msra.mxu0 %v7012
    %7136 = vmatpush.bf16.msra.mxu0 %v7011
    %7137 = vmatpush.bf16.msra.mxu0 %v7010
    %7138 = vmatpush.bf16.msra.mxu0 %v7009
    %7139 = vmatpush.bf16.msra.mxu0 %v7008
    %7140 = vmatpush.bf16.msra.mxu0 %v7007
    %7141 = vmatpush.bf16.msra.mxu0 %v7006
    %7142 = vmatpush.bf16.msra.mxu0 %v7005
    %7143 = vmatmul.bf16.gmra.mxu0 %v6829
    %v7144 = vpop.f32.mrf.mxu0
    %v7145 = vadd.f32 %v7096, %v7144
    %v7146 = vpop.f32.mrf.mxu0
    %v7147 = vadd.f32 %v7098, %v7146
    %7148 = vmatmul.bf16.gmra.mxu0 %v6830
    %v7149 = vpop.f32.mrf.mxu0
    %v7150 = vadd.f32 %v7101, %v7149
    %v7151 = vpop.f32.mrf.mxu0
    %v7152 = vadd.f32 %v7103, %v7151
    %7153 = vmatmul.bf16.gmra.mxu0 %v6831
    %v7154 = vpop.f32.mrf.mxu0
    %v7155 = vadd.f32 %v7106, %v7154
    %v7156 = vpop.f32.mrf.mxu0
    %v7157 = vadd.f32 %v7108, %v7156
    %7158 = vmatmul.bf16.gmra.mxu0 %v6832
    %v7159 = vpop.f32.mrf.mxu0
    %v7160 = vadd.f32 %v7111, %v7159
    %v7161 = vpop.f32.mrf.mxu0
    %v7162 = vadd.f32 %v7113, %v7161
    %7163 = vmatmul.bf16.gmra.mxu0 %v6833
    %v7164 = vpop.f32.mrf.mxu0
    %v7165 = vadd.f32 %v7116, %v7164
    %v7166 = vpop.f32.mrf.mxu0
    %v7167 = vadd.f32 %v7118, %v7166
    %7168 = vmatmul.bf16.gmra.mxu0 %v6834
    %v7169 = vpop.f32.mrf.mxu0
    %v7170 = vadd.f32 %v7121, %v7169
    %v7171 = vpop.f32.mrf.mxu0
    %v7172 = vadd.f32 %v7123, %v7171
    %7173 = vmatmul.bf16.gmra.mxu0 %v6835
    %v7174 = vpop.f32.mrf.mxu0
    %v7175 = vadd.f32 %v7126, %v7174
    %v7176 = vpop.f32.mrf.mxu0
    %v7177 = vadd.f32 %v7128, %v7176
    %7178 = vmatmul.bf16.gmra.mxu0 %v6836
    %v7179 = vpop.f32.mrf.mxu0
    %v7180 = vadd.f32 %v7131, %v7179
    %v7181 = vpop.f32.mrf.mxu0
    %v7182 = vadd.f32 %v7133, %v7181
    %7183 = vdwg.mxu0
    %v7184 = vadd.f32 %v6566, %v7145
    %v7185 = vadd.f32 %v6568, %v7147
    %v7186 = vadd.f32 %v6571, %v7150
    %v7187 = vadd.f32 %v6573, %v7152
    %v7188 = vadd.f32 %v6576, %v7155
    %v7189 = vadd.f32 %v6578, %v7157
    %v7190 = vadd.f32 %v6581, %v7160
    %v7191 = vadd.f32 %v6583, %v7162
    %v7192 = vadd.f32 %v6586, %v7165
    %v7193 = vadd.f32 %v6588, %v7167
    %v7194 = vadd.f32 %v6591, %v7170
    %v7195 = vadd.f32 %v6593, %v7172
    %v7196 = vadd.f32 %v6596, %v7175
    %v7197 = vadd.f32 %v6598, %v7177
    %v7198 = vadd.f32 %v6601, %v7180
    %v7199 = vadd.f32 %v6603, %v7182
    %v7200 = vld [vmem:[%s5 + $0x4] sm:$0x1]
    %v7201 = vperm.slane %v7200, 0
    %v7202 = vmul.f32 %v7184, %v7201
    %v7203 = vmul.f32 %v7185, %v7201
    %v7204 = vmul.f32 %v7186, %v7201
    %v7205 = vmul.f32 %v7187, %v7201
    %v7206 = vmul.f32 %v7188, %v7201
    %v7207 = vmul.f32 %v7189, %v7201
    %v7208 = vmul.f32 %v7190, %v7201
    %v7209 = vmul.f32 %v7191, %v7201
    %v7210 = vmul.f32 %v7192, %v7201
    %v7211 = vmul.f32 %v7193, %v7201
    %v7212 = vmul.f32 %v7194, %v7201
    %v7213 = vmul.f32 %v7195, %v7201
    %v7214 = vmul.f32 %v7196, %v7201
    %v7215 = vmul.f32 %v7197, %v7201
    %v7216 = vmul.f32 %v7198, %v7201
    %v7217 = vmul.f32 %v7199, %v7201
    %v7218 = vld [vmem:[%s5 + $0x5] sm:$0x1]
    %v7219 = vperm.slane %v7218, 0
    %v7220 = vadd.f32 %v7202, %v7219
    %v7221 = vadd.f32 %v7203, %v7219
    %v7222 = vadd.f32 %v7204, %v7219
    %v7223 = vadd.f32 %v7205, %v7219
    %v7224 = vadd.f32 %v7206, %v7219
    %v7225 = vadd.f32 %v7207, %v7219
    %v7226 = vadd.f32 %v7208, %v7219
    %v7227 = vadd.f32 %v7209, %v7219
    %v7228 = vadd.f32 %v7210, %v7219
    %v7229 = vadd.f32 %v7211, %v7219
    %v7230 = vadd.f32 %v7212, %v7219
    %v7231 = vadd.f32 %v7213, %v7219
    %v7232 = vadd.f32 %v7214, %v7219
    %v7233 = vadd.f32 %v7215, %v7219
    %v7234 = vadd.f32 %v7216, %v7219
    %v7235 = vadd.f32 %v7217, %v7219
    %vm7236 = vcmp.ge.f32.partialorder %v7220, 0.0
    %vm7237 = vcmp.ge.f32.partialorder %v7221, 0.0
    %vm7238 = vcmp.ge.f32.partialorder %v7222, 0.0
    %vm7239 = vcmp.ge.f32.partialorder %v7223, 0.0
    %vm7240 = vcmp.ge.f32.partialorder %v7224, 0.0
    %vm7241 = vcmp.ge.f32.partialorder %v7225, 0.0
    %vm7242 = vcmp.ge.f32.partialorder %v7226, 0.0
    %vm7243 = vcmp.ge.f32.partialorder %v7227, 0.0
    %vm7244 = vcmp.ge.f32.partialorder %v7228, 0.0
    %vm7245 = vcmp.ge.f32.partialorder %v7229, 0.0
    %vm7246 = vcmp.ge.f32.partialorder %v7230, 0.0
    %vm7247 = vcmp.ge.f32.partialorder %v7231, 0.0
    %vm7248 = vcmp.ge.f32.partialorder %v7232, 0.0
    %vm7249 = vcmp.ge.f32.partialorder %v7233, 0.0
    %vm7250 = vcmp.ge.f32.partialorder %v7234, 0.0
    %vm7251 = vcmp.ge.f32.partialorder %v7235, 0.0
    %v7252 = vmul.f32 %v7220, 0.01
    %v7253 = vmul.f32 %v7221, 0.01
    %v7254 = vmul.f32 %v7222, 0.01
    %v7255 = vmul.f32 %v7223, 0.01
    %v7256 = vmul.f32 %v7224, 0.01
    %v7257 = vmul.f32 %v7225, 0.01
    %v7258 = vmul.f32 %v7226, 0.01
    %v7259 = vmul.f32 %v7227, 0.01
    %v7260 = vmul.f32 %v7228, 0.01
    %v7261 = vmul.f32 %v7229, 0.01
    %v7262 = vmul.f32 %v7230, 0.01
    %v7263 = vmul.f32 %v7231, 0.01
    %v7264 = vmul.f32 %v7232, 0.01
    %v7265 = vmul.f32 %v7233, 0.01
    %v7266 = vmul.f32 %v7234, 0.01
    %v7267 = vmul.f32 %v7235, 0.01
    %v7268 = vsel %vm7236, %v7220, %v7252
    %v7269 = vsel %vm7237, %v7221, %v7253
    %v7270 = vsel %vm7238, %v7222, %v7254
    %v7271 = vsel %vm7239, %v7223, %v7255
    %v7272 = vsel %vm7240, %v7224, %v7256
    %v7273 = vsel %vm7241, %v7225, %v7257
    %v7274 = vsel %vm7242, %v7226, %v7258
    %v7275 = vsel %vm7243, %v7227, %v7259
    %v7276 = vsel %vm7244, %v7228, %v7260
    %v7277 = vsel %vm7245, %v7229, %v7261
    %v7278 = vsel %vm7246, %v7230, %v7262
    %v7279 = vsel %vm7247, %v7231, %v7263
    %v7280 = vsel %vm7248, %v7232, %v7264
    %v7281 = vsel %vm7249, %v7233, %v7265
    %v7282 = vsel %vm7250, %v7234, %v7266
    %v7283 = vsel %vm7251, %v7235, %v7267
    %7284 = vst [vmem:[%s454 + $0x2] sm:$0xff] %v7268
    %7285 = vst [vmem:[%s454 + $0x12] sm:$0xff] %v7269
    %7286 = vst [vmem:[%s454 + $0x22] sm:$0xff] %v7270
    %7287 = vst [vmem:[%s454 + $0x32] sm:$0xff] %v7271
    %7288 = vst [vmem:[%s454 + $0x42] sm:$0xff] %v7272
    %7289 = vst [vmem:[%s454 + $0x52] sm:$0xff] %v7273
    %7290 = vst [vmem:[%s454 + $0x62] sm:$0xff] %v7274
    %7291 = vst [vmem:[%s454 + $0x72] sm:$0xff] %v7275
    %7292 = vst [vmem:[%s454 + $0xc2] sm:$0xff] %v7276
    %7293 = vst [vmem:[%s454 + $0xd2] sm:$0xff] %v7277
    %7294 = vst [vmem:[%s454 + $0xe2] sm:$0xff] %v7278
    %7295 = vst [vmem:[%s454 + $0xf2] sm:$0xff] %v7279
    %7296 = vst [vmem:[%s454 + $0x102] sm:$0xff] %v7280
    %7297 = vst [vmem:[%s454 + $0x112] sm:$0xff] %v7281
    %7298 = vst [vmem:[%s454 + $0x122] sm:$0xff] %v7282
    %7299 = vst [vmem:[%s454 + $0x132] sm:$0xff] %v7283
    %v7300 = vld [vmem:[#allocation2] sm:$0xff]
    %v7301 = vld [vmem:[#allocation2 + $0x10] sm:$0xff]
    %v7302 = vld [vmem:[#allocation2 + $0x20] sm:$0xff]
    %v7303 = vld [vmem:[#allocation2 + $0x30] sm:$0xff]
    %v7304 = vld [vmem:[#allocation2 + $0x40] sm:$0xff]
    %v7305 = vld [vmem:[#allocation2 + $0x50] sm:$0xff]
    %v7306 = vld [vmem:[#allocation2 + $0x60] sm:$0xff]
    %v7307 = vld [vmem:[#allocation2 + $0x70] sm:$0xff]
    %v7308 = vld [vmem:[#allocation2 + $0xc0] sm:$0xff]
    %v7309 = vld [vmem:[#allocation2 + $0xd0] sm:$0xff]
    %v7310 = vld [vmem:[#allocation2 + $0xe0] sm:$0xff]
    %v7311 = vld [vmem:[#allocation2 + $0xf0] sm:$0xff]
    %v7312 = vld [vmem:[#allocation2 + $0x100] sm:$0xff]
    %v7313 = vld [vmem:[#allocation2 + $0x110] sm:$0xff]
    %v7314 = vld [vmem:[#allocation2 + $0x120] sm:$0xff]
    %v7315 = vld [vmem:[#allocation2 + $0x130] sm:$0xff]
    %v7316 = vld [vmem:[%s4] sm:$0x1]
    %v7317 = vperm.slane %v7316, 0
    %v7318 = vmul.f32 %v7300, %v7317
    %v7319 = vmul.f32 %v7301, %v7317
    %v7320 = vmul.f32 %v7302, %v7317
    %v7321 = vmul.f32 %v7303, %v7317
    %v7322 = vmul.f32 %v7304, %v7317
    %v7323 = vmul.f32 %v7305, %v7317
    %v7324 = vmul.f32 %v7306, %v7317
    %v7325 = vmul.f32 %v7307, %v7317
    %v7326 = vmul.f32 %v7308, %v7317
    %v7327 = vmul.f32 %v7309, %v7317
    %v7328 = vmul.f32 %v7310, %v7317
    %v7329 = vmul.f32 %v7311, %v7317
    %v7330 = vmul.f32 %v7312, %v7317
    %v7331 = vmul.f32 %v7313, %v7317
    %v7332 = vmul.f32 %v7314, %v7317
    %v7333 = vmul.f32 %v7315, %v7317
    %7334 = vadd.xlane.f32.xlu0 %v7318
    %v7335 = vpop.xlane.xlu0 %7334
    %7336 = vadd.xlane.f32.xlu0 %v7319
    %v7337 = vpop.xlane.xlu0 %7336
    %7338 = vadd.xlane.f32.xlu0 %v7320
    %v7339 = vpop.xlane.xlu0 %7338
    %7340 = vadd.xlane.f32.xlu0 %v7321
    %v7341 = vpop.xlane.xlu0 %7340
    %7342 = vadd.xlane.f32.xlu0 %v7322
    %v7343 = vpop.xlane.xlu0 %7342
    %7344 = vadd.xlane.f32.xlu0 %v7323
    %v7345 = vpop.xlane.xlu0 %7344
    %7346 = vadd.xlane.f32.xlu0 %v7324
    %v7347 = vpop.xlane.xlu0 %7346
    %7348 = vadd.xlane.f32.xlu0 %v7325
    %v7349 = vpop.xlane.xlu0 %7348
    %7350 = vadd.xlane.f32.xlu0 %v7326
    %v7351 = vpop.xlane.xlu0 %7350
    %7352 = vadd.xlane.f32.xlu0 %v7327
    %v7353 = vpop.xlane.xlu0 %7352
    %7354 = vadd.xlane.f32.xlu0 %v7328
    %v7355 = vpop.xlane.xlu0 %7354
    %7356 = vadd.xlane.f32.xlu0 %v7329
    %v7357 = vpop.xlane.xlu0 %7356
    %7358 = vadd.xlane.f32.xlu0 %v7330
    %v7359 = vpop.xlane.xlu0 %7358
    %7360 = vadd.xlane.f32.xlu0 %v7331
    %v7361 = vpop.xlane.xlu0 %7360
    %7362 = vadd.xlane.f32.xlu0 %v7332
    %v7363 = vpop.xlane.xlu0 %7362
    %7364 = vadd.xlane.f32.xlu0 %v7333
    %v7365 = vpop.xlane.xlu0 %7364
    %v7366 = vadd.f32 %v7335, 0.0
    %v7367 = vadd.f32 %v7337, 0.0
    %v7368 = vadd.f32 %v7339, 0.0
    %v7369 = vadd.f32 %v7341, 0.0
    %v7370 = vadd.f32 %v7343, 0.0
    %v7371 = vadd.f32 %v7345, 0.0
    %v7372 = vadd.f32 %v7347, 0.0
    %v7373 = vadd.f32 %v7349, 0.0
    %v7374 = vadd.f32 %v7351, 0.0
    %v7375 = vadd.f32 %v7353, 0.0
    %v7376 = vadd.f32 %v7355, 0.0
    %v7377 = vadd.f32 %v7357, 0.0
    %v7378 = vadd.f32 %v7359, 0.0
    %v7379 = vadd.f32 %v7361, 0.0
    %v7380 = vadd.f32 %v7363, 0.0
    %v7381 = vadd.f32 %v7365, 0.0
    %v7382 = vld [vmem:[#allocation2 + $0x2] sm:$0xff]
    %v7383 = vld [vmem:[#allocation2 + $0x12] sm:$0xff]
    %v7384 = vld [vmem:[#allocation2 + $0x22] sm:$0xff]
    %v7385 = vld [vmem:[#allocation2 + $0x32] sm:$0xff]
    %v7386 = vld [vmem:[#allocation2 + $0x42] sm:$0xff]
    %v7387 = vld [vmem:[#allocation2 + $0x52] sm:$0xff]
    %v7388 = vld [vmem:[#allocation2 + $0x62] sm:$0xff]
    %v7389 = vld [vmem:[#allocation2 + $0x72] sm:$0xff]
    %v7390 = vld [vmem:[#allocation2 + $0xc2] sm:$0xff]
    %v7391 = vld [vmem:[#allocation2 + $0xd2] sm:$0xff]
    %v7392 = vld [vmem:[#allocation2 + $0xe2] sm:$0xff]
    %v7393 = vld [vmem:[#allocation2 + $0xf2] sm:$0xff]
    %v7394 = vld [vmem:[#allocation2 + $0x102] sm:$0xff]
    %v7395 = vld [vmem:[#allocation2 + $0x112] sm:$0xff]
    %v7396 = vld [vmem:[#allocation2 + $0x122] sm:$0xff]
    %v7397 = vld [vmem:[#allocation2 + $0x132] sm:$0xff]
    %v7398 = vld [vmem:[%s4 + $0x1] sm:$0x1]
    %v7399 = vperm.slane %v7398, 0
    %v7400 = vmul.f32 %v7382, %v7399
    %v7401 = vmul.f32 %v7383, %v7399
    %v7402 = vmul.f32 %v7384, %v7399
    %v7403 = vmul.f32 %v7385, %v7399
    %v7404 = vmul.f32 %v7386, %v7399
    %v7405 = vmul.f32 %v7387, %v7399
    %v7406 = vmul.f32 %v7388, %v7399
    %v7407 = vmul.f32 %v7389, %v7399
    %v7408 = vmul.f32 %v7390, %v7399
    %v7409 = vmul.f32 %v7391, %v7399
    %v7410 = vmul.f32 %v7392, %v7399
    %v7411 = vmul.f32 %v7393, %v7399
    %v7412 = vmul.f32 %v7394, %v7399
    %v7413 = vmul.f32 %v7395, %v7399
    %v7414 = vmul.f32 %v7396, %v7399
    %v7415 = vmul.f32 %v7397, %v7399
    %7416 = vadd.xlane.f32.xlu0 %v7400
    %v7417 = vpop.xlane.xlu0 %7416
    %7418 = vadd.xlane.f32.xlu0 %v7401
    %v7419 = vpop.xlane.xlu0 %7418
    %7420 = vadd.xlane.f32.xlu0 %v7402
    %v7421 = vpop.xlane.xlu0 %7420
    %7422 = vadd.xlane.f32.xlu0 %v7403
    %v7423 = vpop.xlane.xlu0 %7422
    %7424 = vadd.xlane.f32.xlu0 %v7404
    %v7425 = vpop.xlane.xlu0 %7424
    %7426 = vadd.xlane.f32.xlu0 %v7405
    %v7427 = vpop.xlane.xlu0 %7426
    %7428 = vadd.xlane.f32.xlu0 %v7406
    %v7429 = vpop.xlane.xlu0 %7428
    %7430 = vadd.xlane.f32.xlu0 %v7407
    %v7431 = vpop.xlane.xlu0 %7430
    %7432 = vadd.xlane.f32.xlu0 %v7408
    %v7433 = vpop.xlane.xlu0 %7432
    %7434 = vadd.xlane.f32.xlu0 %v7409
    %v7435 = vpop.xlane.xlu0 %7434
    %7436 = vadd.xlane.f32.xlu0 %v7410
    %v7437 = vpop.xlane.xlu0 %7436
    %7438 = vadd.xlane.f32.xlu0 %v7411
    %v7439 = vpop.xlane.xlu0 %7438
    %7440 = vadd.xlane.f32.xlu0 %v7412
    %v7441 = vpop.xlane.xlu0 %7440
    %7442 = vadd.xlane.f32.xlu0 %v7413
    %v7443 = vpop.xlane.xlu0 %7442
    %7444 = vadd.xlane.f32.xlu0 %v7414
    %v7445 = vpop.xlane.xlu0 %7444
    %7446 = vadd.xlane.f32.xlu0 %v7415
    %v7447 = vpop.xlane.xlu0 %7446
    %v7448 = vadd.f32 %v7366, %v7417
    %v7449 = vadd.f32 %v7367, %v7419
    %v7450 = vadd.f32 %v7368, %v7421
    %v7451 = vadd.f32 %v7369, %v7423
    %v7452 = vadd.f32 %v7370, %v7425
    %v7453 = vadd.f32 %v7371, %v7427
    %v7454 = vadd.f32 %v7372, %v7429
    %v7455 = vadd.f32 %v7373, %v7431
    %v7456 = vadd.f32 %v7374, %v7433
    %v7457 = vadd.f32 %v7375, %v7435
    %v7458 = vadd.f32 %v7376, %v7437
    %v7459 = vadd.f32 %v7377, %v7439
    %v7460 = vadd.f32 %v7378, %v7441
    %v7461 = vadd.f32 %v7379, %v7443
    %v7462 = vadd.f32 %v7380, %v7445
    %v7463 = vadd.f32 %v7381, %v7447
    %v7464 = vld [vmem:[#allocation2 + $0x4] sm:$0xff]
    %v7465 = vld [vmem:[#allocation2 + $0x14] sm:$0xff]
    %v7466 = vld [vmem:[#allocation2 + $0x24] sm:$0xff]
    %v7467 = vld [vmem:[#allocation2 + $0x34] sm:$0xff]
    %v7468 = vld [vmem:[#allocation2 + $0x44] sm:$0xff]
    %v7469 = vld [vmem:[#allocation2 + $0x54] sm:$0xff]
    %v7470 = vld [vmem:[#allocation2 + $0x64] sm:$0xff]
    %v7471 = vld [vmem:[#allocation2 + $0x74] sm:$0xff]
    %v7472 = vld [vmem:[#allocation2 + $0xc4] sm:$0xff]
    %v7473 = vld [vmem:[#allocation2 + $0xd4] sm:$0xff]
    %v7474 = vld [vmem:[#allocation2 + $0xe4] sm:$0xff]
    %v7475 = vld [vmem:[#allocation2 + $0xf4] sm:$0xff]
    %v7476 = vld [vmem:[#allocation2 + $0x104] sm:$0xff]
    %v7477 = vld [vmem:[#allocation2 + $0x114] sm:$0xff]
    %v7478 = vld [vmem:[#allocation2 + $0x124] sm:$0xff]
    %v7479 = vld [vmem:[#allocation2 + $0x134] sm:$0xff]
    %v7480 = vld [vmem:[%s4 + $0x2] sm:$0x1]
    %v7481 = vperm.slane %v7480, 0
    %v7482 = vmul.f32 %v7464, %v7481
    %v7483 = vmul.f32 %v7465, %v7481
    %v7484 = vmul.f32 %v7466, %v7481
    %v7485 = vmul.f32 %v7467, %v7481
    %v7486 = vmul.f32 %v7468, %v7481
    %v7487 = vmul.f32 %v7469, %v7481
    %v7488 = vmul.f32 %v7470, %v7481
    %v7489 = vmul.f32 %v7471, %v7481
    %v7490 = vmul.f32 %v7472, %v7481
    %v7491 = vmul.f32 %v7473, %v7481
    %v7492 = vmul.f32 %v7474, %v7481
    %v7493 = vmul.f32 %v7475, %v7481
    %v7494 = vmul.f32 %v7476, %v7481
    %v7495 = vmul.f32 %v7477, %v7481
    %v7496 = vmul.f32 %v7478, %v7481
    %v7497 = vmul.f32 %v7479, %v7481
    %7498 = vadd.xlane.f32.xlu0 %v7482
    %v7499 = vpop.xlane.xlu0 %7498
    %7500 = vadd.xlane.f32.xlu0 %v7483
    %v7501 = vpop.xlane.xlu0 %7500
    %7502 = vadd.xlane.f32.xlu0 %v7484
    %v7503 = vpop.xlane.xlu0 %7502
    %7504 = vadd.xlane.f32.xlu0 %v7485
    %v7505 = vpop.xlane.xlu0 %7504
    %7506 = vadd.xlane.f32.xlu0 %v7486
    %v7507 = vpop.xlane.xlu0 %7506
    %7508 = vadd.xlane.f32.xlu0 %v7487
    %v7509 = vpop.xlane.xlu0 %7508
    %7510 = vadd.xlane.f32.xlu0 %v7488
    %v7511 = vpop.xlane.xlu0 %7510
    %7512 = vadd.xlane.f32.xlu0 %v7489
    %v7513 = vpop.xlane.xlu0 %7512
    %7514 = vadd.xlane.f32.xlu0 %v7490
    %v7515 = vpop.xlane.xlu0 %7514
    %7516 = vadd.xlane.f32.xlu0 %v7491
    %v7517 = vpop.xlane.xlu0 %7516
    %7518 = vadd.xlane.f32.xlu0 %v7492
    %v7519 = vpop.xlane.xlu0 %7518
    %7520 = vadd.xlane.f32.xlu0 %v7493
    %v7521 = vpop.xlane.xlu0 %7520
    %7522 = vadd.xlane.f32.xlu0 %v7494
    %v7523 = vpop.xlane.xlu0 %7522
    %7524 = vadd.xlane.f32.xlu0 %v7495
    %v7525 = vpop.xlane.xlu0 %7524
    %7526 = vadd.xlane.f32.xlu0 %v7496
    %v7527 = vpop.xlane.xlu0 %7526
    %7528 = vadd.xlane.f32.xlu0 %v7497
    %v7529 = vpop.xlane.xlu0 %7528
    %v7530 = vadd.f32 %v7448, %v7499
    %v7531 = vadd.f32 %v7449, %v7501
    %v7532 = vadd.f32 %v7450, %v7503
    %v7533 = vadd.f32 %v7451, %v7505
    %v7534 = vadd.f32 %v7452, %v7507
    %v7535 = vadd.f32 %v7453, %v7509
    %v7536 = vadd.f32 %v7454, %v7511
    %v7537 = vadd.f32 %v7455, %v7513
    %v7538 = vadd.f32 %v7456, %v7515
    %v7539 = vadd.f32 %v7457, %v7517
    %v7540 = vadd.f32 %v7458, %v7519
    %v7541 = vadd.f32 %v7459, %v7521
    %v7542 = vadd.f32 %v7460, %v7523
    %v7543 = vadd.f32 %v7461, %v7525
    %v7544 = vadd.f32 %v7462, %v7527
    %v7545 = vadd.f32 %v7463, %v7529
    %v7546 = vld [vmem:[%s454] sm:$0xff]
    %v7547 = vld [vmem:[%s454 + $0x10] sm:$0xff]
    %v7548 = vld [vmem:[%s454 + $0x20] sm:$0xff]
    %v7549 = vld [vmem:[%s454 + $0x30] sm:$0xff]
    %v7550 = vld [vmem:[%s454 + $0x40] sm:$0xff]
    %v7551 = vld [vmem:[%s454 + $0x50] sm:$0xff]
    %v7552 = vld [vmem:[%s454 + $0x60] sm:$0xff]
    %v7553 = vld [vmem:[%s454 + $0x70] sm:$0xff]
    %v7554 = vld [vmem:[%s454 + $0xc0] sm:$0xff]
    %v7555 = vld [vmem:[%s454 + $0xd0] sm:$0xff]
    %v7556 = vld [vmem:[%s454 + $0xe0] sm:$0xff]
    %v7557 = vld [vmem:[%s454 + $0xf0] sm:$0xff]
    %v7558 = vld [vmem:[%s454 + $0x100] sm:$0xff]
    %v7559 = vld [vmem:[%s454 + $0x110] sm:$0xff]
    %v7560 = vld [vmem:[%s454 + $0x120] sm:$0xff]
    %v7561 = vld [vmem:[%s454 + $0x130] sm:$0xff]
    %v7562 = vld [vmem:[%s4 + $0x3] sm:$0x1]
    %v7563 = vperm.slane %v7562, 0
    %v7564 = vmul.f32 %v7546, %v7563
    %v7565 = vmul.f32 %v7547, %v7563
    %v7566 = vmul.f32 %v7548, %v7563
    %v7567 = vmul.f32 %v7549, %v7563
    %v7568 = vmul.f32 %v7550, %v7563
    %v7569 = vmul.f32 %v7551, %v7563
    %v7570 = vmul.f32 %v7552, %v7563
    %v7571 = vmul.f32 %v7553, %v7563
    %v7572 = vmul.f32 %v7554, %v7563
    %v7573 = vmul.f32 %v7555, %v7563
    %v7574 = vmul.f32 %v7556, %v7563
    %v7575 = vmul.f32 %v7557, %v7563
    %v7576 = vmul.f32 %v7558, %v7563
    %v7577 = vmul.f32 %v7559, %v7563
    %v7578 = vmul.f32 %v7560, %v7563
    %v7579 = vmul.f32 %v7561, %v7563
    %7580 = vadd.xlane.f32.xlu0 %v7564
    %v7581 = vpop.xlane.xlu0 %7580
    %7582 = vadd.xlane.f32.xlu0 %v7565
    %v7583 = vpop.xlane.xlu0 %7582
    %7584 = vadd.xlane.f32.xlu0 %v7566
    %v7585 = vpop.xlane.xlu0 %7584
    %7586 = vadd.xlane.f32.xlu0 %v7567
    %v7587 = vpop.xlane.xlu0 %7586
    %7588 = vadd.xlane.f32.xlu0 %v7568
    %v7589 = vpop.xlane.xlu0 %7588
    %7590 = vadd.xlane.f32.xlu0 %v7569
    %v7591 = vpop.xlane.xlu0 %7590
    %7592 = vadd.xlane.f32.xlu0 %v7570
    %v7593 = vpop.xlane.xlu0 %7592
    %7594 = vadd.xlane.f32.xlu0 %v7571
    %v7595 = vpop.xlane.xlu0 %7594
    %7596 = vadd.xlane.f32.xlu0 %v7572
    %v7597 = vpop.xlane.xlu0 %7596
    %7598 = vadd.xlane.f32.xlu0 %v7573
    %v7599 = vpop.xlane.xlu0 %7598
    %7600 = vadd.xlane.f32.xlu0 %v7574
    %v7601 = vpop.xlane.xlu0 %7600
    %7602 = vadd.xlane.f32.xlu0 %v7575
    %v7603 = vpop.xlane.xlu0 %7602
    %7604 = vadd.xlane.f32.xlu0 %v7576
    %v7605 = vpop.xlane.xlu0 %7604
    %7606 = vadd.xlane.f32.xlu0 %v7577
    %v7607 = vpop.xlane.xlu0 %7606
    %7608 = vadd.xlane.f32.xlu0 %v7578
    %v7609 = vpop.xlane.xlu0 %7608
    %7610 = vadd.xlane.f32.xlu0 %v7579
    %v7611 = vpop.xlane.xlu0 %7610
    %v7612 = vadd.f32 %v7530, %v7581
    %v7613 = vadd.f32 %v7531, %v7583
    %v7614 = vadd.f32 %v7532, %v7585
    %v7615 = vadd.f32 %v7533, %v7587
    %v7616 = vadd.f32 %v7534, %v7589
    %v7617 = vadd.f32 %v7535, %v7591
    %v7618 = vadd.f32 %v7536, %v7593
    %v7619 = vadd.f32 %v7537, %v7595
    %v7620 = vadd.f32 %v7538, %v7597
    %v7621 = vadd.f32 %v7539, %v7599
    %v7622 = vadd.f32 %v7540, %v7601
    %v7623 = vadd.f32 %v7541, %v7603
    %v7624 = vadd.f32 %v7542, %v7605
    %v7625 = vadd.f32 %v7543, %v7607
    %v7626 = vadd.f32 %v7544, %v7609
    %v7627 = vadd.f32 %v7545, %v7611
    %v7628 = vld [vmem:[%s454 + $0x2] sm:$0xff]
    %v7629 = vld [vmem:[%s454 + $0x12] sm:$0xff]
    %v7630 = vld [vmem:[%s454 + $0x22] sm:$0xff]
    %v7631 = vld [vmem:[%s454 + $0x32] sm:$0xff]
    %v7632 = vld [vmem:[%s454 + $0x42] sm:$0xff]
    %v7633 = vld [vmem:[%s454 + $0x52] sm:$0xff]
    %v7634 = vld [vmem:[%s454 + $0x62] sm:$0xff]
    %v7635 = vld [vmem:[%s454 + $0x72] sm:$0xff]
    %v7636 = vld [vmem:[%s454 + $0xc2] sm:$0xff]
    %v7637 = vld [vmem:[%s454 + $0xd2] sm:$0xff]
    %v7638 = vld [vmem:[%s454 + $0xe2] sm:$0xff]
    %v7639 = vld [vmem:[%s454 + $0xf2] sm:$0xff]
    %v7640 = vld [vmem:[%s454 + $0x102] sm:$0xff]
    %v7641 = vld [vmem:[%s454 + $0x112] sm:$0xff]
    %v7642 = vld [vmem:[%s454 + $0x122] sm:$0xff]
    %v7643 = vld [vmem:[%s454 + $0x132] sm:$0xff]
    %v7644 = vld [vmem:[%s4 + $0x4] sm:$0x1]
    %v7645 = vperm.slane %v7644, 0
    %v7646 = vmul.f32 %v7628, %v7645
    %v7647 = vmul.f32 %v7629, %v7645
    %v7648 = vmul.f32 %v7630, %v7645
    %v7649 = vmul.f32 %v7631, %v7645
    %v7650 = vmul.f32 %v7632, %v7645
    %v7651 = vmul.f32 %v7633, %v7645
    %v7652 = vmul.f32 %v7634, %v7645
    %v7653 = vmul.f32 %v7635, %v7645
    %v7654 = vmul.f32 %v7636, %v7645
    %v7655 = vmul.f32 %v7637, %v7645
    %v7656 = vmul.f32 %v7638, %v7645
    %v7657 = vmul.f32 %v7639, %v7645
    %v7658 = vmul.f32 %v7640, %v7645
    %v7659 = vmul.f32 %v7641, %v7645
    %v7660 = vmul.f32 %v7642, %v7645
    %v7661 = vmul.f32 %v7643, %v7645
    %7662 = vadd.xlane.f32.xlu0 %v7646
    %v7663 = vpop.xlane.xlu0 %7662
    %7664 = vadd.xlane.f32.xlu0 %v7647
    %v7665 = vpop.xlane.xlu0 %7664
    %7666 = vadd.xlane.f32.xlu0 %v7648
    %v7667 = vpop.xlane.xlu0 %7666
    %7668 = vadd.xlane.f32.xlu0 %v7649
    %v7669 = vpop.xlane.xlu0 %7668
    %7670 = vadd.xlane.f32.xlu0 %v7650
    %v7671 = vpop.xlane.xlu0 %7670
    %7672 = vadd.xlane.f32.xlu0 %v7651
    %v7673 = vpop.xlane.xlu0 %7672
    %7674 = vadd.xlane.f32.xlu0 %v7652
    %v7675 = vpop.xlane.xlu0 %7674
    %7676 = vadd.xlane.f32.xlu0 %v7653
    %v7677 = vpop.xlane.xlu0 %7676
    %7678 = vadd.xlane.f32.xlu0 %v7654
    %v7679 = vpop.xlane.xlu0 %7678
    %7680 = vadd.xlane.f32.xlu0 %v7655
    %v7681 = vpop.xlane.xlu0 %7680
    %7682 = vadd.xlane.f32.xlu0 %v7656
    %v7683 = vpop.xlane.xlu0 %7682
    %7684 = vadd.xlane.f32.xlu0 %v7657
    %v7685 = vpop.xlane.xlu0 %7684
    %7686 = vadd.xlane.f32.xlu0 %v7658
    %v7687 = vpop.xlane.xlu0 %7686
    %7688 = vadd.xlane.f32.xlu0 %v7659
    %v7689 = vpop.xlane.xlu0 %7688
    %7690 = vadd.xlane.f32.xlu0 %v7660
    %v7691 = vpop.xlane.xlu0 %7690
    %7692 = vadd.xlane.f32.xlu0 %v7661
    %v7693 = vpop.xlane.xlu0 %7692
    %v7694 = vadd.f32 %v7612, %v7663
    %v7695 = vadd.f32 %v7613, %v7665
    %v7696 = vadd.f32 %v7614, %v7667
    %v7697 = vadd.f32 %v7615, %v7669
    %v7698 = vadd.f32 %v7616, %v7671
    %v7699 = vadd.f32 %v7617, %v7673
    %v7700 = vadd.f32 %v7618, %v7675
    %v7701 = vadd.f32 %v7619, %v7677
    %v7702 = vadd.f32 %v7620, %v7679
    %v7703 = vadd.f32 %v7621, %v7681
    %v7704 = vadd.f32 %v7622, %v7683
    %v7705 = vadd.f32 %v7623, %v7685
    %v7706 = vadd.f32 %v7624, %v7687
    %v7707 = vadd.f32 %v7625, %v7689
    %v7708 = vadd.f32 %v7626, %v7691
    %v7709 = vadd.f32 %v7627, %v7693
    %v7710 = vld [vmem:[%s454 + $0x4] sm:$0xff]
    %v7711 = vld [vmem:[%s454 + $0x14] sm:$0xff]
    %v7712 = vld [vmem:[%s454 + $0x24] sm:$0xff]
    %v7713 = vld [vmem:[%s454 + $0x34] sm:$0xff]
    %v7714 = vld [vmem:[%s454 + $0x44] sm:$0xff]
    %v7715 = vld [vmem:[%s454 + $0x54] sm:$0xff]
    %v7716 = vld [vmem:[%s454 + $0x64] sm:$0xff]
    %v7717 = vld [vmem:[%s454 + $0x74] sm:$0xff]
    %v7718 = vld [vmem:[%s454 + $0xc4] sm:$0xff]
    %v7719 = vld [vmem:[%s454 + $0xd4] sm:$0xff]
    %v7720 = vld [vmem:[%s454 + $0xe4] sm:$0xff]
    %v7721 = vld [vmem:[%s454 + $0xf4] sm:$0xff]
    %v7722 = vld [vmem:[%s454 + $0x104] sm:$0xff]
    %v7723 = vld [vmem:[%s454 + $0x114] sm:$0xff]
    %v7724 = vld [vmem:[%s454 + $0x124] sm:$0xff]
    %v7725 = vld [vmem:[%s454 + $0x134] sm:$0xff]
    %v7726 = vld [vmem:[%s4 + $0x5] sm:$0x1]
    %v7727 = vperm.slane %v7726, 0
    %v7728 = vmul.f32 %v7710, %v7727
    %v7729 = vmul.f32 %v7711, %v7727
    %v7730 = vmul.f32 %v7712, %v7727
    %v7731 = vmul.f32 %v7713, %v7727
    %v7732 = vmul.f32 %v7714, %v7727
    %v7733 = vmul.f32 %v7715, %v7727
    %v7734 = vmul.f32 %v7716, %v7727
    %v7735 = vmul.f32 %v7717, %v7727
    %v7736 = vmul.f32 %v7718, %v7727
    %v7737 = vmul.f32 %v7719, %v7727
    %v7738 = vmul.f32 %v7720, %v7727
    %v7739 = vmul.f32 %v7721, %v7727
    %v7740 = vmul.f32 %v7722, %v7727
    %v7741 = vmul.f32 %v7723, %v7727
    %v7742 = vmul.f32 %v7724, %v7727
    %v7743 = vmul.f32 %v7725, %v7727
    %7744 = vadd.xlane.f32.xlu0 %v7728
    %v7745 = vpop.xlane.xlu0 %7744
    %7746 = vadd.xlane.f32.xlu0 %v7729
    %v7747 = vpop.xlane.xlu0 %7746
    %7748 = vadd.xlane.f32.xlu0 %v7730
    %v7749 = vpop.xlane.xlu0 %7748
    %7750 = vadd.xlane.f32.xlu0 %v7731
    %v7751 = vpop.xlane.xlu0 %7750
    %7752 = vadd.xlane.f32.xlu0 %v7732
    %v7753 = vpop.xlane.xlu0 %7752
    %7754 = vadd.xlane.f32.xlu0 %v7733
    %v7755 = vpop.xlane.xlu0 %7754
    %7756 = vadd.xlane.f32.xlu0 %v7734
    %v7757 = vpop.xlane.xlu0 %7756
    %7758 = vadd.xlane.f32.xlu0 %v7735
    %v7759 = vpop.xlane.xlu0 %7758
    %7760 = vadd.xlane.f32.xlu0 %v7736
    %v7761 = vpop.xlane.xlu0 %7760
    %7762 = vadd.xlane.f32.xlu0 %v7737
    %v7763 = vpop.xlane.xlu0 %7762
    %7764 = vadd.xlane.f32.xlu0 %v7738
    %v7765 = vpop.xlane.xlu0 %7764
    %7766 = vadd.xlane.f32.xlu0 %v7739
    %v7767 = vpop.xlane.xlu0 %7766
    %7768 = vadd.xlane.f32.xlu0 %v7740
    %v7769 = vpop.xlane.xlu0 %7768
    %7770 = vadd.xlane.f32.xlu0 %v7741
    %v7771 = vpop.xlane.xlu0 %7770
    %7772 = vadd.xlane.f32.xlu0 %v7742
    %v7773 = vpop.xlane.xlu0 %7772
    %7774 = vadd.xlane.f32.xlu0 %v7743
    %v7775 = vpop.xlane.xlu0 %7774
    %v7776 = vadd.f32 %v7694, %v7745
    %v7777 = vadd.f32 %v7695, %v7747
    %v7778 = vadd.f32 %v7696, %v7749
    %v7779 = vadd.f32 %v7697, %v7751
    %v7780 = vadd.f32 %v7698, %v7753
    %v7781 = vadd.f32 %v7699, %v7755
    %v7782 = vadd.f32 %v7700, %v7757
    %v7783 = vadd.f32 %v7701, %v7759
    %v7784 = vadd.f32 %v7702, %v7761
    %v7785 = vadd.f32 %v7703, %v7763
    %v7786 = vadd.f32 %v7704, %v7765
    %v7787 = vadd.f32 %v7705, %v7767
    %v7788 = vadd.f32 %v7706, %v7769
    %v7789 = vadd.f32 %v7707, %v7771
    %v7790 = vadd.f32 %v7708, %v7773
    %v7791 = vadd.f32 %v7709, %v7775
    %v7792 = vld [vmem:[%s4365] sm:$0xff]
    %v7793 = vld [vmem:[%s4365 + $0x10] sm:$0xff]
    %v7794 = vld [vmem:[%s4365 + $0x20] sm:$0xff]
    %v7795 = vld [vmem:[%s4365 + $0x30] sm:$0xff]
    %v7796 = vld [vmem:[%s4365 + $0x40] sm:$0xff]
    %v7797 = vld [vmem:[%s4365 + $0x50] sm:$0xff]
    %v7798 = vld [vmem:[%s4365 + $0x60] sm:$0xff]
    %v7799 = vld [vmem:[%s4365 + $0x70] sm:$0xff]
    %v7800 = vld [vmem:[%s4365 + $0xc0] sm:$0xff]
    %v7801 = vld [vmem:[%s4365 + $0xd0] sm:$0xff]
    %v7802 = vld [vmem:[%s4365 + $0xe0] sm:$0xff]
    %v7803 = vld [vmem:[%s4365 + $0xf0] sm:$0xff]
    %v7804 = vld [vmem:[%s4365 + $0x100] sm:$0xff]
    %v7805 = vld [vmem:[%s4365 + $0x110] sm:$0xff]
    %v7806 = vld [vmem:[%s4365 + $0x120] sm:$0xff]
    %v7807 = vld [vmem:[%s4365 + $0x130] sm:$0xff]
    %v7808 = vld [vmem:[%s4 + $0x6] sm:$0x1]
    %v7809 = vperm.slane %v7808, 0
    %v7810 = vmul.f32 %v7792, %v7809
    %v7811 = vmul.f32 %v7793, %v7809
    %v7812 = vmul.f32 %v7794, %v7809
    %v7813 = vmul.f32 %v7795, %v7809
    %v7814 = vmul.f32 %v7796, %v7809
    %v7815 = vmul.f32 %v7797, %v7809
    %v7816 = vmul.f32 %v7798, %v7809
    %v7817 = vmul.f32 %v7799, %v7809
    %v7818 = vmul.f32 %v7800, %v7809
    %v7819 = vmul.f32 %v7801, %v7809
    %v7820 = vmul.f32 %v7802, %v7809
    %v7821 = vmul.f32 %v7803, %v7809
    %v7822 = vmul.f32 %v7804, %v7809
    %v7823 = vmul.f32 %v7805, %v7809
    %v7824 = vmul.f32 %v7806, %v7809
    %v7825 = vmul.f32 %v7807, %v7809
    %7826 = vadd.xlane.f32.xlu0 %v7810
    %v7827 = vpop.xlane.xlu0 %7826
    %7828 = vadd.xlane.f32.xlu0 %v7811
    %v7829 = vpop.xlane.xlu0 %7828
    %7830 = vadd.xlane.f32.xlu0 %v7812
    %v7831 = vpop.xlane.xlu0 %7830
    %7832 = vadd.xlane.f32.xlu0 %v7813
    %v7833 = vpop.xlane.xlu0 %7832
    %7834 = vadd.xlane.f32.xlu0 %v7814
    %v7835 = vpop.xlane.xlu0 %7834
    %7836 = vadd.xlane.f32.xlu0 %v7815
    %v7837 = vpop.xlane.xlu0 %7836
    %7838 = vadd.xlane.f32.xlu0 %v7816
    %v7839 = vpop.xlane.xlu0 %7838
    %7840 = vadd.xlane.f32.xlu0 %v7817
    %v7841 = vpop.xlane.xlu0 %7840
    %7842 = vadd.xlane.f32.xlu0 %v7818
    %v7843 = vpop.xlane.xlu0 %7842
    %7844 = vadd.xlane.f32.xlu0 %v7819
    %v7845 = vpop.xlane.xlu0 %7844
    %7846 = vadd.xlane.f32.xlu0 %v7820
    %v7847 = vpop.xlane.xlu0 %7846
    %7848 = vadd.xlane.f32.xlu0 %v7821
    %v7849 = vpop.xlane.xlu0 %7848
    %7850 = vadd.xlane.f32.xlu0 %v7822
    %v7851 = vpop.xlane.xlu0 %7850
    %7852 = vadd.xlane.f32.xlu0 %v7823
    %v7853 = vpop.xlane.xlu0 %7852
    %7854 = vadd.xlane.f32.xlu0 %v7824
    %v7855 = vpop.xlane.xlu0 %7854
    %7856 = vadd.xlane.f32.xlu0 %v7825
    %v7857 = vpop.xlane.xlu0 %7856
    %v7858 = vadd.f32 %v7776, %v7827
    %v7859 = vadd.f32 %v7777, %v7829
    %v7860 = vadd.f32 %v7778, %v7831
    %v7861 = vadd.f32 %v7779, %v7833
    %v7862 = vadd.f32 %v7780, %v7835
    %v7863 = vadd.f32 %v7781, %v7837
    %v7864 = vadd.f32 %v7782, %v7839
    %v7865 = vadd.f32 %v7783, %v7841
    %v7866 = vadd.f32 %v7784, %v7843
    %v7867 = vadd.f32 %v7785, %v7845
    %v7868 = vadd.f32 %v7786, %v7847
    %v7869 = vadd.f32 %v7787, %v7849
    %v7870 = vadd.f32 %v7788, %v7851
    %v7871 = vadd.f32 %v7789, %v7853
    %v7872 = vadd.f32 %v7790, %v7855
    %v7873 = vadd.f32 %v7791, %v7857
    %v7874 = vld [vmem:[%s4365 + $0x2] sm:$0xff]
    %v7875 = vld [vmem:[%s4365 + $0x12] sm:$0xff]
    %v7876 = vld [vmem:[%s4365 + $0x22] sm:$0xff]
    %v7877 = vld [vmem:[%s4365 + $0x32] sm:$0xff]
    %v7878 = vld [vmem:[%s4365 + $0x42] sm:$0xff]
    %v7879 = vld [vmem:[%s4365 + $0x52] sm:$0xff]
    %v7880 = vld [vmem:[%s4365 + $0x62] sm:$0xff]
    %v7881 = vld [vmem:[%s4365 + $0x72] sm:$0xff]
    %v7882 = vld [vmem:[%s4365 + $0xc2] sm:$0xff]
    %v7883 = vld [vmem:[%s4365 + $0xd2] sm:$0xff]
    %v7884 = vld [vmem:[%s4365 + $0xe2] sm:$0xff]
    %v7885 = vld [vmem:[%s4365 + $0xf2] sm:$0xff]
    %v7886 = vld [vmem:[%s4365 + $0x102] sm:$0xff]
    %v7887 = vld [vmem:[%s4365 + $0x112] sm:$0xff]
    %v7888 = vld [vmem:[%s4365 + $0x122] sm:$0xff]
    %v7889 = vld [vmem:[%s4365 + $0x132] sm:$0xff]
    %v7890 = vld [vmem:[%s4 + $0x7] sm:$0x1]
    %v7891 = vperm.slane %v7890, 0
    %v7892 = vmul.f32 %v7874, %v7891
    %v7893 = vmul.f32 %v7875, %v7891
    %v7894 = vmul.f32 %v7876, %v7891
    %v7895 = vmul.f32 %v7877, %v7891
    %v7896 = vmul.f32 %v7878, %v7891
    %v7897 = vmul.f32 %v7879, %v7891
    %v7898 = vmul.f32 %v7880, %v7891
    %v7899 = vmul.f32 %v7881, %v7891
    %v7900 = vmul.f32 %v7882, %v7891
    %v7901 = vmul.f32 %v7883, %v7891
    %v7902 = vmul.f32 %v7884, %v7891
    %v7903 = vmul.f32 %v7885, %v7891
    %v7904 = vmul.f32 %v7886, %v7891
    %v7905 = vmul.f32 %v7887, %v7891
    %v7906 = vmul.f32 %v7888, %v7891
    %v7907 = vmul.f32 %v7889, %v7891
    %7908 = vadd.xlane.f32.xlu0 %v7892
    %v7909 = vpop.xlane.xlu0 %7908
    %7910 = vadd.xlane.f32.xlu0 %v7893
    %v7911 = vpop.xlane.xlu0 %7910
    %7912 = vadd.xlane.f32.xlu0 %v7894
    %v7913 = vpop.xlane.xlu0 %7912
    %7914 = vadd.xlane.f32.xlu0 %v7895
    %v7915 = vpop.xlane.xlu0 %7914
    %7916 = vadd.xlane.f32.xlu0 %v7896
    %v7917 = vpop.xlane.xlu0 %7916
    %7918 = vadd.xlane.f32.xlu0 %v7897
    %v7919 = vpop.xlane.xlu0 %7918
    %7920 = vadd.xlane.f32.xlu0 %v7898
    %v7921 = vpop.xlane.xlu0 %7920
    %7922 = vadd.xlane.f32.xlu0 %v7899
    %v7923 = vpop.xlane.xlu0 %7922
    %7924 = vadd.xlane.f32.xlu0 %v7900
    %v7925 = vpop.xlane.xlu0 %7924
    %7926 = vadd.xlane.f32.xlu0 %v7901
    %v7927 = vpop.xlane.xlu0 %7926
    %7928 = vadd.xlane.f32.xlu0 %v7902
    %v7929 = vpop.xlane.xlu0 %7928
    %7930 = vadd.xlane.f32.xlu0 %v7903
    %v7931 = vpop.xlane.xlu0 %7930
    %7932 = vadd.xlane.f32.xlu0 %v7904
    %v7933 = vpop.xlane.xlu0 %7932
    %7934 = vadd.xlane.f32.xlu0 %v7905
    %v7935 = vpop.xlane.xlu0 %7934
    %7936 = vadd.xlane.f32.xlu0 %v7906
    %v7937 = vpop.xlane.xlu0 %7936
    %7938 = vadd.xlane.f32.xlu0 %v7907
    %v7939 = vpop.xlane.xlu0 %7938
    %v7940 = vadd.f32 %v7858, %v7909
    %v7941 = vadd.f32 %v7859, %v7911
    %v7942 = vadd.f32 %v7860, %v7913
    %v7943 = vadd.f32 %v7861, %v7915
    %v7944 = vadd.f32 %v7862, %v7917
    %v7945 = vadd.f32 %v7863, %v7919
    %v7946 = vadd.f32 %v7864, %v7921
    %v7947 = vadd.f32 %v7865, %v7923
    %v7948 = vadd.f32 %v7866, %v7925
    %v7949 = vadd.f32 %v7867, %v7927
    %v7950 = vadd.f32 %v7868, %v7929
    %v7951 = vadd.f32 %v7869, %v7931
    %v7952 = vadd.f32 %v7870, %v7933
    %v7953 = vadd.f32 %v7871, %v7935
    %v7954 = vadd.f32 %v7872, %v7937
    %v7955 = vadd.f32 %v7873, %v7939
    %v7956 = vld [vmem:[%s4365 + $0x4] sm:$0xff]
    %v7957 = vld [vmem:[%s4365 + $0x14] sm:$0xff]
    %v7958 = vld [vmem:[%s4365 + $0x24] sm:$0xff]
    %v7959 = vld [vmem:[%s4365 + $0x34] sm:$0xff]
    %v7960 = vld [vmem:[%s4365 + $0x44] sm:$0xff]
    %v7961 = vld [vmem:[%s4365 + $0x54] sm:$0xff]
    %v7962 = vld [vmem:[%s4365 + $0x64] sm:$0xff]
    %v7963 = vld [vmem:[%s4365 + $0x74] sm:$0xff]
    %v7964 = vld [vmem:[%s4365 + $0xc4] sm:$0xff]
    %v7965 = vld [vmem:[%s4365 + $0xd4] sm:$0xff]
    %v7966 = vld [vmem:[%s4365 + $0xe4] sm:$0xff]
    %v7967 = vld [vmem:[%s4365 + $0xf4] sm:$0xff]
    %v7968 = vld [vmem:[%s4365 + $0x104] sm:$0xff]
    %v7969 = vld [vmem:[%s4365 + $0x114] sm:$0xff]
    %v7970 = vld [vmem:[%s4365 + $0x124] sm:$0xff]
    %v7971 = vld [vmem:[%s4365 + $0x134] sm:$0xff]
    %v7972 = vld [vmem:[%s4 + $0x8] sm:$0x1]
    %v7973 = vperm.slane %v7972, 0
    %v7974 = vmul.f32 %v7956, %v7973
    %v7975 = vmul.f32 %v7957, %v7973
    %v7976 = vmul.f32 %v7958, %v7973
    %v7977 = vmul.f32 %v7959, %v7973
    %v7978 = vmul.f32 %v7960, %v7973
    %v7979 = vmul.f32 %v7961, %v7973
    %v7980 = vmul.f32 %v7962, %v7973
    %v7981 = vmul.f32 %v7963, %v7973
    %v7982 = vmul.f32 %v7964, %v7973
    %v7983 = vmul.f32 %v7965, %v7973
    %v7984 = vmul.f32 %v7966, %v7973
    %v7985 = vmul.f32 %v7967, %v7973
    %v7986 = vmul.f32 %v7968, %v7973
    %v7987 = vmul.f32 %v7969, %v7973
    %v7988 = vmul.f32 %v7970, %v7973
    %v7989 = vmul.f32 %v7971, %v7973
    %7990 = vadd.xlane.f32.xlu0 %v7974
    %v7991 = vpop.xlane.xlu0 %7990
    %7992 = vadd.xlane.f32.xlu0 %v7975
    %v7993 = vpop.xlane.xlu0 %7992
    %7994 = vadd.xlane.f32.xlu0 %v7976
    %v7995 = vpop.xlane.xlu0 %7994
    %7996 = vadd.xlane.f32.xlu0 %v7977
    %v7997 = vpop.xlane.xlu0 %7996
    %7998 = vadd.xlane.f32.xlu0 %v7978
    %v7999 = vpop.xlane.xlu0 %7998
    %8000 = vadd.xlane.f32.xlu0 %v7979
    %v8001 = vpop.xlane.xlu0 %8000
    %8002 = vadd.xlane.f32.xlu0 %v7980
    %v8003 = vpop.xlane.xlu0 %8002
    %8004 = vadd.xlane.f32.xlu0 %v7981
    %v8005 = vpop.xlane.xlu0 %8004
    %8006 = vadd.xlane.f32.xlu0 %v7982
    %v8007 = vpop.xlane.xlu0 %8006
    %8008 = vadd.xlane.f32.xlu0 %v7983
    %v8009 = vpop.xlane.xlu0 %8008
    %8010 = vadd.xlane.f32.xlu0 %v7984
    %v8011 = vpop.xlane.xlu0 %8010
    %8012 = vadd.xlane.f32.xlu0 %v7985
    %v8013 = vpop.xlane.xlu0 %8012
    %8014 = vadd.xlane.f32.xlu0 %v7986
    %v8015 = vpop.xlane.xlu0 %8014
    %8016 = vadd.xlane.f32.xlu0 %v7987
    %v8017 = vpop.xlane.xlu0 %8016
    %8018 = vadd.xlane.f32.xlu0 %v7988
    %v8019 = vpop.xlane.xlu0 %8018
    %8020 = vadd.xlane.f32.xlu0 %v7989
    %v8021 = vpop.xlane.xlu0 %8020
    %v8022 = vadd.f32 %v7940, %v7991
    %v8023 = vadd.f32 %v7941, %v7993
    %v8024 = vadd.f32 %v7942, %v7995
    %v8025 = vadd.f32 %v7943, %v7997
    %v8026 = vadd.f32 %v7944, %v7999
    %v8027 = vadd.f32 %v7945, %v8001
    %v8028 = vadd.f32 %v7946, %v8003
    %v8029 = vadd.f32 %v7947, %v8005
    %v8030 = vadd.f32 %v7948, %v8007
    %v8031 = vadd.f32 %v7949, %v8009
    %v8032 = vadd.f32 %v7950, %v8011
    %v8033 = vadd.f32 %v7951, %v8013
    %v8034 = vadd.f32 %v7952, %v8015
    %v8035 = vadd.f32 %v7953, %v8017
    %v8036 = vadd.f32 %v7954, %v8019
    %v8037 = vadd.f32 %v7955, %v8021
    %vm8038 = vcmp.ge.f32.partialorder %v8022, 0.0
    %vm8039 = vcmp.ge.f32.partialorder %v8023, 0.0
    %vm8040 = vcmp.ge.f32.partialorder %v8024, 0.0
    %vm8041 = vcmp.ge.f32.partialorder %v8025, 0.0
    %vm8042 = vcmp.ge.f32.partialorder %v8026, 0.0
    %vm8043 = vcmp.ge.f32.partialorder %v8027, 0.0
    %vm8044 = vcmp.ge.f32.partialorder %v8028, 0.0
    %vm8045 = vcmp.ge.f32.partialorder %v8029, 0.0
    %vm8046 = vcmp.ge.f32.partialorder %v8030, 0.0
    %vm8047 = vcmp.ge.f32.partialorder %v8031, 0.0
    %vm8048 = vcmp.ge.f32.partialorder %v8032, 0.0
    %vm8049 = vcmp.ge.f32.partialorder %v8033, 0.0
    %vm8050 = vcmp.ge.f32.partialorder %v8034, 0.0
    %vm8051 = vcmp.ge.f32.partialorder %v8035, 0.0
    %vm8052 = vcmp.ge.f32.partialorder %v8036, 0.0
    %vm8053 = vcmp.ge.f32.partialorder %v8037, 0.0
    %v8054 = vmul.f32 %v8022, 0.01
    %v8055 = vmul.f32 %v8023, 0.01
    %v8056 = vmul.f32 %v8024, 0.01
    %v8057 = vmul.f32 %v8025, 0.01
    %v8058 = vmul.f32 %v8026, 0.01
    %v8059 = vmul.f32 %v8027, 0.01
    %v8060 = vmul.f32 %v8028, 0.01
    %v8061 = vmul.f32 %v8029, 0.01
    %v8062 = vmul.f32 %v8030, 0.01
    %v8063 = vmul.f32 %v8031, 0.01
    %v8064 = vmul.f32 %v8032, 0.01
    %v8065 = vmul.f32 %v8033, 0.01
    %v8066 = vmul.f32 %v8034, 0.01
    %v8067 = vmul.f32 %v8035, 0.01
    %v8068 = vmul.f32 %v8036, 0.01
    %v8069 = vmul.f32 %v8037, 0.01
    %v8070 = vsel %vm8038, %v8022, %v8054
    %v8071 = vsel %vm8039, %v8023, %v8055
    %v8072 = vsel %vm8040, %v8024, %v8056
    %v8073 = vsel %vm8041, %v8025, %v8057
    %v8074 = vsel %vm8042, %v8026, %v8058
    %v8075 = vsel %vm8043, %v8027, %v8059
    %v8076 = vsel %vm8044, %v8028, %v8060
    %v8077 = vsel %vm8045, %v8029, %v8061
    %v8078 = vsel %vm8046, %v8030, %v8062
    %v8079 = vsel %vm8047, %v8031, %v8063
    %v8080 = vsel %vm8048, %v8032, %v8064
    %v8081 = vsel %vm8049, %v8033, %v8065
    %v8082 = vsel %vm8050, %v8034, %v8066
    %v8083 = vsel %vm8051, %v8035, %v8067
    %v8084 = vsel %vm8052, %v8036, %v8068
    %v8085 = vsel %vm8053, %v8037, %v8069
    %v8086 = vld [vmem:[%s6] sm:$0xf]
    %v8087 = vld [vmem:[%s6 + $0x4] sm:$0xf]
    %v8088 = vld [vmem:[%s6 + $0x8] sm:$0xf]
    %v8089 = vld [vmem:[%s6 + $0xc] sm:$0xf]
    %v8090 = vpack.c.bf16 %v8070, %v8070
    %v8091 = vpack.c.bf16 %v8071, %v8071
    %v8092 = vpack.c.bf16 %v8072, %v8072
    %v8093 = vpack.c.bf16 %v8073, %v8073
    %v8094 = vpack.c.bf16 %v8074, %v8074
    %v8095 = vpack.c.bf16 %v8075, %v8075
    %v8096 = vpack.c.bf16 %v8076, %v8076
    %v8097 = vpack.c.bf16 %v8077, %v8077
    %v8102 = vunpack.c.l.b16 %v8086
    %v8103 = vunpack.c.l.b16 %v8087
    %v8104 = vunpack.c.l.b16 %v8088
    %v8105 = vunpack.c.l.b16 %v8089
    %v8106 = vpack.c.b16 %v8103, %v8102
    %v8107 = vpack.c.b16 %v8105, %v8104
    %v8116 = vunpack.c.l.b16 %v8090
    %v8117 = vunpack.c.l.b16 %v8091
    %v8118 = vunpack.c.l.b16 %v8092
    %v8119 = vunpack.c.l.b16 %v8093
    %v8120 = vunpack.c.l.b16 %v8094
    %v8121 = vunpack.c.l.b16 %v8095
    %v8122 = vunpack.c.l.b16 %v8096
    %v8123 = vunpack.c.l.b16 %v8097
    %v8124 = vlaneseq
    %v8125 = vand.u32 %v8124, 127
    %v8126 = vperm.slane %v8116, %v8125
    %v8127 = vperm.slane %v8117, %v8125
    %v8128 = vperm.slane %v8118, %v8125
    %v8129 = vperm.slane %v8119, %v8125
    %v8130 = vperm.slane %v8120, %v8125
    %v8131 = vperm.slane %v8121, %v8125
    %v8132 = vperm.slane %v8122, %v8125
    %v8133 = vperm.slane %v8123, %v8125
    %vm8134 = vcmask 1041409
    %v8135 = vsel %vm8134, %v8127, %v8126
    %vm8136 = vcmask 1042434
    %v8137 = vsel %vm8136, %v8128, %v8135
    %vm8138 = vcmask 1043459
    %v8139 = vsel %vm8138, %v8129, %v8137
    %vm8140 = vcmask 1044484
    %v8141 = vsel %vm8140, %v8130, %v8139
    %vm8142 = vcmask 1045509
    %v8143 = vsel %vm8142, %v8131, %v8141
    %vm8144 = vcmask 1046534
    %v8145 = vsel %vm8144, %v8132, %v8143
    %vm8146 = vcmask 1047559
    %v8147 = vsel %vm8146, %v8133, %v8145
    %v8148 = vpack.c.b16 %v8147, %v8147
    %vm8149 = vcmask 64512
    %v8151 = vsel %vm8149, %v8106, 0
    %v8154 = vsel %vm8149, %v8107, 0
    %v8157 = vsel %vm268, %v8148, 0
    %8159 = vmatpush.bf16.msra.mxu0 0
    %8160 = vmatpush.bf16.msra.mxu0 0
    %8161 = vmatpush.bf16.msra.mxu0 0
    %8162 = vmatpush.bf16.msra.mxu0 0
    %8163 = vmatpush.bf16.msra.mxu0 0
    %8164 = vmatpush.bf16.msra.mxu0 0
    %8165 = vmatpush.bf16.msra.mxu0 0
    %8166 = vmatpush.bf16.msra.mxu0 %v8157
    %8167 = vmatmul.bf16.gmra.mxu0 %v8151
    %v8168 = vpop.f32.mrf.mxu0
    %v8169 = vadd.f32 0.0, %v8168
    %v8170 = vpop.f32.mrf.mxu0
    %v8171 = vadd.f32 0.0, %v8170
    %8172 = vmatmul.bf16.gmra.mxu0 %v8154
    %v8173 = vpop.f32.mrf.mxu0
    %v8174 = vadd.f32 0.0, %v8173
    %v8175 = vpop.f32.mrf.mxu0
    %v8176 = vadd.f32 0.0, %v8175
    %8177 = vdwg.mxu0
    %v8178 = vpack.c.bf16 %v8171, %v8169
    %v8179 = vpack.c.bf16 %v8176, %v8174
    %v8180 = vld [vmem:[%s7] sm:$0xf]
    %v8182 = vsel %vm8149, %v8178, 0
    %v8185 = vsel %vm8149, %v8179, 0
    %v8188 = vsel %vm268, %v8180, 0
    %8190 = vmatpush.bf16.msra.mxu0 0
    %8191 = vmatpush.bf16.msra.mxu0 0
    %8192 = vmatpush.bf16.msra.mxu0 0
    %8193 = vmatpush.bf16.msra.mxu0 0
    %8194 = vmatpush.bf16.msra.mxu0 0
    %8195 = vmatpush.bf16.msra.mxu0 0
    %8196 = vmatpush.bf16.msra.mxu0 0
    %8197 = vmatpush.bf16.msra.mxu0 %v8188
    %8198 = vmatmul.bf16.gmra.mxu0 %v8182
    %v8199 = vpop.f32.mrf.mxu0
    %v8200 = vadd.f32 0.0, %v8199
    %v8201 = vpop.f32.mrf.mxu0
    %v8202 = vadd.f32 0.0, %v8201
    %8203 = vmatmul.bf16.gmra.mxu0 %v8185
    %v8204 = vpop.f32.mrf.mxu0
    %v8205 = vadd.f32 0.0, %v8204
    %v8206 = vpop.f32.mrf.mxu0
    %v8207 = vadd.f32 0.0, %v8206
    %8208 = vdwg.mxu0
    %vm8209 = vcmask 261120
    %v8210 = vsel %vm8209, %v8200, -inf
    %8211 = vmax.xlane.f32.xlu0 %v8210
    %v8212 = vpop.xlane.xlu0 %8211
    %v8213 = vsel %vm8209, %v8202, -inf
    %8214 = vmax.xlane.f32.xlu0 %v8213
    %v8215 = vpop.xlane.xlu0 %8214
    %v8216 = vsel %vm8209, %v8205, -inf
    %8217 = vmax.xlane.f32.xlu0 %v8216
    %v8218 = vpop.xlane.xlu0 %8217
    %v8219 = vsel %vm8209, %v8207, -inf
    %8220 = vmax.xlane.f32.xlu0 %v8219
    %v8221 = vpop.xlane.xlu0 %8220
    %v8222 = vmax.f32 %v8212, %v8215
    %v8223 = vmax.f32 %v8218, %v8221
    %v8224 = vmax.f32 %v8222, %v8223
    %v8225 = vrot.slane %v8224, 4
    %v8226 = vmax.f32 %v8224, %v8225
    %v8227 = vrot.slane %v8226, 2
    %v8228 = vmax.f32 %v8226, %v8227
    %v8229 = vrot.slane %v8228, 1
    %v8230 = vmax.f32 %v8228, %v8229
    %v8231 = vsub.f32 %v8200, %v8230
    %v8232 = vsub.f32 %v8202, %v8230
    %v8233 = vsub.f32 %v8205, %v8230
    %v8234 = vsub.f32 %v8207, %v8230
    %v8235 = vmul.f32 %v8231, 1.442695
    %v8236 = vpow.pop %v8235
    %v8237 = vmul.f32 %v8232, 1.442695
    %v8238 = vpow.pop %v8237
    %v8239 = vmul.f32 %v8233, 1.442695
    %v8240 = vpow.pop %v8239
    %v8241 = vmul.f32 %v8234, 1.442695
    %v8242 = vpow.pop %v8241
    %v8243 = vsel %vm8209, %v8236, 0.0
    %8244 = vadd.xlane.f32.xlu0 %v8243
    %v8245 = vpop.xlane.xlu0 %8244
    %v8246 = vsel %vm8209, %v8238, 0.0
    %8247 = vadd.xlane.f32.xlu0 %v8246
    %v8248 = vpop.xlane.xlu0 %8247
    %v8249 = vsel %vm8209, %v8240, 0.0
    %8250 = vadd.xlane.f32.xlu0 %v8249
    %v8251 = vpop.xlane.xlu0 %8250
    %v8252 = vsel %vm8209, %v8242, 0.0
    %8253 = vadd.xlane.f32.xlu0 %v8252
    %v8254 = vpop.xlane.xlu0 %8253
    %v8255 = vadd.f32 %v8245, %v8248
    %v8256 = vadd.f32 %v8255, %v8251
    %v8257 = vadd.f32 %v8256, %v8254
    %v8258 = vrot.slane %v8257, 4
    %v8259 = vadd.f32 %v8257, %v8258
    %v8260 = vrot.slane %v8259, 2
    %v8261 = vadd.f32 %v8259, %v8260
    %v8262 = vrot.slane %v8261, 1
    %v8263 = vadd.f32 %v8261, %v8262
    %v8264 = vrcp.pop %v8263
    %v8265 = vmul.f32 %v8263, %v8264
    %v8266 = vsub.f32 2.0, %v8265
    %v8267 = vmul.f32 %v8264, %v8266
    %v8268 = vmul.f32 %v8236, %v8267
    %v8269 = vmul.f32 %v8238, %v8267
    %v8270 = vmul.f32 %v8240, %v8267
    %v8271 = vmul.f32 %v8242, %v8267
    %8272 = vst.msk [vmem:[#allocation3] sm:$0xff] %vm8209, %v8268
    %8273 = vst.msk [vmem:[#allocation3 + $0x8] sm:$0xff] %vm8209, %v8269
    %8274 = vst.msk [vmem:[#allocation3 + $0x10] sm:$0xff] %vm8209, %v8270
    %8275 = vst.msk [vmem:[#allocation3 + $0x18] sm:$0xff] %vm8209, %v8271
    %v8276 = vld [vmem:[%s6] sm:$0xf]
    %v8277 = vld [vmem:[%s6 + $0x4] sm:$0xf]
    %v8278 = vld [vmem:[%s6 + $0x8] sm:$0xf]
    %v8279 = vld [vmem:[%s6 + $0xc] sm:$0xf]
    %v8280 = vpack.c.bf16 %v8078, %v8078
    %v8281 = vpack.c.bf16 %v8079, %v8079
    %v8282 = vpack.c.bf16 %v8080, %v8080
    %v8283 = vpack.c.bf16 %v8081, %v8081
    %v8284 = vpack.c.bf16 %v8082, %v8082
    %v8285 = vpack.c.bf16 %v8083, %v8083
    %v8286 = vpack.c.bf16 %v8084, %v8084
    %v8287 = vpack.c.bf16 %v8085, %v8085
    %v8292 = vunpack.c.l.b16 %v8276
    %v8293 = vunpack.c.l.b16 %v8277
    %v8294 = vunpack.c.l.b16 %v8278
    %v8295 = vunpack.c.l.b16 %v8279
    %v8296 = vpack.c.b16 %v8293, %v8292
    %v8297 = vpack.c.b16 %v8295, %v8294
    %v8306 = vunpack.c.l.b16 %v8280
    %v8307 = vunpack.c.l.b16 %v8281
    %v8308 = vunpack.c.l.b16 %v8282
    %v8309 = vunpack.c.l.b16 %v8283
    %v8310 = vunpack.c.l.b16 %v8284
    %v8311 = vunpack.c.l.b16 %v8285
    %v8312 = vunpack.c.l.b16 %v8286
    %v8313 = vunpack.c.l.b16 %v8287
    %v8314 = vperm.slane %v8306, %v8125
    %v8315 = vperm.slane %v8307, %v8125
    %v8316 = vperm.slane %v8308, %v8125
    %v8317 = vperm.slane %v8309, %v8125
    %v8318 = vperm.slane %v8310, %v8125
    %v8319 = vperm.slane %v8311, %v8125
    %v8320 = vperm.slane %v8312, %v8125
    %v8321 = vperm.slane %v8313, %v8125
    %v8322 = vsel %vm8134, %v8315, %v8314
    %v8323 = vsel %vm8136, %v8316, %v8322
    %v8324 = vsel %vm8138, %v8317, %v8323
    %v8325 = vsel %vm8140, %v8318, %v8324
    %v8326 = vsel %vm8142, %v8319, %v8325
    %v8327 = vsel %vm8144, %v8320, %v8326
    %v8328 = vsel %vm8146, %v8321, %v8327
    %v8329 = vpack.c.b16 %v8328, %v8328
    %v8331 = vsel %vm8149, %v8296, 0
    %v8334 = vsel %vm8149, %v8297, 0
    %v8337 = vsel %vm268, %v8329, 0
    %8339 = vmatpush.bf16.msra.mxu0 0
    %8340 = vmatpush.bf16.msra.mxu0 0
    %8341 = vmatpush.bf16.msra.mxu0 0
    %8342 = vmatpush.bf16.msra.mxu0 0
    %8343 = vmatpush.bf16.msra.mxu0 0
    %8344 = vmatpush.bf16.msra.mxu0 0
    %8345 = vmatpush.bf16.msra.mxu0 0
    %8346 = vmatpush.bf16.msra.mxu0 %v8337
    %8347 = vmatmul.bf16.gmra.mxu0 %v8331
    %v8348 = vpop.f32.mrf.mxu0
    %v8349 = vadd.f32 0.0, %v8348
    %v8350 = vpop.f32.mrf.mxu0
    %v8351 = vadd.f32 0.0, %v8350
    %8352 = vmatmul.bf16.gmra.mxu0 %v8334
    %v8353 = vpop.f32.mrf.mxu0
    %v8354 = vadd.f32 0.0, %v8353
    %v8355 = vpop.f32.mrf.mxu0
    %v8356 = vadd.f32 0.0, %v8355
    %8357 = vdwg.mxu0
    %v8358 = vpack.c.bf16 %v8351, %v8349
    %v8359 = vpack.c.bf16 %v8356, %v8354
    %v8360 = vld [vmem:[%s7] sm:$0xf]
    %v8362 = vsel %vm8149, %v8358, 0
    %v8365 = vsel %vm8149, %v8359, 0
    %v8368 = vsel %vm268, %v8360, 0
    %8370 = vmatpush.bf16.msra.mxu0 0
    %8371 = vmatpush.bf16.msra.mxu0 0
    %8372 = vmatpush.bf16.msra.mxu0 0
    %8373 = vmatpush.bf16.msra.mxu0 0
    %8374 = vmatpush.bf16.msra.mxu0 0
    %8375 = vmatpush.bf16.msra.mxu0 0
    %8376 = vmatpush.bf16.msra.mxu0 0
    %8377 = vmatpush.bf16.msra.mxu0 %v8368
    %8378 = vmatmul.bf16.gmra.mxu0 %v8362
    %v8379 = vpop.f32.mrf.mxu0
    %v8380 = vadd.f32 0.0, %v8379
    %v8381 = vpop.f32.mrf.mxu0
    %v8382 = vadd.f32 0.0, %v8381
    %8383 = vmatmul.bf16.gmra.mxu0 %v8365
    %v8384 = vpop.f32.mrf.mxu0
    %v8385 = vadd.f32 0.0, %v8384
    %v8386 = vpop.f32.mrf.mxu0
    %v8387 = vadd.f32 0.0, %v8386
    %8388 = vdwg.mxu0
    %v8389 = vsel %vm8209, %v8380, -inf
    %8390 = vmax.xlane.f32.xlu0 %v8389
    %v8391 = vpop.xlane.xlu0 %8390
    %v8392 = vsel %vm8209, %v8382, -inf
    %8393 = vmax.xlane.f32.xlu0 %v8392
    %v8394 = vpop.xlane.xlu0 %8393
    %v8395 = vsel %vm8209, %v8385, -inf
    %8396 = vmax.xlane.f32.xlu0 %v8395
    %v8397 = vpop.xlane.xlu0 %8396
    %v8398 = vsel %vm8209, %v8387, -inf
    %8399 = vmax.xlane.f32.xlu0 %v8398
    %v8400 = vpop.xlane.xlu0 %8399
    %v8401 = vmax.f32 %v8391, %v8394
    %v8402 = vmax.f32 %v8397, %v8400
    %v8403 = vmax.f32 %v8401, %v8402
    %v8404 = vrot.slane %v8403, 4
    %v8405 = vmax.f32 %v8403, %v8404
    %v8406 = vrot.slane %v8405, 2
    %v8407 = vmax.f32 %v8405, %v8406
    %v8408 = vrot.slane %v8407, 1
    %v8409 = vmax.f32 %v8407, %v8408
    %v8410 = vsub.f32 %v8380, %v8409
    %v8411 = vsub.f32 %v8382, %v8409
    %v8412 = vsub.f32 %v8385, %v8409
    %v8413 = vsub.f32 %v8387, %v8409
    %v8414 = vmul.f32 %v8410, 1.442695
    %v8415 = vpow.pop %v8414
    %v8416 = vmul.f32 %v8411, 1.442695
    %v8417 = vpow.pop %v8416
    %v8418 = vmul.f32 %v8412, 1.442695
    %v8419 = vpow.pop %v8418
    %v8420 = vmul.f32 %v8413, 1.442695
    %v8421 = vpow.pop %v8420
    %v8422 = vsel %vm8209, %v8415, 0.0
    %8423 = vadd.xlane.f32.xlu0 %v8422
    %v8424 = vpop.xlane.xlu0 %8423
    %v8425 = vsel %vm8209, %v8417, 0.0
    %8426 = vadd.xlane.f32.xlu0 %v8425
    %v8427 = vpop.xlane.xlu0 %8426
    %v8428 = vsel %vm8209, %v8419, 0.0
    %8429 = vadd.xlane.f32.xlu0 %v8428
    %v8430 = vpop.xlane.xlu0 %8429
    %v8431 = vsel %vm8209, %v8421, 0.0
    %8432 = vadd.xlane.f32.xlu0 %v8431
    %v8433 = vpop.xlane.xlu0 %8432
    %v8434 = vadd.f32 %v8424, %v8427
    %v8435 = vadd.f32 %v8434, %v8430
    %v8436 = vadd.f32 %v8435, %v8433
    %v8437 = vrot.slane %v8436, 4
    %v8438 = vadd.f32 %v8436, %v8437
    %v8439 = vrot.slane %v8438, 2
    %v8440 = vadd.f32 %v8438, %v8439
    %v8441 = vrot.slane %v8440, 1
    %v8442 = vadd.f32 %v8440, %v8441
    %v8443 = vrcp.pop %v8442
    %v8444 = vmul.f32 %v8442, %v8443
    %v8445 = vsub.f32 2.0, %v8444
    %v8446 = vmul.f32 %v8443, %v8445
    %v8447 = vmul.f32 %v8415, %v8446
    %v8448 = vmul.f32 %v8417, %v8446
    %v8449 = vmul.f32 %v8419, %v8446
    %v8450 = vmul.f32 %v8421, %v8446
    %s8451 = scalar_lea.vmem [#allocation3], 32
    %8452 = vst.msk [vmem:[%s8451] sm:$0xff] %vm8209, %v8447
    %8453 = vst.msk [vmem:[%s8451 + $0x8] sm:$0xff] %vm8209, %v8448
    %8454 = vst.msk [vmem:[%s8451 + $0x10] sm:$0xff] %vm8209, %v8449
    %8455 = vst.msk [vmem:[%s8451 + $0x18] sm:$0xff] %vm8209, %v8450
    // Predicated region
    $region34: #{basic_block_forward.1} parent=1 // pred_check
      _
    $region35: #{basic_block_forward.1} parent=1 // pred_check_branch
      %8457 = sbr.rel (0) target = $region37
    $region36: #{basic_block_forward.1} parent=1 // pred_region
      %8459 = vsyncadd [#allocation4], 0
      %s8460 = sshll.u32 [#allocation3], 4
      %s8461 = int_to_ptr.vmem [resolvable:$true] %s8460
      %s8462 = sshll.u32 %s8, 4
      %s8463 = int_to_ptr.hbm [resolvable:$true] %s8462
      %8468 = dma.vmem_to_hbm [thread:$0]  %s8461, 1024, %s8463, [#allocation4], 128, 128, 8
    $region37: #{basic_block_forward.1} parent=1 // pred_fallthru
      _
    // Predicated region
    $region38: #{basic_block_forward.1} parent=1 // pred_check
      _
    $region39: #{basic_block_forward.1} parent=1 // pred_check_branch
      %8470 = sbr.rel (0) target = $region41
    $region40: #{basic_block_forward.1} parent=1 // pred_region
      %8472 = dma.done [#allocation4], 1024
    $region41: #{basic_block_forward.1} parent=1 // pred_fallthru
      _
    %8473 = vsyncpa [#allocation4], 1

</llo_original>
